<compile_context>
chip_gen: v7x
topology: tpu7x:2x2x1
jax: 0.10.0
libtpu: 0.0.40
codegen_flags: <defaults>
</compile_context>

<pallas_src>
import functools
import math

import jax
import jax.numpy as jnp
from jax import lax
from jax.experimental import pallas as pl
from jax.experimental.pallas import tpu as pltpu


# ----------------------------------------------------------------------------
# Helpers.
# ----------------------------------------------------------------------------
def _pick_tile(n, candidates):
    for c in candidates:
        if n % c == 0:
            return c
    return n


def _compiler_params(sem, block_bytes):
    # Per-kernel VMEM budget: ~3x the per-step block bytes (double buffering +
    # compiler scratch), clamped to [32 MiB, 48 MiB] (< v7x 64 MiB/TC ceiling).
    limit = int(min(max(3 * block_bytes + (4 << 20), 32 << 20), 48 << 20))
    return pltpu.CompilerParams(dimension_semantics=sem, vmem_limit_bytes=limit)


def _im2col(x):
    """(B, C, H, W) f32 -> lane-dense (B, 9*C, H*W) bf16 im2col (3x3, pad=1)."""
    # TODO(synk): im2col / zero-pad / stack kept as XLA layout glue per review.
    B, C, H, W = x.shape
    xp = jnp.pad(x.astype(jnp.bfloat16), ((0, 0), (0, 0), (1, 1), (1, 1)))
    taps = [xp[:, :, dy:dy + H, dx:dx + W] for dy in range(3) for dx in range(3)]
    return jnp.stack(taps, axis=1).reshape(B, 9 * C, H * W)


def _wcol(w):
    """(C_out, C_in, 3, 3) -> (C_out, 9*C_in) bf16 matching _im2col ordering."""
    C_out, C_in = w.shape[:2]
    return jnp.transpose(w, (0, 2, 3, 1)).reshape(C_out, 9 * C_in).astype(jnp.bfloat16)


# ----------------------------------------------------------------------------
# Wrapper glue: bilinear resize with align_corners=True (interpolate2d_as).
# TODO(synk): interpolate2d_as bilinear resize kept as XLA glue (not Pallas).
# ----------------------------------------------------------------------------
def _interp_bilinear_align_corners(img, out_h, out_w):
    _, _, H, W = img.shape
    if (H, W) == (out_h, out_w):
        return img

    def axis(n_in, n_out):
        c = jnp.linspace(0.0, n_in - 1.0, n_out)
        i0 = jnp.clip(jnp.floor(c).astype(jnp.int32), 0, max(n_in - 2, 0))
        i1 = jnp.minimum(i0 + 1, n_in - 1)
        w = c - i0.astype(jnp.float32)
        return i0, i1, w

    y0, y1, wy = axis(H, out_h)
    x0, x1, wx = axis(W, out_w)
    top = jnp.take(img, y0, axis=2)
    bot = jnp.take(img, y1, axis=2)
    rows = top * (1.0 - wy)[None, None, :, None] + bot * wy[None, None, :, None]
    left = jnp.take(rows, x0, axis=3)
    right = jnp.take(rows, x1, axis=3)
    return left * (1.0 - wx)[None, None, None, :] + right * wx[None, None, None, :]


# ----------------------------------------------------------------------------
# Kernel 1: 3x3 conv as ONE deep im2col matmul (+ bias, optional LeakyReLU).
# ----------------------------------------------------------------------------
def _conv_kernel(x_ref, w_ref, b_ref, o_ref, *, relu):
    # x_ref: (1, 9*C_in, hw_tile) bf16 im2col
    # w_ref: (C_out_tile, 9*C_in) bf16
    # b_ref: (C_out_tile, 1) f32
    acc = jnp.dot(w_ref[...], x_ref[0], preferred_element_type=jnp.float32)
    acc = acc + b_ref[...]
    if relu:
        acc = jnp.maximum(acc, 0.1 * acc)          # LeakyReLU(0.1)
    o_ref[0] = acc.astype(o_ref.dtype)


def conv3x3(x, w, b, *, relu):
    """x: (B, C_in, H, W); w: (C_out, C_in, 3, 3); b: (C_out,) -> (B,C_out,H,W)."""
    B, C_in, H, W = x.shape
    C_out = w.shape[0]
    HW = H * W
    K = 9 * C_in
    co_tile = 128 if (C_out % 128 == 0 and C_out > 128) else C_out
    hw_tile = _pick_tile(HW, (512, 256, 128))

    xcol = _im2col(x)                                    # (B, K, HW) bf16
    wcol = _wcol(w)                                      # (C_out, K) bf16
    bc = b.reshape(C_out, 1).astype(jnp.float32)

    bb = K * hw_tile * 2 + co_tile * K * 2 + co_tile * 4 + co_tile * hw_tile * 4
    out = pl.pallas_call(
        functools.partial(_conv_kernel, relu=relu),
        out_shape=jax.ShapeDtypeStruct((B, C_out, HW), jnp.float32),
        grid_spec=pltpu.PrefetchScalarGridSpec(
            num_scalar_prefetch=0,
            grid=(B, C_out // co_tile, HW // hw_tile),
            in_specs=[
                pl.BlockSpec((1, K, hw_tile), lambda bi, j, t: (bi, 0, t)),
                pl.BlockSpec((co_tile, K), lambda bi, j, t: (j, 0)),
                pl.BlockSpec((co_tile, 1), lambda bi, j, t: (j, 0)),
            ],
            out_specs=pl.BlockSpec((1, co_tile, hw_tile),
                                   lambda bi, j, t: (bi, j, t)),
        ),
        compiler_params=_compiler_params(("parallel", "parallel", "parallel"), bb),
    )(xcol, wcol, bc)
    return out.reshape(B, C_out, H, W)


# ----------------------------------------------------------------------------
# Kernel 2: fused softsplat (summation splat via one bf16 matmul per dest tile)
#           + softmax normalization + conv1x1 validity mask + disocc count.
# ----------------------------------------------------------------------------
def _softsplat_kernel(wb_ref, inp_ref, flow_ref, feat2_ref,
                      h_ref, c_ref, cnt_ref, cnt_sc,
                      *, H, W, T, C1, Cf, base):
    # inp_ref : (1, C_pad, HW) bf16   [x*e | c*e | f1*e | pad | e | pad7 | 1 | pad7]
    # flow_ref: (1, 2, HW)  f32       lane-dense (dx, dy)
    # feat2_ref:(1, Cf, HW) f32
    # h_ref/c_ref: (1, C1, HW) f32 outputs ;  cnt_ref: (1, 8, 128) f32
    HW = H * W
    nt = HW // T

    # ---- hoisted, lane-dense prelude: every temporary is a (1, HW) row ----
    lane = lax.broadcasted_iota(jnp.int32, (1, HW), 1)
    sy = (lane // W).astype(jnp.float32)
    sx = (lane % W).astype(jnp.float32)
    ox = sx + flow_ref[0, 0:1, :]
    oy = sy + flow_ref[0, 1:2, :]
    x0f = jnp.floor(ox)
    y0f = jnp.floor(oy)
    x0 = x0f.astype(jnp.int32)
    y0 = y0f.astype(jnp.int32)
    wx1 = ox - x0f
    wx0 = 1.0 - wx1
    wy1 = oy - y0f
    wy0 = 1.0 - wy1

    corner_lin = []
    corner_w = []
    for cy, cx, wgt in ((y0, x0, wy0 * wx0), (y0, x0 + 1, wy0 * wx1),
                        (y0 + 1, x0, wy1 * wx0), (y0 + 1, x0 + 1, wy1 * wx1)):
        valid = ((cx >= 0) & (cx <= W - 1) & (cy >= 0) & (cy <= H - 1))
        lin = jnp.clip(cy, 0, H - 1) * W + jnp.clip(cx, 0, W - 1)   # (1, HW)
        corner_lin.append(lin)
        corner_w.append((wgt * valid.astype(jnp.float32)).astype(jnp.bfloat16))

    w1 = wb_ref[0, 0]
    b1 = wb_ref[0, 1]
    cnt_sc[0] = jnp.float32(0.0)

    @pl.loop(0, nt)
    def _(t):
        off = pl.multiple_of(t * T, T)
        dst = lax.broadcasted_iota(jnp.int32, (T, 1), 0) + off       # (T, 1)
        # Flipped lane-dense scatter matrix in bf16, one per dest tile.
        wmat = jnp.zeros((T, HW), jnp.bfloat16)
        for lin, wcr in zip(corner_lin, corner_w):
            wmat = wmat + jnp.where(lin == dst, wcr, 0.0)
        # out[c, q] = sum_p inp[c, p] * wmat[q, p]   (contract over source pix)
        r = lax.dot_general(inp_ref[0], wmat, (((1,), (1,)), ((), ())),
                            preferred_element_type=jnp.float32)      # (C_pad, T)

        e_sum = r[base:base + 1]                                     # (1, T)
        ones_sum = r[base + 8:base + 9]                              # (1, T)
        inv = pl.reciprocal(jnp.where(e_sum == 0.0, 1.0, e_sum), approx=True)

        # conv1x1((feat1_warped * feat2).sum(1)) + LeakyReLU(0.1), then > 0.5
        f1w = r[2 * C1:2 * C1 + Cf] * inv
        s = jnp.sum(f1w * feat2_ref[0, :, pl.ds(off, T)], axis=0, keepdims=True)
        y = w1 * s + b1
        y = jnp.maximum(y, 0.1 * y)
        valid_mask = (y > 0.5).astype(jnp.float32)                   # (1, T)

        h_ref[0, :, pl.ds(off, T)] = r[0:C1] * inv * valid_mask
        c_ref[0, :, pl.ds(off, T)] = r[C1:2 * C1] * inv * valid_mask
        cnt_sc[0] = cnt_sc[0] + jnp.sum((ones_sum > 0.5).astype(jnp.float32))

    cnt_ref[0] = jnp.zeros((8, 128), jnp.float32) + cnt_sc[0]


def softsplat_featprop(params, x_out_pr, cell_state, flow, disp, feat1, feat2):
    """Fused FeatureProp_Softsplat for h_pre and c_pre.  Returns (h, c, keep)."""
    B, C1, H, W = x_out_pr.shape
    HW = H * W
    Cf = feat1.shape[1]
    Cf_pad = ((Cf + 7) // 8) * 8
    base = 2 * C1 + Cf_pad            # 8-aligned offset of the e channel
    C_pad = base + 16                 # [... | e | pad7 | ones | pad7]
    T = _pick_tile(HW, (256, 128))

    # softmax-splat importance: exp(-20 * (0.4 - disp))
    e = jnp.exp(-20.0 * (0.4 - disp))                        # (B, 1, H, W)
    zeros7 = jnp.zeros((B, 7, H, W), jnp.float32)
    parts = [x_out_pr * e, cell_state * e, feat1 * e]
    if Cf_pad > Cf:
        parts.append(jnp.zeros((B, Cf_pad - Cf, H, W), jnp.float32))
    parts += [e, zeros7, jnp.ones((B, 1, H, W), jnp.float32), zeros7]
    splat_in = jnp.concatenate(parts, axis=1).reshape(B, C_pad, HW)
    splat_in = splat_in.astype(jnp.bfloat16)

    flow_flat = flow.reshape(B, 2, HW).astype(jnp.float32)
    feat2_flat = feat2.reshape(B, Cf, HW).astype(jnp.float32)
    w1, b1 = params["conv1x1"]
    wb = jnp.stack([w1.reshape(()), b1.reshape(())]).reshape(1, 2).astype(jnp.float32)

    bb = (C_pad * HW * 2 + 2 * HW * 4 + Cf * HW * 4 + 2 * C1 * HW * 4
          + 8 * 128 * 4 + T * HW * 2 + C_pad * T * 4)
    h_pre, c_pre, cnt = pl.pallas_call(
        functools.partial(_softsplat_kernel, H=H, W=W, T=T, C1=C1, Cf=Cf,
                          base=base),
        out_shape=(jax.ShapeDtypeStruct((B, C1, HW), jnp.float32),
                   jax.ShapeDtypeStruct((B, C1, HW), jnp.float32),
                   jax.ShapeDtypeStruct((B, 8, 128), jnp.float32)),
        grid_spec=pltpu.PrefetchScalarGridSpec(
            num_scalar_prefetch=0,
            grid=(B,),
            in_specs=[
                pl.BlockSpec(memory_space=pltpu.MemorySpace.SMEM),        # (1, 2)
                pl.BlockSpec((1, C_pad, HW), lambda bi: (bi, 0, 0)),
                pl.BlockSpec((1, 2, HW), lambda bi: (bi, 0, 0)),
                pl.BlockSpec((1, Cf, HW), lambda bi: (bi, 0, 0)),
            ],
            out_specs=[pl.BlockSpec((1, C1, HW), lambda bi: (bi, 0, 0)),
                       pl.BlockSpec((1, C1, HW), lambda bi: (bi, 0, 0)),
                       pl.BlockSpec((1, 8, 128), lambda bi: (bi, 0, 0))],
            scratch_shapes=[pltpu.SMEM((1,), jnp.float32)],
        ),
        compiler_params=_compiler_params(("parallel",), bb),
    )(wb, splat_in, flow_flat, feat2_flat)

    # Global disocclusion check (tiny scalar reduce over per-batch counts).
    counts = cnt[:, 0, 0]
    keep = (jnp.sum(counts) >= (B * H * W / 2.0)).astype(jnp.float32)
    return h_pre, c_pre, keep.reshape(1, 1)


# ----------------------------------------------------------------------------
# Kernel 3: fused ConvLSTM (3x3 conv on [x_curr, h_pre] split into two deep
#           matmuls + gate nonlinearities + disocclusion fail-mask).
# ----------------------------------------------------------------------------
def _convlstm_kernel(keep_ref, xcol_ref, hcol_ref, wx_ref, wh_ref, b_ref, c_ref,
                     h_out_ref, c_out_ref, *, hidden):
    keep = keep_ref[0, 0]

    def sig(z):
        return pl.reciprocal(1.0 + jnp.exp(-z), approx=True)

    cc = jnp.dot(wx_ref[...], xcol_ref[0], preferred_element_type=jnp.float32)
    cc = cc + keep * jnp.dot(wh_ref[...], hcol_ref[0],
                             preferred_element_type=jnp.float32)
    cc = cc + b_ref[...]

    i = sig(cc[0 * hidden:1 * hidden])
    f = sig(cc[1 * hidden:2 * hidden])
    o = sig(cc[2 * hidden:3 * hidden])
    g = cc[3 * hidden:4 * hidden]
    g = jnp.maximum(g, 0.1 * g)                              # LeakyReLU(0.1)
    c_next = f * (keep * c_ref[0]) + i * g
    h_next = o * jnp.maximum(c_next, 0.1 * c_next)
    h_out_ref[0] = h_next.astype(h_out_ref.dtype)
    c_out_ref[0] = c_next.astype(c_out_ref.dtype)


def convlstm_fused(x_col, h_col, wx_col, wh_col, bias, c_pre, keep, hidden, H, W):
    B, K, HW = x_col.shape
    hw_tile = _pick_tile(HW, (256, 128))
    bc = bias.reshape(4 * hidden, 1).astype(jnp.float32)
    bb = (2 * K * hw_tile * 2 + 2 * 4 * hidden * K * 2 + 4 * hidden * 4
          + 3 * hidden * hw_tile * 4)
    h_next, c_next = pl.pallas_call(
        functools.partial(_convlstm_kernel, hidden=hidden),
        out_shape=(jax.ShapeDtypeStruct((B, hidden, HW), jnp.float32),
                   jax.ShapeDtypeStruct((B, hidden, HW), jnp.float32)),
        grid_spec=pltpu.PrefetchScalarGridSpec(
            num_scalar_prefetch=0,
            grid=(B, HW // hw_tile),
            in_specs=[
                pl.BlockSpec(memory_space=pltpu.MemorySpace.SMEM),     # (1, 1)
                pl.BlockSpec((1, K, hw_tile), lambda bi, t: (bi, 0, t)),
                pl.BlockSpec((1, K, hw_tile), lambda bi, t: (bi, 0, t)),
                pl.BlockSpec((4 * hidden, K), lambda bi, t: (0, 0)),
                pl.BlockSpec((4 * hidden, K), lambda bi, t: (0, 0)),
                pl.BlockSpec((4 * hidden, 1), lambda bi, t: (0, 0)),
                pl.BlockSpec((1, hidden, hw_tile), lambda bi, t: (bi, 0, t)),
            ],
            out_specs=[
                pl.BlockSpec((1, hidden, hw_tile), lambda bi, t: (bi, 0, t)),
                pl.BlockSpec((1, hidden, hw_tile), lambda bi, t: (bi, 0, t)),
            ],
        ),
        compiler_params=_compiler_params(("parallel", "parallel"), bb),
    )(keep, x_col, h_col, wx_col, wh_col, bc, c_pre)
    return h_next, c_next


# ----------------------------------------------------------------------------
# FeatureProp_Softsplat + ConvLSTM cell.
# ----------------------------------------------------------------------------
def _featprop_and_lstm(params, x_curr, cell_state, x_out_pr, fl_pr, dp_pr,
                       feat1, feat2):
    B, C1, H, W = x_out_pr.shape
    hidden = C1

    flow = _interp_bilinear_align_corners(fl_pr.astype(jnp.float32), H, W)
    disp = _interp_bilinear_align_corners(dp_pr.astype(jnp.float32), H, W)

    h_pre, c_pre, keep = softsplat_featprop(
        params, x_out_pr.astype(jnp.float32), cell_state.astype(jnp.float32),
        flow, disp, feat1.astype(jnp.float32), feat2.astype(jnp.float32))

    # ConvLSTM: cc = W_x * im2col(x_curr) + keep * W_h * im2col(h_pre) + b.
    # (conv on concat([x, h]) == sum of the two partial convolutions; the global
    #  disocclusion fail-mask `keep` zeroes the h_pre/c_pre terms in-kernel,
    #  matching the reference's `return torch.zeros_like(x)` branch.)
    wl, bl = params["conv_lstm"]
    wx_col = _wcol(wl[:, :hidden])
    wh_col = _wcol(wl[:, hidden:])
    x_col = _im2col(x_curr)
    h_col = _im2col(h_pre.reshape(B, hidden, H, W))
    h_next, c_next = convlstm_fused(x_col, h_col, wx_col, wh_col, bl,
                                    c_pre, keep, hidden, H, W)
    return (h_next.reshape(B, hidden, H, W),
            c_next.reshape(B, hidden, H, W))


# ----------------------------------------------------------------------------
# MonoSceneFlowDecoder_LSTM forward.
# ----------------------------------------------------------------------------
def mono_sceneflow_decoder_lstm(params, x, x_out_pr=None, fl_pr=None,
                                dp_pr=None, x0=None, x1=None, cell_state=None):
    """Returns (x_curr, sf, disp1, new_cell_state)."""
    h = x.astype(jnp.float32)
    for (w, b) in params["convs"]:
        h = conv3x3(h, w, b, relu=True)
    x_curr = h                                                        # (B,96,H,W)

    if x_out_pr is None:
        wci, bci = params["conv_c_init"]
        new_cell = conv3x3(x_curr, wci, bci, relu=True)
        x_out = x_curr
    else:
        x_out, new_cell = _featprop_and_lstm(
            params, x_curr, cell_state, x_out_pr, fl_pr, dp_pr, x0, x1)

    # Fused conv_sf / conv_d1 head (concat layer-1, block-diag layers 2-3,
    # final C_out padded 4 -> 8); split at the end.
    t = x_out
    n = len(params["head"])
    for idx, (w, b) in enumerate(params["head"]):
        t = conv3x3(t, w, b, relu=(idx < n - 1))
    sf = t[:, 0:3]
    d1 = t[:, 3:4]
    return x_out, sf, d1, new_cell


# ----------------------------------------------------------------------------
# Parameter init (deterministic, PRNGKey based) + head fusion.
# ----------------------------------------------------------------------------
def _init_conv(key, c_in, c_out, k=3):
    kw, kb = jax.random.split(key)
    scale = 1.0 / math.sqrt(c_in * k * k)
    w = jax.random.normal(kw, (c_out, c_in, k, k), jnp.float32) * scale
    b = jax.random.normal(kb, (c_out,), jnp.float32) * 0.01
    return w, b


def _fuse_head_params(conv_sf, conv_d1):
    (ws1, bs1), (ws2, bs2), (ws3, bs3) = conv_sf
    (wd1, bd1), (wd2, bd2), (wd3, bd3) = conv_d1

    def block_diag(wa, wb):
        oa, ia = wa.shape[:2]
        ob, ib = wb.shape[:2]
        z = jnp.zeros((oa + ob, ia + ib, 3, 3), jnp.float32)
        z = z.at[:oa, :ia].set(wa)
        z = z.at[oa:, ia:].set(wb)
        return z

    w1 = jnp.concatenate([ws1, wd1], axis=0)
    b1 = jnp.concatenate([bs1, bd1])
    w2 = block_diag(ws2, wd2)
    b2 = jnp.concatenate([bs2, bd2])
    w3 = jnp.pad(block_diag(ws3, wd3), ((0, 4), (0, 0), (0, 0), (0, 0)))
    b3 = jnp.pad(jnp.concatenate([bs3, bd3]), ((0, 4),))
    return [(w1, b1), (w2, b2), (w3, b3)]


def init_params(key, ch_in, hidden=96):
    keys = jax.random.split(key, 12)
    conv_sf = [_init_conv(keys[3], hidden, 64),
               _init_conv(keys[4], 64, 32),
               _init_conv(keys[5], 32, 3)]
    conv_d1 = [_init_conv(keys[6], hidden, 64),
               _init_conv(keys[7], 64, 32),
               _init_conv(keys[8], 32, 1)]
    return {
        "convs": [_init_conv(keys[0], ch_in, 128),
                  _init_conv(keys[1], 128, 128),
                  _init_conv(keys[2], 128, hidden)],
        "head": _fuse_head_params(conv_sf, conv_d1),
        "conv_c_init": _init_conv(keys[9], hidden, hidden),
        "conv_lstm": _init_conv(keys[10], 2 * hidden, 4 * hidden),
        "conv1x1": _init_conv(keys[11], 1, 1, k=1),
    }


if __name__ == "__main__":
    key = jax.random.PRNGKey(0)
    B, ch_in, H, W = 2, 32, 16, 16
    feat_ch = 32
    hidden = 96
    k_par, k1, k2, k3, k4, k5, k6 = jax.random.split(key, 7)

    params = init_params(k_par, ch_in, hidden)

    x_t0 = jax.random.normal(k1, (B, ch_in, H, W), jnp.float32)
    x_t1 = jax.random.normal(k2, (B, ch_in, H, W), jnp.float32)
    fl_pr = jax.random.normal(k3, (B, 2, H // 2, W // 2), jnp.float32) * 1.5
    dp_pr = jax.random.uniform(k4, (B, 1, H // 2, W // 2), jnp.float32,
                               minval=0.05, maxval=0.45)
    feat1 = jax.random.normal(k5, (B, feat_ch, H, W), jnp.float32) * 0.5
    feat2 = jax.random.normal(k6, (B, feat_ch, H, W), jnp.float32) * 0.5

    fwd = jax.jit(mono_sceneflow_decoder_lstm)

    # t = 0 : no previous state -> cell state initialized by conv_c_init.
    x_c0, sf0, d0, cell0 = fwd(params, x_t0)

    # t = 1 : previous output + flow/disp -> softsplat propagation + ConvLSTM.
    x_c1, sf1, d1, cell1 = fwd(params, x_t1, x_out_pr=x_c0, fl_pr=fl_pr,
                               dp_pr=dp_pr, x0=feat1, x1=feat2,
                               cell_state=cell0)

    outs = (x_c0, sf0, d0, cell0, x_c1, sf1, d1, cell1)
    for t in outs:
        jax.block_until_ready(t)

    assert x_c1.shape == (B, hidden, H, W)
    assert sf1.shape == (B, 3, H, W)
    assert d1.shape == (B, 1, H, W)
    assert cell1.shape == (B, hidden, H, W)
    assert all(bool(jnp.all(jnp.isfinite(t))) for t in outs)
    print("KERNEL_OK")
</pallas_src>

<mosaic_0001>
module attributes {stable_mosaic.version = 11 : i64} {
  func.func @_conv_kernel(%arg0: i32, %arg1: i32, %arg2: i32, %arg3: memref<1x288x256xbf16, #tpu.memory_space<vmem>>, %arg4: memref<128x288xbf16, #tpu.memory_space<vmem>>, %arg5: memref<128x1xf32, #tpu.memory_space<vmem>>, %arg6: memref<1x128x256xf32, #tpu.memory_space<vmem>>) attributes {dimension_semantics = [#tpu.dimension_semantics<parallel>, #tpu.dimension_semantics<parallel>, #tpu.dimension_semantics<parallel>], iteration_bounds = array<i64: 2, 1, 1>, scalar_prefetch = 0 : i64, scratch_operands = 0 : i64, tpu.core_type = #tpu.core_type<tc>, window_params = [{transform_indices = @transform_0, window_bounds = array<i64: 1, 288, 256>}, {transform_indices = @transform_1, window_bounds = array<i64: 128, 288>}, {transform_indices = @transform_2, window_bounds = array<i64: 128, 1>}, {transform_indices = @transform_3, window_bounds = array<i64: 1, 128, 256>}]} {
    %c0 = arith.constant 0 : index
    %c0_0 = arith.constant 0 : index
    %0 = vector.load %arg4[%c0, %c0_0] : memref<128x288xbf16, #tpu.memory_space<vmem>>, vector<128x288xbf16>
    %c0_1 = arith.constant 0 : index
    %c0_2 = arith.constant 0 : index
    %c0_3 = arith.constant 0 : index
    %1 = vector.load %arg3[%c0_1, %c0_2, %c0_3] : memref<1x288x256xbf16, #tpu.memory_space<vmem>>, vector<1x288x256xbf16>
    %2 = vector.shape_cast %1 : vector<1x288x256xbf16> to vector<288x256xbf16>
    %cst = arith.constant dense<0.000000e+00> : vector<128x256xf32>
    %3 = tpu.matmul %0, %2, %cst {dimension_numbers = #tpu.dot_dimension_numbers<[1], [0], [0], [1], [0, 0, 1, 1], [], []>} : vector<128x288xbf16>, vector<288x256xbf16>, vector<128x256xf32> -> vector<128x256xf32>
    %c0_4 = arith.constant 0 : index
    %c0_5 = arith.constant 0 : index
    %4 = vector.load %arg5[%c0_4, %c0_5] : memref<128x1xf32, #tpu.memory_space<vmem>>, vector<128x1xf32>
    %5 = vector.broadcast %4 : vector<128x1xf32> to vector<128x256xf32>
    %6 = arith.addf %3, %5 : vector<128x256xf32>
    %cst_6 = arith.constant 1.000000e-01 : f32
    %7 = vector.broadcast %cst_6 : f32 to vector<128x256xf32>
    %8 = arith.mulf %7, %6 : vector<128x256xf32>
    %9 = arith.maximumf %6, %8 : vector<128x256xf32>
    %c0_7 = arith.constant 0 : index
    %c0_8 = arith.constant 0 : index
    %c0_9 = arith.constant 0 : index
    %10 = vector.load %arg6[%c0_7, %c0_8, %c0_9] : memref<1x128x256xf32, #tpu.memory_space<vmem>>, vector<1x128x256xf32>
    %11 = vector.shape_cast %10 : vector<1x128x256xf32> to vector<128x256xf32>
    %12 = vector.shape_cast %9 : vector<128x256xf32> to vector<1x128x256xf32>
    tpu.vector_store %arg6[%c0_7, %c0_8, %c0_9], %12 {strides = array<i32>} : memref<1x128x256xf32, #tpu.memory_space<vmem>>, vector<1x128x256xf32>,
    return
  }
  func.func @transform_0(%arg0: i32, %arg1: i32, %arg2: i32) -> (i32, i32, i32) {
    %c0_i32 = arith.constant 0 : i32
    %c0_i32_0 = arith.constant 0 : i32
    return %arg0, %c0_i32, %arg2 : i32, i32, i32
  }
  func.func @transform_1(%arg0: i32, %arg1: i32, %arg2: i32) -> (i32, i32) {
    %c0_i32 = arith.constant 0 : i32
    %c0_i32_0 = arith.constant 0 : i32
    return %arg1, %c0_i32 : i32, i32
  }
  func.func @transform_2(%arg0: i32, %arg1: i32, %arg2: i32) -> (i32, i32) {
    %c0_i32 = arith.constant 0 : i32
    %c0_i32_0 = arith.constant 0 : i32
    return %arg1, %c0_i32 : i32, i32
  }
  func.func @transform_3(%arg0: i32, %arg1: i32, %arg2: i32) -> (i32, i32, i32) {
    %c0_i32 = arith.constant 0 : i32
    return %arg0, %arg1, %arg2 : i32, i32, i32
  }
}

module attributes {stable_mosaic.version = 11 : i64} {
  func.func @_conv_kernel(%arg0: i32, %arg1: i32, %arg2: i32, %arg3: memref<1x1152x256xbf16, #tpu.memory_space<vmem>>, %arg4: memref<128x1152xbf16, #tpu.memory_space<vmem>>, %arg5: memref<128x1xf32, #tpu.memory_space<vmem>>, %arg6: memref<1x128x256xf32, #tpu.memory_space<vmem>>) attributes {dimension_semantics = [#tpu.dimension_semantics<parallel>, #tpu.dimension_semantics<parallel>, #tpu.dimension_semantics<parallel>], iteration_bounds = array<i64: 2, 1, 1>, scalar_prefetch = 0 : i64, scratch_operands = 0 : i64, tpu.core_type = #tpu.core_type<tc>, window_params = [{transform_indices = @transform_0, window_bounds = array<i64: 1, 1152, 256>}, {transform_indices = @transform_1, window_bounds = array<i64: 128, 1152>}, {transform_indices = @transform_2, window_bounds = array<i64: 128, 1>}, {transform_indices = @transform_3, window_bounds = array<i64: 1, 128, 256>}]} {
    %c0 = arith.constant 0 : index
    %c0_0 = arith.constant 0 : index
    %0 = vector.load %arg4[%c0, %c0_0] : memref<128x1152xbf16, #tpu.memory_space<vmem>>, vector<128x1152xbf16>
    %c0_1 = arith.constant 0 : index
    %c0_2 = arith.constant 0 : index
    %c0_3 = arith.constant 0 : index
    %1 = vector.load %arg3[%c0_1, %c0_2, %c0_3] : memref<1x1152x256xbf16, #tpu.memory_space<vmem>>, vector<1x1152x256xbf16>
    %2 = vector.shape_cast %1 : vector<1x1152x256xbf16> to vector<1152x256xbf16>
    %cst = arith.constant dense<0.000000e+00> : vector<128x256xf32>
    %3 = tpu.matmul %0, %2, %cst {dimension_numbers = #tpu.dot_dimension_numbers<[1], [0], [0], [1], [0, 0, 1, 1], [], []>} : vector<128x1152xbf16>, vector<1152x256xbf16>, vector<128x256xf32> -> vector<128x256xf32>
    %c0_4 = arith.constant 0 : index
    %c0_5 = arith.constant 0 : index
    %4 = vector.load %arg5[%c0_4, %c0_5] : memref<128x1xf32, #tpu.memory_space<vmem>>, vector<128x1xf32>
    %5 = vector.broadcast %4 : vector<128x1xf32> to vector<128x256xf32>
    %6 = arith.addf %3, %5 : vector<128x256xf32>
    %cst_6 = arith.constant 1.000000e-01 : f32
    %7 = vector.broadcast %cst_6 : f32 to vector<128x256xf32>
    %8 = arith.mulf %7, %6 : vector<128x256xf32>
    %9 = arith.maximumf %6, %8 : vector<128x256xf32>
    %c0_7 = arith.constant 0 : index
    %c0_8 = arith.constant 0 : index
    %c0_9 = arith.constant 0 : index
    %10 = vector.load %arg6[%c0_7, %c0_8, %c0_9] : memref<1x128x256xf32, #tpu.memory_space<vmem>>, vector<1x128x256xf32>
    %11 = vector.shape_cast %10 : vector<1x128x256xf32> to vector<128x256xf32>
    %12 = vector.shape_cast %9 : vector<128x256xf32> to vector<1x128x256xf32>
    tpu.vector_store %arg6[%c0_7, %c0_8, %c0_9], %12 {strides = array<i32>} : memref<1x128x256xf32, #tpu.memory_space<vmem>>, vector<1x128x256xf32>,
    return
  }
  func.func @transform_0(%arg0: i32, %arg1: i32, %arg2: i32) -> (i32, i32, i32) {
    %c0_i32 = arith.constant 0 : i32
    %c0_i32_0 = arith.constant 0 : i32
    return %arg0, %c0_i32, %arg2 : i32, i32, i32
  }
  func.func @transform_1(%arg0: i32, %arg1: i32, %arg2: i32) -> (i32, i32) {
    %c0_i32 = arith.constant 0 : i32
    %c0_i32_0 = arith.constant 0 : i32
    return %arg1, %c0_i32 : i32, i32
  }
  func.func @transform_2(%arg0: i32, %arg1: i32, %arg2: i32) -> (i32, i32) {
    %c0_i32 = arith.constant 0 : i32
    %c0_i32_0 = arith.constant 0 : i32
    return %arg1, %c0_i32 : i32, i32
  }
  func.func @transform_3(%arg0: i32, %arg1: i32, %arg2: i32) -> (i32, i32, i32) {
    %c0_i32 = arith.constant 0 : i32
    return %arg0, %arg1, %arg2 : i32, i32, i32
  }
}

module attributes {stable_mosaic.version = 11 : i64} {
  func.func @_conv_kernel(%arg0: i32, %arg1: i32, %arg2: i32, %arg3: memref<1x1152x256xbf16, #tpu.memory_space<vmem>>, %arg4: memref<96x1152xbf16, #tpu.memory_space<vmem>>, %arg5: memref<96x1xf32, #tpu.memory_space<vmem>>, %arg6: memref<1x96x256xf32, #tpu.memory_space<vmem>>) attributes {dimension_semantics = [#tpu.dimension_semantics<parallel>, #tpu.dimension_semantics<parallel>, #tpu.dimension_semantics<parallel>], iteration_bounds = array<i64: 2, 1, 1>, scalar_prefetch = 0 : i64, scratch_operands = 0 : i64, tpu.core_type = #tpu.core_type<tc>, window_params = [{transform_indices = @transform_0, window_bounds = array<i64: 1, 1152, 256>}, {transform_indices = @transform_1, window_bounds = array<i64: 96, 1152>}, {transform_indices = @transform_2, window_bounds = array<i64: 96, 1>}, {transform_indices = @transform_3, window_bounds = array<i64: 1, 96, 256>}]} {
    %c0 = arith.constant 0 : index
    %c0_0 = arith.constant 0 : index
    %0 = vector.load %arg4[%c0, %c0_0] : memref<96x1152xbf16, #tpu.memory_space<vmem>>, vector<96x1152xbf16>
    %c0_1 = arith.constant 0 : index
    %c0_2 = arith.constant 0 : index
    %c0_3 = arith.constant 0 : index
    %1 = vector.load %arg3[%c0_1, %c0_2, %c0_3] : memref<1x1152x256xbf16, #tpu.memory_space<vmem>>, vector<1x1152x256xbf16>
    %2 = vector.shape_cast %1 : vector<1x1152x256xbf16> to vector<1152x256xbf16>
    %cst = arith.constant dense<0.000000e+00> : vector<96x256xf32>
    %3 = tpu.matmul %0, %2, %cst {dimension_numbers = #tpu.dot_dimension_numbers<[1], [0], [0], [1], [0, 0, 1, 1], [], []>} : vector<96x1152xbf16>, vector<1152x256xbf16>, vector<96x256xf32> -> vector<96x256xf32>
    %c0_4 = arith.constant 0 : index
    %c0_5 = arith.constant 0 : index
    %4 = vector.load %arg5[%c0_4, %c0_5] : memref<96x1xf32, #tpu.memory_space<vmem>>, vector<96x1xf32>
    %5 = vector.broadcast %4 : vector<96x1xf32> to vector<96x256xf32>
    %6 = arith.addf %3, %5 : vector<96x256xf32>
    %cst_6 = arith.constant 1.000000e-01 : f32
    %7 = vector.broadcast %cst_6 : f32 to vector<96x256xf32>
    %8 = arith.mulf %7, %6 : vector<96x256xf32>
    %9 = arith.maximumf %6, %8 : vector<96x256xf32>
    %c0_7 = arith.constant 0 : index
    %c0_8 = arith.constant 0 : index
    %c0_9 = arith.constant 0 : index
    %10 = vector.load %arg6[%c0_7, %c0_8, %c0_9] : memref<1x96x256xf32, #tpu.memory_space<vmem>>, vector<1x96x256xf32>
    %11 = vector.shape_cast %10 : vector<1x96x256xf32> to vector<96x256xf32>
    %12 = vector.shape_cast %9 : vector<96x256xf32> to vector<1x96x256xf32>
    tpu.vector_store %arg6[%c0_7, %c0_8, %c0_9], %12 {strides = array<i32>} : memref<1x96x256xf32, #tpu.memory_space<vmem>>, vector<1x96x256xf32>,
    return
  }
  func.func @transform_0(%arg0: i32, %arg1: i32, %arg2: i32) -> (i32, i32, i32) {
    %c0_i32 = arith.constant 0 : i32
    %c0_i32_0 = arith.constant 0 : i32
    return %arg0, %c0_i32, %arg2 : i32, i32, i32
  }
  func.func @transform_1(%arg0: i32, %arg1: i32, %arg2: i32) -> (i32, i32) {
    %c0_i32 = arith.constant 0 : i32
    %c0_i32_0 = arith.constant 0 : i32
    return %arg1, %c0_i32 : i32, i32
  }
  func.func @transform_2(%arg0: i32, %arg1: i32, %arg2: i32) -> (i32, i32) {
    %c0_i32 = arith.constant 0 : i32
    %c0_i32_0 = arith.constant 0 : i32
    return %arg1, %c0_i32 : i32, i32
  }
  func.func @transform_3(%arg0: i32, %arg1: i32, %arg2: i32) -> (i32, i32, i32) {
    %c0_i32 = arith.constant 0 : i32
    return %arg0, %arg1, %arg2 : i32, i32, i32
  }
}

module attributes {stable_mosaic.version = 11 : i64} {
  func.func @_conv_kernel(%arg0: i32, %arg1: i32, %arg2: i32, %arg3: memref<1x864x256xbf16, #tpu.memory_space<vmem>>, %arg4: memref<128x864xbf16, #tpu.memory_space<vmem>>, %arg5: memref<128x1xf32, #tpu.memory_space<vmem>>, %arg6: memref<1x128x256xf32, #tpu.memory_space<vmem>>) attributes {dimension_semantics = [#tpu.dimension_semantics<parallel>, #tpu.dimension_semantics<parallel>, #tpu.dimension_semantics<parallel>], iteration_bounds = array<i64: 2, 1, 1>, scalar_prefetch = 0 : i64, scratch_operands = 0 : i64, tpu.core_type = #tpu.core_type<tc>, window_params = [{transform_indices = @transform_0, window_bounds = array<i64: 1, 864, 256>}, {transform_indices = @transform_1, window_bounds = array<i64: 128, 864>}, {transform_indices = @transform_2, window_bounds = array<i64: 128, 1>}, {transform_indices = @transform_3, window_bounds = array<i64: 1, 128, 256>}]} {
    %c0 = arith.constant 0 : index
    %c0_0 = arith.constant 0 : index
    %0 = vector.load %arg4[%c0, %c0_0] : memref<128x864xbf16, #tpu.memory_space<vmem>>, vector<128x864xbf16>
    %c0_1 = arith.constant 0 : index
    %c0_2 = arith.constant 0 : index
    %c0_3 = arith.constant 0 : index
    %1 = vector.load %arg3[%c0_1, %c0_2, %c0_3] : memref<1x864x256xbf16, #tpu.memory_space<vmem>>, vector<1x864x256xbf16>
    %2 = vector.shape_cast %1 : vector<1x864x256xbf16> to vector<864x256xbf16>
    %cst = arith.constant dense<0.000000e+00> : vector<128x256xf32>
    %3 = tpu.matmul %0, %2, %cst {dimension_numbers = #tpu.dot_dimension_numbers<[1], [0], [0], [1], [0, 0, 1, 1], [], []>} : vector<128x864xbf16>, vector<864x256xbf16>, vector<128x256xf32> -> vector<128x256xf32>
    %c0_4 = arith.constant 0 : index
    %c0_5 = arith.constant 0 : index
    %4 = vector.load %arg5[%c0_4, %c0_5] : memref<128x1xf32, #tpu.memory_space<vmem>>, vector<128x1xf32>
    %5 = vector.broadcast %4 : vector<128x1xf32> to vector<128x256xf32>
    %6 = arith.addf %3, %5 : vector<128x256xf32>
    %cst_6 = arith.constant 1.000000e-01 : f32
    %7 = vector.broadcast %cst_6 : f32 to vector<128x256xf32>
    %8 = arith.mulf %7, %6 : vector<128x256xf32>
    %9 = arith.maximumf %6, %8 : vector<128x256xf32>
    %c0_7 = arith.constant 0 : index
    %c0_8 = arith.constant 0 : index
    %c0_9 = arith.constant 0 : index
    %10 = vector.load %arg6[%c0_7, %c0_8, %c0_9] : memref<1x128x256xf32, #tpu.memory_space<vmem>>, vector<1x128x256xf32>
    %11 = vector.shape_cast %10 : vector<1x128x256xf32> to vector<128x256xf32>
    %12 = vector.shape_cast %9 : vector<128x256xf32> to vector<1x128x256xf32>
    tpu.vector_store %arg6[%c0_7, %c0_8, %c0_9], %12 {strides = array<i32>} : memref<1x128x256xf32, #tpu.memory_space<vmem>>, vector<1x128x256xf32>,
    return
  }
  func.func @transform_0(%arg0: i32, %arg1: i32, %arg2: i32) -> (i32, i32, i32) {
    %c0_i32 = arith.constant 0 : i32
    %c0_i32_0 = arith.constant 0 : i32
    return %arg0, %c0_i32, %arg2 : i32, i32, i32
  }
  func.func @transform_1(%arg0: i32, %arg1: i32, %arg2: i32) -> (i32, i32) {
    %c0_i32 = arith.constant 0 : i32
    %c0_i32_0 = arith.constant 0 : i32
    return %arg1, %c0_i32 : i32, i32
  }
  func.func @transform_2(%arg0: i32, %arg1: i32, %arg2: i32) -> (i32, i32) {
    %c0_i32 = arith.constant 0 : i32
    %c0_i32_0 = arith.constant 0 : i32
    return %arg1, %c0_i32 : i32, i32
  }
  func.func @transform_3(%arg0: i32, %arg1: i32, %arg2: i32) -> (i32, i32, i32) {
    %c0_i32 = arith.constant 0 : i32
    return %arg0, %arg1, %arg2 : i32, i32, i32
  }
}

module attributes {stable_mosaic.version = 11 : i64} {
  func.func @_conv_kernel(%arg0: i32, %arg1: i32, %arg2: i32, %arg3: memref<1x1152x256xbf16, #tpu.memory_space<vmem>>, %arg4: memref<64x1152xbf16, #tpu.memory_space<vmem>>, %arg5: memref<64x1xf32, #tpu.memory_space<vmem>>, %arg6: memref<1x64x256xf32, #tpu.memory_space<vmem>>) attributes {dimension_semantics = [#tpu.dimension_semantics<parallel>, #tpu.dimension_semantics<parallel>, #tpu.dimension_semantics<parallel>], iteration_bounds = array<i64: 2, 1, 1>, scalar_prefetch = 0 : i64, scratch_operands = 0 : i64, tpu.core_type = #tpu.core_type<tc>, window_params = [{transform_indices = @transform_0, window_bounds = array<i64: 1, 1152, 256>}, {transform_indices = @transform_1, window_bounds = array<i64: 64, 1152>}, {transform_indices = @transform_2, window_bounds = array<i64: 64, 1>}, {transform_indices = @transform_3, window_bounds = array<i64: 1, 64, 256>}]} {
    %c0 = arith.constant 0 : index
    %c0_0 = arith.constant 0 : index
    %0 = vector.load %arg4[%c0, %c0_0] : memref<64x1152xbf16, #tpu.memory_space<vmem>>, vector<64x1152xbf16>
    %c0_1 = arith.constant 0 : index
    %c0_2 = arith.constant 0 : index
    %c0_3 = arith.constant 0 : index
    %1 = vector.load %arg3[%c0_1, %c0_2, %c0_3] : memref<1x1152x256xbf16, #tpu.memory_space<vmem>>, vector<1x1152x256xbf16>
    %2 = vector.shape_cast %1 : vector<1x1152x256xbf16> to vector<1152x256xbf16>
    %cst = arith.constant dense<0.000000e+00> : vector<64x256xf32>
    %3 = tpu.matmul %0, %2, %cst {dimension_numbers = #tpu.dot_dimension_numbers<[1], [0], [0], [1], [0, 0, 1, 1], [], []>} : vector<64x1152xbf16>, vector<1152x256xbf16>, vector<64x256xf32> -> vector<64x256xf32>
    %c0_4 = arith.constant 0 : index
    %c0_5 = arith.constant 0 : index
    %4 = vector.load %arg5[%c0_4, %c0_5] : memref<64x1xf32, #tpu.memory_space<vmem>>, vector<64x1xf32>
    %5 = vector.broadcast %4 : vector<64x1xf32> to vector<64x256xf32>
    %6 = arith.addf %3, %5 : vector<64x256xf32>
    %cst_6 = arith.constant 1.000000e-01 : f32
    %7 = vector.broadcast %cst_6 : f32 to vector<64x256xf32>
    %8 = arith.mulf %7, %6 : vector<64x256xf32>
    %9 = arith.maximumf %6, %8 : vector<64x256xf32>
    %c0_7 = arith.constant 0 : index
    %c0_8 = arith.constant 0 : index
    %c0_9 = arith.constant 0 : index
    %10 = vector.load %arg6[%c0_7, %c0_8, %c0_9] : memref<1x64x256xf32, #tpu.memory_space<vmem>>, vector<1x64x256xf32>
    %11 = vector.shape_cast %10 : vector<1x64x256xf32> to vector<64x256xf32>
    %12 = vector.shape_cast %9 : vector<64x256xf32> to vector<1x64x256xf32>
    tpu.vector_store %arg6[%c0_7, %c0_8, %c0_9], %12 {strides = array<i32>} : memref<1x64x256xf32, #tpu.memory_space<vmem>>, vector<1x64x256xf32>,
    return
  }
  func.func @transform_0(%arg0: i32, %arg1: i32, %arg2: i32) -> (i32, i32, i32) {
    %c0_i32 = arith.constant 0 : i32
    %c0_i32_0 = arith.constant 0 : i32
    return %arg0, %c0_i32, %arg2 : i32, i32, i32
  }
  func.func @transform_1(%arg0: i32, %arg1: i32, %arg2: i32) -> (i32, i32) {
    %c0_i32 = arith.constant 0 : i32
    %c0_i32_0 = arith.constant 0 : i32
    return %arg1, %c0_i32 : i32, i32
  }
  func.func @transform_2(%arg0: i32, %arg1: i32, %arg2: i32) -> (i32, i32) {
    %c0_i32 = arith.constant 0 : i32
    %c0_i32_0 = arith.constant 0 : i32
    return %arg1, %c0_i32 : i32, i32
  }
  func.func @transform_3(%arg0: i32, %arg1: i32, %arg2: i32) -> (i32, i32, i32) {
    %c0_i32 = arith.constant 0 : i32
    return %arg0, %arg1, %arg2 : i32, i32, i32
  }
}

module attributes {stable_mosaic.version = 11 : i64} {
  func.func @_conv_kernel(%arg0: i32, %arg1: i32, %arg2: i32, %arg3: memref<1x576x256xbf16, #tpu.memory_space<vmem>>, %arg4: memref<8x576xbf16, #tpu.memory_space<vmem>>, %arg5: memref<8x1xf32, #tpu.memory_space<vmem>>, %arg6: memref<1x8x256xf32, #tpu.memory_space<vmem>>) attributes {dimension_semantics = [#tpu.dimension_semantics<parallel>, #tpu.dimension_semantics<parallel>, #tpu.dimension_semantics<parallel>], iteration_bounds = array<i64: 2, 1, 1>, scalar_prefetch = 0 : i64, scratch_operands = 0 : i64, tpu.core_type = #tpu.core_type<tc>, window_params = [{transform_indices = @transform_0, window_bounds = array<i64: 1, 576, 256>}, {transform_indices = @transform_1, window_bounds = array<i64: 8, 576>}, {transform_indices = @transform_2, window_bounds = array<i64: 8, 1>}, {transform_indices = @transform_3, window_bounds = array<i64: 1, 8, 256>}]} {
    %c0 = arith.constant 0 : index
    %c0_0 = arith.constant 0 : index
    %0 = vector.load %arg4[%c0, %c0_0] : memref<8x576xbf16, #tpu.memory_space<vmem>>, vector<8x576xbf16>
    %c0_1 = arith.constant 0 : index
    %c0_2 = arith.constant 0 : index
    %c0_3 = arith.constant 0 : index
    %1 = vector.load %arg3[%c0_1, %c0_2, %c0_3] : memref<1x576x256xbf16, #tpu.memory_space<vmem>>, vector<1x576x256xbf16>
    %2 = vector.shape_cast %1 : vector<1x576x256xbf16> to vector<576x256xbf16>
    %cst = arith.constant dense<0.000000e+00> : vector<8x256xf32>
    %3 = tpu.matmul %0, %2, %cst {dimension_numbers = #tpu.dot_dimension_numbers<[1], [0], [0], [1], [0, 0, 1, 1], [], []>} : vector<8x576xbf16>, vector<576x256xbf16>, vector<8x256xf32> -> vector<8x256xf32>
    %c0_4 = arith.constant 0 : index
    %c0_5 = arith.constant 0 : index
    %4 = vector.load %arg5[%c0_4, %c0_5] : memref<8x1xf32, #tpu.memory_space<vmem>>, vector<8x1xf32>
    %5 = vector.broadcast %4 : vector<8x1xf32> to vector<8x256xf32>
    %6 = arith.addf %3, %5 : vector<8x256xf32>
    %c0_6 = arith.constant 0 : index
    %c0_7 = arith.constant 0 : index
    %c0_8 = arith.constant 0 : index
    %7 = vector.load %arg6[%c0_6, %c0_7, %c0_8] : memref<1x8x256xf32, #tpu.memory_space<vmem>>, vector<1x8x256xf32>
    %8 = vector.shape_cast %7 : vector<1x8x256xf32> to vector<8x256xf32>
    %9 = vector.shape_cast %6 : vector<8x256xf32> to vector<1x8x256xf32>
    tpu.vector_store %arg6[%c0_6, %c0_7, %c0_8], %9 {strides = array<i32>} : memref<1x8x256xf32, #tpu.memory_space<vmem>>, vector<1x8x256xf32>,
    return
  }
  func.func @transform_0(%arg0: i32, %arg1: i32, %arg2: i32) -> (i32, i32, i32) {
    %c0_i32 = arith.constant 0 : i32
    %c0_i32_0 = arith.constant 0 : i32
    return %arg0, %c0_i32, %arg2 : i32, i32, i32
  }
  func.func @transform_1(%arg0: i32, %arg1: i32, %arg2: i32) -> (i32, i32) {
    %c0_i32 = arith.constant 0 : i32
    %c0_i32_0 = arith.constant 0 : i32
    return %arg1, %c0_i32 : i32, i32
  }
  func.func @transform_2(%arg0: i32, %arg1: i32, %arg2: i32) -> (i32, i32) {
    %c0_i32 = arith.constant 0 : i32
    %c0_i32_0 = arith.constant 0 : i32
    return %arg1, %c0_i32 : i32, i32
  }
  func.func @transform_3(%arg0: i32, %arg1: i32, %arg2: i32) -> (i32, i32, i32) {
    %c0_i32 = arith.constant 0 : i32
    return %arg0, %arg1, %arg2 : i32, i32, i32
  }
}

module attributes {stable_mosaic.version = 11 : i64} {
  func.func @_conv_kernel(%arg0: i32, %arg1: i32, %arg2: i32, %arg3: memref<1x864x256xbf16, #tpu.memory_space<vmem>>, %arg4: memref<96x864xbf16, #tpu.memory_space<vmem>>, %arg5: memref<96x1xf32, #tpu.memory_space<vmem>>, %arg6: memref<1x96x256xf32, #tpu.memory_space<vmem>>) attributes {dimension_semantics = [#tpu.dimension_semantics<parallel>, #tpu.dimension_semantics<parallel>, #tpu.dimension_semantics<parallel>], iteration_bounds = array<i64: 2, 1, 1>, scalar_prefetch = 0 : i64, scratch_operands = 0 : i64, tpu.core_type = #tpu.core_type<tc>, window_params = [{transform_indices = @transform_0, window_bounds = array<i64: 1, 864, 256>}, {transform_indices = @transform_1, window_bounds = array<i64: 96, 864>}, {transform_indices = @transform_2, window_bounds = array<i64: 96, 1>}, {transform_indices = @transform_3, window_bounds = array<i64: 1, 96, 256>}]} {
    %c0 = arith.constant 0 : index
    %c0_0 = arith.constant 0 : index
    %0 = vector.load %arg4[%c0, %c0_0] : memref<96x864xbf16, #tpu.memory_space<vmem>>, vector<96x864xbf16>
    %c0_1 = arith.constant 0 : index
    %c0_2 = arith.constant 0 : index
    %c0_3 = arith.constant 0 : index
    %1 = vector.load %arg3[%c0_1, %c0_2, %c0_3] : memref<1x864x256xbf16, #tpu.memory_space<vmem>>, vector<1x864x256xbf16>
    %2 = vector.shape_cast %1 : vector<1x864x256xbf16> to vector<864x256xbf16>
    %cst = arith.constant dense<0.000000e+00> : vector<96x256xf32>
    %3 = tpu.matmul %0, %2, %cst {dimension_numbers = #tpu.dot_dimension_numbers<[1], [0], [0], [1], [0, 0, 1, 1], [], []>} : vector<96x864xbf16>, vector<864x256xbf16>, vector<96x256xf32> -> vector<96x256xf32>
    %c0_4 = arith.constant 0 : index
    %c0_5 = arith.constant 0 : index
    %4 = vector.load %arg5[%c0_4, %c0_5] : memref<96x1xf32, #tpu.memory_space<vmem>>, vector<96x1xf32>
    %5 = vector.broadcast %4 : vector<96x1xf32> to vector<96x256xf32>
    %6 = arith.addf %3, %5 : vector<96x256xf32>
    %cst_6 = arith.constant 1.000000e-01 : f32
    %7 = vector.broadcast %cst_6 : f32 to vector<96x256xf32>
    %8 = arith.mulf %7, %6 : vector<96x256xf32>
    %9 = arith.maximumf %6, %8 : vector<96x256xf32>
    %c0_7 = arith.constant 0 : index
    %c0_8 = arith.constant 0 : index
    %c0_9 = arith.constant 0 : index
    %10 = vector.load %arg6[%c0_7, %c0_8, %c0_9] : memref<1x96x256xf32, #tpu.memory_space<vmem>>, vector<1x96x256xf32>
    %11 = vector.shape_cast %10 : vector<1x96x256xf32> to vector<96x256xf32>
    %12 = vector.shape_cast %9 : vector<96x256xf32> to vector<1x96x256xf32>
    tpu.vector_store %arg6[%c0_7, %c0_8, %c0_9], %12 {strides = array<i32>} : memref<1x96x256xf32, #tpu.memory_space<vmem>>, vector<1x96x256xf32>,
    return
  }
  func.func @transform_0(%arg0: i32, %arg1: i32, %arg2: i32) -> (i32, i32, i32) {
    %c0_i32 = arith.constant 0 : i32
    %c0_i32_0 = arith.constant 0 : i32
    return %arg0, %c0_i32, %arg2 : i32, i32, i32
  }
  func.func @transform_1(%arg0: i32, %arg1: i32, %arg2: i32) -> (i32, i32) {
    %c0_i32 = arith.constant 0 : i32
    %c0_i32_0 = arith.constant 0 : i32
    return %arg1, %c0_i32 : i32, i32
  }
  func.func @transform_2(%arg0: i32, %arg1: i32, %arg2: i32) -> (i32, i32) {
    %c0_i32 = arith.constant 0 : i32
    %c0_i32_0 = arith.constant 0 : i32
    return %arg1, %c0_i32 : i32, i32
  }
  func.func @transform_3(%arg0: i32, %arg1: i32, %arg2: i32) -> (i32, i32, i32) {
    %c0_i32 = arith.constant 0 : i32
    return %arg0, %arg1, %arg2 : i32, i32, i32
  }
}

</mosaic_0001>

<llo_original>
// kernel: mono_sceneflow_decoder_lstm.7
$region0: #{mono_sceneflow_decoder_lstm.7}
  #allocation0 [shape = 'u32[]', space=smem, size = 0x4, offset = 0x4, fixed_abs, tag = 'smem constant byte address 0x4 - core index']
  #allocation1 [shape = 'u32[144,128]{1,0:T(1,128)}', space=vmem, size = 0x12000, scoped, tag = 'internal scratch']
  %s0 = inlined_call_operand.vmem [shape: bf16[2,288,256], index: 0, kind: input, shape index: {}]
  %s1 = inlined_call_operand.vmem [shape: bf16[128,288], index: 1, kind: input, shape index: {}]
  %s2 = inlined_call_operand.vmem [shape: f32[128,1], index: 2, kind: input, shape index: {}]
  %s3 = inlined_call_operand.vmem [shape: f32[2,128,256], index: 3, kind: output, shape index: {}]
  %s4 = sld [smem:[#allocation0]]
  $region45: #{mono_sceneflow_decoder_lstm.7} parent=0
    _
  %s6 = ssub.s32 1, %s4
  %s7 = scalar_select 0, %s6, %s4
  loop: start=0, step=1, limit=4
  $region2: #{mono_sceneflow_decoder_lstm.7} parent=0 // loop_pre_header
    _
  $region3: #{mono_sceneflow_decoder_lstm.7} parent=0 // loop_header
    %s9 = sphi 0, %s13
    %p10 = scmp.ge.s32.totalorder %s9, 4
    %s16 = sphi 0, %s35
    %s17 = sphi 0, %s31
    %s18 = sphi 0, %s27
    %s19 = sphi 0, %s16
    %s20 = sphi 0, %s17
    %s21 = sphi 0, %s18
    %s22 = sphi 0, %s19
    %s23 = sphi 0, %s20
    %s24 = sphi 0, %s21
    %s40 = sphi 0, %s42
    %s43 = sphi 0, %s40
    %s44 = sphi 0, %s43
    %s60 = sphi 0, %s44
    %s66 = sphi 0, %s68
    %s69 = sphi 0, %s66
    %s70 = sphi 0, %s69
    %s86 = sphi 0, %s70
    %s92 = sphi 0, %s94
    %s95 = sphi 0, %s92
    %s96 = sphi 0, %s95
    %s112 = sphi 0, %s96
    %s122 = sphi 0, %s124
    %s125 = sphi 0, %s122
    %s126 = sphi 0, %s125
    %s142 = sphi 0, %s126
  $region4: #{mono_sceneflow_decoder_lstm.7} parent=0 // loop_header_branch
    %12 = sbr.rel (%p10) target = $region8
  $region5: #{mono_sceneflow_decoder_lstm.7} parent=0 // loop_body
    %s14 = ssub.s32 %s9, 1
    %s15 = ssub.s32 %s9, 2
    %s25 = sadd.s32 1, %s18
    %p26 = scmp.ge.s32.totalorder %s25, 1
    %s27 = scalar_select %p26, 0, %s25
    %s28 = sadd.s32 1, %s17
    %s29 = scalar_select %p26, %s28, %s17
    %p30 = scmp.ge.s32.totalorder %s29, 1
    %s31 = scalar_select %p30, 0, %s29
    %s32 = sadd.s32 1, %s16
    %s33 = scalar_select %p30, %s32, %s16
    %p34 = scmp.ge.s32.totalorder %s33, 2
    %s35 = scalar_select %p34, 0, %s33
    %s36 = ssub.s32 %s16, %s35
    %s37 = ssub.s32 %s18, %s27
    %s38 = sor.u32 %s36, %s37
    %p39 = scmp.eq.s32.totalorder %s38, 0
    %s41 = sadd.s32 %s40, 1
    %s42 = scalar_select %p39, %s40, %s41
    %p45 = pneg %p39
    %p46 = scmp.eq.s32.totalorder %s9, 1
    %p47 = por %p45, %p46
    %p48 = scmp.ne.s32.totalorder %s40, %s43
    %p49 = scmp.eq.s32.totalorder %s9, 0
    %p50 = por %p48, %p49
    %p51 = scmp.ne.s32.totalorder %s40, %s43
    %p52 = scmp.eq.s32.totalorder %s14, 1
    %p53 = por %p51, %p52
    %p54 = scmp.ne.s32.totalorder %s43, %s44
    %p55 = scmp.eq.s32.totalorder %s14, 0
    %p56 = por %p54, %p55
    %p57 = scmp.ne.s32.totalorder %s43, %s44
    %p58 = scmp.eq.s32.totalorder %s15, 1
    %p59 = por %p57, %p58
    %p61 = scmp.ne.s32.totalorder %s44, %s60
    %p62 = scmp.eq.s32.totalorder %s15, 0
    %p63 = por %p61, %p62
    %s64 = ssub.s32 %s17, %s31
    %p65 = scmp.eq.s32.totalorder %s64, 0
    %s67 = sadd.s32 %s66, 1
    %s68 = scalar_select %p65, %s66, %s67
    %p71 = pneg %p65
    %p72 = scmp.eq.s32.totalorder %s9, 1
    %p73 = por %p71, %p72
    %p74 = scmp.ne.s32.totalorder %s66, %s69
    %p75 = scmp.eq.s32.totalorder %s9, 0
    %p76 = por %p74, %p75
    %p77 = scmp.ne.s32.totalorder %s66, %s69
    %p78 = scmp.eq.s32.totalorder %s14, 1
    %p79 = por %p77, %p78
    %p80 = scmp.ne.s32.totalorder %s69, %s70
    %p81 = scmp.eq.s32.totalorder %s14, 0
    %p82 = por %p80, %p81
    %p83 = scmp.ne.s32.totalorder %s69, %s70
    %p84 = scmp.eq.s32.totalorder %s15, 1
    %p85 = por %p83, %p84
    %p87 = scmp.ne.s32.totalorder %s70, %s86
    %p88 = scmp.eq.s32.totalorder %s15, 0
    %p89 = por %p87, %p88
    %s90 = ssub.s32 %s17, %s31
    %p91 = scmp.eq.s32.totalorder %s90, 0
    %s93 = sadd.s32 %s92, 1
    %s94 = scalar_select %p91, %s92, %s93
    %p97 = pneg %p91
    %p98 = scmp.eq.s32.totalorder %s9, 1
    %p99 = por %p97, %p98
    %p100 = scmp.ne.s32.totalorder %s92, %s95
    %p101 = scmp.eq.s32.totalorder %s9, 0
    %p102 = por %p100, %p101
    %p103 = scmp.ne.s32.totalorder %s92, %s95
    %p104 = scmp.eq.s32.totalorder %s14, 1
    %p105 = por %p103, %p104
    %p106 = scmp.ne.s32.totalorder %s95, %s96
    %p107 = scmp.eq.s32.totalorder %s14, 0
    %p108 = por %p106, %p107
    %p109 = scmp.ne.s32.totalorder %s95, %s96
    %p110 = scmp.eq.s32.totalorder %s15, 1
    %p111 = por %p109, %p110
    %p113 = scmp.ne.s32.totalorder %s96, %s112
    %p114 = scmp.eq.s32.totalorder %s15, 0
    %p115 = por %p113, %p114
    %s116 = ssub.s32 %s16, %s35
    %s117 = ssub.s32 %s17, %s31
    %s118 = sor.u32 %s116, %s117
    %s119 = ssub.s32 %s18, %s27
    %s120 = sor.u32 %s118, %s119
    %p121 = scmp.eq.s32.totalorder %s120, 0
    %s123 = sadd.s32 %s122, 1
    %s124 = scalar_select %p121, %s122, %s123
    %p127 = pneg %p121
    %p128 = scmp.eq.s32.totalorder %s9, 1
    %p129 = por %p127, %p128
    %p130 = scmp.ne.s32.totalorder %s122, %s125
    %p131 = scmp.eq.s32.totalorder %s9, 0
    %p132 = por %p130, %p131
    %p133 = scmp.ne.s32.totalorder %s122, %s125
    %p134 = scmp.eq.s32.totalorder %s14, 1
    %p135 = por %p133, %p134
    %p136 = scmp.ne.s32.totalorder %s125, %s126
    %p137 = scmp.eq.s32.totalorder %s14, 0
    %p138 = por %p136, %p137
    %p139 = scmp.ne.s32.totalorder %s125, %s126
    %p140 = scmp.eq.s32.totalorder %s15, 1
    %p141 = por %p139, %p140
    %p143 = scmp.ne.s32.totalorder %s126, %s142
    %p144 = scmp.eq.s32.totalorder %s15, 0
    %p145 = por %p143, %p144
    %p146 = scmp.le.s32.totalorder 1, %s9
    %p147 = scmp.lt.s32.totalorder %s9, 3
    %p148 = pnand %p146, %p147
    %p149 = pneg %p148
    // Predicated region
    $region9: #{mono_sceneflow_decoder_lstm.7} parent=5 // pred_check
      _
    $region10: #{mono_sceneflow_decoder_lstm.7} parent=5 // pred_check_branch
      %151 = sbr.rel (%p148) target = $region12
    $region11: #{mono_sceneflow_decoder_lstm.7} parent=5 // pred_region
      %s152 = ssub.s32 %s9, 1
      // Predicated region
      $region13: #{mono_sceneflow_decoder_lstm.7} parent=11 // pred_check
        %p153 = pneg %p82
      $region14: #{mono_sceneflow_decoder_lstm.7} parent=11 // pred_check_branch
        %155 = sbr.rel (%p153) target = $region16
      $region15: #{mono_sceneflow_decoder_lstm.7} parent=11 // pred_region
        %s156 = smul.u32 16, %s20
        %p157 = scmp.lt.s32.totalorder %s156, 15
        %s158 = scalar_select %p157, %s156, 15
        %s159 = smul.addr %s158, 3
        %s160 = smul.addr %s159, 4
        %s161 = scalar_lea.vmem %s1, %s160
        %s162 = smul.u32 16, %s20
      $region16: #{mono_sceneflow_decoder_lstm.7} parent=11 // pred_fallthru
        _
      // Predicated region
      $region17: #{mono_sceneflow_decoder_lstm.7} parent=11 // pred_check
        %p163 = pneg %p108
      $region18: #{mono_sceneflow_decoder_lstm.7} parent=11 // pred_check_branch
        %165 = sbr.rel (%p163) target = $region20
      $region19: #{mono_sceneflow_decoder_lstm.7} parent=11 // pred_region
        %s166 = smul.u32 16, %s20
        %p167 = scmp.lt.s32.totalorder %s166, 15
        %s168 = scalar_select %p167, %s166, 15
        %s169 = smul.addr %s168, 8
        %s170 = scalar_lea.vmem %s2, %s169
        %s171 = smul.u32 16, %s20
      $region20: #{mono_sceneflow_decoder_lstm.7} parent=11 // pred_fallthru
        _
    $region12: #{mono_sceneflow_decoder_lstm.7} parent=5 // pred_fallthru
      _
    %p172 = scmp.lt.s32.totalorder %s9, 2
    // Predicated region
    $region21: #{mono_sceneflow_decoder_lstm.7} parent=5 // pred_check
      %p173 = pneg %p172
    $region22: #{mono_sceneflow_decoder_lstm.7} parent=5 // pred_check_branch
      %175 = sbr.rel (%p173) target = $region24
    $region23: #{mono_sceneflow_decoder_lstm.7} parent=5 // pred_region
      // Predicated region
      $region25: #{mono_sceneflow_decoder_lstm.7} parent=23 // pred_check
        %p176 = pneg %p50
      $region26: #{mono_sceneflow_decoder_lstm.7} parent=23 // pred_check_branch
        %178 = sbr.rel (%p176) target = $region28
      $region27: #{mono_sceneflow_decoder_lstm.7} parent=23 // pred_region
        %s179 = smul.u32 2, %s18
        %p180 = scmp.lt.s32.totalorder %s16, 1
        %s181 = scalar_select %p180, %s16, 1
        %p182 = scmp.lt.s32.totalorder %s179, 1
        %s183 = scalar_select %p182, %s179, 1
        %s184 = smul.addr %s181, 72
        %s185 = sadd.s32 %s183, %s184
        %s186 = smul.addr %s185, 4
        %s187 = scalar_lea.vmem %s0, %s186
        %s188 = smul.u32 2, %s18
      $region28: #{mono_sceneflow_decoder_lstm.7} parent=23 // pred_fallthru
        _
    $region24: #{mono_sceneflow_decoder_lstm.7} parent=5 // pred_fallthru
      _
    %p189 = scmp.le.s32.totalorder 1, %s9
    %p190 = scmp.lt.s32.totalorder %s9, 3
    %p191 = pnand %p189, %p190
    %p192 = pneg %p191
    // Predicated region
    $region29: #{mono_sceneflow_decoder_lstm.7} parent=5 // pred_check
      _
    $region30: #{mono_sceneflow_decoder_lstm.7} parent=5 // pred_check_branch
      %194 = sbr.rel (%p191) target = $region32
    $region31: #{mono_sceneflow_decoder_lstm.7} parent=5 // pred_region
      %s195 = ssub.s32 %s9, 1
      %s196 = smul.u32 2, %s21
      %p197 = scmp.lt.s32.totalorder %s19, 1
      %s198 = scalar_select %p197, %s19, 1
      %p199 = scmp.lt.s32.totalorder %s196, 1
      %s200 = scalar_select %p199, %s196, 1
      %s201 = smul.addr %s198, 72
      %s202 = sadd.s32 %s200, %s201
      %s203 = smul.addr %s202, 4
      %s204 = scalar_lea.vmem %s0, %s203
      %p205 = pneg %p56
      %p206 = pneg %p53
      %s207 = smul.u32 16, %s20
      %p208 = scmp.lt.s32.totalorder %s207, 15
      %s209 = scalar_select %p208, %s207, 15
      %s210 = smul.addr %s209, 3
      %s211 = smul.addr %s210, 4
      %s212 = scalar_lea.vmem %s1, %s211
      %p213 = pneg %p82
      %p214 = pneg %p79
      %s215 = smul.u32 16, %s20
      %p216 = scmp.lt.s32.totalorder %s215, 15
      %s217 = scalar_select %p216, %s215, 15
      %s218 = smul.addr %s217, 8
      %s219 = scalar_lea.vmem %s2, %s218
      %p220 = pneg %p108
      %p221 = pneg %p105
      %p222 = pneg %p138
      %p223 = pneg %p135
      %s224 = smul.u32 16, %s20
      %s225 = smul.u32 2, %s21
      %p226 = scmp.lt.s32.totalorder %s19, 1
      %s227 = scalar_select %p226, %s19, 1
      %p228 = scmp.lt.s32.totalorder %s224, 15
      %s229 = scalar_select %p228, %s224, 15
      %p230 = scmp.lt.s32.totalorder %s225, 1
      %s231 = scalar_select %p230, %s225, 1
      %s232 = smul.addr %s229, 2
      %s233 = sadd.s32 %s231, %s232
      %s234 = smul.addr %s227, 32
      %s235 = sadd.s32 %s233, %s234
      %s236 = smul.addr %s235, 8
      %s237 = scalar_lea.vmem %s3, %s236
      %s238 = smul.u32 2, %s21
      %p239 = scmp.lt.s32.totalorder %s19, 1
      %s240 = scalar_select %p239, %s19, 1
      %p241 = scmp.lt.s32.totalorder %s238, 1
      %s242 = scalar_select %p241, %s238, 1
      %s243 = smul.addr %s240, 72
      %s244 = sadd.s32 %s242, %s243
      %s245 = smul.addr %s244, 4
      %s246 = scalar_lea.vmem %s0, %s245
      %s247 = smul.u32 2, %s21
      %s248 = smul.u32 16, %s20
      %p249 = scmp.lt.s32.totalorder %s248, 15
      %s250 = scalar_select %p249, %s248, 15
      %s251 = smul.addr %s250, 3
      %s252 = smul.addr %s251, 4
      %s253 = scalar_lea.vmem %s1, %s252
      %s254 = smul.u32 16, %s20
      %s255 = smul.u32 16, %s20
      %p256 = scmp.lt.s32.totalorder %s255, 15
      %s257 = scalar_select %p256, %s255, 15
      %s258 = smul.addr %s257, 8
      %s259 = scalar_lea.vmem %s2, %s258
      %s260 = smul.u32 16, %s20
      %s261 = smul.u32 16, %s20
      %s262 = smul.u32 2, %s21
      %p263 = scmp.lt.s32.totalorder %s19, 1
      %s264 = scalar_select %p263, %s19, 1
      %p265 = scmp.lt.s32.totalorder %s261, 15
      %s266 = scalar_select %p265, %s261, 15
      %p267 = scmp.lt.s32.totalorder %s262, 1
      %s268 = scalar_select %p267, %s262, 1
      %s269 = smul.addr %s266, 2
      %s270 = sadd.s32 %s268, %s269
      %s271 = smul.addr %s264, 32
      %s272 = sadd.s32 %s270, %s271
      %s273 = smul.addr %s272, 8
      %s274 = scalar_lea.vmem %s3, %s273
      %s275 = smul.u32 16, %s20
      %s276 = smul.u32 2, %s21
      %v278 = vld [vmem:[%s253] sm:$0xff]
      %v279 = vld [vmem:[%s253 + $0x8] sm:$0xf]
      %v280 = vld [vmem:[%s253 + $0xc] sm:$0xff]
      %v281 = vld [vmem:[%s253 + $0x14] sm:$0xf]
      %v282 = vld [vmem:[%s253 + $0x18] sm:$0xff]
      %v283 = vld [vmem:[%s253 + $0x20] sm:$0xf]
      %v284 = vld [vmem:[%s253 + $0x24] sm:$0xff]
      %v285 = vld [vmem:[%s253 + $0x2c] sm:$0xf]
      %v286 = vld [vmem:[%s253 + $0x30] sm:$0xff]
      %v287 = vld [vmem:[%s253 + $0x38] sm:$0xf]
      %v288 = vld [vmem:[%s253 + $0x3c] sm:$0xff]
      %v289 = vld [vmem:[%s253 + $0x44] sm:$0xf]
      %v290 = vld [vmem:[%s253 + $0x48] sm:$0xff]
      %v291 = vld [vmem:[%s253 + $0x50] sm:$0xf]
      %v292 = vld [vmem:[%s253 + $0x54] sm:$0xff]
      %v293 = vld [vmem:[%s253 + $0x5c] sm:$0xf]
      %v294 = vld [vmem:[%s253 + $0x60] sm:$0xff]
      %v295 = vld [vmem:[%s253 + $0x68] sm:$0xf]
      %v296 = vld [vmem:[%s253 + $0x6c] sm:$0xff]
      %v297 = vld [vmem:[%s253 + $0x74] sm:$0xf]
      %v298 = vld [vmem:[%s253 + $0x78] sm:$0xff]
      %v299 = vld [vmem:[%s253 + $0x80] sm:$0xf]
      %v300 = vld [vmem:[%s253 + $0x84] sm:$0xff]
      %v301 = vld [vmem:[%s253 + $0x8c] sm:$0xf]
      %v302 = vld [vmem:[%s253 + $0x90] sm:$0xff]
      %v303 = vld [vmem:[%s253 + $0x98] sm:$0xf]
      %v304 = vld [vmem:[%s253 + $0x9c] sm:$0xff]
      %v305 = vld [vmem:[%s253 + $0xa4] sm:$0xf]
      %v306 = vld [vmem:[%s253 + $0xa8] sm:$0xff]
      %v307 = vld [vmem:[%s253 + $0xb0] sm:$0xf]
      %v308 = vld [vmem:[%s253 + $0xb4] sm:$0xff]
      %v309 = vld [vmem:[%s253 + $0xbc] sm:$0xf]
      %v310 = vld [vmem:[%s246] sm:$0xff]
      %v311 = vld [vmem:[%s246 + $0x8] sm:$0xff]
      %v312 = vld [vmem:[%s246 + $0x10] sm:$0xff]
      %v313 = vld [vmem:[%s246 + $0x18] sm:$0xff]
      %v314 = vld [vmem:[%s246 + $0x20] sm:$0xff]
      %v315 = vld [vmem:[%s246 + $0x28] sm:$0xff]
      %v316 = vld [vmem:[%s246 + $0x30] sm:$0xff]
      %v317 = vld [vmem:[%s246 + $0x38] sm:$0xff]
      %v318 = vld [vmem:[%s246 + $0x40] sm:$0xff]
      %v319 = vld [vmem:[%s246 + $0x48] sm:$0xff]
      %v320 = vld [vmem:[%s246 + $0x50] sm:$0xff]
      %v321 = vld [vmem:[%s246 + $0x58] sm:$0xff]
      %v322 = vld [vmem:[%s246 + $0x60] sm:$0xff]
      %v323 = vld [vmem:[%s246 + $0x68] sm:$0xff]
      %v324 = vld [vmem:[%s246 + $0x70] sm:$0xff]
      %v325 = vld [vmem:[%s246 + $0x78] sm:$0xff]
      %v326 = vld [vmem:[%s246 + $0x80] sm:$0xff]
      %v327 = vld [vmem:[%s246 + $0x88] sm:$0xff]
      %v328 = vld [vmem:[%s246 + $0x90] sm:$0xff]
      %v329 = vld [vmem:[%s246 + $0x98] sm:$0xff]
      %v330 = vld [vmem:[%s246 + $0xa0] sm:$0xff]
      %v331 = vld [vmem:[%s246 + $0xa8] sm:$0xff]
      %v332 = vld [vmem:[%s246 + $0xb0] sm:$0xff]
      %v333 = vld [vmem:[%s246 + $0xb8] sm:$0xff]
      %v334 = vld [vmem:[%s246 + $0xc0] sm:$0xff]
      %v335 = vld [vmem:[%s246 + $0xc8] sm:$0xff]
      %v336 = vld [vmem:[%s246 + $0xd0] sm:$0xff]
      %v337 = vld [vmem:[%s246 + $0xd8] sm:$0xff]
      %v338 = vld [vmem:[%s246 + $0xe0] sm:$0xff]
      %v339 = vld [vmem:[%s246 + $0xe8] sm:$0xff]
      %v340 = vld [vmem:[%s246 + $0xf0] sm:$0xff]
      %v341 = vld [vmem:[%s246 + $0xf8] sm:$0xff]
      %v342 = vld [vmem:[%s246 + $0x100] sm:$0xff]
      %v343 = vld [vmem:[%s246 + $0x108] sm:$0xff]
      %v344 = vld [vmem:[%s246 + $0x110] sm:$0xff]
      %v345 = vld [vmem:[%s246 + $0x118] sm:$0xff]
      %v346 = vld [vmem:[%s259] sm:$0xff]
      %v347 = vld [vmem:[%s259 + $0x8] sm:$0xff]
      %v348 = vld [vmem:[%s259 + $0x10] sm:$0xff]
      %v349 = vld [vmem:[%s259 + $0x18] sm:$0xff]
      %v350 = vld [vmem:[%s259 + $0x20] sm:$0xff]
      %v351 = vld [vmem:[%s259 + $0x28] sm:$0xff]
      %v352 = vld [vmem:[%s259 + $0x30] sm:$0xff]
      %v353 = vld [vmem:[%s259 + $0x38] sm:$0xff]
      %v354 = vld [vmem:[%s259 + $0x40] sm:$0xff]
      %v355 = vld [vmem:[%s259 + $0x48] sm:$0xff]
      %v356 = vld [vmem:[%s259 + $0x50] sm:$0xff]
      %v357 = vld [vmem:[%s259 + $0x58] sm:$0xff]
      %v358 = vld [vmem:[%s259 + $0x60] sm:$0xff]
      %v359 = vld [vmem:[%s259 + $0x68] sm:$0xff]
      %v360 = vld [vmem:[%s259 + $0x70] sm:$0xff]
      %v361 = vld [vmem:[%s259 + $0x78] sm:$0xff]
      %363 = vset.pattern.permute.xlu0 0
      %364 = vperm.xlu0 %363, %v346
      %v365 = vpop.permute.xlu0 %364
      %368 = vset.pattern.permute.xlu0 0
      %369 = vperm.xlu0 %368, %v347
      %v370 = vpop.permute.xlu0 %369
      %373 = vset.pattern.permute.xlu0 0
      %374 = vperm.xlu0 %373, %v348
      %v375 = vpop.permute.xlu0 %374
      %378 = vset.pattern.permute.xlu0 0
      %379 = vperm.xlu0 %378, %v349
      %v380 = vpop.permute.xlu0 %379
      %383 = vset.pattern.permute.xlu0 0
      %384 = vperm.xlu0 %383, %v350
      %v385 = vpop.permute.xlu0 %384
      %388 = vset.pattern.permute.xlu0 0
      %389 = vperm.xlu0 %388, %v351
      %v390 = vpop.permute.xlu0 %389
      %393 = vset.pattern.permute.xlu0 0
      %394 = vperm.xlu0 %393, %v352
      %v395 = vpop.permute.xlu0 %394
      %398 = vset.pattern.permute.xlu0 0
      %399 = vperm.xlu0 %398, %v353
      %v400 = vpop.permute.xlu0 %399
      %403 = vset.pattern.permute.xlu0 0
      %404 = vperm.xlu0 %403, %v354
      %v405 = vpop.permute.xlu0 %404
      %408 = vset.pattern.permute.xlu0 0
      %409 = vperm.xlu0 %408, %v355
      %v410 = vpop.permute.xlu0 %409
      %413 = vset.pattern.permute.xlu0 0
      %414 = vperm.xlu0 %413, %v356
      %v415 = vpop.permute.xlu0 %414
      %418 = vset.pattern.permute.xlu0 0
      %419 = vperm.xlu0 %418, %v357
      %v420 = vpop.permute.xlu0 %419
      %423 = vset.pattern.permute.xlu0 0
      %424 = vperm.xlu0 %423, %v358
      %v425 = vpop.permute.xlu0 %424
      %428 = vset.pattern.permute.xlu0 0
      %429 = vperm.xlu0 %428, %v359
      %v430 = vpop.permute.xlu0 %429
      %433 = vset.pattern.permute.xlu0 0
      %434 = vperm.xlu0 %433, %v360
      %v435 = vpop.permute.xlu0 %434
      %438 = vset.pattern.permute.xlu0 0
      %439 = vperm.xlu0 %438, %v361
      %v440 = vpop.permute.xlu0 %439
      %v474 = vunpack.c.l.b16 %v278
      %v475 = vunpack.c.h.b16 %v278
      %v476 = vunpack.c.l.b16 %v279
      %v477 = vunpack.c.l.b16 %v280
      %v478 = vunpack.c.h.b16 %v280
      %v479 = vunpack.c.l.b16 %v281
      %v480 = vunpack.c.l.b16 %v282
      %v481 = vunpack.c.h.b16 %v282
      %v482 = vunpack.c.l.b16 %v283
      %v483 = vunpack.c.l.b16 %v284
      %v484 = vunpack.c.h.b16 %v284
      %v485 = vunpack.c.l.b16 %v285
      %v486 = vunpack.c.l.b16 %v286
      %v487 = vunpack.c.h.b16 %v286
      %v488 = vunpack.c.l.b16 %v287
      %v489 = vunpack.c.l.b16 %v288
      %v490 = vunpack.c.h.b16 %v288
      %v491 = vunpack.c.l.b16 %v289
      %v492 = vunpack.c.l.b16 %v290
      %v493 = vunpack.c.h.b16 %v290
      %v494 = vunpack.c.l.b16 %v291
      %v495 = vunpack.c.l.b16 %v292
      %v496 = vunpack.c.h.b16 %v292
      %v497 = vunpack.c.l.b16 %v293
      %v498 = vunpack.c.l.b16 %v294
      %v499 = vunpack.c.h.b16 %v294
      %v500 = vunpack.c.l.b16 %v295
      %v501 = vunpack.c.l.b16 %v296
      %v502 = vunpack.c.h.b16 %v296
      %v503 = vunpack.c.l.b16 %v297
      %v504 = vunpack.c.l.b16 %v298
      %v505 = vunpack.c.h.b16 %v298
      %v506 = vunpack.c.l.b16 %v299
      %v507 = vunpack.c.l.b16 %v300
      %v508 = vunpack.c.h.b16 %v300
      %v509 = vunpack.c.l.b16 %v301
      %v510 = vunpack.c.l.b16 %v302
      %v511 = vunpack.c.h.b16 %v302
      %v512 = vunpack.c.l.b16 %v303
      %v513 = vunpack.c.l.b16 %v304
      %v514 = vunpack.c.h.b16 %v304
      %v515 = vunpack.c.l.b16 %v305
      %v516 = vunpack.c.l.b16 %v306
      %v517 = vunpack.c.h.b16 %v306
      %v518 = vunpack.c.l.b16 %v307
      %v519 = vunpack.c.l.b16 %v308
      %v520 = vunpack.c.h.b16 %v308
      %v521 = vunpack.c.l.b16 %v309
      %v522 = vpack.c.b16 %v477, %v474
      %v523 = vpack.c.b16 %v478, %v475
      %v524 = vpack.c.b16 %v479, %v476
      %v525 = vpack.c.b16 %v483, %v480
      %v526 = vpack.c.b16 %v484, %v481
      %v527 = vpack.c.b16 %v485, %v482
      %v528 = vpack.c.b16 %v489, %v486
      %v529 = vpack.c.b16 %v490, %v487
      %v530 = vpack.c.b16 %v491, %v488
      %v531 = vpack.c.b16 %v495, %v492
      %v532 = vpack.c.b16 %v496, %v493
      %v533 = vpack.c.b16 %v497, %v494
      %v534 = vpack.c.b16 %v501, %v498
      %v535 = vpack.c.b16 %v502, %v499
      %v536 = vpack.c.b16 %v503, %v500
      %v537 = vpack.c.b16 %v507, %v504
      %v538 = vpack.c.b16 %v508, %v505
      %v539 = vpack.c.b16 %v509, %v506
      %v540 = vpack.c.b16 %v513, %v510
      %v541 = vpack.c.b16 %v514, %v511
      %v542 = vpack.c.b16 %v515, %v512
      %v543 = vpack.c.b16 %v519, %v516
      %v544 = vpack.c.b16 %v520, %v517
      %v545 = vpack.c.b16 %v521, %v518
      %v598 = vunpack.c.l.b16 %v310
      %v599 = vunpack.c.h.b16 %v310
      %v600 = vunpack.c.l.b16 %v311
      %v601 = vunpack.c.h.b16 %v311
      %v602 = vunpack.c.l.b16 %v312
      %v603 = vunpack.c.h.b16 %v312
      %v604 = vunpack.c.l.b16 %v313
      %v605 = vunpack.c.h.b16 %v313
      %v606 = vunpack.c.l.b16 %v314
      %v607 = vunpack.c.h.b16 %v314
      %v608 = vunpack.c.l.b16 %v315
      %v609 = vunpack.c.h.b16 %v315
      %v610 = vunpack.c.l.b16 %v316
      %v611 = vunpack.c.h.b16 %v316
      %v612 = vunpack.c.l.b16 %v317
      %v613 = vunpack.c.h.b16 %v317
      %v614 = vunpack.c.l.b16 %v318
      %v615 = vunpack.c.h.b16 %v318
      %v616 = vunpack.c.l.b16 %v319
      %v617 = vunpack.c.h.b16 %v319
      %v618 = vunpack.c.l.b16 %v320
      %v619 = vunpack.c.h.b16 %v320
      %v620 = vunpack.c.l.b16 %v321
      %v621 = vunpack.c.h.b16 %v321
      %v622 = vunpack.c.l.b16 %v322
      %v623 = vunpack.c.h.b16 %v322
      %v624 = vunpack.c.l.b16 %v323
      %v625 = vunpack.c.h.b16 %v323
      %v626 = vunpack.c.l.b16 %v324
      %v627 = vunpack.c.h.b16 %v324
      %v628 = vunpack.c.l.b16 %v325
      %v629 = vunpack.c.h.b16 %v325
      %v630 = vunpack.c.l.b16 %v326
      %v631 = vunpack.c.h.b16 %v326
      %v632 = vunpack.c.l.b16 %v327
      %v633 = vunpack.c.h.b16 %v327
      %v634 = vunpack.c.l.b16 %v328
      %v635 = vunpack.c.h.b16 %v328
      %v636 = vunpack.c.l.b16 %v329
      %v637 = vunpack.c.h.b16 %v329
      %v638 = vunpack.c.l.b16 %v330
      %v639 = vunpack.c.h.b16 %v330
      %v640 = vunpack.c.l.b16 %v331
      %v641 = vunpack.c.h.b16 %v331
      %v642 = vunpack.c.l.b16 %v332
      %v643 = vunpack.c.h.b16 %v332
      %v644 = vunpack.c.l.b16 %v333
      %v645 = vunpack.c.h.b16 %v333
      %v646 = vunpack.c.l.b16 %v334
      %v647 = vunpack.c.h.b16 %v334
      %v648 = vunpack.c.l.b16 %v335
      %v649 = vunpack.c.h.b16 %v335
      %v650 = vunpack.c.l.b16 %v336
      %v651 = vunpack.c.h.b16 %v336
      %v652 = vunpack.c.l.b16 %v337
      %v653 = vunpack.c.h.b16 %v337
      %v654 = vunpack.c.l.b16 %v338
      %v655 = vunpack.c.h.b16 %v338
      %v656 = vunpack.c.l.b16 %v339
      %v657 = vunpack.c.h.b16 %v339
      %v658 = vunpack.c.l.b16 %v340
      %v659 = vunpack.c.h.b16 %v340
      %v660 = vunpack.c.l.b16 %v341
      %v661 = vunpack.c.h.b16 %v341
      %v662 = vunpack.c.l.b16 %v342
      %v663 = vunpack.c.h.b16 %v342
      %v664 = vunpack.c.l.b16 %v343
      %v665 = vunpack.c.h.b16 %v343
      %v666 = vunpack.c.l.b16 %v344
      %v667 = vunpack.c.h.b16 %v344
      %v668 = vunpack.c.l.b16 %v345
      %v669 = vunpack.c.h.b16 %v345
      %v670 = vpack.c.b16 %v600, %v598
      %v671 = vpack.c.b16 %v601, %v599
      %v672 = vpack.c.b16 %v604, %v602
      %v673 = vpack.c.b16 %v605, %v603
      %v674 = vpack.c.b16 %v608, %v606
      %v675 = vpack.c.b16 %v609, %v607
      %v676 = vpack.c.b16 %v612, %v610
      %v677 = vpack.c.b16 %v613, %v611
      %v678 = vpack.c.b16 %v616, %v614
      %v679 = vpack.c.b16 %v617, %v615
      %v680 = vpack.c.b16 %v620, %v618
      %v681 = vpack.c.b16 %v621, %v619
      %v682 = vpack.c.b16 %v624, %v622
      %v683 = vpack.c.b16 %v625, %v623
      %v684 = vpack.c.b16 %v628, %v626
      %v685 = vpack.c.b16 %v629, %v627
      %v686 = vpack.c.b16 %v632, %v630
      %v687 = vpack.c.b16 %v633, %v631
      %v688 = vpack.c.b16 %v636, %v634
      %v689 = vpack.c.b16 %v637, %v635
      %v690 = vpack.c.b16 %v640, %v638
      %v691 = vpack.c.b16 %v641, %v639
      %v692 = vpack.c.b16 %v644, %v642
      %v693 = vpack.c.b16 %v645, %v643
      %v694 = vpack.c.b16 %v648, %v646
      %v695 = vpack.c.b16 %v649, %v647
      %v696 = vpack.c.b16 %v652, %v650
      %v697 = vpack.c.b16 %v653, %v651
      %v698 = vpack.c.b16 %v656, %v654
      %v699 = vpack.c.b16 %v657, %v655
      %v700 = vpack.c.b16 %v660, %v658
      %v701 = vpack.c.b16 %v661, %v659
      %v702 = vpack.c.b16 %v664, %v662
      %v703 = vpack.c.b16 %v665, %v663
      %v704 = vpack.c.b16 %v668, %v666
      %v705 = vpack.c.b16 %v669, %v667
      %vm742 = vcmask 261120
      %v744 = vsel %vm742, %v524, 0
      %v747 = vsel %vm742, %v527, 0
      %v750 = vsel %vm742, %v530, 0
      %v753 = vsel %vm742, %v533, 0
      %v756 = vsel %vm742, %v536, 0
      %v759 = vsel %vm742, %v539, 0
      %v762 = vsel %vm742, %v542, 0
      %v765 = vsel %vm742, %v545, 0
      %767 = vmatprep.subr.bf16.mxu0 %v671
      %768 = vmatpush1.bf16.msra.mxu0 %v670
      %769 = vmatprep.subr.bf16.mxu0 %v673
      %770 = vmatpush1.bf16.msra.mxu0 %v672
      %771 = vmatprep.subr.bf16.mxu0 %v675
      %772 = vmatpush1.bf16.msra.mxu0 %v674
      %773 = vmatprep.subr.bf16.mxu0 %v677
      %774 = vmatpush1.bf16.msra.mxu0 %v676
      %775 = vmatprep.subr.bf16.mxu0 %v679
      %776 = vmatpush1.bf16.msra.mxu0 %v678
      %777 = vmatprep.subr.bf16.mxu0 %v681
      %778 = vmatpush1.bf16.msra.mxu0 %v680
      %779 = vmatprep.subr.bf16.mxu0 %v683
      %780 = vmatpush1.bf16.msra.mxu0 %v682
      %781 = vmatprep.subr.bf16.mxu0 %v685
      %782 = vmatpush1.bf16.msra.mxu0 %v684
      %783 = vmatprep.subr.bf16.mxu0 %v687
      %784 = vmatpush1.bf16.msra.mxu0 %v686
      %785 = vmatprep.subr.bf16.mxu0 %v689
      %786 = vmatpush1.bf16.msra.mxu0 %v688
      %787 = vmatprep.subr.bf16.mxu0 %v691
      %788 = vmatpush1.bf16.msra.mxu0 %v690
      %789 = vmatprep.subr.bf16.mxu0 %v693
      %790 = vmatpush1.bf16.msra.mxu0 %v692
      %791 = vmatprep.subr.bf16.mxu0 %v695
      %792 = vmatpush1.bf16.msra.mxu0 %v694
      %793 = vmatprep.subr.bf16.mxu0 %v697
      %794 = vmatpush1.bf16.msra.mxu0 %v696
      %795 = vmatprep.subr.bf16.mxu0 %v699
      %796 = vmatpush1.bf16.msra.mxu0 %v698
      %797 = vmatprep.subr.bf16.mxu0 %v701
      %798 = vmatpush1.bf16.msra.mxu0 %v700
      %799 = vmatprep.mubr.bf16.mxu0 %v523
      %800 = vmatmul.mubr.bf16.gmra.mrb[0].mxu0 %v522
      %v801 = vpop.f32.mrb[0].mxu0
      %v802 = vadd.f32 %v365, %v801
      %v803 = vpop.f32.mrb[0].mxu0
      %v804 = vadd.f32 %v365, %v803
      %v805 = vpop.f32.mrb[0].mxu0
      %v806 = vadd.f32 %v370, %v805
      %v807 = vpop.f32.mrb[0].mxu0
      %v808 = vadd.f32 %v370, %v807
      %809 = vmatprep.mubr.bf16.mxu0 %v526
      %810 = vmatmul.mubr.bf16.gmra.mrb[0].mxu0 %v525
      %v811 = vpop.f32.mrb[0].mxu0
      %v812 = vadd.f32 %v375, %v811
      %v813 = vpop.f32.mrb[0].mxu0
      %v814 = vadd.f32 %v375, %v813
      %v815 = vpop.f32.mrb[0].mxu0
      %v816 = vadd.f32 %v380, %v815
      %v817 = vpop.f32.mrb[0].mxu0
      %v818 = vadd.f32 %v380, %v817
      %819 = vmatprep.mubr.bf16.mxu0 %v529
      %820 = vmatmul.mubr.bf16.gmra.mrb[0].mxu0 %v528
      %v821 = vpop.f32.mrb[0].mxu0
      %v822 = vadd.f32 %v385, %v821
      %v823 = vpop.f32.mrb[0].mxu0
      %v824 = vadd.f32 %v385, %v823
      %v825 = vpop.f32.mrb[0].mxu0
      %v826 = vadd.f32 %v390, %v825
      %v827 = vpop.f32.mrb[0].mxu0
      %v828 = vadd.f32 %v390, %v827
      %829 = vmatprep.mubr.bf16.mxu0 %v532
      %830 = vmatmul.mubr.bf16.gmra.mrb[0].mxu0 %v531
      %v831 = vpop.f32.mrb[0].mxu0
      %v832 = vadd.f32 %v395, %v831
      %v833 = vpop.f32.mrb[0].mxu0
      %v834 = vadd.f32 %v395, %v833
      %v835 = vpop.f32.mrb[0].mxu0
      %v836 = vadd.f32 %v400, %v835
      %v837 = vpop.f32.mrb[0].mxu0
      %v838 = vadd.f32 %v400, %v837
      %839 = vmatprep.mubr.bf16.mxu0 %v535
      %840 = vmatmul.mubr.bf16.gmra.mrb[0].mxu0 %v534
      %v841 = vpop.f32.mrb[0].mxu0
      %v842 = vadd.f32 %v405, %v841
      %v843 = vpop.f32.mrb[0].mxu0
      %v844 = vadd.f32 %v405, %v843
      %v845 = vpop.f32.mrb[0].mxu0
      %v846 = vadd.f32 %v410, %v845
      %v847 = vpop.f32.mrb[0].mxu0
      %v848 = vadd.f32 %v410, %v847
      %849 = vmatprep.mubr.bf16.mxu0 %v538
      %850 = vmatmul.mubr.bf16.gmra.mrb[0].mxu0 %v537
      %v851 = vpop.f32.mrb[0].mxu0
      %v852 = vadd.f32 %v415, %v851
      %v853 = vpop.f32.mrb[0].mxu0
      %v854 = vadd.f32 %v415, %v853
      %v855 = vpop.f32.mrb[0].mxu0
      %v856 = vadd.f32 %v420, %v855
      %v857 = vpop.f32.mrb[0].mxu0
      %v858 = vadd.f32 %v420, %v857
      %859 = vmatprep.mubr.bf16.mxu0 %v541
      %860 = vmatmul.mubr.bf16.gmra.mrb[0].mxu0 %v540
      %v861 = vpop.f32.mrb[0].mxu0
      %v862 = vadd.f32 %v425, %v861
      %v863 = vpop.f32.mrb[0].mxu0
      %v864 = vadd.f32 %v425, %v863
      %v865 = vpop.f32.mrb[0].mxu0
      %v866 = vadd.f32 %v430, %v865
      %v867 = vpop.f32.mrb[0].mxu0
      %v868 = vadd.f32 %v430, %v867
      %869 = vmatprep.mubr.bf16.mxu0 %v544
      %870 = vmatmul.mubr.bf16.gmra.mrb[0].mxu0 %v543
      %v871 = vpop.f32.mrb[0].mxu0
      %v872 = vadd.f32 %v435, %v871
      %v873 = vpop.f32.mrb[0].mxu0
      %v874 = vadd.f32 %v435, %v873
      %v875 = vpop.f32.mrb[0].mxu0
      %v876 = vadd.f32 %v440, %v875
      %v877 = vpop.f32.mrb[0].mxu0
      %v878 = vadd.f32 %v440, %v877
      %879 = vdwg.mxu0
      %880 = vmatprep.subr.bf16.mxu0 %v703
      %881 = vmatpush1.bf16.msra.mxu0 %v702
      %882 = vmatprep.subr.bf16.mxu0 %v705
      %883 = vmatpush1.bf16.msra.mxu0 %v704
      %884 = vmatprep.subr.bf16.mxu0 0
      %885 = vmatpush1.bf16.msra.mxu0 0
      %886 = vmatprep.subr.bf16.mxu0 0
      %887 = vmatpush1.bf16.msra.mxu0 0
      %888 = vmatprep.subr.bf16.mxu0 0
      %889 = vmatpush1.bf16.msra.mxu0 0
      %890 = vmatprep.subr.bf16.mxu0 0
      %891 = vmatpush1.bf16.msra.mxu0 0
      %892 = vmatprep.subr.bf16.mxu0 0
      %893 = vmatpush1.bf16.msra.mxu0 0
      %894 = vmatprep.subr.bf16.mxu0 0
      %895 = vmatpush1.bf16.msra.mxu0 0
      %896 = vmatprep.subr.bf16.mxu0 0
      %897 = vmatpush1.bf16.msra.mxu0 0
      %898 = vmatprep.subr.bf16.mxu0 0
      %899 = vmatpush1.bf16.msra.mxu0 0
      %900 = vmatprep.subr.bf16.mxu0 0
      %901 = vmatpush1.bf16.msra.mxu0 0
      %902 = vmatprep.subr.bf16.mxu0 0
      %903 = vmatpush1.bf16.msra.mxu0 0
      %904 = vmatprep.subr.bf16.mxu0 0
      %905 = vmatpush1.bf16.msra.mxu0 0
      %906 = vmatprep.subr.bf16.mxu0 0
      %907 = vmatpush1.bf16.msra.mxu0 0
      %908 = vmatprep.subr.bf16.mxu0 0
      %909 = vmatpush1.bf16.msra.mxu0 0
      %910 = vmatprep.subr.bf16.mxu0 0
      %911 = vmatpush1.bf16.msra.mxu0 0
      %912 = vmatprep.mubr.bf16.mxu0 0
      %913 = vmatmul.mubr.bf16.gmra.mrb[0].mxu0 %v744
      %v914 = vpop.f32.mrb[0].mxu0
      %v915 = vadd.f32 %v802, %v914
      %v916 = vpop.f32.mrb[0].mxu0
      %v917 = vadd.f32 %v804, %v916
      %v918 = vpop.f32.mrb[0].mxu0
      %v919 = vadd.f32 %v806, %v918
      %v920 = vpop.f32.mrb[0].mxu0
      %v921 = vadd.f32 %v808, %v920
      %922 = vmatprep.mubr.bf16.mxu0 0
      %923 = vmatmul.mubr.bf16.gmra.mrb[0].mxu0 %v747
      %v924 = vpop.f32.mrb[0].mxu0
      %v925 = vadd.f32 %v812, %v924
      %v926 = vpop.f32.mrb[0].mxu0
      %v927 = vadd.f32 %v814, %v926
      %v928 = vpop.f32.mrb[0].mxu0
      %v929 = vadd.f32 %v816, %v928
      %v930 = vpop.f32.mrb[0].mxu0
      %v931 = vadd.f32 %v818, %v930
      %932 = vmatprep.mubr.bf16.mxu0 0
      %933 = vmatmul.mubr.bf16.gmra.mrb[0].mxu0 %v750
      %v934 = vpop.f32.mrb[0].mxu0
      %v935 = vadd.f32 %v822, %v934
      %v936 = vpop.f32.mrb[0].mxu0
      %v937 = vadd.f32 %v824, %v936
      %v938 = vpop.f32.mrb[0].mxu0
      %v939 = vadd.f32 %v826, %v938
      %v940 = vpop.f32.mrb[0].mxu0
      %v941 = vadd.f32 %v828, %v940
      %942 = vmatprep.mubr.bf16.mxu0 0
      %943 = vmatmul.mubr.bf16.gmra.mrb[0].mxu0 %v753
      %v944 = vpop.f32.mrb[0].mxu0
      %v945 = vadd.f32 %v832, %v944
      %v946 = vpop.f32.mrb[0].mxu0
      %v947 = vadd.f32 %v834, %v946
      %v948 = vpop.f32.mrb[0].mxu0
      %v949 = vadd.f32 %v836, %v948
      %v950 = vpop.f32.mrb[0].mxu0
      %v951 = vadd.f32 %v838, %v950
      %952 = vmatprep.mubr.bf16.mxu0 0
      %953 = vmatmul.mubr.bf16.gmra.mrb[0].mxu0 %v756
      %v954 = vpop.f32.mrb[0].mxu0
      %v955 = vadd.f32 %v842, %v954
      %v956 = vpop.f32.mrb[0].mxu0
      %v957 = vadd.f32 %v844, %v956
      %v958 = vpop.f32.mrb[0].mxu0
      %v959 = vadd.f32 %v846, %v958
      %v960 = vpop.f32.mrb[0].mxu0
      %v961 = vadd.f32 %v848, %v960
      %962 = vmatprep.mubr.bf16.mxu0 0
      %963 = vmatmul.mubr.bf16.gmra.mrb[0].mxu0 %v759
      %v964 = vpop.f32.mrb[0].mxu0
      %v965 = vadd.f32 %v852, %v964
      %v966 = vpop.f32.mrb[0].mxu0
      %v967 = vadd.f32 %v854, %v966
      %v968 = vpop.f32.mrb[0].mxu0
      %v969 = vadd.f32 %v856, %v968
      %v970 = vpop.f32.mrb[0].mxu0
      %v971 = vadd.f32 %v858, %v970
      %972 = vmatprep.mubr.bf16.mxu0 0
      %973 = vmatmul.mubr.bf16.gmra.mrb[0].mxu0 %v762
      %v974 = vpop.f32.mrb[0].mxu0
      %v975 = vadd.f32 %v862, %v974
      %v976 = vpop.f32.mrb[0].mxu0
      %v977 = vadd.f32 %v864, %v976
      %v978 = vpop.f32.mrb[0].mxu0
      %v979 = vadd.f32 %v866, %v978
      %v980 = vpop.f32.mrb[0].mxu0
      %v981 = vadd.f32 %v868, %v980
      %982 = vmatprep.mubr.bf16.mxu0 0
      %983 = vmatmul.mubr.bf16.gmra.mrb[0].mxu0 %v765
      %v984 = vpop.f32.mrb[0].mxu0
      %v985 = vadd.f32 %v872, %v984
      %v986 = vpop.f32.mrb[0].mxu0
      %v987 = vadd.f32 %v874, %v986
      %v988 = vpop.f32.mrb[0].mxu0
      %v989 = vadd.f32 %v876, %v988
      %v990 = vpop.f32.mrb[0].mxu0
      %v991 = vadd.f32 %v878, %v990
      %992 = vdwg.mxu0
      %v993 = vmul.f32 %v915, 0.1
      %v994 = vmul.f32 %v917, 0.1
      %v995 = vmul.f32 %v919, 0.1
      %v996 = vmul.f32 %v921, 0.1
      %v997 = vmul.f32 %v925, 0.1
      %v998 = vmul.f32 %v927, 0.1
      %v999 = vmul.f32 %v929, 0.1
      %v1000 = vmul.f32 %v931, 0.1
      %v1001 = vmul.f32 %v935, 0.1
      %v1002 = vmul.f32 %v937, 0.1
      %v1003 = vmul.f32 %v939, 0.1
      %v1004 = vmul.f32 %v941, 0.1
      %v1005 = vmul.f32 %v945, 0.1
      %v1006 = vmul.f32 %v947, 0.1
      %v1007 = vmul.f32 %v949, 0.1
      %v1008 = vmul.f32 %v951, 0.1
      %v1009 = vmul.f32 %v955, 0.1
      %v1010 = vmul.f32 %v957, 0.1
      %v1011 = vmul.f32 %v959, 0.1
      %v1012 = vmul.f32 %v961, 0.1
      %v1013 = vmul.f32 %v965, 0.1
      %v1014 = vmul.f32 %v967, 0.1
      %v1015 = vmul.f32 %v969, 0.1
      %v1016 = vmul.f32 %v971, 0.1
      %v1017 = vmul.f32 %v975, 0.1
      %v1018 = vmul.f32 %v977, 0.1
      %v1019 = vmul.f32 %v979, 0.1
      %v1020 = vmul.f32 %v981, 0.1
      %v1021 = vmul.f32 %v985, 0.1
      %v1022 = vmul.f32 %v987, 0.1
      %v1023 = vmul.f32 %v989, 0.1
      %v1024 = vmul.f32 %v991, 0.1
      %v1025 = vmax.f32 %v915, %v993
      %v1026 = vmax.f32 %v917, %v994
      %v1027 = vmax.f32 %v919, %v995
      %v1028 = vmax.f32 %v921, %v996
      %v1029 = vmax.f32 %v925, %v997
      %v1030 = vmax.f32 %v927, %v998
      %v1031 = vmax.f32 %v929, %v999
      %v1032 = vmax.f32 %v931, %v1000
      %v1033 = vmax.f32 %v935, %v1001
      %v1034 = vmax.f32 %v937, %v1002
      %v1035 = vmax.f32 %v939, %v1003
      %v1036 = vmax.f32 %v941, %v1004
      %v1037 = vmax.f32 %v945, %v1005
      %v1038 = vmax.f32 %v947, %v1006
      %v1039 = vmax.f32 %v949, %v1007
      %v1040 = vmax.f32 %v951, %v1008
      %v1041 = vmax.f32 %v955, %v1009
      %v1042 = vmax.f32 %v957, %v1010
      %v1043 = vmax.f32 %v959, %v1011
      %v1044 = vmax.f32 %v961, %v1012
      %v1045 = vmax.f32 %v965, %v1013
      %v1046 = vmax.f32 %v967, %v1014
      %v1047 = vmax.f32 %v969, %v1015
      %v1048 = vmax.f32 %v971, %v1016
      %v1049 = vmax.f32 %v975, %v1017
      %v1050 = vmax.f32 %v977, %v1018
      %v1051 = vmax.f32 %v979, %v1019
      %v1052 = vmax.f32 %v981, %v1020
      %v1053 = vmax.f32 %v985, %v1021
      %v1054 = vmax.f32 %v987, %v1022
      %v1055 = vmax.f32 %v989, %v1023
      %v1056 = vmax.f32 %v991, %v1024
      %1057 = vst [vmem:[%s274] sm:$0xff] %v1025
      %1058 = vst [vmem:[%s274 + $0x8] sm:$0xff] %v1026
      %1059 = vst [vmem:[%s274 + $0x10] sm:$0xff] %v1027
      %1060 = vst [vmem:[%s274 + $0x18] sm:$0xff] %v1028
      %1061 = vst [vmem:[%s274 + $0x20] sm:$0xff] %v1029
      %1062 = vst [vmem:[%s274 + $0x28] sm:$0xff] %v1030
      %1063 = vst [vmem:[%s274 + $0x30] sm:$0xff] %v1031
      %1064 = vst [vmem:[%s274 + $0x38] sm:$0xff] %v1032
      %1065 = vst [vmem:[%s274 + $0x40] sm:$0xff] %v1033
      %1066 = vst [vmem:[%s274 + $0x48] sm:$0xff] %v1034
      %1067 = vst [vmem:[%s274 + $0x50] sm:$0xff] %v1035
      %1068 = vst [vmem:[%s274 + $0x58] sm:$0xff] %v1036
      %1069 = vst [vmem:[%s274 + $0x60] sm:$0xff] %v1037
      %1070 = vst [vmem:[%s274 + $0x68] sm:$0xff] %v1038
      %1071 = vst [vmem:[%s274 + $0x70] sm:$0xff] %v1039
      %1072 = vst [vmem:[%s274 + $0x78] sm:$0xff] %v1040
      %1073 = vst [vmem:[%s274 + $0x80] sm:$0xff] %v1041
      %1074 = vst [vmem:[%s274 + $0x88] sm:$0xff] %v1042
      %1075 = vst [vmem:[%s274 + $0x90] sm:$0xff] %v1043
      %1076 = vst [vmem:[%s274 + $0x98] sm:$0xff] %v1044
      %1077 = vst [vmem:[%s274 + $0xa0] sm:$0xff] %v1045
      %1078 = vst [vmem:[%s274 + $0xa8] sm:$0xff] %v1046
      %1079 = vst [vmem:[%s274 + $0xb0] sm:$0xff] %v1047
      %1080 = vst [vmem:[%s274 + $0xb8] sm:$0xff] %v1048
      %1081 = vst [vmem:[%s274 + $0xc0] sm:$0xff] %v1049
      %1082 = vst [vmem:[%s274 + $0xc8] sm:$0xff] %v1050
      %1083 = vst [vmem:[%s274 + $0xd0] sm:$0xff] %v1051
      %1084 = vst [vmem:[%s274 + $0xd8] sm:$0xff] %v1052
      %1085 = vst [vmem:[%s274 + $0xe0] sm:$0xff] %v1053
      %1086 = vst [vmem:[%s274 + $0xe8] sm:$0xff] %v1054
      %1087 = vst [vmem:[%s274 + $0xf0] sm:$0xff] %v1055
      %1088 = vst [vmem:[%s274 + $0xf8] sm:$0xff] %v1056
      %s1089 = smul.u32 16, %s20
      %s1090 = smul.u32 2, %s21
      %p1091 = scmp.lt.s32.totalorder %s19, 1
      %s1092 = scalar_select %p1091, %s19, 1
      %p1093 = scmp.lt.s32.totalorder %s1089, 15
      %s1094 = scalar_select %p1093, %s1089, 15
      %p1095 = scmp.lt.s32.totalorder %s1090, 1
      %s1096 = scalar_select %p1095, %s1090, 1
      %s1097 = smul.addr %s1094, 2
      %s1098 = sadd.s32 %s1096, %s1097
      %s1099 = smul.addr %s1092, 32
      %s1100 = sadd.s32 %s1098, %s1099
      %s1101 = smul.addr %s1100, 8
      %s1102 = scalar_lea.vmem %s3, %s1101
      // Predicated region
      $region33: #{mono_sceneflow_decoder_lstm.7} parent=31 // pred_check
        %p1103 = pneg %p135
      $region34: #{mono_sceneflow_decoder_lstm.7} parent=31 // pred_check_branch
        %1105 = sbr.rel (%p1103) target = $region36
      $region35: #{mono_sceneflow_decoder_lstm.7} parent=31 // pred_region
        %s1106 = smul.u32 16, %s20
        %s1107 = smul.u32 2, %s21
      $region36: #{mono_sceneflow_decoder_lstm.7} parent=31 // pred_fallthru
        _
    $region32: #{mono_sceneflow_decoder_lstm.7} parent=5 // pred_fallthru
      _
    %p1108 = scmp.le.s32.totalorder 2, %s9
    // Predicated region
    $region37: #{mono_sceneflow_decoder_lstm.7} parent=5 // pred_check
      %p1109 = pneg %p1108
    $region38: #{mono_sceneflow_decoder_lstm.7} parent=5 // pred_check_branch
      %1111 = sbr.rel (%p1109) target = $region40
    $region39: #{mono_sceneflow_decoder_lstm.7} parent=5 // pred_region
      %s1112 = ssub.s32 %s9, 2
      // Predicated region
      $region41: #{mono_sceneflow_decoder_lstm.7} parent=39 // pred_check
        %p1113 = pneg %p141
      $region42: #{mono_sceneflow_decoder_lstm.7} parent=39 // pred_check_branch
        %1115 = sbr.rel (%p1113) target = $region44
      $region43: #{mono_sceneflow_decoder_lstm.7} parent=39 // pred_region
        %s1116 = smul.u32 16, %s23
        %s1117 = smul.u32 2, %s24
        %p1118 = scmp.lt.s32.totalorder %s22, 1
        %s1119 = scalar_select %p1118, %s22, 1
        %p1120 = scmp.lt.s32.totalorder %s1116, 15
        %s1121 = scalar_select %p1120, %s1116, 15
        %p1122 = scmp.lt.s32.totalorder %s1117, 1
        %s1123 = scalar_select %p1122, %s1117, 1
        %s1124 = smul.addr %s1121, 2
        %s1125 = sadd.s32 %s1123, %s1124
        %s1126 = smul.addr %s1119, 32
        %s1127 = sadd.s32 %s1125, %s1126
        %s1128 = smul.addr %s1127, 8
        %s1129 = scalar_lea.vmem %s3, %s1128
      $region44: #{mono_sceneflow_decoder_lstm.7} parent=39 // pred_fallthru
        _
    $region40: #{mono_sceneflow_decoder_lstm.7} parent=5 // pred_fallthru
      _
  $region6: #{mono_sceneflow_decoder_lstm.7} parent=0 // loop_footer
    %s13 = sadd.s32 1, %s9
  $region7: #{mono_sceneflow_decoder_lstm.7} parent=0 // loop_footer_branch
    %8 = sbr.rel target = $region3
  $region8: #{mono_sceneflow_decoder_lstm.7} parent=0 // loop_exit
    _

// kernel: mono_sceneflow_decoder_lstm.8
$region0: #{mono_sceneflow_decoder_lstm.8}
  #allocation0 [shape = 'u32[]', space=smem, size = 0x4, offset = 0x4, fixed_abs, tag = 'smem constant byte address 0x4 - core index']
  #allocation1 [shape = 'u32[144,128]{1,0:T(1,128)}', space=vmem, size = 0x12000, scoped, tag = 'internal scratch']
  %s0 = inlined_call_operand.vmem [shape: bf16[2,1152,256], index: 0, kind: input, shape index: {}]
  %s1 = inlined_call_operand.vmem [shape: bf16[128,1152], index: 1, kind: input, shape index: {}]
  %s2 = inlined_call_operand.vmem [shape: f32[128,1], index: 2, kind: input, shape index: {}]
  %s3 = inlined_call_operand.vmem [shape: f32[2,128,256], index: 3, kind: output, shape index: {}]
  %s4 = sld [smem:[#allocation0]]
  $region45: #{mono_sceneflow_decoder_lstm.8} parent=0
    _
  %s6 = ssub.s32 1, %s4
  %s7 = scalar_select 0, %s6, %s4
  loop: start=0, step=1, limit=4
  $region2: #{mono_sceneflow_decoder_lstm.8} parent=0 // loop_pre_header
    _
  $region3: #{mono_sceneflow_decoder_lstm.8} parent=0 // loop_header
    %s9 = sphi 0, %s13
    %p10 = scmp.ge.s32.totalorder %s9, 4
    %s16 = sphi 0, %s35
    %s17 = sphi 0, %s31
    %s18 = sphi 0, %s27
    %s19 = sphi 0, %s16
    %s20 = sphi 0, %s17
    %s21 = sphi 0, %s18
    %s22 = sphi 0, %s19
    %s23 = sphi 0, %s20
    %s24 = sphi 0, %s21
    %s40 = sphi 0, %s42
    %s43 = sphi 0, %s40
    %s44 = sphi 0, %s43
    %s60 = sphi 0, %s44
    %s66 = sphi 0, %s68
    %s69 = sphi 0, %s66
    %s70 = sphi 0, %s69
    %s86 = sphi 0, %s70
    %s92 = sphi 0, %s94
    %s95 = sphi 0, %s92
    %s96 = sphi 0, %s95
    %s112 = sphi 0, %s96
    %s122 = sphi 0, %s124
    %s125 = sphi 0, %s122
    %s126 = sphi 0, %s125
    %s142 = sphi 0, %s126
  $region4: #{mono_sceneflow_decoder_lstm.8} parent=0 // loop_header_branch
    %12 = sbr.rel (%p10) target = $region8
  $region5: #{mono_sceneflow_decoder_lstm.8} parent=0 // loop_body
    %s14 = ssub.s32 %s9, 1
    %s15 = ssub.s32 %s9, 2
    %s25 = sadd.s32 1, %s18
    %p26 = scmp.ge.s32.totalorder %s25, 1
    %s27 = scalar_select %p26, 0, %s25
    %s28 = sadd.s32 1, %s17
    %s29 = scalar_select %p26, %s28, %s17
    %p30 = scmp.ge.s32.totalorder %s29, 1
    %s31 = scalar_select %p30, 0, %s29
    %s32 = sadd.s32 1, %s16
    %s33 = scalar_select %p30, %s32, %s16
    %p34 = scmp.ge.s32.totalorder %s33, 2
    %s35 = scalar_select %p34, 0, %s33
    %s36 = ssub.s32 %s16, %s35
    %s37 = ssub.s32 %s18, %s27
    %s38 = sor.u32 %s36, %s37
    %p39 = scmp.eq.s32.totalorder %s38, 0
    %s41 = sadd.s32 %s40, 1
    %s42 = scalar_select %p39, %s40, %s41
    %p45 = pneg %p39
    %p46 = scmp.eq.s32.totalorder %s9, 1
    %p47 = por %p45, %p46
    %p48 = scmp.ne.s32.totalorder %s40, %s43
    %p49 = scmp.eq.s32.totalorder %s9, 0
    %p50 = por %p48, %p49
    %p51 = scmp.ne.s32.totalorder %s40, %s43
    %p52 = scmp.eq.s32.totalorder %s14, 1
    %p53 = por %p51, %p52
    %p54 = scmp.ne.s32.totalorder %s43, %s44
    %p55 = scmp.eq.s32.totalorder %s14, 0
    %p56 = por %p54, %p55
    %p57 = scmp.ne.s32.totalorder %s43, %s44
    %p58 = scmp.eq.s32.totalorder %s15, 1
    %p59 = por %p57, %p58
    %p61 = scmp.ne.s32.totalorder %s44, %s60
    %p62 = scmp.eq.s32.totalorder %s15, 0
    %p63 = por %p61, %p62
    %s64 = ssub.s32 %s17, %s31
    %p65 = scmp.eq.s32.totalorder %s64, 0
    %s67 = sadd.s32 %s66, 1
    %s68 = scalar_select %p65, %s66, %s67
    %p71 = pneg %p65
    %p72 = scmp.eq.s32.totalorder %s9, 1
    %p73 = por %p71, %p72
    %p74 = scmp.ne.s32.totalorder %s66, %s69
    %p75 = scmp.eq.s32.totalorder %s9, 0
    %p76 = por %p74, %p75
    %p77 = scmp.ne.s32.totalorder %s66, %s69
    %p78 = scmp.eq.s32.totalorder %s14, 1
    %p79 = por %p77, %p78
    %p80 = scmp.ne.s32.totalorder %s69, %s70
    %p81 = scmp.eq.s32.totalorder %s14, 0
    %p82 = por %p80, %p81
    %p83 = scmp.ne.s32.totalorder %s69, %s70
    %p84 = scmp.eq.s32.totalorder %s15, 1
    %p85 = por %p83, %p84
    %p87 = scmp.ne.s32.totalorder %s70, %s86
    %p88 = scmp.eq.s32.totalorder %s15, 0
    %p89 = por %p87, %p88
    %s90 = ssub.s32 %s17, %s31
    %p91 = scmp.eq.s32.totalorder %s90, 0
    %s93 = sadd.s32 %s92, 1
    %s94 = scalar_select %p91, %s92, %s93
    %p97 = pneg %p91
    %p98 = scmp.eq.s32.totalorder %s9, 1
    %p99 = por %p97, %p98
    %p100 = scmp.ne.s32.totalorder %s92, %s95
    %p101 = scmp.eq.s32.totalorder %s9, 0
    %p102 = por %p100, %p101
    %p103 = scmp.ne.s32.totalorder %s92, %s95
    %p104 = scmp.eq.s32.totalorder %s14, 1
    %p105 = por %p103, %p104
    %p106 = scmp.ne.s32.totalorder %s95, %s96
    %p107 = scmp.eq.s32.totalorder %s14, 0
    %p108 = por %p106, %p107
    %p109 = scmp.ne.s32.totalorder %s95, %s96
    %p110 = scmp.eq.s32.totalorder %s15, 1
    %p111 = por %p109, %p110
    %p113 = scmp.ne.s32.totalorder %s96, %s112
    %p114 = scmp.eq.s32.totalorder %s15, 0
    %p115 = por %p113, %p114
    %s116 = ssub.s32 %s16, %s35
    %s117 = ssub.s32 %s17, %s31
    %s118 = sor.u32 %s116, %s117
    %s119 = ssub.s32 %s18, %s27
    %s120 = sor.u32 %s118, %s119
    %p121 = scmp.eq.s32.totalorder %s120, 0
    %s123 = sadd.s32 %s122, 1
    %s124 = scalar_select %p121, %s122, %s123
    %p127 = pneg %p121
    %p128 = scmp.eq.s32.totalorder %s9, 1
    %p129 = por %p127, %p128
    %p130 = scmp.ne.s32.totalorder %s122, %s125
    %p131 = scmp.eq.s32.totalorder %s9, 0
    %p132 = por %p130, %p131
    %p133 = scmp.ne.s32.totalorder %s122, %s125
    %p134 = scmp.eq.s32.totalorder %s14, 1
    %p135 = por %p133, %p134
    %p136 = scmp.ne.s32.totalorder %s125, %s126
    %p137 = scmp.eq.s32.totalorder %s14, 0
    %p138 = por %p136, %p137
    %p139 = scmp.ne.s32.totalorder %s125, %s126
    %p140 = scmp.eq.s32.totalorder %s15, 1
    %p141 = por %p139, %p140
    %p143 = scmp.ne.s32.totalorder %s126, %s142
    %p144 = scmp.eq.s32.totalorder %s15, 0
    %p145 = por %p143, %p144
    %p146 = scmp.le.s32.totalorder 1, %s9
    %p147 = scmp.lt.s32.totalorder %s9, 3
    %p148 = pnand %p146, %p147
    %p149 = pneg %p148
    // Predicated region
    $region9: #{mono_sceneflow_decoder_lstm.8} parent=5 // pred_check
      _
    $region10: #{mono_sceneflow_decoder_lstm.8} parent=5 // pred_check_branch
      %151 = sbr.rel (%p148) target = $region12
    $region11: #{mono_sceneflow_decoder_lstm.8} parent=5 // pred_region
      %s152 = ssub.s32 %s9, 1
      // Predicated region
      $region13: #{mono_sceneflow_decoder_lstm.8} parent=11 // pred_check
        %p153 = pneg %p82
      $region14: #{mono_sceneflow_decoder_lstm.8} parent=11 // pred_check_branch
        %155 = sbr.rel (%p153) target = $region16
      $region15: #{mono_sceneflow_decoder_lstm.8} parent=11 // pred_region
        %s156 = smul.u32 16, %s20
        %p157 = scmp.lt.s32.totalorder %s156, 15
        %s158 = scalar_select %p157, %s156, 15
        %s159 = smul.addr %s158, 9
        %s160 = smul.addr %s159, 4
        %s161 = scalar_lea.vmem %s1, %s160
        %s162 = smul.u32 16, %s20
      $region16: #{mono_sceneflow_decoder_lstm.8} parent=11 // pred_fallthru
        _
      // Predicated region
      $region17: #{mono_sceneflow_decoder_lstm.8} parent=11 // pred_check
        %p163 = pneg %p108
      $region18: #{mono_sceneflow_decoder_lstm.8} parent=11 // pred_check_branch
        %165 = sbr.rel (%p163) target = $region20
      $region19: #{mono_sceneflow_decoder_lstm.8} parent=11 // pred_region
        %s166 = smul.u32 16, %s20
        %p167 = scmp.lt.s32.totalorder %s166, 15
        %s168 = scalar_select %p167, %s166, 15
        %s169 = smul.addr %s168, 8
        %s170 = scalar_lea.vmem %s2, %s169
        %s171 = smul.u32 16, %s20
      $region20: #{mono_sceneflow_decoder_lstm.8} parent=11 // pred_fallthru
        _
    $region12: #{mono_sceneflow_decoder_lstm.8} parent=5 // pred_fallthru
      _
    %p172 = scmp.lt.s32.totalorder %s9, 2
    // Predicated region
    $region21: #{mono_sceneflow_decoder_lstm.8} parent=5 // pred_check
      %p173 = pneg %p172
    $region22: #{mono_sceneflow_decoder_lstm.8} parent=5 // pred_check_branch
      %175 = sbr.rel (%p173) target = $region24
    $region23: #{mono_sceneflow_decoder_lstm.8} parent=5 // pred_region
      // Predicated region
      $region25: #{mono_sceneflow_decoder_lstm.8} parent=23 // pred_check
        %p176 = pneg %p50
      $region26: #{mono_sceneflow_decoder_lstm.8} parent=23 // pred_check_branch
        %178 = sbr.rel (%p176) target = $region28
      $region27: #{mono_sceneflow_decoder_lstm.8} parent=23 // pred_region
        %s179 = smul.u32 2, %s18
        %p180 = scmp.lt.s32.totalorder %s16, 1
        %s181 = scalar_select %p180, %s16, 1
        %p182 = scmp.lt.s32.totalorder %s179, 1
        %s183 = scalar_select %p182, %s179, 1
        %s184 = smul.addr %s181, 288
        %s185 = sadd.s32 %s183, %s184
        %s186 = smul.addr %s185, 4
        %s187 = scalar_lea.vmem %s0, %s186
        %s188 = smul.u32 2, %s18
      $region28: #{mono_sceneflow_decoder_lstm.8} parent=23 // pred_fallthru
        _
    $region24: #{mono_sceneflow_decoder_lstm.8} parent=5 // pred_fallthru
      _
    %p189 = scmp.le.s32.totalorder 1, %s9
    %p190 = scmp.lt.s32.totalorder %s9, 3
    %p191 = pnand %p189, %p190
    %p192 = pneg %p191
    // Predicated region
    $region29: #{mono_sceneflow_decoder_lstm.8} parent=5 // pred_check
      _
    $region30: #{mono_sceneflow_decoder_lstm.8} parent=5 // pred_check_branch
      %194 = sbr.rel (%p191) target = $region32
    $region31: #{mono_sceneflow_decoder_lstm.8} parent=5 // pred_region
      %s195 = ssub.s32 %s9, 1
      %s196 = smul.u32 2, %s21
      %p197 = scmp.lt.s32.totalorder %s19, 1
      %s198 = scalar_select %p197, %s19, 1
      %p199 = scmp.lt.s32.totalorder %s196, 1
      %s200 = scalar_select %p199, %s196, 1
      %s201 = smul.addr %s198, 288
      %s202 = sadd.s32 %s200, %s201
      %s203 = smul.addr %s202, 4
      %s204 = scalar_lea.vmem %s0, %s203
      %p205 = pneg %p56
      %p206 = pneg %p53
      %s207 = smul.u32 16, %s20
      %p208 = scmp.lt.s32.totalorder %s207, 15
      %s209 = scalar_select %p208, %s207, 15
      %s210 = smul.addr %s209, 9
      %s211 = smul.addr %s210, 4
      %s212 = scalar_lea.vmem %s1, %s211
      %p213 = pneg %p82
      %p214 = pneg %p79
      %s215 = smul.u32 16, %s20
      %p216 = scmp.lt.s32.totalorder %s215, 15
      %s217 = scalar_select %p216, %s215, 15
      %s218 = smul.addr %s217, 8
      %s219 = scalar_lea.vmem %s2, %s218
      %p220 = pneg %p108
      %p221 = pneg %p105
      %p222 = pneg %p138
      %p223 = pneg %p135
      %s224 = smul.u32 16, %s20
      %s225 = smul.u32 2, %s21
      %p226 = scmp.lt.s32.totalorder %s19, 1
      %s227 = scalar_select %p226, %s19, 1
      %p228 = scmp.lt.s32.totalorder %s224, 15
      %s229 = scalar_select %p228, %s224, 15
      %p230 = scmp.lt.s32.totalorder %s225, 1
      %s231 = scalar_select %p230, %s225, 1
      %s232 = smul.addr %s229, 2
      %s233 = sadd.s32 %s231, %s232
      %s234 = smul.addr %s227, 32
      %s235 = sadd.s32 %s233, %s234
      %s236 = smul.addr %s235, 8
      %s237 = scalar_lea.vmem %s3, %s236
      %s238 = smul.u32 2, %s21
      %p239 = scmp.lt.s32.totalorder %s19, 1
      %s240 = scalar_select %p239, %s19, 1
      %p241 = scmp.lt.s32.totalorder %s238, 1
      %s242 = scalar_select %p241, %s238, 1
      %s243 = smul.addr %s240, 288
      %s244 = sadd.s32 %s242, %s243
      %s245 = smul.addr %s244, 4
      %s246 = scalar_lea.vmem %s0, %s245
      %s247 = smul.u32 2, %s21
      %s248 = smul.u32 16, %s20
      %p249 = scmp.lt.s32.totalorder %s248, 15
      %s250 = scalar_select %p249, %s248, 15
      %s251 = smul.addr %s250, 9
      %s252 = smul.addr %s251, 4
      %s253 = scalar_lea.vmem %s1, %s252
      %s254 = smul.u32 16, %s20
      %s255 = smul.u32 16, %s20
      %p256 = scmp.lt.s32.totalorder %s255, 15
      %s257 = scalar_select %p256, %s255, 15
      %s258 = smul.addr %s257, 8
      %s259 = scalar_lea.vmem %s2, %s258
      %s260 = smul.u32 16, %s20
      %s261 = smul.u32 16, %s20
      %s262 = smul.u32 2, %s21
      %p263 = scmp.lt.s32.totalorder %s19, 1
      %s264 = scalar_select %p263, %s19, 1
      %p265 = scmp.lt.s32.totalorder %s261, 15
      %s266 = scalar_select %p265, %s261, 15
      %p267 = scmp.lt.s32.totalorder %s262, 1
      %s268 = scalar_select %p267, %s262, 1
      %s269 = smul.addr %s266, 2
      %s270 = sadd.s32 %s268, %s269
      %s271 = smul.addr %s264, 32
      %s272 = sadd.s32 %s270, %s271
      %s273 = smul.addr %s272, 8
      %s274 = scalar_lea.vmem %s3, %s273
      %s275 = smul.u32 16, %s20
      %s276 = smul.u32 2, %s21
      %v278 = vld [vmem:[%s253] sm:$0xff]
      %v279 = vld [vmem:[%s253 + $0x8] sm:$0xff]
      %v280 = vld [vmem:[%s253 + $0x10] sm:$0xff]
      %v281 = vld [vmem:[%s253 + $0x18] sm:$0xff]
      %v282 = vld [vmem:[%s253 + $0x20] sm:$0xf]
      %v283 = vld [vmem:[%s253 + $0x24] sm:$0xff]
      %v284 = vld [vmem:[%s253 + $0x2c] sm:$0xff]
      %v285 = vld [vmem:[%s253 + $0x34] sm:$0xff]
      %v286 = vld [vmem:[%s253 + $0x3c] sm:$0xff]
      %v287 = vld [vmem:[%s253 + $0x44] sm:$0xf]
      %v288 = vld [vmem:[%s253 + $0x48] sm:$0xff]
      %v289 = vld [vmem:[%s253 + $0x50] sm:$0xff]
      %v290 = vld [vmem:[%s253 + $0x58] sm:$0xff]
      %v291 = vld [vmem:[%s253 + $0x60] sm:$0xff]
      %v292 = vld [vmem:[%s253 + $0x68] sm:$0xf]
      %v293 = vld [vmem:[%s253 + $0x6c] sm:$0xff]
      %v294 = vld [vmem:[%s253 + $0x74] sm:$0xff]
      %v295 = vld [vmem:[%s253 + $0x7c] sm:$0xff]
      %v296 = vld [vmem:[%s253 + $0x84] sm:$0xff]
      %v297 = vld [vmem:[%s253 + $0x8c] sm:$0xf]
      %v298 = vld [vmem:[%s253 + $0x90] sm:$0xff]
      %v299 = vld [vmem:[%s253 + $0x98] sm:$0xff]
      %v300 = vld [vmem:[%s253 + $0xa0] sm:$0xff]
      %v301 = vld [vmem:[%s253 + $0xa8] sm:$0xff]
      %v302 = vld [vmem:[%s253 + $0xb0] sm:$0xf]
      %v303 = vld [vmem:[%s253 + $0xb4] sm:$0xff]
      %v304 = vld [vmem:[%s253 + $0xbc] sm:$0xff]
      %v305 = vld [vmem:[%s253 + $0xc4] sm:$0xff]
      %v306 = vld [vmem:[%s253 + $0xcc] sm:$0xff]
      %v307 = vld [vmem:[%s253 + $0xd4] sm:$0xf]
      %v308 = vld [vmem:[%s253 + $0xd8] sm:$0xff]
      %v309 = vld [vmem:[%s253 + $0xe0] sm:$0xff]
      %v310 = vld [vmem:[%s253 + $0xe8] sm:$0xff]
      %v311 = vld [vmem:[%s253 + $0xf0] sm:$0xff]
      %v312 = vld [vmem:[%s253 + $0xf8] sm:$0xf]
      %v313 = vld [vmem:[%s253 + $0xfc] sm:$0xff]
      %v314 = vld [vmem:[%s253 + $0x104] sm:$0xff]
      %v315 = vld [vmem:[%s253 + $0x10c] sm:$0xff]
      %v316 = vld [vmem:[%s253 + $0x114] sm:$0xff]
      %v317 = vld [vmem:[%s253 + $0x11c] sm:$0xf]
      %v318 = vld [vmem:[%s253 + $0x120] sm:$0xff]
      %v319 = vld [vmem:[%s253 + $0x128] sm:$0xff]
      %v320 = vld [vmem:[%s253 + $0x130] sm:$0xff]
      %v321 = vld [vmem:[%s253 + $0x138] sm:$0xff]
      %v322 = vld [vmem:[%s253 + $0x140] sm:$0xf]
      %v323 = vld [vmem:[%s253 + $0x144] sm:$0xff]
      %v324 = vld [vmem:[%s253 + $0x14c] sm:$0xff]
      %v325 = vld [vmem:[%s253 + $0x154] sm:$0xff]
      %v326 = vld [vmem:[%s253 + $0x15c] sm:$0xff]
      %v327 = vld [vmem:[%s253 + $0x164] sm:$0xf]
      %v328 = vld [vmem:[%s253 + $0x168] sm:$0xff]
      %v329 = vld [vmem:[%s253 + $0x170] sm:$0xff]
      %v330 = vld [vmem:[%s253 + $0x178] sm:$0xff]
      %v331 = vld [vmem:[%s253 + $0x180] sm:$0xff]
      %v332 = vld [vmem:[%s253 + $0x188] sm:$0xf]
      %v333 = vld [vmem:[%s253 + $0x18c] sm:$0xff]
      %v334 = vld [vmem:[%s253 + $0x194] sm:$0xff]
      %v335 = vld [vmem:[%s253 + $0x19c] sm:$0xff]
      %v336 = vld [vmem:[%s253 + $0x1a4] sm:$0xff]
      %v337 = vld [vmem:[%s253 + $0x1ac] sm:$0xf]
      %v338 = vld [vmem:[%s253 + $0x1b0] sm:$0xff]
      %v339 = vld [vmem:[%s253 + $0x1b8] sm:$0xff]
      %v340 = vld [vmem:[%s253 + $0x1c0] sm:$0xff]
      %v341 = vld [vmem:[%s253 + $0x1c8] sm:$0xff]
      %v342 = vld [vmem:[%s253 + $0x1d0] sm:$0xf]
      %v343 = vld [vmem:[%s253 + $0x1d4] sm:$0xff]
      %v344 = vld [vmem:[%s253 + $0x1dc] sm:$0xff]
      %v345 = vld [vmem:[%s253 + $0x1e4] sm:$0xff]
      %v346 = vld [vmem:[%s253 + $0x1ec] sm:$0xff]
      %v347 = vld [vmem:[%s253 + $0x1f4] sm:$0xf]
      %v348 = vld [vmem:[%s253 + $0x1f8] sm:$0xff]
      %v349 = vld [vmem:[%s253 + $0x200] sm:$0xff]
      %v350 = vld [vmem:[%s253 + $0x208] sm:$0xff]
      %v351 = vld [vmem:[%s253 + $0x210] sm:$0xff]
      %v352 = vld [vmem:[%s253 + $0x218] sm:$0xf]
      %v353 = vld [vmem:[%s253 + $0x21c] sm:$0xff]
      %v354 = vld [vmem:[%s253 + $0x224] sm:$0xff]
      %v355 = vld [vmem:[%s253 + $0x22c] sm:$0xff]
      %v356 = vld [vmem:[%s253 + $0x234] sm:$0xff]
      %v357 = vld [vmem:[%s253 + $0x23c] sm:$0xf]
      %v358 = vld [vmem:[%s246] sm:$0xff]
      %v359 = vld [vmem:[%s246 + $0x8] sm:$0xff]
      %v360 = vld [vmem:[%s246 + $0x10] sm:$0xff]
      %v361 = vld [vmem:[%s246 + $0x18] sm:$0xff]
      %v362 = vld [vmem:[%s246 + $0x20] sm:$0xff]
      %v363 = vld [vmem:[%s246 + $0x28] sm:$0xff]
      %v364 = vld [vmem:[%s246 + $0x30] sm:$0xff]
      %v365 = vld [vmem:[%s246 + $0x38] sm:$0xff]
      %v366 = vld [vmem:[%s246 + $0x40] sm:$0xff]
      %v367 = vld [vmem:[%s246 + $0x48] sm:$0xff]
      %v368 = vld [vmem:[%s246 + $0x50] sm:$0xff]
      %v369 = vld [vmem:[%s246 + $0x58] sm:$0xff]
      %v370 = vld [vmem:[%s246 + $0x60] sm:$0xff]
      %v371 = vld [vmem:[%s246 + $0x68] sm:$0xff]
      %v372 = vld [vmem:[%s246 + $0x70] sm:$0xff]
      %v373 = vld [vmem:[%s246 + $0x78] sm:$0xff]
      %v374 = vld [vmem:[%s246 + $0x80] sm:$0xff]
      %v375 = vld [vmem:[%s246 + $0x88] sm:$0xff]
      %v376 = vld [vmem:[%s246 + $0x90] sm:$0xff]
      %v377 = vld [vmem:[%s246 + $0x98] sm:$0xff]
      %v378 = vld [vmem:[%s246 + $0xa0] sm:$0xff]
      %v379 = vld [vmem:[%s246 + $0xa8] sm:$0xff]
      %v380 = vld [vmem:[%s246 + $0xb0] sm:$0xff]
      %v381 = vld [vmem:[%s246 + $0xb8] sm:$0xff]
      %v382 = vld [vmem:[%s246 + $0xc0] sm:$0xff]
      %v383 = vld [vmem:[%s246 + $0xc8] sm:$0xff]
      %v384 = vld [vmem:[%s246 + $0xd0] sm:$0xff]
      %v385 = vld [vmem:[%s246 + $0xd8] sm:$0xff]
      %v386 = vld [vmem:[%s246 + $0xe0] sm:$0xff]
      %v387 = vld [vmem:[%s246 + $0xe8] sm:$0xff]
      %v388 = vld [vmem:[%s246 + $0xf0] sm:$0xff]
      %v389 = vld [vmem:[%s246 + $0xf8] sm:$0xff]
      %v390 = vld [vmem:[%s246 + $0x100] sm:$0xff]
      %v391 = vld [vmem:[%s246 + $0x108] sm:$0xff]
      %v392 = vld [vmem:[%s246 + $0x110] sm:$0xff]
      %v393 = vld [vmem:[%s246 + $0x118] sm:$0xff]
      %v394 = vld [vmem:[%s246 + $0x120] sm:$0xff]
      %v395 = vld [vmem:[%s246 + $0x128] sm:$0xff]
      %v396 = vld [vmem:[%s246 + $0x130] sm:$0xff]
      %v397 = vld [vmem:[%s246 + $0x138] sm:$0xff]
      %v398 = vld [vmem:[%s246 + $0x140] sm:$0xff]
      %v399 = vld [vmem:[%s246 + $0x148] sm:$0xff]
      %v400 = vld [vmem:[%s246 + $0x150] sm:$0xff]
      %v401 = vld [vmem:[%s246 + $0x158] sm:$0xff]
      %v402 = vld [vmem:[%s246 + $0x160] sm:$0xff]
      %v403 = vld [vmem:[%s246 + $0x168] sm:$0xff]
      %v404 = vld [vmem:[%s246 + $0x170] sm:$0xff]
      %v405 = vld [vmem:[%s246 + $0x178] sm:$0xff]
      %v406 = vld [vmem:[%s246 + $0x180] sm:$0xff]
      %v407 = vld [vmem:[%s246 + $0x188] sm:$0xff]
      %v408 = vld [vmem:[%s246 + $0x190] sm:$0xff]
      %v409 = vld [vmem:[%s246 + $0x198] sm:$0xff]
      %v410 = vld [vmem:[%s246 + $0x1a0] sm:$0xff]
      %v411 = vld [vmem:[%s246 + $0x1a8] sm:$0xff]
      %v412 = vld [vmem:[%s246 + $0x1b0] sm:$0xff]
      %v413 = vld [vmem:[%s246 + $0x1b8] sm:$0xff]
      %v414 = vld [vmem:[%s246 + $0x1c0] sm:$0xff]
      %v415 = vld [vmem:[%s246 + $0x1c8] sm:$0xff]
      %v416 = vld [vmem:[%s246 + $0x1d0] sm:$0xff]
      %v417 = vld [vmem:[%s246 + $0x1d8] sm:$0xff]
      %v418 = vld [vmem:[%s246 + $0x1e0] sm:$0xff]
      %v419 = vld [vmem:[%s246 + $0x1e8] sm:$0xff]
      %v420 = vld [vmem:[%s246 + $0x1f0] sm:$0xff]
      %v421 = vld [vmem:[%s246 + $0x1f8] sm:$0xff]
      %v422 = vld [vmem:[%s246 + $0x200] sm:$0xff]
      %v423 = vld [vmem:[%s246 + $0x208] sm:$0xff]
      %v424 = vld [vmem:[%s246 + $0x210] sm:$0xff]
      %v425 = vld [vmem:[%s246 + $0x218] sm:$0xff]
      %v426 = vld [vmem:[%s246 + $0x220] sm:$0xff]
      %v427 = vld [vmem:[%s246 + $0x228] sm:$0xff]
      %v428 = vld [vmem:[%s246 + $0x230] sm:$0xff]
      %v429 = vld [vmem:[%s246 + $0x238] sm:$0xff]
      %v430 = vld [vmem:[%s246 + $0x240] sm:$0xff]
      %v431 = vld [vmem:[%s246 + $0x248] sm:$0xff]
      %v432 = vld [vmem:[%s246 + $0x250] sm:$0xff]
      %v433 = vld [vmem:[%s246 + $0x258] sm:$0xff]
      %v434 = vld [vmem:[%s246 + $0x260] sm:$0xff]
      %v435 = vld [vmem:[%s246 + $0x268] sm:$0xff]
      %v436 = vld [vmem:[%s246 + $0x270] sm:$0xff]
      %v437 = vld [vmem:[%s246 + $0x278] sm:$0xff]
      %v438 = vld [vmem:[%s246 + $0x280] sm:$0xff]
      %v439 = vld [vmem:[%s246 + $0x288] sm:$0xff]
      %v440 = vld [vmem:[%s246 + $0x290] sm:$0xff]
      %v441 = vld [vmem:[%s246 + $0x298] sm:$0xff]
      %v442 = vld [vmem:[%s246 + $0x2a0] sm:$0xff]
      %v443 = vld [vmem:[%s246 + $0x2a8] sm:$0xff]
      %v444 = vld [vmem:[%s246 + $0x2b0] sm:$0xff]
      %v445 = vld [vmem:[%s246 + $0x2b8] sm:$0xff]
      %v446 = vld [vmem:[%s246 + $0x2c0] sm:$0xff]
      %v447 = vld [vmem:[%s246 + $0x2c8] sm:$0xff]
      %v448 = vld [vmem:[%s246 + $0x2d0] sm:$0xff]
      %v449 = vld [vmem:[%s246 + $0x2d8] sm:$0xff]
      %v450 = vld [vmem:[%s246 + $0x2e0] sm:$0xff]
      %v451 = vld [vmem:[%s246 + $0x2e8] sm:$0xff]
      %v452 = vld [vmem:[%s246 + $0x2f0] sm:$0xff]
      %v453 = vld [vmem:[%s246 + $0x2f8] sm:$0xff]
      %v454 = vld [vmem:[%s246 + $0x300] sm:$0xff]
      %v455 = vld [vmem:[%s246 + $0x308] sm:$0xff]
      %v456 = vld [vmem:[%s246 + $0x310] sm:$0xff]
      %v457 = vld [vmem:[%s246 + $0x318] sm:$0xff]
      %v458 = vld [vmem:[%s246 + $0x320] sm:$0xff]
      %v459 = vld [vmem:[%s246 + $0x328] sm:$0xff]
      %v460 = vld [vmem:[%s246 + $0x330] sm:$0xff]
      %v461 = vld [vmem:[%s246 + $0x338] sm:$0xff]
      %v462 = vld [vmem:[%s246 + $0x340] sm:$0xff]
      %v463 = vld [vmem:[%s246 + $0x348] sm:$0xff]
      %v464 = vld [vmem:[%s246 + $0x350] sm:$0xff]
      %v465 = vld [vmem:[%s246 + $0x358] sm:$0xff]
      %v466 = vld [vmem:[%s246 + $0x360] sm:$0xff]
      %v467 = vld [vmem:[%s246 + $0x368] sm:$0xff]
      %v468 = vld [vmem:[%s246 + $0x370] sm:$0xff]
      %v469 = vld [vmem:[%s246 + $0x378] sm:$0xff]
      %v470 = vld [vmem:[%s246 + $0x380] sm:$0xff]
      %v471 = vld [vmem:[%s246 + $0x388] sm:$0xff]
      %v472 = vld [vmem:[%s246 + $0x390] sm:$0xff]
      %v473 = vld [vmem:[%s246 + $0x398] sm:$0xff]
      %v474 = vld [vmem:[%s246 + $0x3a0] sm:$0xff]
      %v475 = vld [vmem:[%s246 + $0x3a8] sm:$0xff]
      %v476 = vld [vmem:[%s246 + $0x3b0] sm:$0xff]
      %v477 = vld [vmem:[%s246 + $0x3b8] sm:$0xff]
      %v478 = vld [vmem:[%s246 + $0x3c0] sm:$0xff]
      %v479 = vld [vmem:[%s246 + $0x3c8] sm:$0xff]
      %v480 = vld [vmem:[%s246 + $0x3d0] sm:$0xff]
      %v481 = vld [vmem:[%s246 + $0x3d8] sm:$0xff]
      %v482 = vld [vmem:[%s246 + $0x3e0] sm:$0xff]
      %v483 = vld [vmem:[%s246 + $0x3e8] sm:$0xff]
      %v484 = vld [vmem:[%s246 + $0x3f0] sm:$0xff]
      %v485 = vld [vmem:[%s246 + $0x3f8] sm:$0xff]
      %v486 = vld [vmem:[%s246 + $0x400] sm:$0xff]
      %v487 = vld [vmem:[%s246 + $0x408] sm:$0xff]
      %v488 = vld [vmem:[%s246 + $0x410] sm:$0xff]
      %v489 = vld [vmem:[%s246 + $0x418] sm:$0xff]
      %v490 = vld [vmem:[%s246 + $0x420] sm:$0xff]
      %v491 = vld [vmem:[%s246 + $0x428] sm:$0xff]
      %v492 = vld [vmem:[%s246 + $0x430] sm:$0xff]
      %v493 = vld [vmem:[%s246 + $0x438] sm:$0xff]
      %v494 = vld [vmem:[%s246 + $0x440] sm:$0xff]
      %v495 = vld [vmem:[%s246 + $0x448] sm:$0xff]
      %v496 = vld [vmem:[%s246 + $0x450] sm:$0xff]
      %v497 = vld [vmem:[%s246 + $0x458] sm:$0xff]
      %v498 = vld [vmem:[%s246 + $0x460] sm:$0xff]
      %v499 = vld [vmem:[%s246 + $0x468] sm:$0xff]
      %v500 = vld [vmem:[%s246 + $0x470] sm:$0xff]
      %v501 = vld [vmem:[%s246 + $0x478] sm:$0xff]
      %v502 = vld [vmem:[%s259] sm:$0xff]
      %v503 = vld [vmem:[%s259 + $0x8] sm:$0xff]
      %v504 = vld [vmem:[%s259 + $0x10] sm:$0xff]
      %v505 = vld [vmem:[%s259 + $0x18] sm:$0xff]
      %v506 = vld [vmem:[%s259 + $0x20] sm:$0xff]
      %v507 = vld [vmem:[%s259 + $0x28] sm:$0xff]
      %v508 = vld [vmem:[%s259 + $0x30] sm:$0xff]
      %v509 = vld [vmem:[%s259 + $0x38] sm:$0xff]
      %v510 = vld [vmem:[%s259 + $0x40] sm:$0xff]
      %v511 = vld [vmem:[%s259 + $0x48] sm:$0xff]
      %v512 = vld [vmem:[%s259 + $0x50] sm:$0xff]
      %v513 = vld [vmem:[%s259 + $0x58] sm:$0xff]
      %v514 = vld [vmem:[%s259 + $0x60] sm:$0xff]
      %v515 = vld [vmem:[%s259 + $0x68] sm:$0xff]
      %v516 = vld [vmem:[%s259 + $0x70] sm:$0xff]
      %v517 = vld [vmem:[%s259 + $0x78] sm:$0xff]
      %519 = vset.pattern.permute.xlu0 0
      %520 = vperm.xlu0 %519, %v502
      %v521 = vpop.permute.xlu0 %520
      %524 = vset.pattern.permute.xlu0 0
      %525 = vperm.xlu0 %524, %v503
      %v526 = vpop.permute.xlu0 %525
      %529 = vset.pattern.permute.xlu0 0
      %530 = vperm.xlu0 %529, %v504
      %v531 = vpop.permute.xlu0 %530
      %534 = vset.pattern.permute.xlu0 0
      %535 = vperm.xlu0 %534, %v505
      %v536 = vpop.permute.xlu0 %535
      %539 = vset.pattern.permute.xlu0 0
      %540 = vperm.xlu0 %539, %v506
      %v541 = vpop.permute.xlu0 %540
      %544 = vset.pattern.permute.xlu0 0
      %545 = vperm.xlu0 %544, %v507
      %v546 = vpop.permute.xlu0 %545
      %549 = vset.pattern.permute.xlu0 0
      %550 = vperm.xlu0 %549, %v508
      %v551 = vpop.permute.xlu0 %550
      %554 = vset.pattern.permute.xlu0 0
      %555 = vperm.xlu0 %554, %v509
      %v556 = vpop.permute.xlu0 %555
      %559 = vset.pattern.permute.xlu0 0
      %560 = vperm.xlu0 %559, %v510
      %v561 = vpop.permute.xlu0 %560
      %564 = vset.pattern.permute.xlu0 0
      %565 = vperm.xlu0 %564, %v511
      %v566 = vpop.permute.xlu0 %565
      %569 = vset.pattern.permute.xlu0 0
      %570 = vperm.xlu0 %569, %v512
      %v571 = vpop.permute.xlu0 %570
      %574 = vset.pattern.permute.xlu0 0
      %575 = vperm.xlu0 %574, %v513
      %v576 = vpop.permute.xlu0 %575
      %579 = vset.pattern.permute.xlu0 0
      %580 = vperm.xlu0 %579, %v514
      %v581 = vpop.permute.xlu0 %580
      %584 = vset.pattern.permute.xlu0 0
      %585 = vperm.xlu0 %584, %v515
      %v586 = vpop.permute.xlu0 %585
      %589 = vset.pattern.permute.xlu0 0
      %590 = vperm.xlu0 %589, %v516
      %v591 = vpop.permute.xlu0 %590
      %594 = vset.pattern.permute.xlu0 0
      %595 = vperm.xlu0 %594, %v517
      %v596 = vpop.permute.xlu0 %595
      %v678 = vunpack.c.l.b16 %v278
      %v679 = vunpack.c.h.b16 %v278
      %v680 = vunpack.c.l.b16 %v279
      %v681 = vunpack.c.h.b16 %v279
      %v682 = vunpack.c.l.b16 %v280
      %v683 = vunpack.c.h.b16 %v280
      %v684 = vunpack.c.l.b16 %v281
      %v685 = vunpack.c.h.b16 %v281
      %v686 = vunpack.c.l.b16 %v282
      %v687 = vunpack.c.l.b16 %v283
      %v688 = vunpack.c.h.b16 %v283
      %v689 = vunpack.c.l.b16 %v284
      %v690 = vunpack.c.h.b16 %v284
      %v691 = vunpack.c.l.b16 %v285
      %v692 = vunpack.c.h.b16 %v285
      %v693 = vunpack.c.l.b16 %v286
      %v694 = vunpack.c.h.b16 %v286
      %v695 = vunpack.c.l.b16 %v287
      %v696 = vunpack.c.l.b16 %v288
      %v697 = vunpack.c.h.b16 %v288
      %v698 = vunpack.c.l.b16 %v289
      %v699 = vunpack.c.h.b16 %v289
      %v700 = vunpack.c.l.b16 %v290
      %v701 = vunpack.c.h.b16 %v290
      %v702 = vunpack.c.l.b16 %v291
      %v703 = vunpack.c.h.b16 %v291
      %v704 = vunpack.c.l.b16 %v292
      %v705 = vunpack.c.l.b16 %v293
      %v706 = vunpack.c.h.b16 %v293
      %v707 = vunpack.c.l.b16 %v294
      %v708 = vunpack.c.h.b16 %v294
      %v709 = vunpack.c.l.b16 %v295
      %v710 = vunpack.c.h.b16 %v295
      %v711 = vunpack.c.l.b16 %v296
      %v712 = vunpack.c.h.b16 %v296
      %v713 = vunpack.c.l.b16 %v297
      %v714 = vunpack.c.l.b16 %v298
      %v715 = vunpack.c.h.b16 %v298
      %v716 = vunpack.c.l.b16 %v299
      %v717 = vunpack.c.h.b16 %v299
      %v718 = vunpack.c.l.b16 %v300
      %v719 = vunpack.c.h.b16 %v300
      %v720 = vunpack.c.l.b16 %v301
      %v721 = vunpack.c.h.b16 %v301
      %v722 = vunpack.c.l.b16 %v302
      %v723 = vunpack.c.l.b16 %v303
      %v724 = vunpack.c.h.b16 %v303
      %v725 = vunpack.c.l.b16 %v304
      %v726 = vunpack.c.h.b16 %v304
      %v727 = vunpack.c.l.b16 %v305
      %v728 = vunpack.c.h.b16 %v305
      %v729 = vunpack.c.l.b16 %v306
      %v730 = vunpack.c.h.b16 %v306
      %v731 = vunpack.c.l.b16 %v307
      %v732 = vunpack.c.l.b16 %v308
      %v733 = vunpack.c.h.b16 %v308
      %v734 = vunpack.c.l.b16 %v309
      %v735 = vunpack.c.h.b16 %v309
      %v736 = vunpack.c.l.b16 %v310
      %v737 = vunpack.c.h.b16 %v310
      %v738 = vunpack.c.l.b16 %v311
      %v739 = vunpack.c.h.b16 %v311
      %v740 = vunpack.c.l.b16 %v312
      %v741 = vunpack.c.l.b16 %v313
      %v742 = vunpack.c.h.b16 %v313
      %v743 = vunpack.c.l.b16 %v314
      %v744 = vunpack.c.h.b16 %v314
      %v745 = vunpack.c.l.b16 %v315
      %v746 = vunpack.c.h.b16 %v315
      %v747 = vunpack.c.l.b16 %v316
      %v748 = vunpack.c.h.b16 %v316
      %v749 = vunpack.c.l.b16 %v317
      %v750 = vunpack.c.l.b16 %v318
      %v751 = vunpack.c.h.b16 %v318
      %v752 = vunpack.c.l.b16 %v319
      %v753 = vunpack.c.h.b16 %v319
      %v754 = vunpack.c.l.b16 %v320
      %v755 = vunpack.c.h.b16 %v320
      %v756 = vunpack.c.l.b16 %v321
      %v757 = vunpack.c.h.b16 %v321
      %v758 = vunpack.c.l.b16 %v322
      %v759 = vunpack.c.l.b16 %v323
      %v760 = vunpack.c.h.b16 %v323
      %v761 = vunpack.c.l.b16 %v324
      %v762 = vunpack.c.h.b16 %v324
      %v763 = vunpack.c.l.b16 %v325
      %v764 = vunpack.c.h.b16 %v325
      %v765 = vunpack.c.l.b16 %v326
      %v766 = vunpack.c.h.b16 %v326
      %v767 = vunpack.c.l.b16 %v327
      %v768 = vunpack.c.l.b16 %v328
      %v769 = vunpack.c.h.b16 %v328
      %v770 = vunpack.c.l.b16 %v329
      %v771 = vunpack.c.h.b16 %v329
      %v772 = vunpack.c.l.b16 %v330
      %v773 = vunpack.c.h.b16 %v330
      %v774 = vunpack.c.l.b16 %v331
      %v775 = vunpack.c.h.b16 %v331
      %v776 = vunpack.c.l.b16 %v332
      %v777 = vunpack.c.l.b16 %v333
      %v778 = vunpack.c.h.b16 %v333
      %v779 = vunpack.c.l.b16 %v334
      %v780 = vunpack.c.h.b16 %v334
      %v781 = vunpack.c.l.b16 %v335
      %v782 = vunpack.c.h.b16 %v335
      %v783 = vunpack.c.l.b16 %v336
      %v784 = vunpack.c.h.b16 %v336
      %v785 = vunpack.c.l.b16 %v337
      %v786 = vunpack.c.l.b16 %v338
      %v787 = vunpack.c.h.b16 %v338
      %v788 = vunpack.c.l.b16 %v339
      %v789 = vunpack.c.h.b16 %v339
      %v790 = vunpack.c.l.b16 %v340
      %v791 = vunpack.c.h.b16 %v340
      %v792 = vunpack.c.l.b16 %v341
      %v793 = vunpack.c.h.b16 %v341
      %v794 = vunpack.c.l.b16 %v342
      %v795 = vunpack.c.l.b16 %v343
      %v796 = vunpack.c.h.b16 %v343
      %v797 = vunpack.c.l.b16 %v344
      %v798 = vunpack.c.h.b16 %v344
      %v799 = vunpack.c.l.b16 %v345
      %v800 = vunpack.c.h.b16 %v345
      %v801 = vunpack.c.l.b16 %v346
      %v802 = vunpack.c.h.b16 %v346
      %v803 = vunpack.c.l.b16 %v347
      %v804 = vunpack.c.l.b16 %v348
      %v805 = vunpack.c.h.b16 %v348
      %v806 = vunpack.c.l.b16 %v349
      %v807 = vunpack.c.h.b16 %v349
      %v808 = vunpack.c.l.b16 %v350
      %v809 = vunpack.c.h.b16 %v350
      %v810 = vunpack.c.l.b16 %v351
      %v811 = vunpack.c.h.b16 %v351
      %v812 = vunpack.c.l.b16 %v352
      %v813 = vunpack.c.l.b16 %v353
      %v814 = vunpack.c.h.b16 %v353
      %v815 = vunpack.c.l.b16 %v354
      %v816 = vunpack.c.h.b16 %v354
      %v817 = vunpack.c.l.b16 %v355
      %v818 = vunpack.c.h.b16 %v355
      %v819 = vunpack.c.l.b16 %v356
      %v820 = vunpack.c.h.b16 %v356
      %v821 = vunpack.c.l.b16 %v357
      %v822 = vpack.c.b16 %v687, %v678
      %v823 = vpack.c.b16 %v688, %v679
      %v824 = vpack.c.b16 %v689, %v680
      %v825 = vpack.c.b16 %v690, %v681
      %v826 = vpack.c.b16 %v691, %v682
      %v827 = vpack.c.b16 %v692, %v683
      %v828 = vpack.c.b16 %v693, %v684
      %v829 = vpack.c.b16 %v694, %v685
      %v830 = vpack.c.b16 %v695, %v686
      %v831 = vpack.c.b16 %v705, %v696
      %v832 = vpack.c.b16 %v706, %v697
      %v833 = vpack.c.b16 %v707, %v698
      %v834 = vpack.c.b16 %v708, %v699
      %v835 = vpack.c.b16 %v709, %v700
      %v836 = vpack.c.b16 %v710, %v701
      %v837 = vpack.c.b16 %v711, %v702
      %v838 = vpack.c.b16 %v712, %v703
      %v839 = vpack.c.b16 %v713, %v704
      %v840 = vpack.c.b16 %v723, %v714
      %v841 = vpack.c.b16 %v724, %v715
      %v842 = vpack.c.b16 %v725, %v716
      %v843 = vpack.c.b16 %v726, %v717
      %v844 = vpack.c.b16 %v727, %v718
      %v845 = vpack.c.b16 %v728, %v719
      %v846 = vpack.c.b16 %v729, %v720
      %v847 = vpack.c.b16 %v730, %v721
      %v848 = vpack.c.b16 %v731, %v722
      %v849 = vpack.c.b16 %v741, %v732
      %v850 = vpack.c.b16 %v742, %v733
      %v851 = vpack.c.b16 %v743, %v734
      %v852 = vpack.c.b16 %v744, %v735
      %v853 = vpack.c.b16 %v745, %v736
      %v854 = vpack.c.b16 %v746, %v737
      %v855 = vpack.c.b16 %v747, %v738
      %v856 = vpack.c.b16 %v748, %v739
      %v857 = vpack.c.b16 %v749, %v740
      %v858 = vpack.c.b16 %v759, %v750
      %v859 = vpack.c.b16 %v760, %v751
      %v860 = vpack.c.b16 %v761, %v752
      %v861 = vpack.c.b16 %v762, %v753
      %v862 = vpack.c.b16 %v763, %v754
      %v863 = vpack.c.b16 %v764, %v755
      %v864 = vpack.c.b16 %v765, %v756
      %v865 = vpack.c.b16 %v766, %v757
      %v866 = vpack.c.b16 %v767, %v758
      %v867 = vpack.c.b16 %v777, %v768
      %v868 = vpack.c.b16 %v778, %v769
      %v869 = vpack.c.b16 %v779, %v770
      %v870 = vpack.c.b16 %v780, %v771
      %v871 = vpack.c.b16 %v781, %v772
      %v872 = vpack.c.b16 %v782, %v773
      %v873 = vpack.c.b16 %v783, %v774
      %v874 = vpack.c.b16 %v784, %v775
      %v875 = vpack.c.b16 %v785, %v776
      %v876 = vpack.c.b16 %v795, %v786
      %v877 = vpack.c.b16 %v796, %v787
      %v878 = vpack.c.b16 %v797, %v788
      %v879 = vpack.c.b16 %v798, %v789
      %v880 = vpack.c.b16 %v799, %v790
      %v881 = vpack.c.b16 %v800, %v791
      %v882 = vpack.c.b16 %v801, %v792
      %v883 = vpack.c.b16 %v802, %v793
      %v884 = vpack.c.b16 %v803, %v794
      %v885 = vpack.c.b16 %v813, %v804
      %v886 = vpack.c.b16 %v814, %v805
      %v887 = vpack.c.b16 %v815, %v806
      %v888 = vpack.c.b16 %v816, %v807
      %v889 = vpack.c.b16 %v817, %v808
      %v890 = vpack.c.b16 %v818, %v809
      %v891 = vpack.c.b16 %v819, %v810
      %v892 = vpack.c.b16 %v820, %v811
      %v893 = vpack.c.b16 %v821, %v812
      %v1110 = vunpack.c.l.b16 %v358
      %v1111 = vunpack.c.h.b16 %v358
      %v1112 = vunpack.c.l.b16 %v359
      %v1113 = vunpack.c.h.b16 %v359
      %v1114 = vunpack.c.l.b16 %v360
      %v1115 = vunpack.c.h.b16 %v360
      %v1116 = vunpack.c.l.b16 %v361
      %v1117 = vunpack.c.h.b16 %v361
      %v1118 = vunpack.c.l.b16 %v362
      %v1119 = vunpack.c.h.b16 %v362
      %v1120 = vunpack.c.l.b16 %v363
      %v1121 = vunpack.c.h.b16 %v363
      %v1122 = vunpack.c.l.b16 %v364
      %v1123 = vunpack.c.h.b16 %v364
      %v1124 = vunpack.c.l.b16 %v365
      %v1125 = vunpack.c.h.b16 %v365
      %v1126 = vunpack.c.l.b16 %v366
      %v1127 = vunpack.c.h.b16 %v366
      %v1128 = vunpack.c.l.b16 %v367
      %v1129 = vunpack.c.h.b16 %v367
      %v1130 = vunpack.c.l.b16 %v368
      %v1131 = vunpack.c.h.b16 %v368
      %v1132 = vunpack.c.l.b16 %v369
      %v1133 = vunpack.c.h.b16 %v369
      %v1134 = vunpack.c.l.b16 %v370
      %v1135 = vunpack.c.h.b16 %v370
      %v1136 = vunpack.c.l.b16 %v371
      %v1137 = vunpack.c.h.b16 %v371
      %v1138 = vunpack.c.l.b16 %v372
      %v1139 = vunpack.c.h.b16 %v372
      %v1140 = vunpack.c.l.b16 %v373
      %v1141 = vunpack.c.h.b16 %v373
      %v1142 = vunpack.c.l.b16 %v374
      %v1143 = vunpack.c.h.b16 %v374
      %v1144 = vunpack.c.l.b16 %v375
      %v1145 = vunpack.c.h.b16 %v375
      %v1146 = vunpack.c.l.b16 %v376
      %v1147 = vunpack.c.h.b16 %v376
      %v1148 = vunpack.c.l.b16 %v377
      %v1149 = vunpack.c.h.b16 %v377
      %v1150 = vunpack.c.l.b16 %v378
      %v1151 = vunpack.c.h.b16 %v378
      %v1152 = vunpack.c.l.b16 %v379
      %v1153 = vunpack.c.h.b16 %v379
      %v1154 = vunpack.c.l.b16 %v380
      %v1155 = vunpack.c.h.b16 %v380
      %v1156 = vunpack.c.l.b16 %v381
      %v1157 = vunpack.c.h.b16 %v381
      %v1158 = vunpack.c.l.b16 %v382
      %v1159 = vunpack.c.h.b16 %v382
      %v1160 = vunpack.c.l.b16 %v383
      %v1161 = vunpack.c.h.b16 %v383
      %v1162 = vunpack.c.l.b16 %v384
      %v1163 = vunpack.c.h.b16 %v384
      %v1164 = vunpack.c.l.b16 %v385
      %v1165 = vunpack.c.h.b16 %v385
      %v1166 = vunpack.c.l.b16 %v386
      %v1167 = vunpack.c.h.b16 %v386
      %v1168 = vunpack.c.l.b16 %v387
      %v1169 = vunpack.c.h.b16 %v387
      %v1170 = vunpack.c.l.b16 %v388
      %v1171 = vunpack.c.h.b16 %v388
      %v1172 = vunpack.c.l.b16 %v389
      %v1173 = vunpack.c.h.b16 %v389
      %v1174 = vunpack.c.l.b16 %v390
      %v1175 = vunpack.c.h.b16 %v390
      %v1176 = vunpack.c.l.b16 %v391
      %v1177 = vunpack.c.h.b16 %v391
      %v1178 = vunpack.c.l.b16 %v392
      %v1179 = vunpack.c.h.b16 %v392
      %v1180 = vunpack.c.l.b16 %v393
      %v1181 = vunpack.c.h.b16 %v393
      %v1182 = vunpack.c.l.b16 %v394
      %v1183 = vunpack.c.h.b16 %v394
      %v1184 = vunpack.c.l.b16 %v395
      %v1185 = vunpack.c.h.b16 %v395
      %v1186 = vunpack.c.l.b16 %v396
      %v1187 = vunpack.c.h.b16 %v396
      %v1188 = vunpack.c.l.b16 %v397
      %v1189 = vunpack.c.h.b16 %v397
      %v1190 = vunpack.c.l.b16 %v398
      %v1191 = vunpack.c.h.b16 %v398
      %v1192 = vunpack.c.l.b16 %v399
      %v1193 = vunpack.c.h.b16 %v399
      %v1194 = vunpack.c.l.b16 %v400
      %v1195 = vunpack.c.h.b16 %v400
      %v1196 = vunpack.c.l.b16 %v401
      %v1197 = vunpack.c.h.b16 %v401
      %v1198 = vunpack.c.l.b16 %v402
      %v1199 = vunpack.c.h.b16 %v402
      %v1200 = vunpack.c.l.b16 %v403
      %v1201 = vunpack.c.h.b16 %v403
      %v1202 = vunpack.c.l.b16 %v404
      %v1203 = vunpack.c.h.b16 %v404
      %v1204 = vunpack.c.l.b16 %v405
      %v1205 = vunpack.c.h.b16 %v405
      %v1206 = vunpack.c.l.b16 %v406
      %v1207 = vunpack.c.h.b16 %v406
      %v1208 = vunpack.c.l.b16 %v407
      %v1209 = vunpack.c.h.b16 %v407
      %v1210 = vunpack.c.l.b16 %v408
      %v1211 = vunpack.c.h.b16 %v408
      %v1212 = vunpack.c.l.b16 %v409
      %v1213 = vunpack.c.h.b16 %v409
      %v1214 = vunpack.c.l.b16 %v410
      %v1215 = vunpack.c.h.b16 %v410
      %v1216 = vunpack.c.l.b16 %v411
      %v1217 = vunpack.c.h.b16 %v411
      %v1218 = vunpack.c.l.b16 %v412
      %v1219 = vunpack.c.h.b16 %v412
      %v1220 = vunpack.c.l.b16 %v413
      %v1221 = vunpack.c.h.b16 %v413
      %v1222 = vunpack.c.l.b16 %v414
      %v1223 = vunpack.c.h.b16 %v414
      %v1224 = vunpack.c.l.b16 %v415
      %v1225 = vunpack.c.h.b16 %v415
      %v1226 = vunpack.c.l.b16 %v416
      %v1227 = vunpack.c.h.b16 %v416
      %v1228 = vunpack.c.l.b16 %v417
      %v1229 = vunpack.c.h.b16 %v417
      %v1230 = vunpack.c.l.b16 %v418
      %v1231 = vunpack.c.h.b16 %v418
      %v1232 = vunpack.c.l.b16 %v419
      %v1233 = vunpack.c.h.b16 %v419
      %v1234 = vunpack.c.l.b16 %v420
      %v1235 = vunpack.c.h.b16 %v420
      %v1236 = vunpack.c.l.b16 %v421
      %v1237 = vunpack.c.h.b16 %v421
      %v1238 = vunpack.c.l.b16 %v422
      %v1239 = vunpack.c.h.b16 %v422
      %v1240 = vunpack.c.l.b16 %v423
      %v1241 = vunpack.c.h.b16 %v423
      %v1242 = vunpack.c.l.b16 %v424
      %v1243 = vunpack.c.h.b16 %v424
      %v1244 = vunpack.c.l.b16 %v425
      %v1245 = vunpack.c.h.b16 %v425
      %v1246 = vunpack.c.l.b16 %v426
      %v1247 = vunpack.c.h.b16 %v426
      %v1248 = vunpack.c.l.b16 %v427
      %v1249 = vunpack.c.h.b16 %v427
      %v1250 = vunpack.c.l.b16 %v428
      %v1251 = vunpack.c.h.b16 %v428
      %v1252 = vunpack.c.l.b16 %v429
      %v1253 = vunpack.c.h.b16 %v429
      %v1254 = vunpack.c.l.b16 %v430
      %v1255 = vunpack.c.h.b16 %v430
      %v1256 = vunpack.c.l.b16 %v431
      %v1257 = vunpack.c.h.b16 %v431
      %v1258 = vunpack.c.l.b16 %v432
      %v1259 = vunpack.c.h.b16 %v432
      %v1260 = vunpack.c.l.b16 %v433
      %v1261 = vunpack.c.h.b16 %v433
      %v1262 = vunpack.c.l.b16 %v434
      %v1263 = vunpack.c.h.b16 %v434
      %v1264 = vunpack.c.l.b16 %v435
      %v1265 = vunpack.c.h.b16 %v435
      %v1266 = vunpack.c.l.b16 %v436
      %v1267 = vunpack.c.h.b16 %v436
      %v1268 = vunpack.c.l.b16 %v437
      %v1269 = vunpack.c.h.b16 %v437
      %v1270 = vunpack.c.l.b16 %v438
      %v1271 = vunpack.c.h.b16 %v438
      %v1272 = vunpack.c.l.b16 %v439
      %v1273 = vunpack.c.h.b16 %v439
      %v1274 = vunpack.c.l.b16 %v440
      %v1275 = vunpack.c.h.b16 %v440
      %v1276 = vunpack.c.l.b16 %v441
      %v1277 = vunpack.c.h.b16 %v441
      %v1278 = vunpack.c.l.b16 %v442
      %v1279 = vunpack.c.h.b16 %v442
      %v1280 = vunpack.c.l.b16 %v443
      %v1281 = vunpack.c.h.b16 %v443
      %v1282 = vunpack.c.l.b16 %v444
      %v1283 = vunpack.c.h.b16 %v444
      %v1284 = vunpack.c.l.b16 %v445
      %v1285 = vunpack.c.h.b16 %v445
      %v1286 = vunpack.c.l.b16 %v446
      %v1287 = vunpack.c.h.b16 %v446
      %v1288 = vunpack.c.l.b16 %v447
      %v1289 = vunpack.c.h.b16 %v447
      %v1290 = vunpack.c.l.b16 %v448
      %v1291 = vunpack.c.h.b16 %v448
      %v1292 = vunpack.c.l.b16 %v449
      %v1293 = vunpack.c.h.b16 %v449
      %v1294 = vunpack.c.l.b16 %v450
      %v1295 = vunpack.c.h.b16 %v450
      %v1296 = vunpack.c.l.b16 %v451
      %v1297 = vunpack.c.h.b16 %v451
      %v1298 = vunpack.c.l.b16 %v452
      %v1299 = vunpack.c.h.b16 %v452
      %v1300 = vunpack.c.l.b16 %v453
      %v1301 = vunpack.c.h.b16 %v453
      %v1302 = vunpack.c.l.b16 %v454
      %v1303 = vunpack.c.h.b16 %v454
      %v1304 = vunpack.c.l.b16 %v455
      %v1305 = vunpack.c.h.b16 %v455
      %v1306 = vunpack.c.l.b16 %v456
      %v1307 = vunpack.c.h.b16 %v456
      %v1308 = vunpack.c.l.b16 %v457
      %v1309 = vunpack.c.h.b16 %v457
      %v1310 = vunpack.c.l.b16 %v458
      %v1311 = vunpack.c.h.b16 %v458
      %v1312 = vunpack.c.l.b16 %v459
      %v1313 = vunpack.c.h.b16 %v459
      %v1314 = vunpack.c.l.b16 %v460
      %v1315 = vunpack.c.h.b16 %v460
      %v1316 = vunpack.c.l.b16 %v461
      %v1317 = vunpack.c.h.b16 %v461
      %v1318 = vunpack.c.l.b16 %v462
      %v1319 = vunpack.c.h.b16 %v462
      %v1320 = vunpack.c.l.b16 %v463
      %v1321 = vunpack.c.h.b16 %v463
      %v1322 = vunpack.c.l.b16 %v464
      %v1323 = vunpack.c.h.b16 %v464
      %v1324 = vunpack.c.l.b16 %v465
      %v1325 = vunpack.c.h.b16 %v465
      %v1326 = vunpack.c.l.b16 %v466
      %v1327 = vunpack.c.h.b16 %v466
      %v1328 = vunpack.c.l.b16 %v467
      %v1329 = vunpack.c.h.b16 %v467
      %v1330 = vunpack.c.l.b16 %v468
      %v1331 = vunpack.c.h.b16 %v468
      %v1332 = vunpack.c.l.b16 %v469
      %v1333 = vunpack.c.h.b16 %v469
      %v1334 = vunpack.c.l.b16 %v470
      %v1335 = vunpack.c.h.b16 %v470
      %v1336 = vunpack.c.l.b16 %v471
      %v1337 = vunpack.c.h.b16 %v471
      %v1338 = vunpack.c.l.b16 %v472
      %v1339 = vunpack.c.h.b16 %v472
      %v1340 = vunpack.c.l.b16 %v473
      %v1341 = vunpack.c.h.b16 %v473
      %v1342 = vunpack.c.l.b16 %v474
      %v1343 = vunpack.c.h.b16 %v474
      %v1344 = vunpack.c.l.b16 %v475
      %v1345 = vunpack.c.h.b16 %v475
      %v1346 = vunpack.c.l.b16 %v476
      %v1347 = vunpack.c.h.b16 %v476
      %v1348 = vunpack.c.l.b16 %v477
      %v1349 = vunpack.c.h.b16 %v477
      %v1350 = vunpack.c.l.b16 %v478
      %v1351 = vunpack.c.h.b16 %v478
      %v1352 = vunpack.c.l.b16 %v479
      %v1353 = vunpack.c.h.b16 %v479
      %v1354 = vunpack.c.l.b16 %v480
      %v1355 = vunpack.c.h.b16 %v480
      %v1356 = vunpack.c.l.b16 %v481
      %v1357 = vunpack.c.h.b16 %v481
      %v1358 = vunpack.c.l.b16 %v482
      %v1359 = vunpack.c.h.b16 %v482
      %v1360 = vunpack.c.l.b16 %v483
      %v1361 = vunpack.c.h.b16 %v483
      %v1362 = vunpack.c.l.b16 %v484
      %v1363 = vunpack.c.h.b16 %v484
      %v1364 = vunpack.c.l.b16 %v485
      %v1365 = vunpack.c.h.b16 %v485
      %v1366 = vunpack.c.l.b16 %v486
      %v1367 = vunpack.c.h.b16 %v486
      %v1368 = vunpack.c.l.b16 %v487
      %v1369 = vunpack.c.h.b16 %v487
      %v1370 = vunpack.c.l.b16 %v488
      %v1371 = vunpack.c.h.b16 %v488
      %v1372 = vunpack.c.l.b16 %v489
      %v1373 = vunpack.c.h.b16 %v489
      %v1374 = vunpack.c.l.b16 %v490
      %v1375 = vunpack.c.h.b16 %v490
      %v1376 = vunpack.c.l.b16 %v491
      %v1377 = vunpack.c.h.b16 %v491
      %v1378 = vunpack.c.l.b16 %v492
      %v1379 = vunpack.c.h.b16 %v492
      %v1380 = vunpack.c.l.b16 %v493
      %v1381 = vunpack.c.h.b16 %v493
      %v1382 = vunpack.c.l.b16 %v494
      %v1383 = vunpack.c.h.b16 %v494
      %v1384 = vunpack.c.l.b16 %v495
      %v1385 = vunpack.c.h.b16 %v495
      %v1386 = vunpack.c.l.b16 %v496
      %v1387 = vunpack.c.h.b16 %v496
      %v1388 = vunpack.c.l.b16 %v497
      %v1389 = vunpack.c.h.b16 %v497
      %v1390 = vunpack.c.l.b16 %v498
      %v1391 = vunpack.c.h.b16 %v498
      %v1392 = vunpack.c.l.b16 %v499
      %v1393 = vunpack.c.h.b16 %v499
      %v1394 = vunpack.c.l.b16 %v500
      %v1395 = vunpack.c.h.b16 %v500
      %v1396 = vunpack.c.l.b16 %v501
      %v1397 = vunpack.c.h.b16 %v501
      %v1398 = vpack.c.b16 %v1112, %v1110
      %v1399 = vpack.c.b16 %v1113, %v1111
      %v1400 = vpack.c.b16 %v1116, %v1114
      %v1401 = vpack.c.b16 %v1117, %v1115
      %v1402 = vpack.c.b16 %v1120, %v1118
      %v1403 = vpack.c.b16 %v1121, %v1119
      %v1404 = vpack.c.b16 %v1124, %v1122
      %v1405 = vpack.c.b16 %v1125, %v1123
      %v1406 = vpack.c.b16 %v1128, %v1126
      %v1407 = vpack.c.b16 %v1129, %v1127
      %v1408 = vpack.c.b16 %v1132, %v1130
      %v1409 = vpack.c.b16 %v1133, %v1131
      %v1410 = vpack.c.b16 %v1136, %v1134
      %v1411 = vpack.c.b16 %v1137, %v1135
      %v1412 = vpack.c.b16 %v1140, %v1138
      %v1413 = vpack.c.b16 %v1141, %v1139
      %v1414 = vpack.c.b16 %v1144, %v1142
      %v1415 = vpack.c.b16 %v1145, %v1143
      %v1416 = vpack.c.b16 %v1148, %v1146
      %v1417 = vpack.c.b16 %v1149, %v1147
      %v1418 = vpack.c.b16 %v1152, %v1150
      %v1419 = vpack.c.b16 %v1153, %v1151
      %v1420 = vpack.c.b16 %v1156, %v1154
      %v1421 = vpack.c.b16 %v1157, %v1155
      %v1422 = vpack.c.b16 %v1160, %v1158
      %v1423 = vpack.c.b16 %v1161, %v1159
      %v1424 = vpack.c.b16 %v1164, %v1162
      %v1425 = vpack.c.b16 %v1165, %v1163
      %v1426 = vpack.c.b16 %v1168, %v1166
      %v1427 = vpack.c.b16 %v1169, %v1167
      %v1428 = vpack.c.b16 %v1172, %v1170
      %v1429 = vpack.c.b16 %v1173, %v1171
      %v1430 = vpack.c.b16 %v1176, %v1174
      %v1431 = vpack.c.b16 %v1177, %v1175
      %v1432 = vpack.c.b16 %v1180, %v1178
      %v1433 = vpack.c.b16 %v1181, %v1179
      %v1434 = vpack.c.b16 %v1184, %v1182
      %v1435 = vpack.c.b16 %v1185, %v1183
      %v1436 = vpack.c.b16 %v1188, %v1186
      %v1437 = vpack.c.b16 %v1189, %v1187
      %v1438 = vpack.c.b16 %v1192, %v1190
      %v1439 = vpack.c.b16 %v1193, %v1191
      %v1440 = vpack.c.b16 %v1196, %v1194
      %v1441 = vpack.c.b16 %v1197, %v1195
      %v1442 = vpack.c.b16 %v1200, %v1198
      %v1443 = vpack.c.b16 %v1201, %v1199
      %v1444 = vpack.c.b16 %v1204, %v1202
      %v1445 = vpack.c.b16 %v1205, %v1203
      %v1446 = vpack.c.b16 %v1208, %v1206
      %v1447 = vpack.c.b16 %v1209, %v1207
      %v1448 = vpack.c.b16 %v1212, %v1210
      %v1449 = vpack.c.b16 %v1213, %v1211
      %v1450 = vpack.c.b16 %v1216, %v1214
      %v1451 = vpack.c.b16 %v1217, %v1215
      %v1452 = vpack.c.b16 %v1220, %v1218
      %v1453 = vpack.c.b16 %v1221, %v1219
      %v1454 = vpack.c.b16 %v1224, %v1222
      %v1455 = vpack.c.b16 %v1225, %v1223
      %v1456 = vpack.c.b16 %v1228, %v1226
      %v1457 = vpack.c.b16 %v1229, %v1227
      %v1458 = vpack.c.b16 %v1232, %v1230
      %v1459 = vpack.c.b16 %v1233, %v1231
      %v1460 = vpack.c.b16 %v1236, %v1234
      %v1461 = vpack.c.b16 %v1237, %v1235
      %v1462 = vpack.c.b16 %v1240, %v1238
      %v1463 = vpack.c.b16 %v1241, %v1239
      %v1464 = vpack.c.b16 %v1244, %v1242
      %v1465 = vpack.c.b16 %v1245, %v1243
      %v1466 = vpack.c.b16 %v1248, %v1246
      %v1467 = vpack.c.b16 %v1249, %v1247
      %v1468 = vpack.c.b16 %v1252, %v1250
      %v1469 = vpack.c.b16 %v1253, %v1251
      %v1470 = vpack.c.b16 %v1256, %v1254
      %v1471 = vpack.c.b16 %v1257, %v1255
      %v1472 = vpack.c.b16 %v1260, %v1258
      %v1473 = vpack.c.b16 %v1261, %v1259
      %v1474 = vpack.c.b16 %v1264, %v1262
      %v1475 = vpack.c.b16 %v1265, %v1263
      %v1476 = vpack.c.b16 %v1268, %v1266
      %v1477 = vpack.c.b16 %v1269, %v1267
      %v1478 = vpack.c.b16 %v1272, %v1270
      %v1479 = vpack.c.b16 %v1273, %v1271
      %v1480 = vpack.c.b16 %v1276, %v1274
      %v1481 = vpack.c.b16 %v1277, %v1275
      %v1482 = vpack.c.b16 %v1280, %v1278
      %v1483 = vpack.c.b16 %v1281, %v1279
      %v1484 = vpack.c.b16 %v1284, %v1282
      %v1485 = vpack.c.b16 %v1285, %v1283
      %v1486 = vpack.c.b16 %v1288, %v1286
      %v1487 = vpack.c.b16 %v1289, %v1287
      %v1488 = vpack.c.b16 %v1292, %v1290
      %v1489 = vpack.c.b16 %v1293, %v1291
      %v1490 = vpack.c.b16 %v1296, %v1294
      %v1491 = vpack.c.b16 %v1297, %v1295
      %v1492 = vpack.c.b16 %v1300, %v1298
      %v1493 = vpack.c.b16 %v1301, %v1299
      %v1494 = vpack.c.b16 %v1304, %v1302
      %v1495 = vpack.c.b16 %v1305, %v1303
      %v1496 = vpack.c.b16 %v1308, %v1306
      %v1497 = vpack.c.b16 %v1309, %v1307
      %v1498 = vpack.c.b16 %v1312, %v1310
      %v1499 = vpack.c.b16 %v1313, %v1311
      %v1500 = vpack.c.b16 %v1316, %v1314
      %v1501 = vpack.c.b16 %v1317, %v1315
      %v1502 = vpack.c.b16 %v1320, %v1318
      %v1503 = vpack.c.b16 %v1321, %v1319
      %v1504 = vpack.c.b16 %v1324, %v1322
      %v1505 = vpack.c.b16 %v1325, %v1323
      %v1506 = vpack.c.b16 %v1328, %v1326
      %v1507 = vpack.c.b16 %v1329, %v1327
      %v1508 = vpack.c.b16 %v1332, %v1330
      %v1509 = vpack.c.b16 %v1333, %v1331
      %v1510 = vpack.c.b16 %v1336, %v1334
      %v1511 = vpack.c.b16 %v1337, %v1335
      %v1512 = vpack.c.b16 %v1340, %v1338
      %v1513 = vpack.c.b16 %v1341, %v1339
      %v1514 = vpack.c.b16 %v1344, %v1342
      %v1515 = vpack.c.b16 %v1345, %v1343
      %v1516 = vpack.c.b16 %v1348, %v1346
      %v1517 = vpack.c.b16 %v1349, %v1347
      %v1518 = vpack.c.b16 %v1352, %v1350
      %v1519 = vpack.c.b16 %v1353, %v1351
      %v1520 = vpack.c.b16 %v1356, %v1354
      %v1521 = vpack.c.b16 %v1357, %v1355
      %v1522 = vpack.c.b16 %v1360, %v1358
      %v1523 = vpack.c.b16 %v1361, %v1359
      %v1524 = vpack.c.b16 %v1364, %v1362
      %v1525 = vpack.c.b16 %v1365, %v1363
      %v1526 = vpack.c.b16 %v1368, %v1366
      %v1527 = vpack.c.b16 %v1369, %v1367
      %v1528 = vpack.c.b16 %v1372, %v1370
      %v1529 = vpack.c.b16 %v1373, %v1371
      %v1530 = vpack.c.b16 %v1376, %v1374
      %v1531 = vpack.c.b16 %v1377, %v1375
      %v1532 = vpack.c.b16 %v1380, %v1378
      %v1533 = vpack.c.b16 %v1381, %v1379
      %v1534 = vpack.c.b16 %v1384, %v1382
      %v1535 = vpack.c.b16 %v1385, %v1383
      %v1536 = vpack.c.b16 %v1388, %v1386
      %v1537 = vpack.c.b16 %v1389, %v1387
      %v1538 = vpack.c.b16 %v1392, %v1390
      %v1539 = vpack.c.b16 %v1393, %v1391
      %v1540 = vpack.c.b16 %v1396, %v1394
      %v1541 = vpack.c.b16 %v1397, %v1395
      %1686 = vmatprep.subr.bf16.mxu0 %v1399
      %1687 = vmatpush1.bf16.msra.mxu0 %v1398
      %1688 = vmatprep.subr.bf16.mxu0 %v1401
      %1689 = vmatpush1.bf16.msra.mxu0 %v1400
      %1690 = vmatprep.subr.bf16.mxu0 %v1403
      %1691 = vmatpush1.bf16.msra.mxu0 %v1402
      %1692 = vmatprep.subr.bf16.mxu0 %v1405
      %1693 = vmatpush1.bf16.msra.mxu0 %v1404
      %1694 = vmatprep.subr.bf16.mxu0 %v1407
      %1695 = vmatpush1.bf16.msra.mxu0 %v1406
      %1696 = vmatprep.subr.bf16.mxu0 %v1409
      %1697 = vmatpush1.bf16.msra.mxu0 %v1408
      %1698 = vmatprep.subr.bf16.mxu0 %v1411
      %1699 = vmatpush1.bf16.msra.mxu0 %v1410
      %1700 = vmatprep.subr.bf16.mxu0 %v1413
      %1701 = vmatpush1.bf16.msra.mxu0 %v1412
      %1702 = vmatprep.subr.bf16.mxu0 %v1415
      %1703 = vmatpush1.bf16.msra.mxu0 %v1414
      %1704 = vmatprep.subr.bf16.mxu0 %v1417
      %1705 = vmatpush1.bf16.msra.mxu0 %v1416
      %1706 = vmatprep.subr.bf16.mxu0 %v1419
      %1707 = vmatpush1.bf16.msra.mxu0 %v1418
      %1708 = vmatprep.subr.bf16.mxu0 %v1421
      %1709 = vmatpush1.bf16.msra.mxu0 %v1420
      %1710 = vmatprep.subr.bf16.mxu0 %v1423
      %1711 = vmatpush1.bf16.msra.mxu0 %v1422
      %1712 = vmatprep.subr.bf16.mxu0 %v1425
      %1713 = vmatpush1.bf16.msra.mxu0 %v1424
      %1714 = vmatprep.subr.bf16.mxu0 %v1427
      %1715 = vmatpush1.bf16.msra.mxu0 %v1426
      %1716 = vmatprep.subr.bf16.mxu0 %v1429
      %1717 = vmatpush1.bf16.msra.mxu0 %v1428
      %1718 = vmatprep.mubr.bf16.mxu0 %v823
      %1719 = vmatmul.mubr.bf16.gmra.mrb[0].mxu0 %v822
      %v1720 = vpop.f32.mrb[0].mxu0
      %v1721 = vadd.f32 %v521, %v1720
      %v1722 = vpop.f32.mrb[0].mxu0
      %v1723 = vadd.f32 %v521, %v1722
      %v1724 = vpop.f32.mrb[0].mxu0
      %v1725 = vadd.f32 %v526, %v1724
      %v1726 = vpop.f32.mrb[0].mxu0
      %v1727 = vadd.f32 %v526, %v1726
      %1728 = vmatprep.mubr.bf16.mxu0 %v832
      %1729 = vmatmul.mubr.bf16.gmra.mrb[0].mxu0 %v831
      %v1730 = vpop.f32.mrb[0].mxu0
      %v1731 = vadd.f32 %v531, %v1730
      %v1732 = vpop.f32.mrb[0].mxu0
      %v1733 = vadd.f32 %v531, %v1732
      %v1734 = vpop.f32.mrb[0].mxu0
      %v1735 = vadd.f32 %v536, %v1734
      %v1736 = vpop.f32.mrb[0].mxu0
      %v1737 = vadd.f32 %v536, %v1736
      %1738 = vmatprep.mubr.bf16.mxu0 %v841
      %1739 = vmatmul.mubr.bf16.gmra.mrb[0].mxu0 %v840
      %v1740 = vpop.f32.mrb[0].mxu0
      %v1741 = vadd.f32 %v541, %v1740
      %v1742 = vpop.f32.mrb[0].mxu0
      %v1743 = vadd.f32 %v541, %v1742
      %v1744 = vpop.f32.mrb[0].mxu0
      %v1745 = vadd.f32 %v546, %v1744
      %v1746 = vpop.f32.mrb[0].mxu0
      %v1747 = vadd.f32 %v546, %v1746
      %1748 = vmatprep.mubr.bf16.mxu0 %v850
      %1749 = vmatmul.mubr.bf16.gmra.mrb[0].mxu0 %v849
      %v1750 = vpop.f32.mrb[0].mxu0
      %v1751 = vadd.f32 %v551, %v1750
      %v1752 = vpop.f32.mrb[0].mxu0
      %v1753 = vadd.f32 %v551, %v1752
      %v1754 = vpop.f32.mrb[0].mxu0
      %v1755 = vadd.f32 %v556, %v1754
      %v1756 = vpop.f32.mrb[0].mxu0
      %v1757 = vadd.f32 %v556, %v1756
      %1758 = vmatprep.mubr.bf16.mxu0 %v859
      %1759 = vmatmul.mubr.bf16.gmra.mrb[0].mxu0 %v858
      %v1760 = vpop.f32.mrb[0].mxu0
      %v1761 = vadd.f32 %v561, %v1760
      %v1762 = vpop.f32.mrb[0].mxu0
      %v1763 = vadd.f32 %v561, %v1762
      %v1764 = vpop.f32.mrb[0].mxu0
      %v1765 = vadd.f32 %v566, %v1764
      %v1766 = vpop.f32.mrb[0].mxu0
      %v1767 = vadd.f32 %v566, %v1766
      %1768 = vmatprep.mubr.bf16.mxu0 %v868
      %1769 = vmatmul.mubr.bf16.gmra.mrb[0].mxu0 %v867
      %v1770 = vpop.f32.mrb[0].mxu0
      %v1771 = vadd.f32 %v571, %v1770
      %v1772 = vpop.f32.mrb[0].mxu0
      %v1773 = vadd.f32 %v571, %v1772
      %v1774 = vpop.f32.mrb[0].mxu0
      %v1775 = vadd.f32 %v576, %v1774
      %v1776 = vpop.f32.mrb[0].mxu0
      %v1777 = vadd.f32 %v576, %v1776
      %1778 = vmatprep.mubr.bf16.mxu0 %v877
      %1779 = vmatmul.mubr.bf16.gmra.mrb[0].mxu0 %v876
      %v1780 = vpop.f32.mrb[0].mxu0
      %v1781 = vadd.f32 %v581, %v1780
      %v1782 = vpop.f32.mrb[0].mxu0
      %v1783 = vadd.f32 %v581, %v1782
      %v1784 = vpop.f32.mrb[0].mxu0
      %v1785 = vadd.f32 %v586, %v1784
      %v1786 = vpop.f32.mrb[0].mxu0
      %v1787 = vadd.f32 %v586, %v1786
      %1788 = vmatprep.mubr.bf16.mxu0 %v886
      %1789 = vmatmul.mubr.bf16.gmra.mrb[0].mxu0 %v885
      %v1790 = vpop.f32.mrb[0].mxu0
      %v1791 = vadd.f32 %v591, %v1790
      %v1792 = vpop.f32.mrb[0].mxu0
      %v1793 = vadd.f32 %v591, %v1792
      %v1794 = vpop.f32.mrb[0].mxu0
      %v1795 = vadd.f32 %v596, %v1794
      %v1796 = vpop.f32.mrb[0].mxu0
      %v1797 = vadd.f32 %v596, %v1796
      %1798 = vdwg.mxu0
      %1799 = vmatprep.subr.bf16.mxu0 %v1431
      %1800 = vmatpush1.bf16.msra.mxu0 %v1430
      %1801 = vmatprep.subr.bf16.mxu0 %v1433
      %1802 = vmatpush1.bf16.msra.mxu0 %v1432
      %1803 = vmatprep.subr.bf16.mxu0 %v1435
      %1804 = vmatpush1.bf16.msra.mxu0 %v1434
      %1805 = vmatprep.subr.bf16.mxu0 %v1437
      %1806 = vmatpush1.bf16.msra.mxu0 %v1436
      %1807 = vmatprep.subr.bf16.mxu0 %v1439
      %1808 = vmatpush1.bf16.msra.mxu0 %v1438
      %1809 = vmatprep.subr.bf16.mxu0 %v1441
      %1810 = vmatpush1.bf16.msra.mxu0 %v1440
      %1811 = vmatprep.subr.bf16.mxu0 %v1443
      %1812 = vmatpush1.bf16.msra.mxu0 %v1442
      %1813 = vmatprep.subr.bf16.mxu0 %v1445
      %1814 = vmatpush1.bf16.msra.mxu0 %v1444
      %1815 = vmatprep.subr.bf16.mxu0 %v1447
      %1816 = vmatpush1.bf16.msra.mxu0 %v1446
      %1817 = vmatprep.subr.bf16.mxu0 %v1449
      %1818 = vmatpush1.bf16.msra.mxu0 %v1448
      %1819 = vmatprep.subr.bf16.mxu0 %v1451
      %1820 = vmatpush1.bf16.msra.mxu0 %v1450
      %1821 = vmatprep.subr.bf16.mxu0 %v1453
      %1822 = vmatpush1.bf16.msra.mxu0 %v1452
      %1823 = vmatprep.subr.bf16.mxu0 %v1455
      %1824 = vmatpush1.bf16.msra.mxu0 %v1454
      %1825 = vmatprep.subr.bf16.mxu0 %v1457
      %1826 = vmatpush1.bf16.msra.mxu0 %v1456
      %1827 = vmatprep.subr.bf16.mxu0 %v1459
      %1828 = vmatpush1.bf16.msra.mxu0 %v1458
      %1829 = vmatprep.subr.bf16.mxu0 %v1461
      %1830 = vmatpush1.bf16.msra.mxu0 %v1460
      %1831 = vmatprep.mubr.bf16.mxu0 %v825
      %1832 = vmatmul.mubr.bf16.gmra.mrb[0].mxu0 %v824
      %v1833 = vpop.f32.mrb[0].mxu0
      %v1834 = vadd.f32 %v1721, %v1833
      %v1835 = vpop.f32.mrb[0].mxu0
      %v1836 = vadd.f32 %v1723, %v1835
      %v1837 = vpop.f32.mrb[0].mxu0
      %v1838 = vadd.f32 %v1725, %v1837
      %v1839 = vpop.f32.mrb[0].mxu0
      %v1840 = vadd.f32 %v1727, %v1839
      %1841 = vmatprep.mubr.bf16.mxu0 %v834
      %1842 = vmatmul.mubr.bf16.gmra.mrb[0].mxu0 %v833
      %v1843 = vpop.f32.mrb[0].mxu0
      %v1844 = vadd.f32 %v1731, %v1843
      %v1845 = vpop.f32.mrb[0].mxu0
      %v1846 = vadd.f32 %v1733, %v1845
      %v1847 = vpop.f32.mrb[0].mxu0
      %v1848 = vadd.f32 %v1735, %v1847
      %v1849 = vpop.f32.mrb[0].mxu0
      %v1850 = vadd.f32 %v1737, %v1849
      %1851 = vmatprep.mubr.bf16.mxu0 %v843
      %1852 = vmatmul.mubr.bf16.gmra.mrb[0].mxu0 %v842
      %v1853 = vpop.f32.mrb[0].mxu0
      %v1854 = vadd.f32 %v1741, %v1853
      %v1855 = vpop.f32.mrb[0].mxu0
      %v1856 = vadd.f32 %v1743, %v1855
      %v1857 = vpop.f32.mrb[0].mxu0
      %v1858 = vadd.f32 %v1745, %v1857
      %v1859 = vpop.f32.mrb[0].mxu0
      %v1860 = vadd.f32 %v1747, %v1859
      %1861 = vmatprep.mubr.bf16.mxu0 %v852
      %1862 = vmatmul.mubr.bf16.gmra.mrb[0].mxu0 %v851
      %v1863 = vpop.f32.mrb[0].mxu0
      %v1864 = vadd.f32 %v1751, %v1863
      %v1865 = vpop.f32.mrb[0].mxu0
      %v1866 = vadd.f32 %v1753, %v1865
      %v1867 = vpop.f32.mrb[0].mxu0
      %v1868 = vadd.f32 %v1755, %v1867
      %v1869 = vpop.f32.mrb[0].mxu0
      %v1870 = vadd.f32 %v1757, %v1869
      %1871 = vmatprep.mubr.bf16.mxu0 %v861
      %1872 = vmatmul.mubr.bf16.gmra.mrb[0].mxu0 %v860
      %v1873 = vpop.f32.mrb[0].mxu0
      %v1874 = vadd.f32 %v1761, %v1873
      %v1875 = vpop.f32.mrb[0].mxu0
      %v1876 = vadd.f32 %v1763, %v1875
      %v1877 = vpop.f32.mrb[0].mxu0
      %v1878 = vadd.f32 %v1765, %v1877
      %v1879 = vpop.f32.mrb[0].mxu0
      %v1880 = vadd.f32 %v1767, %v1879
      %1881 = vmatprep.mubr.bf16.mxu0 %v870
      %1882 = vmatmul.mubr.bf16.gmra.mrb[0].mxu0 %v869
      %v1883 = vpop.f32.mrb[0].mxu0
      %v1884 = vadd.f32 %v1771, %v1883
      %v1885 = vpop.f32.mrb[0].mxu0
      %v1886 = vadd.f32 %v1773, %v1885
      %v1887 = vpop.f32.mrb[0].mxu0
      %v1888 = vadd.f32 %v1775, %v1887
      %v1889 = vpop.f32.mrb[0].mxu0
      %v1890 = vadd.f32 %v1777, %v1889
      %1891 = vmatprep.mubr.bf16.mxu0 %v879
      %1892 = vmatmul.mubr.bf16.gmra.mrb[0].mxu0 %v878
      %v1893 = vpop.f32.mrb[0].mxu0
      %v1894 = vadd.f32 %v1781, %v1893
      %v1895 = vpop.f32.mrb[0].mxu0
      %v1896 = vadd.f32 %v1783, %v1895
      %v1897 = vpop.f32.mrb[0].mxu0
      %v1898 = vadd.f32 %v1785, %v1897
      %v1899 = vpop.f32.mrb[0].mxu0
      %v1900 = vadd.f32 %v1787, %v1899
      %1901 = vmatprep.mubr.bf16.mxu0 %v888
      %1902 = vmatmul.mubr.bf16.gmra.mrb[0].mxu0 %v887
      %v1903 = vpop.f32.mrb[0].mxu0
      %v1904 = vadd.f32 %v1791, %v1903
      %v1905 = vpop.f32.mrb[0].mxu0
      %v1906 = vadd.f32 %v1793, %v1905
      %v1907 = vpop.f32.mrb[0].mxu0
      %v1908 = vadd.f32 %v1795, %v1907
      %v1909 = vpop.f32.mrb[0].mxu0
      %v1910 = vadd.f32 %v1797, %v1909
      %1911 = vdwg.mxu0
      %1912 = vmatprep.subr.bf16.mxu0 %v1463
      %1913 = vmatpush1.bf16.msra.mxu0 %v1462
      %1914 = vmatprep.subr.bf16.mxu0 %v1465
      %1915 = vmatpush1.bf16.msra.mxu0 %v1464
      %1916 = vmatprep.subr.bf16.mxu0 %v1467
      %1917 = vmatpush1.bf16.msra.mxu0 %v1466
      %1918 = vmatprep.subr.bf16.mxu0 %v1469
      %1919 = vmatpush1.bf16.msra.mxu0 %v1468
      %1920 = vmatprep.subr.bf16.mxu0 %v1471
      %1921 = vmatpush1.bf16.msra.mxu0 %v1470
      %1922 = vmatprep.subr.bf16.mxu0 %v1473
      %1923 = vmatpush1.bf16.msra.mxu0 %v1472
      %1924 = vmatprep.subr.bf16.mxu0 %v1475
      %1925 = vmatpush1.bf16.msra.mxu0 %v1474
      %1926 = vmatprep.subr.bf16.mxu0 %v1477
      %1927 = vmatpush1.bf16.msra.mxu0 %v1476
      %1928 = vmatprep.subr.bf16.mxu0 %v1479
      %1929 = vmatpush1.bf16.msra.mxu0 %v1478
      %1930 = vmatprep.subr.bf16.mxu0 %v1481
      %1931 = vmatpush1.bf16.msra.mxu0 %v1480
      %1932 = vmatprep.subr.bf16.mxu0 %v1483
      %1933 = vmatpush1.bf16.msra.mxu0 %v1482
      %1934 = vmatprep.subr.bf16.mxu0 %v1485
      %1935 = vmatpush1.bf16.msra.mxu0 %v1484
      %1936 = vmatprep.subr.bf16.mxu0 %v1487
      %1937 = vmatpush1.bf16.msra.mxu0 %v1486
      %1938 = vmatprep.subr.bf16.mxu0 %v1489
      %1939 = vmatpush1.bf16.msra.mxu0 %v1488
      %1940 = vmatprep.subr.bf16.mxu0 %v1491
      %1941 = vmatpush1.bf16.msra.mxu0 %v1490
      %1942 = vmatprep.subr.bf16.mxu0 %v1493
      %1943 = vmatpush1.bf16.msra.mxu0 %v1492
      %1944 = vmatprep.mubr.bf16.mxu0 %v827
      %1945 = vmatmul.mubr.bf16.gmra.mrb[0].mxu0 %v826
      %v1946 = vpop.f32.mrb[0].mxu0
      %v1947 = vadd.f32 %v1834, %v1946
      %v1948 = vpop.f32.mrb[0].mxu0
      %v1949 = vadd.f32 %v1836, %v1948
      %v1950 = vpop.f32.mrb[0].mxu0
      %v1951 = vadd.f32 %v1838, %v1950
      %v1952 = vpop.f32.mrb[0].mxu0
      %v1953 = vadd.f32 %v1840, %v1952
      %1954 = vmatprep.mubr.bf16.mxu0 %v836
      %1955 = vmatmul.mubr.bf16.gmra.mrb[0].mxu0 %v835
      %v1956 = vpop.f32.mrb[0].mxu0
      %v1957 = vadd.f32 %v1844, %v1956
      %v1958 = vpop.f32.mrb[0].mxu0
      %v1959 = vadd.f32 %v1846, %v1958
      %v1960 = vpop.f32.mrb[0].mxu0
      %v1961 = vadd.f32 %v1848, %v1960
      %v1962 = vpop.f32.mrb[0].mxu0
      %v1963 = vadd.f32 %v1850, %v1962
      %1964 = vmatprep.mubr.bf16.mxu0 %v845
      %1965 = vmatmul.mubr.bf16.gmra.mrb[0].mxu0 %v844
      %v1966 = vpop.f32.mrb[0].mxu0
      %v1967 = vadd.f32 %v1854, %v1966
      %v1968 = vpop.f32.mrb[0].mxu0
      %v1969 = vadd.f32 %v1856, %v1968
      %v1970 = vpop.f32.mrb[0].mxu0
      %v1971 = vadd.f32 %v1858, %v1970
      %v1972 = vpop.f32.mrb[0].mxu0
      %v1973 = vadd.f32 %v1860, %v1972
      %1974 = vmatprep.mubr.bf16.mxu0 %v854
      %1975 = vmatmul.mubr.bf16.gmra.mrb[0].mxu0 %v853
      %v1976 = vpop.f32.mrb[0].mxu0
      %v1977 = vadd.f32 %v1864, %v1976
      %v1978 = vpop.f32.mrb[0].mxu0
      %v1979 = vadd.f32 %v1866, %v1978
      %v1980 = vpop.f32.mrb[0].mxu0
      %v1981 = vadd.f32 %v1868, %v1980
      %v1982 = vpop.f32.mrb[0].mxu0
      %v1983 = vadd.f32 %v1870, %v1982
      %1984 = vmatprep.mubr.bf16.mxu0 %v863
      %1985 = vmatmul.mubr.bf16.gmra.mrb[0].mxu0 %v862
      %v1986 = vpop.f32.mrb[0].mxu0
      %v1987 = vadd.f32 %v1874, %v1986
      %v1988 = vpop.f32.mrb[0].mxu0
      %v1989 = vadd.f32 %v1876, %v1988
      %v1990 = vpop.f32.mrb[0].mxu0
      %v1991 = vadd.f32 %v1878, %v1990
      %v1992 = vpop.f32.mrb[0].mxu0
      %v1993 = vadd.f32 %v1880, %v1992
      %1994 = vmatprep.mubr.bf16.mxu0 %v872
      %1995 = vmatmul.mubr.bf16.gmra.mrb[0].mxu0 %v871
      %v1996 = vpop.f32.mrb[0].mxu0
      %v1997 = vadd.f32 %v1884, %v1996
      %v1998 = vpop.f32.mrb[0].mxu0
      %v1999 = vadd.f32 %v1886, %v1998
      %v2000 = vpop.f32.mrb[0].mxu0
      %v2001 = vadd.f32 %v1888, %v2000
      %v2002 = vpop.f32.mrb[0].mxu0
      %v2003 = vadd.f32 %v1890, %v2002
      %2004 = vmatprep.mubr.bf16.mxu0 %v881
      %2005 = vmatmul.mubr.bf16.gmra.mrb[0].mxu0 %v880
      %v2006 = vpop.f32.mrb[0].mxu0
      %v2007 = vadd.f32 %v1894, %v2006
      %v2008 = vpop.f32.mrb[0].mxu0
      %v2009 = vadd.f32 %v1896, %v2008
      %v2010 = vpop.f32.mrb[0].mxu0
      %v2011 = vadd.f32 %v1898, %v2010
      %v2012 = vpop.f32.mrb[0].mxu0
      %v2013 = vadd.f32 %v1900, %v2012
      %2014 = vmatprep.mubr.bf16.mxu0 %v890
      %2015 = vmatmul.mubr.bf16.gmra.mrb[0].mxu0 %v889
      %v2016 = vpop.f32.mrb[0].mxu0
      %v2017 = vadd.f32 %v1904, %v2016
      %v2018 = vpop.f32.mrb[0].mxu0
      %v2019 = vadd.f32 %v1906, %v2018
      %v2020 = vpop.f32.mrb[0].mxu0
      %v2021 = vadd.f32 %v1908, %v2020
      %v2022 = vpop.f32.mrb[0].mxu0
      %v2023 = vadd.f32 %v1910, %v2022
      %2024 = vdwg.mxu0
      %2025 = vmatprep.subr.bf16.mxu0 %v1495
      %2026 = vmatpush1.bf16.msra.mxu0 %v1494
      %2027 = vmatprep.subr.bf16.mxu0 %v1497
      %2028 = vmatpush1.bf16.msra.mxu0 %v1496
      %2029 = vmatprep.subr.bf16.mxu0 %v1499
      %2030 = vmatpush1.bf16.msra.mxu0 %v1498
      %2031 = vmatprep.subr.bf16.mxu0 %v1501
      %2032 = vmatpush1.bf16.msra.mxu0 %v1500
      %2033 = vmatprep.subr.bf16.mxu0 %v1503
      %2034 = vmatpush1.bf16.msra.mxu0 %v1502
      %2035 = vmatprep.subr.bf16.mxu0 %v1505
      %2036 = vmatpush1.bf16.msra.mxu0 %v1504
      %2037 = vmatprep.subr.bf16.mxu0 %v1507
      %2038 = vmatpush1.bf16.msra.mxu0 %v1506
      %2039 = vmatprep.subr.bf16.mxu0 %v1509
      %2040 = vmatpush1.bf16.msra.mxu0 %v1508
      %2041 = vmatprep.subr.bf16.mxu0 %v1511
      %2042 = vmatpush1.bf16.msra.mxu0 %v1510
      %2043 = vmatprep.subr.bf16.mxu0 %v1513
      %2044 = vmatpush1.bf16.msra.mxu0 %v1512
      %2045 = vmatprep.subr.bf16.mxu0 %v1515
      %2046 = vmatpush1.bf16.msra.mxu0 %v1514
      %2047 = vmatprep.subr.bf16.mxu0 %v1517
      %2048 = vmatpush1.bf16.msra.mxu0 %v1516
      %2049 = vmatprep.subr.bf16.mxu0 %v1519
      %2050 = vmatpush1.bf16.msra.mxu0 %v1518
      %2051 = vmatprep.subr.bf16.mxu0 %v1521
      %2052 = vmatpush1.bf16.msra.mxu0 %v1520
      %2053 = vmatprep.subr.bf16.mxu0 %v1523
      %2054 = vmatpush1.bf16.msra.mxu0 %v1522
      %2055 = vmatprep.subr.bf16.mxu0 %v1525
      %2056 = vmatpush1.bf16.msra.mxu0 %v1524
      %2057 = vmatprep.mubr.bf16.mxu0 %v829
      %2058 = vmatmul.mubr.bf16.gmra.mrb[0].mxu0 %v828
      %v2059 = vpop.f32.mrb[0].mxu0
      %v2060 = vadd.f32 %v1947, %v2059
      %v2061 = vpop.f32.mrb[0].mxu0
      %v2062 = vadd.f32 %v1949, %v2061
      %v2063 = vpop.f32.mrb[0].mxu0
      %v2064 = vadd.f32 %v1951, %v2063
      %v2065 = vpop.f32.mrb[0].mxu0
      %v2066 = vadd.f32 %v1953, %v2065
      %2067 = vmatprep.mubr.bf16.mxu0 %v838
      %2068 = vmatmul.mubr.bf16.gmra.mrb[0].mxu0 %v837
      %v2069 = vpop.f32.mrb[0].mxu0
      %v2070 = vadd.f32 %v1957, %v2069
      %v2071 = vpop.f32.mrb[0].mxu0
      %v2072 = vadd.f32 %v1959, %v2071
      %v2073 = vpop.f32.mrb[0].mxu0
      %v2074 = vadd.f32 %v1961, %v2073
      %v2075 = vpop.f32.mrb[0].mxu0
      %v2076 = vadd.f32 %v1963, %v2075
      %2077 = vmatprep.mubr.bf16.mxu0 %v847
      %2078 = vmatmul.mubr.bf16.gmra.mrb[0].mxu0 %v846
      %v2079 = vpop.f32.mrb[0].mxu0
      %v2080 = vadd.f32 %v1967, %v2079
      %v2081 = vpop.f32.mrb[0].mxu0
      %v2082 = vadd.f32 %v1969, %v2081
      %v2083 = vpop.f32.mrb[0].mxu0
      %v2084 = vadd.f32 %v1971, %v2083
      %v2085 = vpop.f32.mrb[0].mxu0
      %v2086 = vadd.f32 %v1973, %v2085
      %2087 = vmatprep.mubr.bf16.mxu0 %v856
      %2088 = vmatmul.mubr.bf16.gmra.mrb[0].mxu0 %v855
      %v2089 = vpop.f32.mrb[0].mxu0
      %v2090 = vadd.f32 %v1977, %v2089
      %v2091 = vpop.f32.mrb[0].mxu0
      %v2092 = vadd.f32 %v1979, %v2091
      %v2093 = vpop.f32.mrb[0].mxu0
      %v2094 = vadd.f32 %v1981, %v2093
      %v2095 = vpop.f32.mrb[0].mxu0
      %v2096 = vadd.f32 %v1983, %v2095
      %2097 = vmatprep.mubr.bf16.mxu0 %v865
      %2098 = vmatmul.mubr.bf16.gmra.mrb[0].mxu0 %v864
      %v2099 = vpop.f32.mrb[0].mxu0
      %v2100 = vadd.f32 %v1987, %v2099
      %v2101 = vpop.f32.mrb[0].mxu0
      %v2102 = vadd.f32 %v1989, %v2101
      %v2103 = vpop.f32.mrb[0].mxu0
      %v2104 = vadd.f32 %v1991, %v2103
      %v2105 = vpop.f32.mrb[0].mxu0
      %v2106 = vadd.f32 %v1993, %v2105
      %2107 = vmatprep.mubr.bf16.mxu0 %v874
      %2108 = vmatmul.mubr.bf16.gmra.mrb[0].mxu0 %v873
      %v2109 = vpop.f32.mrb[0].mxu0
      %v2110 = vadd.f32 %v1997, %v2109
      %v2111 = vpop.f32.mrb[0].mxu0
      %v2112 = vadd.f32 %v1999, %v2111
      %v2113 = vpop.f32.mrb[0].mxu0
      %v2114 = vadd.f32 %v2001, %v2113
      %v2115 = vpop.f32.mrb[0].mxu0
      %v2116 = vadd.f32 %v2003, %v2115
      %2117 = vmatprep.mubr.bf16.mxu0 %v883
      %2118 = vmatmul.mubr.bf16.gmra.mrb[0].mxu0 %v882
      %v2119 = vpop.f32.mrb[0].mxu0
      %v2120 = vadd.f32 %v2007, %v2119
      %v2121 = vpop.f32.mrb[0].mxu0
      %v2122 = vadd.f32 %v2009, %v2121
      %v2123 = vpop.f32.mrb[0].mxu0
      %v2124 = vadd.f32 %v2011, %v2123
      %v2125 = vpop.f32.mrb[0].mxu0
      %v2126 = vadd.f32 %v2013, %v2125
      %2127 = vmatprep.mubr.bf16.mxu0 %v892
      %2128 = vmatmul.mubr.bf16.gmra.mrb[0].mxu0 %v891
      %v2129 = vpop.f32.mrb[0].mxu0
      %v2130 = vadd.f32 %v2017, %v2129
      %v2131 = vpop.f32.mrb[0].mxu0
      %v2132 = vadd.f32 %v2019, %v2131
      %v2133 = vpop.f32.mrb[0].mxu0
      %v2134 = vadd.f32 %v2021, %v2133
      %v2135 = vpop.f32.mrb[0].mxu0
      %v2136 = vadd.f32 %v2023, %v2135
      %2137 = vdwg.mxu0
      %2138 = vmatprep.subr.bf16.mxu0 %v1527
      %2139 = vmatpush1.bf16.msra.mxu0 %v1526
      %2140 = vmatprep.subr.bf16.mxu0 %v1529
      %2141 = vmatpush1.bf16.msra.mxu0 %v1528
      %2142 = vmatprep.subr.bf16.mxu0 %v1531
      %2143 = vmatpush1.bf16.msra.mxu0 %v1530
      %2144 = vmatprep.subr.bf16.mxu0 %v1533
      %2145 = vmatpush1.bf16.msra.mxu0 %v1532
      %2146 = vmatprep.subr.bf16.mxu0 %v1535
      %2147 = vmatpush1.bf16.msra.mxu0 %v1534
      %2148 = vmatprep.subr.bf16.mxu0 %v1537
      %2149 = vmatpush1.bf16.msra.mxu0 %v1536
      %2150 = vmatprep.subr.bf16.mxu0 %v1539
      %2151 = vmatpush1.bf16.msra.mxu0 %v1538
      %2152 = vmatprep.subr.bf16.mxu0 %v1541
      %2153 = vmatpush1.bf16.msra.mxu0 %v1540
      %2154 = vmatprep.subr.bf16.mxu0 0
      %2155 = vmatpush1.bf16.msra.mxu0 0
      %2156 = vmatprep.subr.bf16.mxu0 0
      %2157 = vmatpush1.bf16.msra.mxu0 0
      %2158 = vmatprep.subr.bf16.mxu0 0
      %2159 = vmatpush1.bf16.msra.mxu0 0
      %2160 = vmatprep.subr.bf16.mxu0 0
      %2161 = vmatpush1.bf16.msra.mxu0 0
      %2162 = vmatprep.subr.bf16.mxu0 0
      %2163 = vmatpush1.bf16.msra.mxu0 0
      %2164 = vmatprep.subr.bf16.mxu0 0
      %2165 = vmatpush1.bf16.msra.mxu0 0
      %2166 = vmatprep.subr.bf16.mxu0 0
      %2167 = vmatpush1.bf16.msra.mxu0 0
      %2168 = vmatprep.subr.bf16.mxu0 0
      %2169 = vmatpush1.bf16.msra.mxu0 0
      %2170 = vmatprep.mubr.bf16.mxu0 0
      %2171 = vmatmul.mubr.bf16.gmra.mrb[0].mxu0 %v830
      %v2172 = vpop.f32.mrb[0].mxu0
      %v2173 = vadd.f32 %v2060, %v2172
      %v2174 = vpop.f32.mrb[0].mxu0
      %v2175 = vadd.f32 %v2062, %v2174
      %v2176 = vpop.f32.mrb[0].mxu0
      %v2177 = vadd.f32 %v2064, %v2176
      %v2178 = vpop.f32.mrb[0].mxu0
      %v2179 = vadd.f32 %v2066, %v2178
      %2180 = vmatprep.mubr.bf16.mxu0 0
      %2181 = vmatmul.mubr.bf16.gmra.mrb[0].mxu0 %v839
      %v2182 = vpop.f32.mrb[0].mxu0
      %v2183 = vadd.f32 %v2070, %v2182
      %v2184 = vpop.f32.mrb[0].mxu0
      %v2185 = vadd.f32 %v2072, %v2184
      %v2186 = vpop.f32.mrb[0].mxu0
      %v2187 = vadd.f32 %v2074, %v2186
      %v2188 = vpop.f32.mrb[0].mxu0
      %v2189 = vadd.f32 %v2076, %v2188
      %2190 = vmatprep.mubr.bf16.mxu0 0
      %2191 = vmatmul.mubr.bf16.gmra.mrb[0].mxu0 %v848
      %v2192 = vpop.f32.mrb[0].mxu0
      %v2193 = vadd.f32 %v2080, %v2192
      %v2194 = vpop.f32.mrb[0].mxu0
      %v2195 = vadd.f32 %v2082, %v2194
      %v2196 = vpop.f32.mrb[0].mxu0
      %v2197 = vadd.f32 %v2084, %v2196
      %v2198 = vpop.f32.mrb[0].mxu0
      %v2199 = vadd.f32 %v2086, %v2198
      %2200 = vmatprep.mubr.bf16.mxu0 0
      %2201 = vmatmul.mubr.bf16.gmra.mrb[0].mxu0 %v857
      %v2202 = vpop.f32.mrb[0].mxu0
      %v2203 = vadd.f32 %v2090, %v2202
      %v2204 = vpop.f32.mrb[0].mxu0
      %v2205 = vadd.f32 %v2092, %v2204
      %v2206 = vpop.f32.mrb[0].mxu0
      %v2207 = vadd.f32 %v2094, %v2206
      %v2208 = vpop.f32.mrb[0].mxu0
      %v2209 = vadd.f32 %v2096, %v2208
      %2210 = vmatprep.mubr.bf16.mxu0 0
      %2211 = vmatmul.mubr.bf16.gmra.mrb[0].mxu0 %v866
      %v2212 = vpop.f32.mrb[0].mxu0
      %v2213 = vadd.f32 %v2100, %v2212
      %v2214 = vpop.f32.mrb[0].mxu0
      %v2215 = vadd.f32 %v2102, %v2214
      %v2216 = vpop.f32.mrb[0].mxu0
      %v2217 = vadd.f32 %v2104, %v2216
      %v2218 = vpop.f32.mrb[0].mxu0
      %v2219 = vadd.f32 %v2106, %v2218
      %2220 = vmatprep.mubr.bf16.mxu0 0
      %2221 = vmatmul.mubr.bf16.gmra.mrb[0].mxu0 %v875
      %v2222 = vpop.f32.mrb[0].mxu0
      %v2223 = vadd.f32 %v2110, %v2222
      %v2224 = vpop.f32.mrb[0].mxu0
      %v2225 = vadd.f32 %v2112, %v2224
      %v2226 = vpop.f32.mrb[0].mxu0
      %v2227 = vadd.f32 %v2114, %v2226
      %v2228 = vpop.f32.mrb[0].mxu0
      %v2229 = vadd.f32 %v2116, %v2228
      %2230 = vmatprep.mubr.bf16.mxu0 0
      %2231 = vmatmul.mubr.bf16.gmra.mrb[0].mxu0 %v884
      %v2232 = vpop.f32.mrb[0].mxu0
      %v2233 = vadd.f32 %v2120, %v2232
      %v2234 = vpop.f32.mrb[0].mxu0
      %v2235 = vadd.f32 %v2122, %v2234
      %v2236 = vpop.f32.mrb[0].mxu0
      %v2237 = vadd.f32 %v2124, %v2236
      %v2238 = vpop.f32.mrb[0].mxu0
      %v2239 = vadd.f32 %v2126, %v2238
      %2240 = vmatprep.mubr.bf16.mxu0 0
      %2241 = vmatmul.mubr.bf16.gmra.mrb[0].mxu0 %v893
      %v2242 = vpop.f32.mrb[0].mxu0
      %v2243 = vadd.f32 %v2130, %v2242
      %v2244 = vpop.f32.mrb[0].mxu0
      %v2245 = vadd.f32 %v2132, %v2244
      %v2246 = vpop.f32.mrb[0].mxu0
      %v2247 = vadd.f32 %v2134, %v2246
      %v2248 = vpop.f32.mrb[0].mxu0
      %v2249 = vadd.f32 %v2136, %v2248
      %2250 = vdwg.mxu0
      %v2251 = vmul.f32 %v2173, 0.1
      %v2252 = vmul.f32 %v2175, 0.1
      %v2253 = vmul.f32 %v2177, 0.1
      %v2254 = vmul.f32 %v2179, 0.1
      %v2255 = vmul.f32 %v2183, 0.1
      %v2256 = vmul.f32 %v2185, 0.1
      %v2257 = vmul.f32 %v2187, 0.1
      %v2258 = vmul.f32 %v2189, 0.1
      %v2259 = vmul.f32 %v2193, 0.1
      %v2260 = vmul.f32 %v2195, 0.1
      %v2261 = vmul.f32 %v2197, 0.1
      %v2262 = vmul.f32 %v2199, 0.1
      %v2263 = vmul.f32 %v2203, 0.1
      %v2264 = vmul.f32 %v2205, 0.1
      %v2265 = vmul.f32 %v2207, 0.1
      %v2266 = vmul.f32 %v2209, 0.1
      %v2267 = vmul.f32 %v2213, 0.1
      %v2268 = vmul.f32 %v2215, 0.1
      %v2269 = vmul.f32 %v2217, 0.1
      %v2270 = vmul.f32 %v2219, 0.1
      %v2271 = vmul.f32 %v2223, 0.1
      %v2272 = vmul.f32 %v2225, 0.1
      %v2273 = vmul.f32 %v2227, 0.1
      %v2274 = vmul.f32 %v2229, 0.1
      %v2275 = vmul.f32 %v2233, 0.1
      %v2276 = vmul.f32 %v2235, 0.1
      %v2277 = vmul.f32 %v2237, 0.1
      %v2278 = vmul.f32 %v2239, 0.1
      %v2279 = vmul.f32 %v2243, 0.1
      %v2280 = vmul.f32 %v2245, 0.1
      %v2281 = vmul.f32 %v2247, 0.1
      %v2282 = vmul.f32 %v2249, 0.1
      %v2283 = vmax.f32 %v2173, %v2251
      %v2284 = vmax.f32 %v2175, %v2252
      %v2285 = vmax.f32 %v2177, %v2253
      %v2286 = vmax.f32 %v2179, %v2254
      %v2287 = vmax.f32 %v2183, %v2255
      %v2288 = vmax.f32 %v2185, %v2256
      %v2289 = vmax.f32 %v2187, %v2257
      %v2290 = vmax.f32 %v2189, %v2258
      %v2291 = vmax.f32 %v2193, %v2259
      %v2292 = vmax.f32 %v2195, %v2260
      %v2293 = vmax.f32 %v2197, %v2261
      %v2294 = vmax.f32 %v2199, %v2262
      %v2295 = vmax.f32 %v2203, %v2263
      %v2296 = vmax.f32 %v2205, %v2264
      %v2297 = vmax.f32 %v2207, %v2265
      %v2298 = vmax.f32 %v2209, %v2266
      %v2299 = vmax.f32 %v2213, %v2267
      %v2300 = vmax.f32 %v2215, %v2268
      %v2301 = vmax.f32 %v2217, %v2269
      %v2302 = vmax.f32 %v2219, %v2270
      %v2303 = vmax.f32 %v2223, %v2271
      %v2304 = vmax.f32 %v2225, %v2272
      %v2305 = vmax.f32 %v2227, %v2273
      %v2306 = vmax.f32 %v2229, %v2274
      %v2307 = vmax.f32 %v2233, %v2275
      %v2308 = vmax.f32 %v2235, %v2276
      %v2309 = vmax.f32 %v2237, %v2277
      %v2310 = vmax.f32 %v2239, %v2278
      %v2311 = vmax.f32 %v2243, %v2279
      %v2312 = vmax.f32 %v2245, %v2280
      %v2313 = vmax.f32 %v2247, %v2281
      %v2314 = vmax.f32 %v2249, %v2282
      %2315 = vst [vmem:[%s274] sm:$0xff] %v2283
      %2316 = vst [vmem:[%s274 + $0x8] sm:$0xff] %v2284
      %2317 = vst [vmem:[%s274 + $0x10] sm:$0xff] %v2285
      %2318 = vst [vmem:[%s274 + $0x18] sm:$0xff] %v2286
      %2319 = vst [vmem:[%s274 + $0x20] sm:$0xff] %v2287
      %2320 = vst [vmem:[%s274 + $0x28] sm:$0xff] %v2288
      %2321 = vst [vmem:[%s274 + $0x30] sm:$0xff] %v2289
      %2322 = vst [vmem:[%s274 + $0x38] sm:$0xff] %v2290
      %2323 = vst [vmem:[%s274 + $0x40] sm:$0xff] %v2291
      %2324 = vst [vmem:[%s274 + $0x48] sm:$0xff] %v2292
      %2325 = vst [vmem:[%s274 + $0x50] sm:$0xff] %v2293
      %2326 = vst [vmem:[%s274 + $0x58] sm:$0xff] %v2294
      %2327 = vst [vmem:[%s274 + $0x60] sm:$0xff] %v2295
      %2328 = vst [vmem:[%s274 + $0x68] sm:$0xff] %v2296
      %2329 = vst [vmem:[%s274 + $0x70] sm:$0xff] %v2297
      %2330 = vst [vmem:[%s274 + $0x78] sm:$0xff] %v2298
      %2331 = vst [vmem:[%s274 + $0x80] sm:$0xff] %v2299
      %2332 = vst [vmem:[%s274 + $0x88] sm:$0xff] %v2300
      %2333 = vst [vmem:[%s274 + $0x90] sm:$0xff] %v2301
      %2334 = vst [vmem:[%s274 + $0x98] sm:$0xff] %v2302
      %2335 = vst [vmem:[%s274 + $0xa0] sm:$0xff] %v2303
      %2336 = vst [vmem:[%s274 + $0xa8] sm:$0xff] %v2304
      %2337 = vst [vmem:[%s274 + $0xb0] sm:$0xff] %v2305
      %2338 = vst [vmem:[%s274 + $0xb8] sm:$0xff] %v2306
      %2339 = vst [vmem:[%s274 + $0xc0] sm:$0xff] %v2307
      %2340 = vst [vmem:[%s274 + $0xc8] sm:$0xff] %v2308
      %2341 = vst [vmem:[%s274 + $0xd0] sm:$0xff] %v2309
      %2342 = vst [vmem:[%s274 + $0xd8] sm:$0xff] %v2310
      %2343 = vst [vmem:[%s274 + $0xe0] sm:$0xff] %v2311
      %2344 = vst [vmem:[%s274 + $0xe8] sm:$0xff] %v2312
      %2345 = vst [vmem:[%s274 + $0xf0] sm:$0xff] %v2313
      %2346 = vst [vmem:[%s274 + $0xf8] sm:$0xff] %v2314
      %s2347 = smul.u32 16, %s20
      %s2348 = smul.u32 2, %s21
      %p2349 = scmp.lt.s32.totalorder %s19, 1
      %s2350 = scalar_select %p2349, %s19, 1
      %p2351 = scmp.lt.s32.totalorder %s2347, 15
      %s2352 = scalar_select %p2351, %s2347, 15
      %p2353 = scmp.lt.s32.totalorder %s2348, 1
      %s2354 = scalar_select %p2353, %s2348, 1
      %s2355 = smul.addr %s2352, 2
      %s2356 = sadd.s32 %s2354, %s2355
      %s2357 = smul.addr %s2350, 32
      %s2358 = sadd.s32 %s2356, %s2357
      %s2359 = smul.addr %s2358, 8
      %s2360 = scalar_lea.vmem %s3, %s2359
      // Predicated region
      $region33: #{mono_sceneflow_decoder_lstm.8} parent=31 // pred_check
        %p2361 = pneg %p135
      $region34: #{mono_sceneflow_decoder_lstm.8} parent=31 // pred_check_branch
        %2363 = sbr.rel (%p2361) target = $region36
      $region35: #{mono_sceneflow_decoder_lstm.8} parent=31 // pred_region
        %s2364 = smul.u32 16, %s20
        %s2365 = smul.u32 2, %s21
      $region36: #{mono_sceneflow_decoder_lstm.8} parent=31 // pred_fallthru
        _
    $region32: #{mono_sceneflow_decoder_lstm.8} parent=5 // pred_fallthru
      _
    %p2366 = scmp.le.s32.totalorder 2, %s9
    // Predicated region
    $region37: #{mono_sceneflow_decoder_lstm.8} parent=5 // pred_check
      %p2367 = pneg %p2366
    $region38: #{mono_sceneflow_decoder_lstm.8} parent=5 // pred_check_branch
      %2369 = sbr.rel (%p2367) target = $region40
    $region39: #{mono_sceneflow_decoder_lstm.8} parent=5 // pred_region
      %s2370 = ssub.s32 %s9, 2
      // Predicated region
      $region41: #{mono_sceneflow_decoder_lstm.8} parent=39 // pred_check
        %p2371 = pneg %p141
      $region42: #{mono_sceneflow_decoder_lstm.8} parent=39 // pred_check_branch
        %2373 = sbr.rel (%p2371) target = $region44
      $region43: #{mono_sceneflow_decoder_lstm.8} parent=39 // pred_region
        %s2374 = smul.u32 16, %s23
        %s2375 = smul.u32 2, %s24
        %p2376 = scmp.lt.s32.totalorder %s22, 1
        %s2377 = scalar_select %p2376, %s22, 1
        %p2378 = scmp.lt.s32.totalorder %s2374, 15
        %s2379 = scalar_select %p2378, %s2374, 15
        %p2380 = scmp.lt.s32.totalorder %s2375, 1
        %s2381 = scalar_select %p2380, %s2375, 1
        %s2382 = smul.addr %s2379, 2
        %s2383 = sadd.s32 %s2381, %s2382
        %s2384 = smul.addr %s2377, 32
        %s2385 = sadd.s32 %s2383, %s2384
        %s2386 = smul.addr %s2385, 8
        %s2387 = scalar_lea.vmem %s3, %s2386
      $region44: #{mono_sceneflow_decoder_lstm.8} parent=39 // pred_fallthru
        _
    $region40: #{mono_sceneflow_decoder_lstm.8} parent=5 // pred_fallthru
      _
  $region6: #{mono_sceneflow_decoder_lstm.8} parent=0 // loop_footer
    %s13 = sadd.s32 1, %s9
  $region7: #{mono_sceneflow_decoder_lstm.8} parent=0 // loop_footer_branch
    %8 = sbr.rel target = $region3
  $region8: #{mono_sceneflow_decoder_lstm.8} parent=0 // loop_exit
    _

// kernel: mono_sceneflow_decoder_lstm.9
$region0: #{mono_sceneflow_decoder_lstm.9}
  #allocation0 [shape = 'u32[]', space=smem, size = 0x4, offset = 0x4, fixed_abs, tag = 'smem constant byte address 0x4 - core index']
  #allocation1 [shape = 'u32[144,128]{1,0:T(1,128)}', space=vmem, size = 0x12000, scoped, tag = 'internal scratch']
  %s0 = inlined_call_operand.vmem [shape: bf16[2,1152,256], index: 0, kind: input, shape index: {}]
  %s1 = inlined_call_operand.vmem [shape: bf16[96,1152], index: 1, kind: input, shape index: {}]
  %s2 = inlined_call_operand.vmem [shape: f32[96,1], index: 2, kind: input, shape index: {}]
  %s3 = inlined_call_operand.vmem [shape: f32[2,96,256], index: 3, kind: output, shape index: {}]
  %s4 = sld [smem:[#allocation0]]
  $region45: #{mono_sceneflow_decoder_lstm.9} parent=0
    _
  %s6 = ssub.s32 1, %s4
  %s7 = scalar_select 0, %s6, %s4
  loop: start=0, step=1, limit=4
  $region2: #{mono_sceneflow_decoder_lstm.9} parent=0 // loop_pre_header
    _
  $region3: #{mono_sceneflow_decoder_lstm.9} parent=0 // loop_header
    %s9 = sphi 0, %s13
    %p10 = scmp.ge.s32.totalorder %s9, 4
    %s16 = sphi 0, %s35
    %s17 = sphi 0, %s31
    %s18 = sphi 0, %s27
    %s19 = sphi 0, %s16
    %s20 = sphi 0, %s17
    %s21 = sphi 0, %s18
    %s22 = sphi 0, %s19
    %s23 = sphi 0, %s20
    %s24 = sphi 0, %s21
    %s40 = sphi 0, %s42
    %s43 = sphi 0, %s40
    %s44 = sphi 0, %s43
    %s60 = sphi 0, %s44
    %s66 = sphi 0, %s68
    %s69 = sphi 0, %s66
    %s70 = sphi 0, %s69
    %s86 = sphi 0, %s70
    %s92 = sphi 0, %s94
    %s95 = sphi 0, %s92
    %s96 = sphi 0, %s95
    %s112 = sphi 0, %s96
    %s122 = sphi 0, %s124
    %s125 = sphi 0, %s122
    %s126 = sphi 0, %s125
    %s142 = sphi 0, %s126
  $region4: #{mono_sceneflow_decoder_lstm.9} parent=0 // loop_header_branch
    %12 = sbr.rel (%p10) target = $region8
  $region5: #{mono_sceneflow_decoder_lstm.9} parent=0 // loop_body
    %s14 = ssub.s32 %s9, 1
    %s15 = ssub.s32 %s9, 2
    %s25 = sadd.s32 1, %s18
    %p26 = scmp.ge.s32.totalorder %s25, 1
    %s27 = scalar_select %p26, 0, %s25
    %s28 = sadd.s32 1, %s17
    %s29 = scalar_select %p26, %s28, %s17
    %p30 = scmp.ge.s32.totalorder %s29, 1
    %s31 = scalar_select %p30, 0, %s29
    %s32 = sadd.s32 1, %s16
    %s33 = scalar_select %p30, %s32, %s16
    %p34 = scmp.ge.s32.totalorder %s33, 2
    %s35 = scalar_select %p34, 0, %s33
    %s36 = ssub.s32 %s16, %s35
    %s37 = ssub.s32 %s18, %s27
    %s38 = sor.u32 %s36, %s37
    %p39 = scmp.eq.s32.totalorder %s38, 0
    %s41 = sadd.s32 %s40, 1
    %s42 = scalar_select %p39, %s40, %s41
    %p45 = pneg %p39
    %p46 = scmp.eq.s32.totalorder %s9, 1
    %p47 = por %p45, %p46
    %p48 = scmp.ne.s32.totalorder %s40, %s43
    %p49 = scmp.eq.s32.totalorder %s9, 0
    %p50 = por %p48, %p49
    %p51 = scmp.ne.s32.totalorder %s40, %s43
    %p52 = scmp.eq.s32.totalorder %s14, 1
    %p53 = por %p51, %p52
    %p54 = scmp.ne.s32.totalorder %s43, %s44
    %p55 = scmp.eq.s32.totalorder %s14, 0
    %p56 = por %p54, %p55
    %p57 = scmp.ne.s32.totalorder %s43, %s44
    %p58 = scmp.eq.s32.totalorder %s15, 1
    %p59 = por %p57, %p58
    %p61 = scmp.ne.s32.totalorder %s44, %s60
    %p62 = scmp.eq.s32.totalorder %s15, 0
    %p63 = por %p61, %p62
    %s64 = ssub.s32 %s17, %s31
    %p65 = scmp.eq.s32.totalorder %s64, 0
    %s67 = sadd.s32 %s66, 1
    %s68 = scalar_select %p65, %s66, %s67
    %p71 = pneg %p65
    %p72 = scmp.eq.s32.totalorder %s9, 1
    %p73 = por %p71, %p72
    %p74 = scmp.ne.s32.totalorder %s66, %s69
    %p75 = scmp.eq.s32.totalorder %s9, 0
    %p76 = por %p74, %p75
    %p77 = scmp.ne.s32.totalorder %s66, %s69
    %p78 = scmp.eq.s32.totalorder %s14, 1
    %p79 = por %p77, %p78
    %p80 = scmp.ne.s32.totalorder %s69, %s70
    %p81 = scmp.eq.s32.totalorder %s14, 0
    %p82 = por %p80, %p81
    %p83 = scmp.ne.s32.totalorder %s69, %s70
    %p84 = scmp.eq.s32.totalorder %s15, 1
    %p85 = por %p83, %p84
    %p87 = scmp.ne.s32.totalorder %s70, %s86
    %p88 = scmp.eq.s32.totalorder %s15, 0
    %p89 = por %p87, %p88
    %s90 = ssub.s32 %s17, %s31
    %p91 = scmp.eq.s32.totalorder %s90, 0
    %s93 = sadd.s32 %s92, 1
    %s94 = scalar_select %p91, %s92, %s93
    %p97 = pneg %p91
    %p98 = scmp.eq.s32.totalorder %s9, 1
    %p99 = por %p97, %p98
    %p100 = scmp.ne.s32.totalorder %s92, %s95
    %p101 = scmp.eq.s32.totalorder %s9, 0
    %p102 = por %p100, %p101
    %p103 = scmp.ne.s32.totalorder %s92, %s95
    %p104 = scmp.eq.s32.totalorder %s14, 1
    %p105 = por %p103, %p104
    %p106 = scmp.ne.s32.totalorder %s95, %s96
    %p107 = scmp.eq.s32.totalorder %s14, 0
    %p108 = por %p106, %p107
    %p109 = scmp.ne.s32.totalorder %s95, %s96
    %p110 = scmp.eq.s32.totalorder %s15, 1
    %p111 = por %p109, %p110
    %p113 = scmp.ne.s32.totalorder %s96, %s112
    %p114 = scmp.eq.s32.totalorder %s15, 0
    %p115 = por %p113, %p114
    %s116 = ssub.s32 %s16, %s35
    %s117 = ssub.s32 %s17, %s31
    %s118 = sor.u32 %s116, %s117
    %s119 = ssub.s32 %s18, %s27
    %s120 = sor.u32 %s118, %s119
    %p121 = scmp.eq.s32.totalorder %s120, 0
    %s123 = sadd.s32 %s122, 1
    %s124 = scalar_select %p121, %s122, %s123
    %p127 = pneg %p121
    %p128 = scmp.eq.s32.totalorder %s9, 1
    %p129 = por %p127, %p128
    %p130 = scmp.ne.s32.totalorder %s122, %s125
    %p131 = scmp.eq.s32.totalorder %s9, 0
    %p132 = por %p130, %p131
    %p133 = scmp.ne.s32.totalorder %s122, %s125
    %p134 = scmp.eq.s32.totalorder %s14, 1
    %p135 = por %p133, %p134
    %p136 = scmp.ne.s32.totalorder %s125, %s126
    %p137 = scmp.eq.s32.totalorder %s14, 0
    %p138 = por %p136, %p137
    %p139 = scmp.ne.s32.totalorder %s125, %s126
    %p140 = scmp.eq.s32.totalorder %s15, 1
    %p141 = por %p139, %p140
    %p143 = scmp.ne.s32.totalorder %s126, %s142
    %p144 = scmp.eq.s32.totalorder %s15, 0
    %p145 = por %p143, %p144
    %p146 = scmp.le.s32.totalorder 1, %s9
    %p147 = scmp.lt.s32.totalorder %s9, 3
    %p148 = pnand %p146, %p147
    %p149 = pneg %p148
    // Predicated region
    $region9: #{mono_sceneflow_decoder_lstm.9} parent=5 // pred_check
      _
    $region10: #{mono_sceneflow_decoder_lstm.9} parent=5 // pred_check_branch
      %151 = sbr.rel (%p148) target = $region12
    $region11: #{mono_sceneflow_decoder_lstm.9} parent=5 // pred_region
      %s152 = ssub.s32 %s9, 1
      // Predicated region
      $region13: #{mono_sceneflow_decoder_lstm.9} parent=11 // pred_check
        %p153 = pneg %p82
      $region14: #{mono_sceneflow_decoder_lstm.9} parent=11 // pred_check_branch
        %155 = sbr.rel (%p153) target = $region16
      $region15: #{mono_sceneflow_decoder_lstm.9} parent=11 // pred_region
        %s156 = smul.u32 12, %s20
        %p157 = scmp.lt.s32.totalorder %s156, 11
        %s158 = scalar_select %p157, %s156, 11
        %s159 = smul.addr %s158, 9
        %s160 = smul.addr %s159, 4
        %s161 = scalar_lea.vmem %s1, %s160
        %s162 = smul.u32 12, %s20
      $region16: #{mono_sceneflow_decoder_lstm.9} parent=11 // pred_fallthru
        _
      // Predicated region
      $region17: #{mono_sceneflow_decoder_lstm.9} parent=11 // pred_check
        %p163 = pneg %p108
      $region18: #{mono_sceneflow_decoder_lstm.9} parent=11 // pred_check_branch
        %165 = sbr.rel (%p163) target = $region20
      $region19: #{mono_sceneflow_decoder_lstm.9} parent=11 // pred_region
        %s166 = smul.u32 12, %s20
        %p167 = scmp.lt.s32.totalorder %s166, 11
        %s168 = scalar_select %p167, %s166, 11
        %s169 = smul.addr %s168, 8
        %s170 = scalar_lea.vmem %s2, %s169
        %s171 = smul.u32 12, %s20
      $region20: #{mono_sceneflow_decoder_lstm.9} parent=11 // pred_fallthru
        _
    $region12: #{mono_sceneflow_decoder_lstm.9} parent=5 // pred_fallthru
      _
    %p172 = scmp.lt.s32.totalorder %s9, 2
    // Predicated region
    $region21: #{mono_sceneflow_decoder_lstm.9} parent=5 // pred_check
      %p173 = pneg %p172
    $region22: #{mono_sceneflow_decoder_lstm.9} parent=5 // pred_check_branch
      %175 = sbr.rel (%p173) target = $region24
    $region23: #{mono_sceneflow_decoder_lstm.9} parent=5 // pred_region
      // Predicated region
      $region25: #{mono_sceneflow_decoder_lstm.9} parent=23 // pred_check
        %p176 = pneg %p50
      $region26: #{mono_sceneflow_decoder_lstm.9} parent=23 // pred_check_branch
        %178 = sbr.rel (%p176) target = $region28
      $region27: #{mono_sceneflow_decoder_lstm.9} parent=23 // pred_region
        %s179 = smul.u32 2, %s18
        %p180 = scmp.lt.s32.totalorder %s16, 1
        %s181 = scalar_select %p180, %s16, 1
        %p182 = scmp.lt.s32.totalorder %s179, 1
        %s183 = scalar_select %p182, %s179, 1
        %s184 = smul.addr %s181, 288
        %s185 = sadd.s32 %s183, %s184
        %s186 = smul.addr %s185, 4
        %s187 = scalar_lea.vmem %s0, %s186
        %s188 = smul.u32 2, %s18
      $region28: #{mono_sceneflow_decoder_lstm.9} parent=23 // pred_fallthru
        _
    $region24: #{mono_sceneflow_decoder_lstm.9} parent=5 // pred_fallthru
      _
    %p189 = scmp.le.s32.totalorder 1, %s9
    %p190 = scmp.lt.s32.totalorder %s9, 3
    %p191 = pnand %p189, %p190
    %p192 = pneg %p191
    // Predicated region
    $region29: #{mono_sceneflow_decoder_lstm.9} parent=5 // pred_check
      _
    $region30: #{mono_sceneflow_decoder_lstm.9} parent=5 // pred_check_branch
      %194 = sbr.rel (%p191) target = $region32
    $region31: #{mono_sceneflow_decoder_lstm.9} parent=5 // pred_region
      %s195 = ssub.s32 %s9, 1
      %s196 = smul.u32 2, %s21
      %p197 = scmp.lt.s32.totalorder %s19, 1
      %s198 = scalar_select %p197, %s19, 1
      %p199 = scmp.lt.s32.totalorder %s196, 1
      %s200 = scalar_select %p199, %s196, 1
      %s201 = smul.addr %s198, 288
      %s202 = sadd.s32 %s200, %s201
      %s203 = smul.addr %s202, 4
      %s204 = scalar_lea.vmem %s0, %s203
      %p205 = pneg %p56
      %p206 = pneg %p53
      %s207 = smul.u32 12, %s20
      %p208 = scmp.lt.s32.totalorder %s207, 11
      %s209 = scalar_select %p208, %s207, 11
      %s210 = smul.addr %s209, 9
      %s211 = smul.addr %s210, 4
      %s212 = scalar_lea.vmem %s1, %s211
      %p213 = pneg %p82
      %p214 = pneg %p79
      %s215 = smul.u32 12, %s20
      %p216 = scmp.lt.s32.totalorder %s215, 11
      %s217 = scalar_select %p216, %s215, 11
      %s218 = smul.addr %s217, 8
      %s219 = scalar_lea.vmem %s2, %s218
      %p220 = pneg %p108
      %p221 = pneg %p105
      %p222 = pneg %p138
      %p223 = pneg %p135
      %s224 = smul.u32 12, %s20
      %s225 = smul.u32 2, %s21
      %p226 = scmp.lt.s32.totalorder %s19, 1
      %s227 = scalar_select %p226, %s19, 1
      %p228 = scmp.lt.s32.totalorder %s224, 11
      %s229 = scalar_select %p228, %s224, 11
      %p230 = scmp.lt.s32.totalorder %s225, 1
      %s231 = scalar_select %p230, %s225, 1
      %s232 = smul.addr %s229, 2
      %s233 = sadd.s32 %s231, %s232
      %s234 = smul.addr %s227, 24
      %s235 = sadd.s32 %s233, %s234
      %s236 = smul.addr %s235, 8
      %s237 = scalar_lea.vmem %s3, %s236
      %s238 = smul.u32 2, %s21
      %p239 = scmp.lt.s32.totalorder %s19, 1
      %s240 = scalar_select %p239, %s19, 1
      %p241 = scmp.lt.s32.totalorder %s238, 1
      %s242 = scalar_select %p241, %s238, 1
      %s243 = smul.addr %s240, 288
      %s244 = sadd.s32 %s242, %s243
      %s245 = smul.addr %s244, 4
      %s246 = scalar_lea.vmem %s0, %s245
      %s247 = smul.u32 2, %s21
      %s248 = smul.u32 12, %s20
      %p249 = scmp.lt.s32.totalorder %s248, 11
      %s250 = scalar_select %p249, %s248, 11
      %s251 = smul.addr %s250, 9
      %s252 = smul.addr %s251, 4
      %s253 = scalar_lea.vmem %s1, %s252
      %s254 = smul.u32 12, %s20
      %s255 = smul.u32 12, %s20
      %p256 = scmp.lt.s32.totalorder %s255, 11
      %s257 = scalar_select %p256, %s255, 11
      %s258 = smul.addr %s257, 8
      %s259 = scalar_lea.vmem %s2, %s258
      %s260 = smul.u32 12, %s20
      %s261 = smul.u32 12, %s20
      %s262 = smul.u32 2, %s21
      %p263 = scmp.lt.s32.totalorder %s19, 1
      %s264 = scalar_select %p263, %s19, 1
      %p265 = scmp.lt.s32.totalorder %s261, 11
      %s266 = scalar_select %p265, %s261, 11
      %p267 = scmp.lt.s32.totalorder %s262, 1
      %s268 = scalar_select %p267, %s262, 1
      %s269 = smul.addr %s266, 2
      %s270 = sadd.s32 %s268, %s269
      %s271 = smul.addr %s264, 24
      %s272 = sadd.s32 %s270, %s271
      %s273 = smul.addr %s272, 8
      %s274 = scalar_lea.vmem %s3, %s273
      %s275 = smul.u32 12, %s20
      %s276 = smul.u32 2, %s21
      %v278 = vld [vmem:[%s253] sm:$0xff]
      %v279 = vld [vmem:[%s253 + $0x8] sm:$0xff]
      %v280 = vld [vmem:[%s253 + $0x10] sm:$0xff]
      %v281 = vld [vmem:[%s253 + $0x18] sm:$0xff]
      %v282 = vld [vmem:[%s253 + $0x20] sm:$0xf]
      %v283 = vld [vmem:[%s253 + $0x24] sm:$0xff]
      %v284 = vld [vmem:[%s253 + $0x2c] sm:$0xff]
      %v285 = vld [vmem:[%s253 + $0x34] sm:$0xff]
      %v286 = vld [vmem:[%s253 + $0x3c] sm:$0xff]
      %v287 = vld [vmem:[%s253 + $0x44] sm:$0xf]
      %v288 = vld [vmem:[%s253 + $0x48] sm:$0xff]
      %v289 = vld [vmem:[%s253 + $0x50] sm:$0xff]
      %v290 = vld [vmem:[%s253 + $0x58] sm:$0xff]
      %v291 = vld [vmem:[%s253 + $0x60] sm:$0xff]
      %v292 = vld [vmem:[%s253 + $0x68] sm:$0xf]
      %v293 = vld [vmem:[%s253 + $0x6c] sm:$0xff]
      %v294 = vld [vmem:[%s253 + $0x74] sm:$0xff]
      %v295 = vld [vmem:[%s253 + $0x7c] sm:$0xff]
      %v296 = vld [vmem:[%s253 + $0x84] sm:$0xff]
      %v297 = vld [vmem:[%s253 + $0x8c] sm:$0xf]
      %v298 = vld [vmem:[%s253 + $0x90] sm:$0xff]
      %v299 = vld [vmem:[%s253 + $0x98] sm:$0xff]
      %v300 = vld [vmem:[%s253 + $0xa0] sm:$0xff]
      %v301 = vld [vmem:[%s253 + $0xa8] sm:$0xff]
      %v302 = vld [vmem:[%s253 + $0xb0] sm:$0xf]
      %v303 = vld [vmem:[%s253 + $0xb4] sm:$0xff]
      %v304 = vld [vmem:[%s253 + $0xbc] sm:$0xff]
      %v305 = vld [vmem:[%s253 + $0xc4] sm:$0xff]
      %v306 = vld [vmem:[%s253 + $0xcc] sm:$0xff]
      %v307 = vld [vmem:[%s253 + $0xd4] sm:$0xf]
      %v308 = vld [vmem:[%s253 + $0xd8] sm:$0xff]
      %v309 = vld [vmem:[%s253 + $0xe0] sm:$0xff]
      %v310 = vld [vmem:[%s253 + $0xe8] sm:$0xff]
      %v311 = vld [vmem:[%s253 + $0xf0] sm:$0xff]
      %v312 = vld [vmem:[%s253 + $0xf8] sm:$0xf]
      %v313 = vld [vmem:[%s253 + $0xfc] sm:$0xff]
      %v314 = vld [vmem:[%s253 + $0x104] sm:$0xff]
      %v315 = vld [vmem:[%s253 + $0x10c] sm:$0xff]
      %v316 = vld [vmem:[%s253 + $0x114] sm:$0xff]
      %v317 = vld [vmem:[%s253 + $0x11c] sm:$0xf]
      %v318 = vld [vmem:[%s253 + $0x120] sm:$0xff]
      %v319 = vld [vmem:[%s253 + $0x128] sm:$0xff]
      %v320 = vld [vmem:[%s253 + $0x130] sm:$0xff]
      %v321 = vld [vmem:[%s253 + $0x138] sm:$0xff]
      %v322 = vld [vmem:[%s253 + $0x140] sm:$0xf]
      %v323 = vld [vmem:[%s253 + $0x144] sm:$0xff]
      %v324 = vld [vmem:[%s253 + $0x14c] sm:$0xff]
      %v325 = vld [vmem:[%s253 + $0x154] sm:$0xff]
      %v326 = vld [vmem:[%s253 + $0x15c] sm:$0xff]
      %v327 = vld [vmem:[%s253 + $0x164] sm:$0xf]
      %v328 = vld [vmem:[%s253 + $0x168] sm:$0xff]
      %v329 = vld [vmem:[%s253 + $0x170] sm:$0xff]
      %v330 = vld [vmem:[%s253 + $0x178] sm:$0xff]
      %v331 = vld [vmem:[%s253 + $0x180] sm:$0xff]
      %v332 = vld [vmem:[%s253 + $0x188] sm:$0xf]
      %v333 = vld [vmem:[%s253 + $0x18c] sm:$0xff]
      %v334 = vld [vmem:[%s253 + $0x194] sm:$0xff]
      %v335 = vld [vmem:[%s253 + $0x19c] sm:$0xff]
      %v336 = vld [vmem:[%s253 + $0x1a4] sm:$0xff]
      %v337 = vld [vmem:[%s253 + $0x1ac] sm:$0xf]
      %v338 = vld [vmem:[%s246] sm:$0xff]
      %v339 = vld [vmem:[%s246 + $0x8] sm:$0xff]
      %v340 = vld [vmem:[%s246 + $0x10] sm:$0xff]
      %v341 = vld [vmem:[%s246 + $0x18] sm:$0xff]
      %v342 = vld [vmem:[%s246 + $0x20] sm:$0xff]
      %v343 = vld [vmem:[%s246 + $0x28] sm:$0xff]
      %v344 = vld [vmem:[%s246 + $0x30] sm:$0xff]
      %v345 = vld [vmem:[%s246 + $0x38] sm:$0xff]
      %v346 = vld [vmem:[%s246 + $0x40] sm:$0xff]
      %v347 = vld [vmem:[%s246 + $0x48] sm:$0xff]
      %v348 = vld [vmem:[%s246 + $0x50] sm:$0xff]
      %v349 = vld [vmem:[%s246 + $0x58] sm:$0xff]
      %v350 = vld [vmem:[%s246 + $0x60] sm:$0xff]
      %v351 = vld [vmem:[%s246 + $0x68] sm:$0xff]
      %v352 = vld [vmem:[%s246 + $0x70] sm:$0xff]
      %v353 = vld [vmem:[%s246 + $0x78] sm:$0xff]
      %v354 = vld [vmem:[%s246 + $0x80] sm:$0xff]
      %v355 = vld [vmem:[%s246 + $0x88] sm:$0xff]
      %v356 = vld [vmem:[%s246 + $0x90] sm:$0xff]
      %v357 = vld [vmem:[%s246 + $0x98] sm:$0xff]
      %v358 = vld [vmem:[%s246 + $0xa0] sm:$0xff]
      %v359 = vld [vmem:[%s246 + $0xa8] sm:$0xff]
      %v360 = vld [vmem:[%s246 + $0xb0] sm:$0xff]
      %v361 = vld [vmem:[%s246 + $0xb8] sm:$0xff]
      %v362 = vld [vmem:[%s246 + $0xc0] sm:$0xff]
      %v363 = vld [vmem:[%s246 + $0xc8] sm:$0xff]
      %v364 = vld [vmem:[%s246 + $0xd0] sm:$0xff]
      %v365 = vld [vmem:[%s246 + $0xd8] sm:$0xff]
      %v366 = vld [vmem:[%s246 + $0xe0] sm:$0xff]
      %v367 = vld [vmem:[%s246 + $0xe8] sm:$0xff]
      %v368 = vld [vmem:[%s246 + $0xf0] sm:$0xff]
      %v369 = vld [vmem:[%s246 + $0xf8] sm:$0xff]
      %v370 = vld [vmem:[%s246 + $0x100] sm:$0xff]
      %v371 = vld [vmem:[%s246 + $0x108] sm:$0xff]
      %v372 = vld [vmem:[%s246 + $0x110] sm:$0xff]
      %v373 = vld [vmem:[%s246 + $0x118] sm:$0xff]
      %v374 = vld [vmem:[%s246 + $0x120] sm:$0xff]
      %v375 = vld [vmem:[%s246 + $0x128] sm:$0xff]
      %v376 = vld [vmem:[%s246 + $0x130] sm:$0xff]
      %v377 = vld [vmem:[%s246 + $0x138] sm:$0xff]
      %v378 = vld [vmem:[%s246 + $0x140] sm:$0xff]
      %v379 = vld [vmem:[%s246 + $0x148] sm:$0xff]
      %v380 = vld [vmem:[%s246 + $0x150] sm:$0xff]
      %v381 = vld [vmem:[%s246 + $0x158] sm:$0xff]
      %v382 = vld [vmem:[%s246 + $0x160] sm:$0xff]
      %v383 = vld [vmem:[%s246 + $0x168] sm:$0xff]
      %v384 = vld [vmem:[%s246 + $0x170] sm:$0xff]
      %v385 = vld [vmem:[%s246 + $0x178] sm:$0xff]
      %v386 = vld [vmem:[%s246 + $0x180] sm:$0xff]
      %v387 = vld [vmem:[%s246 + $0x188] sm:$0xff]
      %v388 = vld [vmem:[%s246 + $0x190] sm:$0xff]
      %v389 = vld [vmem:[%s246 + $0x198] sm:$0xff]
      %v390 = vld [vmem:[%s246 + $0x1a0] sm:$0xff]
      %v391 = vld [vmem:[%s246 + $0x1a8] sm:$0xff]
      %v392 = vld [vmem:[%s246 + $0x1b0] sm:$0xff]
      %v393 = vld [vmem:[%s246 + $0x1b8] sm:$0xff]
      %v394 = vld [vmem:[%s246 + $0x1c0] sm:$0xff]
      %v395 = vld [vmem:[%s246 + $0x1c8] sm:$0xff]
      %v396 = vld [vmem:[%s246 + $0x1d0] sm:$0xff]
      %v397 = vld [vmem:[%s246 + $0x1d8] sm:$0xff]
      %v398 = vld [vmem:[%s246 + $0x1e0] sm:$0xff]
      %v399 = vld [vmem:[%s246 + $0x1e8] sm:$0xff]
      %v400 = vld [vmem:[%s246 + $0x1f0] sm:$0xff]
      %v401 = vld [vmem:[%s246 + $0x1f8] sm:$0xff]
      %v402 = vld [vmem:[%s246 + $0x200] sm:$0xff]
      %v403 = vld [vmem:[%s246 + $0x208] sm:$0xff]
      %v404 = vld [vmem:[%s246 + $0x210] sm:$0xff]
      %v405 = vld [vmem:[%s246 + $0x218] sm:$0xff]
      %v406 = vld [vmem:[%s246 + $0x220] sm:$0xff]
      %v407 = vld [vmem:[%s246 + $0x228] sm:$0xff]
      %v408 = vld [vmem:[%s246 + $0x230] sm:$0xff]
      %v409 = vld [vmem:[%s246 + $0x238] sm:$0xff]
      %v410 = vld [vmem:[%s246 + $0x240] sm:$0xff]
      %v411 = vld [vmem:[%s246 + $0x248] sm:$0xff]
      %v412 = vld [vmem:[%s246 + $0x250] sm:$0xff]
      %v413 = vld [vmem:[%s246 + $0x258] sm:$0xff]
      %v414 = vld [vmem:[%s246 + $0x260] sm:$0xff]
      %v415 = vld [vmem:[%s246 + $0x268] sm:$0xff]
      %v416 = vld [vmem:[%s246 + $0x270] sm:$0xff]
      %v417 = vld [vmem:[%s246 + $0x278] sm:$0xff]
      %v418 = vld [vmem:[%s246 + $0x280] sm:$0xff]
      %v419 = vld [vmem:[%s246 + $0x288] sm:$0xff]
      %v420 = vld [vmem:[%s246 + $0x290] sm:$0xff]
      %v421 = vld [vmem:[%s246 + $0x298] sm:$0xff]
      %v422 = vld [vmem:[%s246 + $0x2a0] sm:$0xff]
      %v423 = vld [vmem:[%s246 + $0x2a8] sm:$0xff]
      %v424 = vld [vmem:[%s246 + $0x2b0] sm:$0xff]
      %v425 = vld [vmem:[%s246 + $0x2b8] sm:$0xff]
      %v426 = vld [vmem:[%s246 + $0x2c0] sm:$0xff]
      %v427 = vld [vmem:[%s246 + $0x2c8] sm:$0xff]
      %v428 = vld [vmem:[%s246 + $0x2d0] sm:$0xff]
      %v429 = vld [vmem:[%s246 + $0x2d8] sm:$0xff]
      %v430 = vld [vmem:[%s246 + $0x2e0] sm:$0xff]
      %v431 = vld [vmem:[%s246 + $0x2e8] sm:$0xff]
      %v432 = vld [vmem:[%s246 + $0x2f0] sm:$0xff]
      %v433 = vld [vmem:[%s246 + $0x2f8] sm:$0xff]
      %v434 = vld [vmem:[%s246 + $0x300] sm:$0xff]
      %v435 = vld [vmem:[%s246 + $0x308] sm:$0xff]
      %v436 = vld [vmem:[%s246 + $0x310] sm:$0xff]
      %v437 = vld [vmem:[%s246 + $0x318] sm:$0xff]
      %v438 = vld [vmem:[%s246 + $0x320] sm:$0xff]
      %v439 = vld [vmem:[%s246 + $0x328] sm:$0xff]
      %v440 = vld [vmem:[%s246 + $0x330] sm:$0xff]
      %v441 = vld [vmem:[%s246 + $0x338] sm:$0xff]
      %v442 = vld [vmem:[%s246 + $0x340] sm:$0xff]
      %v443 = vld [vmem:[%s246 + $0x348] sm:$0xff]
      %v444 = vld [vmem:[%s246 + $0x350] sm:$0xff]
      %v445 = vld [vmem:[%s246 + $0x358] sm:$0xff]
      %v446 = vld [vmem:[%s246 + $0x360] sm:$0xff]
      %v447 = vld [vmem:[%s246 + $0x368] sm:$0xff]
      %v448 = vld [vmem:[%s246 + $0x370] sm:$0xff]
      %v449 = vld [vmem:[%s246 + $0x378] sm:$0xff]
      %v450 = vld [vmem:[%s246 + $0x380] sm:$0xff]
      %v451 = vld [vmem:[%s246 + $0x388] sm:$0xff]
      %v452 = vld [vmem:[%s246 + $0x390] sm:$0xff]
      %v453 = vld [vmem:[%s246 + $0x398] sm:$0xff]
      %v454 = vld [vmem:[%s246 + $0x3a0] sm:$0xff]
      %v455 = vld [vmem:[%s246 + $0x3a8] sm:$0xff]
      %v456 = vld [vmem:[%s246 + $0x3b0] sm:$0xff]
      %v457 = vld [vmem:[%s246 + $0x3b8] sm:$0xff]
      %v458 = vld [vmem:[%s246 + $0x3c0] sm:$0xff]
      %v459 = vld [vmem:[%s246 + $0x3c8] sm:$0xff]
      %v460 = vld [vmem:[%s246 + $0x3d0] sm:$0xff]
      %v461 = vld [vmem:[%s246 + $0x3d8] sm:$0xff]
      %v462 = vld [vmem:[%s246 + $0x3e0] sm:$0xff]
      %v463 = vld [vmem:[%s246 + $0x3e8] sm:$0xff]
      %v464 = vld [vmem:[%s246 + $0x3f0] sm:$0xff]
      %v465 = vld [vmem:[%s246 + $0x3f8] sm:$0xff]
      %v466 = vld [vmem:[%s246 + $0x400] sm:$0xff]
      %v467 = vld [vmem:[%s246 + $0x408] sm:$0xff]
      %v468 = vld [vmem:[%s246 + $0x410] sm:$0xff]
      %v469 = vld [vmem:[%s246 + $0x418] sm:$0xff]
      %v470 = vld [vmem:[%s246 + $0x420] sm:$0xff]
      %v471 = vld [vmem:[%s246 + $0x428] sm:$0xff]
      %v472 = vld [vmem:[%s246 + $0x430] sm:$0xff]
      %v473 = vld [vmem:[%s246 + $0x438] sm:$0xff]
      %v474 = vld [vmem:[%s246 + $0x440] sm:$0xff]
      %v475 = vld [vmem:[%s246 + $0x448] sm:$0xff]
      %v476 = vld [vmem:[%s246 + $0x450] sm:$0xff]
      %v477 = vld [vmem:[%s246 + $0x458] sm:$0xff]
      %v478 = vld [vmem:[%s246 + $0x460] sm:$0xff]
      %v479 = vld [vmem:[%s246 + $0x468] sm:$0xff]
      %v480 = vld [vmem:[%s246 + $0x470] sm:$0xff]
      %v481 = vld [vmem:[%s246 + $0x478] sm:$0xff]
      %v482 = vld [vmem:[%s259] sm:$0xff]
      %v483 = vld [vmem:[%s259 + $0x8] sm:$0xff]
      %v484 = vld [vmem:[%s259 + $0x10] sm:$0xff]
      %v485 = vld [vmem:[%s259 + $0x18] sm:$0xff]
      %v486 = vld [vmem:[%s259 + $0x20] sm:$0xff]
      %v487 = vld [vmem:[%s259 + $0x28] sm:$0xff]
      %v488 = vld [vmem:[%s259 + $0x30] sm:$0xff]
      %v489 = vld [vmem:[%s259 + $0x38] sm:$0xff]
      %v490 = vld [vmem:[%s259 + $0x40] sm:$0xff]
      %v491 = vld [vmem:[%s259 + $0x48] sm:$0xff]
      %v492 = vld [vmem:[%s259 + $0x50] sm:$0xff]
      %v493 = vld [vmem:[%s259 + $0x58] sm:$0xff]
      %495 = vset.pattern.permute.xlu0 0
      %496 = vperm.xlu0 %495, %v482
      %v497 = vpop.permute.xlu0 %496
      %500 = vset.pattern.permute.xlu0 0
      %501 = vperm.xlu0 %500, %v483
      %v502 = vpop.permute.xlu0 %501
      %505 = vset.pattern.permute.xlu0 0
      %506 = vperm.xlu0 %505, %v484
      %v507 = vpop.permute.xlu0 %506
      %510 = vset.pattern.permute.xlu0 0
      %511 = vperm.xlu0 %510, %v485
      %v512 = vpop.permute.xlu0 %511
      %515 = vset.pattern.permute.xlu0 0
      %516 = vperm.xlu0 %515, %v486
      %v517 = vpop.permute.xlu0 %516
      %520 = vset.pattern.permute.xlu0 0
      %521 = vperm.xlu0 %520, %v487
      %v522 = vpop.permute.xlu0 %521
      %525 = vset.pattern.permute.xlu0 0
      %526 = vperm.xlu0 %525, %v488
      %v527 = vpop.permute.xlu0 %526
      %530 = vset.pattern.permute.xlu0 0
      %531 = vperm.xlu0 %530, %v489
      %v532 = vpop.permute.xlu0 %531
      %535 = vset.pattern.permute.xlu0 0
      %536 = vperm.xlu0 %535, %v490
      %v537 = vpop.permute.xlu0 %536
      %540 = vset.pattern.permute.xlu0 0
      %541 = vperm.xlu0 %540, %v491
      %v542 = vpop.permute.xlu0 %541
      %545 = vset.pattern.permute.xlu0 0
      %546 = vperm.xlu0 %545, %v492
      %v547 = vpop.permute.xlu0 %546
      %550 = vset.pattern.permute.xlu0 0
      %551 = vperm.xlu0 %550, %v493
      %v552 = vpop.permute.xlu0 %551
      %v614 = vunpack.c.l.b16 %v278
      %v615 = vunpack.c.h.b16 %v278
      %v616 = vunpack.c.l.b16 %v279
      %v617 = vunpack.c.h.b16 %v279
      %v618 = vunpack.c.l.b16 %v280
      %v619 = vunpack.c.h.b16 %v280
      %v620 = vunpack.c.l.b16 %v281
      %v621 = vunpack.c.h.b16 %v281
      %v622 = vunpack.c.l.b16 %v282
      %v623 = vunpack.c.l.b16 %v283
      %v624 = vunpack.c.h.b16 %v283
      %v625 = vunpack.c.l.b16 %v284
      %v626 = vunpack.c.h.b16 %v284
      %v627 = vunpack.c.l.b16 %v285
      %v628 = vunpack.c.h.b16 %v285
      %v629 = vunpack.c.l.b16 %v286
      %v630 = vunpack.c.h.b16 %v286
      %v631 = vunpack.c.l.b16 %v287
      %v632 = vunpack.c.l.b16 %v288
      %v633 = vunpack.c.h.b16 %v288
      %v634 = vunpack.c.l.b16 %v289
      %v635 = vunpack.c.h.b16 %v289
      %v636 = vunpack.c.l.b16 %v290
      %v637 = vunpack.c.h.b16 %v290
      %v638 = vunpack.c.l.b16 %v291
      %v639 = vunpack.c.h.b16 %v291
      %v640 = vunpack.c.l.b16 %v292
      %v641 = vunpack.c.l.b16 %v293
      %v642 = vunpack.c.h.b16 %v293
      %v643 = vunpack.c.l.b16 %v294
      %v644 = vunpack.c.h.b16 %v294
      %v645 = vunpack.c.l.b16 %v295
      %v646 = vunpack.c.h.b16 %v295
      %v647 = vunpack.c.l.b16 %v296
      %v648 = vunpack.c.h.b16 %v296
      %v649 = vunpack.c.l.b16 %v297
      %v650 = vunpack.c.l.b16 %v298
      %v651 = vunpack.c.h.b16 %v298
      %v652 = vunpack.c.l.b16 %v299
      %v653 = vunpack.c.h.b16 %v299
      %v654 = vunpack.c.l.b16 %v300
      %v655 = vunpack.c.h.b16 %v300
      %v656 = vunpack.c.l.b16 %v301
      %v657 = vunpack.c.h.b16 %v301
      %v658 = vunpack.c.l.b16 %v302
      %v659 = vunpack.c.l.b16 %v303
      %v660 = vunpack.c.h.b16 %v303
      %v661 = vunpack.c.l.b16 %v304
      %v662 = vunpack.c.h.b16 %v304
      %v663 = vunpack.c.l.b16 %v305
      %v664 = vunpack.c.h.b16 %v305
      %v665 = vunpack.c.l.b16 %v306
      %v666 = vunpack.c.h.b16 %v306
      %v667 = vunpack.c.l.b16 %v307
      %v668 = vunpack.c.l.b16 %v308
      %v669 = vunpack.c.h.b16 %v308
      %v670 = vunpack.c.l.b16 %v309
      %v671 = vunpack.c.h.b16 %v309
      %v672 = vunpack.c.l.b16 %v310
      %v673 = vunpack.c.h.b16 %v310
      %v674 = vunpack.c.l.b16 %v311
      %v675 = vunpack.c.h.b16 %v311
      %v676 = vunpack.c.l.b16 %v312
      %v677 = vunpack.c.l.b16 %v313
      %v678 = vunpack.c.h.b16 %v313
      %v679 = vunpack.c.l.b16 %v314
      %v680 = vunpack.c.h.b16 %v314
      %v681 = vunpack.c.l.b16 %v315
      %v682 = vunpack.c.h.b16 %v315
      %v683 = vunpack.c.l.b16 %v316
      %v684 = vunpack.c.h.b16 %v316
      %v685 = vunpack.c.l.b16 %v317
      %v686 = vunpack.c.l.b16 %v318
      %v687 = vunpack.c.h.b16 %v318
      %v688 = vunpack.c.l.b16 %v319
      %v689 = vunpack.c.h.b16 %v319
      %v690 = vunpack.c.l.b16 %v320
      %v691 = vunpack.c.h.b16 %v320
      %v692 = vunpack.c.l.b16 %v321
      %v693 = vunpack.c.h.b16 %v321
      %v694 = vunpack.c.l.b16 %v322
      %v695 = vunpack.c.l.b16 %v323
      %v696 = vunpack.c.h.b16 %v323
      %v697 = vunpack.c.l.b16 %v324
      %v698 = vunpack.c.h.b16 %v324
      %v699 = vunpack.c.l.b16 %v325
      %v700 = vunpack.c.h.b16 %v325
      %v701 = vunpack.c.l.b16 %v326
      %v702 = vunpack.c.h.b16 %v326
      %v703 = vunpack.c.l.b16 %v327
      %v704 = vunpack.c.l.b16 %v328
      %v705 = vunpack.c.h.b16 %v328
      %v706 = vunpack.c.l.b16 %v329
      %v707 = vunpack.c.h.b16 %v329
      %v708 = vunpack.c.l.b16 %v330
      %v709 = vunpack.c.h.b16 %v330
      %v710 = vunpack.c.l.b16 %v331
      %v711 = vunpack.c.h.b16 %v331
      %v712 = vunpack.c.l.b16 %v332
      %v713 = vunpack.c.l.b16 %v333
      %v714 = vunpack.c.h.b16 %v333
      %v715 = vunpack.c.l.b16 %v334
      %v716 = vunpack.c.h.b16 %v334
      %v717 = vunpack.c.l.b16 %v335
      %v718 = vunpack.c.h.b16 %v335
      %v719 = vunpack.c.l.b16 %v336
      %v720 = vunpack.c.h.b16 %v336
      %v721 = vunpack.c.l.b16 %v337
      %v722 = vpack.c.b16 %v623, %v614
      %v723 = vpack.c.b16 %v624, %v615
      %v724 = vpack.c.b16 %v625, %v616
      %v725 = vpack.c.b16 %v626, %v617
      %v726 = vpack.c.b16 %v627, %v618
      %v727 = vpack.c.b16 %v628, %v619
      %v728 = vpack.c.b16 %v629, %v620
      %v729 = vpack.c.b16 %v630, %v621
      %v730 = vpack.c.b16 %v631, %v622
      %v731 = vpack.c.b16 %v641, %v632
      %v732 = vpack.c.b16 %v642, %v633
      %v733 = vpack.c.b16 %v643, %v634
      %v734 = vpack.c.b16 %v644, %v635
      %v735 = vpack.c.b16 %v645, %v636
      %v736 = vpack.c.b16 %v646, %v637
      %v737 = vpack.c.b16 %v647, %v638
      %v738 = vpack.c.b16 %v648, %v639
      %v739 = vpack.c.b16 %v649, %v640
      %v740 = vpack.c.b16 %v659, %v650
      %v741 = vpack.c.b16 %v660, %v651
      %v742 = vpack.c.b16 %v661, %v652
      %v743 = vpack.c.b16 %v662, %v653
      %v744 = vpack.c.b16 %v663, %v654
      %v745 = vpack.c.b16 %v664, %v655
      %v746 = vpack.c.b16 %v665, %v656
      %v747 = vpack.c.b16 %v666, %v657
      %v748 = vpack.c.b16 %v667, %v658
      %v749 = vpack.c.b16 %v677, %v668
      %v750 = vpack.c.b16 %v678, %v669
      %v751 = vpack.c.b16 %v679, %v670
      %v752 = vpack.c.b16 %v680, %v671
      %v753 = vpack.c.b16 %v681, %v672
      %v754 = vpack.c.b16 %v682, %v673
      %v755 = vpack.c.b16 %v683, %v674
      %v756 = vpack.c.b16 %v684, %v675
      %v757 = vpack.c.b16 %v685, %v676
      %v758 = vpack.c.b16 %v695, %v686
      %v759 = vpack.c.b16 %v696, %v687
      %v760 = vpack.c.b16 %v697, %v688
      %v761 = vpack.c.b16 %v698, %v689
      %v762 = vpack.c.b16 %v699, %v690
      %v763 = vpack.c.b16 %v700, %v691
      %v764 = vpack.c.b16 %v701, %v692
      %v765 = vpack.c.b16 %v702, %v693
      %v766 = vpack.c.b16 %v703, %v694
      %v767 = vpack.c.b16 %v713, %v704
      %v768 = vpack.c.b16 %v714, %v705
      %v769 = vpack.c.b16 %v715, %v706
      %v770 = vpack.c.b16 %v716, %v707
      %v771 = vpack.c.b16 %v717, %v708
      %v772 = vpack.c.b16 %v718, %v709
      %v773 = vpack.c.b16 %v719, %v710
      %v774 = vpack.c.b16 %v720, %v711
      %v775 = vpack.c.b16 %v721, %v712
      %v974 = vunpack.c.l.b16 %v338
      %v975 = vunpack.c.h.b16 %v338
      %v976 = vunpack.c.l.b16 %v339
      %v977 = vunpack.c.h.b16 %v339
      %v978 = vunpack.c.l.b16 %v340
      %v979 = vunpack.c.h.b16 %v340
      %v980 = vunpack.c.l.b16 %v341
      %v981 = vunpack.c.h.b16 %v341
      %v982 = vunpack.c.l.b16 %v342
      %v983 = vunpack.c.h.b16 %v342
      %v984 = vunpack.c.l.b16 %v343
      %v985 = vunpack.c.h.b16 %v343
      %v986 = vunpack.c.l.b16 %v344
      %v987 = vunpack.c.h.b16 %v344
      %v988 = vunpack.c.l.b16 %v345
      %v989 = vunpack.c.h.b16 %v345
      %v990 = vunpack.c.l.b16 %v346
      %v991 = vunpack.c.h.b16 %v346
      %v992 = vunpack.c.l.b16 %v347
      %v993 = vunpack.c.h.b16 %v347
      %v994 = vunpack.c.l.b16 %v348
      %v995 = vunpack.c.h.b16 %v348
      %v996 = vunpack.c.l.b16 %v349
      %v997 = vunpack.c.h.b16 %v349
      %v998 = vunpack.c.l.b16 %v350
      %v999 = vunpack.c.h.b16 %v350
      %v1000 = vunpack.c.l.b16 %v351
      %v1001 = vunpack.c.h.b16 %v351
      %v1002 = vunpack.c.l.b16 %v352
      %v1003 = vunpack.c.h.b16 %v352
      %v1004 = vunpack.c.l.b16 %v353
      %v1005 = vunpack.c.h.b16 %v353
      %v1006 = vunpack.c.l.b16 %v354
      %v1007 = vunpack.c.h.b16 %v354
      %v1008 = vunpack.c.l.b16 %v355
      %v1009 = vunpack.c.h.b16 %v355
      %v1010 = vunpack.c.l.b16 %v356
      %v1011 = vunpack.c.h.b16 %v356
      %v1012 = vunpack.c.l.b16 %v357
      %v1013 = vunpack.c.h.b16 %v357
      %v1014 = vunpack.c.l.b16 %v358
      %v1015 = vunpack.c.h.b16 %v358
      %v1016 = vunpack.c.l.b16 %v359
      %v1017 = vunpack.c.h.b16 %v359
      %v1018 = vunpack.c.l.b16 %v360
      %v1019 = vunpack.c.h.b16 %v360
      %v1020 = vunpack.c.l.b16 %v361
      %v1021 = vunpack.c.h.b16 %v361
      %v1022 = vunpack.c.l.b16 %v362
      %v1023 = vunpack.c.h.b16 %v362
      %v1024 = vunpack.c.l.b16 %v363
      %v1025 = vunpack.c.h.b16 %v363
      %v1026 = vunpack.c.l.b16 %v364
      %v1027 = vunpack.c.h.b16 %v364
      %v1028 = vunpack.c.l.b16 %v365
      %v1029 = vunpack.c.h.b16 %v365
      %v1030 = vunpack.c.l.b16 %v366
      %v1031 = vunpack.c.h.b16 %v366
      %v1032 = vunpack.c.l.b16 %v367
      %v1033 = vunpack.c.h.b16 %v367
      %v1034 = vunpack.c.l.b16 %v368
      %v1035 = vunpack.c.h.b16 %v368
      %v1036 = vunpack.c.l.b16 %v369
      %v1037 = vunpack.c.h.b16 %v369
      %v1038 = vunpack.c.l.b16 %v370
      %v1039 = vunpack.c.h.b16 %v370
      %v1040 = vunpack.c.l.b16 %v371
      %v1041 = vunpack.c.h.b16 %v371
      %v1042 = vunpack.c.l.b16 %v372
      %v1043 = vunpack.c.h.b16 %v372
      %v1044 = vunpack.c.l.b16 %v373
      %v1045 = vunpack.c.h.b16 %v373
      %v1046 = vunpack.c.l.b16 %v374
      %v1047 = vunpack.c.h.b16 %v374
      %v1048 = vunpack.c.l.b16 %v375
      %v1049 = vunpack.c.h.b16 %v375
      %v1050 = vunpack.c.l.b16 %v376
      %v1051 = vunpack.c.h.b16 %v376
      %v1052 = vunpack.c.l.b16 %v377
      %v1053 = vunpack.c.h.b16 %v377
      %v1054 = vunpack.c.l.b16 %v378
      %v1055 = vunpack.c.h.b16 %v378
      %v1056 = vunpack.c.l.b16 %v379
      %v1057 = vunpack.c.h.b16 %v379
      %v1058 = vunpack.c.l.b16 %v380
      %v1059 = vunpack.c.h.b16 %v380
      %v1060 = vunpack.c.l.b16 %v381
      %v1061 = vunpack.c.h.b16 %v381
      %v1062 = vunpack.c.l.b16 %v382
      %v1063 = vunpack.c.h.b16 %v382
      %v1064 = vunpack.c.l.b16 %v383
      %v1065 = vunpack.c.h.b16 %v383
      %v1066 = vunpack.c.l.b16 %v384
      %v1067 = vunpack.c.h.b16 %v384
      %v1068 = vunpack.c.l.b16 %v385
      %v1069 = vunpack.c.h.b16 %v385
      %v1070 = vunpack.c.l.b16 %v386
      %v1071 = vunpack.c.h.b16 %v386
      %v1072 = vunpack.c.l.b16 %v387
      %v1073 = vunpack.c.h.b16 %v387
      %v1074 = vunpack.c.l.b16 %v388
      %v1075 = vunpack.c.h.b16 %v388
      %v1076 = vunpack.c.l.b16 %v389
      %v1077 = vunpack.c.h.b16 %v389
      %v1078 = vunpack.c.l.b16 %v390
      %v1079 = vunpack.c.h.b16 %v390
      %v1080 = vunpack.c.l.b16 %v391
      %v1081 = vunpack.c.h.b16 %v391
      %v1082 = vunpack.c.l.b16 %v392
      %v1083 = vunpack.c.h.b16 %v392
      %v1084 = vunpack.c.l.b16 %v393
      %v1085 = vunpack.c.h.b16 %v393
      %v1086 = vunpack.c.l.b16 %v394
      %v1087 = vunpack.c.h.b16 %v394
      %v1088 = vunpack.c.l.b16 %v395
      %v1089 = vunpack.c.h.b16 %v395
      %v1090 = vunpack.c.l.b16 %v396
      %v1091 = vunpack.c.h.b16 %v396
      %v1092 = vunpack.c.l.b16 %v397
      %v1093 = vunpack.c.h.b16 %v397
      %v1094 = vunpack.c.l.b16 %v398
      %v1095 = vunpack.c.h.b16 %v398
      %v1096 = vunpack.c.l.b16 %v399
      %v1097 = vunpack.c.h.b16 %v399
      %v1098 = vunpack.c.l.b16 %v400
      %v1099 = vunpack.c.h.b16 %v400
      %v1100 = vunpack.c.l.b16 %v401
      %v1101 = vunpack.c.h.b16 %v401
      %v1102 = vunpack.c.l.b16 %v402
      %v1103 = vunpack.c.h.b16 %v402
      %v1104 = vunpack.c.l.b16 %v403
      %v1105 = vunpack.c.h.b16 %v403
      %v1106 = vunpack.c.l.b16 %v404
      %v1107 = vunpack.c.h.b16 %v404
      %v1108 = vunpack.c.l.b16 %v405
      %v1109 = vunpack.c.h.b16 %v405
      %v1110 = vunpack.c.l.b16 %v406
      %v1111 = vunpack.c.h.b16 %v406
      %v1112 = vunpack.c.l.b16 %v407
      %v1113 = vunpack.c.h.b16 %v407
      %v1114 = vunpack.c.l.b16 %v408
      %v1115 = vunpack.c.h.b16 %v408
      %v1116 = vunpack.c.l.b16 %v409
      %v1117 = vunpack.c.h.b16 %v409
      %v1118 = vunpack.c.l.b16 %v410
      %v1119 = vunpack.c.h.b16 %v410
      %v1120 = vunpack.c.l.b16 %v411
      %v1121 = vunpack.c.h.b16 %v411
      %v1122 = vunpack.c.l.b16 %v412
      %v1123 = vunpack.c.h.b16 %v412
      %v1124 = vunpack.c.l.b16 %v413
      %v1125 = vunpack.c.h.b16 %v413
      %v1126 = vunpack.c.l.b16 %v414
      %v1127 = vunpack.c.h.b16 %v414
      %v1128 = vunpack.c.l.b16 %v415
      %v1129 = vunpack.c.h.b16 %v415
      %v1130 = vunpack.c.l.b16 %v416
      %v1131 = vunpack.c.h.b16 %v416
      %v1132 = vunpack.c.l.b16 %v417
      %v1133 = vunpack.c.h.b16 %v417
      %v1134 = vunpack.c.l.b16 %v418
      %v1135 = vunpack.c.h.b16 %v418
      %v1136 = vunpack.c.l.b16 %v419
      %v1137 = vunpack.c.h.b16 %v419
      %v1138 = vunpack.c.l.b16 %v420
      %v1139 = vunpack.c.h.b16 %v420
      %v1140 = vunpack.c.l.b16 %v421
      %v1141 = vunpack.c.h.b16 %v421
      %v1142 = vunpack.c.l.b16 %v422
      %v1143 = vunpack.c.h.b16 %v422
      %v1144 = vunpack.c.l.b16 %v423
      %v1145 = vunpack.c.h.b16 %v423
      %v1146 = vunpack.c.l.b16 %v424
      %v1147 = vunpack.c.h.b16 %v424
      %v1148 = vunpack.c.l.b16 %v425
      %v1149 = vunpack.c.h.b16 %v425
      %v1150 = vunpack.c.l.b16 %v426
      %v1151 = vunpack.c.h.b16 %v426
      %v1152 = vunpack.c.l.b16 %v427
      %v1153 = vunpack.c.h.b16 %v427
      %v1154 = vunpack.c.l.b16 %v428
      %v1155 = vunpack.c.h.b16 %v428
      %v1156 = vunpack.c.l.b16 %v429
      %v1157 = vunpack.c.h.b16 %v429
      %v1158 = vunpack.c.l.b16 %v430
      %v1159 = vunpack.c.h.b16 %v430
      %v1160 = vunpack.c.l.b16 %v431
      %v1161 = vunpack.c.h.b16 %v431
      %v1162 = vunpack.c.l.b16 %v432
      %v1163 = vunpack.c.h.b16 %v432
      %v1164 = vunpack.c.l.b16 %v433
      %v1165 = vunpack.c.h.b16 %v433
      %v1166 = vunpack.c.l.b16 %v434
      %v1167 = vunpack.c.h.b16 %v434
      %v1168 = vunpack.c.l.b16 %v435
      %v1169 = vunpack.c.h.b16 %v435
      %v1170 = vunpack.c.l.b16 %v436
      %v1171 = vunpack.c.h.b16 %v436
      %v1172 = vunpack.c.l.b16 %v437
      %v1173 = vunpack.c.h.b16 %v437
      %v1174 = vunpack.c.l.b16 %v438
      %v1175 = vunpack.c.h.b16 %v438
      %v1176 = vunpack.c.l.b16 %v439
      %v1177 = vunpack.c.h.b16 %v439
      %v1178 = vunpack.c.l.b16 %v440
      %v1179 = vunpack.c.h.b16 %v440
      %v1180 = vunpack.c.l.b16 %v441
      %v1181 = vunpack.c.h.b16 %v441
      %v1182 = vunpack.c.l.b16 %v442
      %v1183 = vunpack.c.h.b16 %v442
      %v1184 = vunpack.c.l.b16 %v443
      %v1185 = vunpack.c.h.b16 %v443
      %v1186 = vunpack.c.l.b16 %v444
      %v1187 = vunpack.c.h.b16 %v444
      %v1188 = vunpack.c.l.b16 %v445
      %v1189 = vunpack.c.h.b16 %v445
      %v1190 = vunpack.c.l.b16 %v446
      %v1191 = vunpack.c.h.b16 %v446
      %v1192 = vunpack.c.l.b16 %v447
      %v1193 = vunpack.c.h.b16 %v447
      %v1194 = vunpack.c.l.b16 %v448
      %v1195 = vunpack.c.h.b16 %v448
      %v1196 = vunpack.c.l.b16 %v449
      %v1197 = vunpack.c.h.b16 %v449
      %v1198 = vunpack.c.l.b16 %v450
      %v1199 = vunpack.c.h.b16 %v450
      %v1200 = vunpack.c.l.b16 %v451
      %v1201 = vunpack.c.h.b16 %v451
      %v1202 = vunpack.c.l.b16 %v452
      %v1203 = vunpack.c.h.b16 %v452
      %v1204 = vunpack.c.l.b16 %v453
      %v1205 = vunpack.c.h.b16 %v453
      %v1206 = vunpack.c.l.b16 %v454
      %v1207 = vunpack.c.h.b16 %v454
      %v1208 = vunpack.c.l.b16 %v455
      %v1209 = vunpack.c.h.b16 %v455
      %v1210 = vunpack.c.l.b16 %v456
      %v1211 = vunpack.c.h.b16 %v456
      %v1212 = vunpack.c.l.b16 %v457
      %v1213 = vunpack.c.h.b16 %v457
      %v1214 = vunpack.c.l.b16 %v458
      %v1215 = vunpack.c.h.b16 %v458
      %v1216 = vunpack.c.l.b16 %v459
      %v1217 = vunpack.c.h.b16 %v459
      %v1218 = vunpack.c.l.b16 %v460
      %v1219 = vunpack.c.h.b16 %v460
      %v1220 = vunpack.c.l.b16 %v461
      %v1221 = vunpack.c.h.b16 %v461
      %v1222 = vunpack.c.l.b16 %v462
      %v1223 = vunpack.c.h.b16 %v462
      %v1224 = vunpack.c.l.b16 %v463
      %v1225 = vunpack.c.h.b16 %v463
      %v1226 = vunpack.c.l.b16 %v464
      %v1227 = vunpack.c.h.b16 %v464
      %v1228 = vunpack.c.l.b16 %v465
      %v1229 = vunpack.c.h.b16 %v465
      %v1230 = vunpack.c.l.b16 %v466
      %v1231 = vunpack.c.h.b16 %v466
      %v1232 = vunpack.c.l.b16 %v467
      %v1233 = vunpack.c.h.b16 %v467
      %v1234 = vunpack.c.l.b16 %v468
      %v1235 = vunpack.c.h.b16 %v468
      %v1236 = vunpack.c.l.b16 %v469
      %v1237 = vunpack.c.h.b16 %v469
      %v1238 = vunpack.c.l.b16 %v470
      %v1239 = vunpack.c.h.b16 %v470
      %v1240 = vunpack.c.l.b16 %v471
      %v1241 = vunpack.c.h.b16 %v471
      %v1242 = vunpack.c.l.b16 %v472
      %v1243 = vunpack.c.h.b16 %v472
      %v1244 = vunpack.c.l.b16 %v473
      %v1245 = vunpack.c.h.b16 %v473
      %v1246 = vunpack.c.l.b16 %v474
      %v1247 = vunpack.c.h.b16 %v474
      %v1248 = vunpack.c.l.b16 %v475
      %v1249 = vunpack.c.h.b16 %v475
      %v1250 = vunpack.c.l.b16 %v476
      %v1251 = vunpack.c.h.b16 %v476
      %v1252 = vunpack.c.l.b16 %v477
      %v1253 = vunpack.c.h.b16 %v477
      %v1254 = vunpack.c.l.b16 %v478
      %v1255 = vunpack.c.h.b16 %v478
      %v1256 = vunpack.c.l.b16 %v479
      %v1257 = vunpack.c.h.b16 %v479
      %v1258 = vunpack.c.l.b16 %v480
      %v1259 = vunpack.c.h.b16 %v480
      %v1260 = vunpack.c.l.b16 %v481
      %v1261 = vunpack.c.h.b16 %v481
      %v1262 = vpack.c.b16 %v976, %v974
      %v1263 = vpack.c.b16 %v977, %v975
      %v1264 = vpack.c.b16 %v980, %v978
      %v1265 = vpack.c.b16 %v981, %v979
      %v1266 = vpack.c.b16 %v984, %v982
      %v1267 = vpack.c.b16 %v985, %v983
      %v1268 = vpack.c.b16 %v988, %v986
      %v1269 = vpack.c.b16 %v989, %v987
      %v1270 = vpack.c.b16 %v992, %v990
      %v1271 = vpack.c.b16 %v993, %v991
      %v1272 = vpack.c.b16 %v996, %v994
      %v1273 = vpack.c.b16 %v997, %v995
      %v1274 = vpack.c.b16 %v1000, %v998
      %v1275 = vpack.c.b16 %v1001, %v999
      %v1276 = vpack.c.b16 %v1004, %v1002
      %v1277 = vpack.c.b16 %v1005, %v1003
      %v1278 = vpack.c.b16 %v1008, %v1006
      %v1279 = vpack.c.b16 %v1009, %v1007
      %v1280 = vpack.c.b16 %v1012, %v1010
      %v1281 = vpack.c.b16 %v1013, %v1011
      %v1282 = vpack.c.b16 %v1016, %v1014
      %v1283 = vpack.c.b16 %v1017, %v1015
      %v1284 = vpack.c.b16 %v1020, %v1018
      %v1285 = vpack.c.b16 %v1021, %v1019
      %v1286 = vpack.c.b16 %v1024, %v1022
      %v1287 = vpack.c.b16 %v1025, %v1023
      %v1288 = vpack.c.b16 %v1028, %v1026
      %v1289 = vpack.c.b16 %v1029, %v1027
      %v1290 = vpack.c.b16 %v1032, %v1030
      %v1291 = vpack.c.b16 %v1033, %v1031
      %v1292 = vpack.c.b16 %v1036, %v1034
      %v1293 = vpack.c.b16 %v1037, %v1035
      %v1294 = vpack.c.b16 %v1040, %v1038
      %v1295 = vpack.c.b16 %v1041, %v1039
      %v1296 = vpack.c.b16 %v1044, %v1042
      %v1297 = vpack.c.b16 %v1045, %v1043
      %v1298 = vpack.c.b16 %v1048, %v1046
      %v1299 = vpack.c.b16 %v1049, %v1047
      %v1300 = vpack.c.b16 %v1052, %v1050
      %v1301 = vpack.c.b16 %v1053, %v1051
      %v1302 = vpack.c.b16 %v1056, %v1054
      %v1303 = vpack.c.b16 %v1057, %v1055
      %v1304 = vpack.c.b16 %v1060, %v1058
      %v1305 = vpack.c.b16 %v1061, %v1059
      %v1306 = vpack.c.b16 %v1064, %v1062
      %v1307 = vpack.c.b16 %v1065, %v1063
      %v1308 = vpack.c.b16 %v1068, %v1066
      %v1309 = vpack.c.b16 %v1069, %v1067
      %v1310 = vpack.c.b16 %v1072, %v1070
      %v1311 = vpack.c.b16 %v1073, %v1071
      %v1312 = vpack.c.b16 %v1076, %v1074
      %v1313 = vpack.c.b16 %v1077, %v1075
      %v1314 = vpack.c.b16 %v1080, %v1078
      %v1315 = vpack.c.b16 %v1081, %v1079
      %v1316 = vpack.c.b16 %v1084, %v1082
      %v1317 = vpack.c.b16 %v1085, %v1083
      %v1318 = vpack.c.b16 %v1088, %v1086
      %v1319 = vpack.c.b16 %v1089, %v1087
      %v1320 = vpack.c.b16 %v1092, %v1090
      %v1321 = vpack.c.b16 %v1093, %v1091
      %v1322 = vpack.c.b16 %v1096, %v1094
      %v1323 = vpack.c.b16 %v1097, %v1095
      %v1324 = vpack.c.b16 %v1100, %v1098
      %v1325 = vpack.c.b16 %v1101, %v1099
      %v1326 = vpack.c.b16 %v1104, %v1102
      %v1327 = vpack.c.b16 %v1105, %v1103
      %v1328 = vpack.c.b16 %v1108, %v1106
      %v1329 = vpack.c.b16 %v1109, %v1107
      %v1330 = vpack.c.b16 %v1112, %v1110
      %v1331 = vpack.c.b16 %v1113, %v1111
      %v1332 = vpack.c.b16 %v1116, %v1114
      %v1333 = vpack.c.b16 %v1117, %v1115
      %v1334 = vpack.c.b16 %v1120, %v1118
      %v1335 = vpack.c.b16 %v1121, %v1119
      %v1336 = vpack.c.b16 %v1124, %v1122
      %v1337 = vpack.c.b16 %v1125, %v1123
      %v1338 = vpack.c.b16 %v1128, %v1126
      %v1339 = vpack.c.b16 %v1129, %v1127
      %v1340 = vpack.c.b16 %v1132, %v1130
      %v1341 = vpack.c.b16 %v1133, %v1131
      %v1342 = vpack.c.b16 %v1136, %v1134
      %v1343 = vpack.c.b16 %v1137, %v1135
      %v1344 = vpack.c.b16 %v1140, %v1138
      %v1345 = vpack.c.b16 %v1141, %v1139
      %v1346 = vpack.c.b16 %v1144, %v1142
      %v1347 = vpack.c.b16 %v1145, %v1143
      %v1348 = vpack.c.b16 %v1148, %v1146
      %v1349 = vpack.c.b16 %v1149, %v1147
      %v1350 = vpack.c.b16 %v1152, %v1150
      %v1351 = vpack.c.b16 %v1153, %v1151
      %v1352 = vpack.c.b16 %v1156, %v1154
      %v1353 = vpack.c.b16 %v1157, %v1155
      %v1354 = vpack.c.b16 %v1160, %v1158
      %v1355 = vpack.c.b16 %v1161, %v1159
      %v1356 = vpack.c.b16 %v1164, %v1162
      %v1357 = vpack.c.b16 %v1165, %v1163
      %v1358 = vpack.c.b16 %v1168, %v1166
      %v1359 = vpack.c.b16 %v1169, %v1167
      %v1360 = vpack.c.b16 %v1172, %v1170
      %v1361 = vpack.c.b16 %v1173, %v1171
      %v1362 = vpack.c.b16 %v1176, %v1174
      %v1363 = vpack.c.b16 %v1177, %v1175
      %v1364 = vpack.c.b16 %v1180, %v1178
      %v1365 = vpack.c.b16 %v1181, %v1179
      %v1366 = vpack.c.b16 %v1184, %v1182
      %v1367 = vpack.c.b16 %v1185, %v1183
      %v1368 = vpack.c.b16 %v1188, %v1186
      %v1369 = vpack.c.b16 %v1189, %v1187
      %v1370 = vpack.c.b16 %v1192, %v1190
      %v1371 = vpack.c.b16 %v1193, %v1191
      %v1372 = vpack.c.b16 %v1196, %v1194
      %v1373 = vpack.c.b16 %v1197, %v1195
      %v1374 = vpack.c.b16 %v1200, %v1198
      %v1375 = vpack.c.b16 %v1201, %v1199
      %v1376 = vpack.c.b16 %v1204, %v1202
      %v1377 = vpack.c.b16 %v1205, %v1203
      %v1378 = vpack.c.b16 %v1208, %v1206
      %v1379 = vpack.c.b16 %v1209, %v1207
      %v1380 = vpack.c.b16 %v1212, %v1210
      %v1381 = vpack.c.b16 %v1213, %v1211
      %v1382 = vpack.c.b16 %v1216, %v1214
      %v1383 = vpack.c.b16 %v1217, %v1215
      %v1384 = vpack.c.b16 %v1220, %v1218
      %v1385 = vpack.c.b16 %v1221, %v1219
      %v1386 = vpack.c.b16 %v1224, %v1222
      %v1387 = vpack.c.b16 %v1225, %v1223
      %v1388 = vpack.c.b16 %v1228, %v1226
      %v1389 = vpack.c.b16 %v1229, %v1227
      %v1390 = vpack.c.b16 %v1232, %v1230
      %v1391 = vpack.c.b16 %v1233, %v1231
      %v1392 = vpack.c.b16 %v1236, %v1234
      %v1393 = vpack.c.b16 %v1237, %v1235
      %v1394 = vpack.c.b16 %v1240, %v1238
      %v1395 = vpack.c.b16 %v1241, %v1239
      %v1396 = vpack.c.b16 %v1244, %v1242
      %v1397 = vpack.c.b16 %v1245, %v1243
      %v1398 = vpack.c.b16 %v1248, %v1246
      %v1399 = vpack.c.b16 %v1249, %v1247
      %v1400 = vpack.c.b16 %v1252, %v1250
      %v1401 = vpack.c.b16 %v1253, %v1251
      %v1402 = vpack.c.b16 %v1256, %v1254
      %v1403 = vpack.c.b16 %v1257, %v1255
      %v1404 = vpack.c.b16 %v1260, %v1258
      %v1405 = vpack.c.b16 %v1261, %v1259
      %1550 = vmatprep.subr.bf16.mxu0 %v1263
      %1551 = vmatpush1.bf16.msra.mxu0 %v1262
      %1552 = vmatprep.subr.bf16.mxu0 %v1265
      %1553 = vmatpush1.bf16.msra.mxu0 %v1264
      %1554 = vmatprep.subr.bf16.mxu0 %v1267
      %1555 = vmatpush1.bf16.msra.mxu0 %v1266
      %1556 = vmatprep.subr.bf16.mxu0 %v1269
      %1557 = vmatpush1.bf16.msra.mxu0 %v1268
      %1558 = vmatprep.subr.bf16.mxu0 %v1271
      %1559 = vmatpush1.bf16.msra.mxu0 %v1270
      %1560 = vmatprep.subr.bf16.mxu0 %v1273
      %1561 = vmatpush1.bf16.msra.mxu0 %v1272
      %1562 = vmatprep.subr.bf16.mxu0 %v1275
      %1563 = vmatpush1.bf16.msra.mxu0 %v1274
      %1564 = vmatprep.subr.bf16.mxu0 %v1277
      %1565 = vmatpush1.bf16.msra.mxu0 %v1276
      %1566 = vmatprep.subr.bf16.mxu0 %v1279
      %1567 = vmatpush1.bf16.msra.mxu0 %v1278
      %1568 = vmatprep.subr.bf16.mxu0 %v1281
      %1569 = vmatpush1.bf16.msra.mxu0 %v1280
      %1570 = vmatprep.subr.bf16.mxu0 %v1283
      %1571 = vmatpush1.bf16.msra.mxu0 %v1282
      %1572 = vmatprep.subr.bf16.mxu0 %v1285
      %1573 = vmatpush1.bf16.msra.mxu0 %v1284
      %1574 = vmatprep.subr.bf16.mxu0 %v1287
      %1575 = vmatpush1.bf16.msra.mxu0 %v1286
      %1576 = vmatprep.subr.bf16.mxu0 %v1289
      %1577 = vmatpush1.bf16.msra.mxu0 %v1288
      %1578 = vmatprep.subr.bf16.mxu0 %v1291
      %1579 = vmatpush1.bf16.msra.mxu0 %v1290
      %1580 = vmatprep.subr.bf16.mxu0 %v1293
      %1581 = vmatpush1.bf16.msra.mxu0 %v1292
      %1582 = vmatprep.mubr.bf16.mxu0 %v723
      %1583 = vmatmul.mubr.bf16.gmra.mrb[0].mxu0 %v722
      %v1584 = vpop.f32.mrb[0].mxu0
      %v1585 = vadd.f32 %v497, %v1584
      %v1586 = vpop.f32.mrb[0].mxu0
      %v1587 = vadd.f32 %v497, %v1586
      %v1588 = vpop.f32.mrb[0].mxu0
      %v1589 = vadd.f32 %v502, %v1588
      %v1590 = vpop.f32.mrb[0].mxu0
      %v1591 = vadd.f32 %v502, %v1590
      %1592 = vmatprep.mubr.bf16.mxu0 %v732
      %1593 = vmatmul.mubr.bf16.gmra.mrb[0].mxu0 %v731
      %v1594 = vpop.f32.mrb[0].mxu0
      %v1595 = vadd.f32 %v507, %v1594
      %v1596 = vpop.f32.mrb[0].mxu0
      %v1597 = vadd.f32 %v507, %v1596
      %v1598 = vpop.f32.mrb[0].mxu0
      %v1599 = vadd.f32 %v512, %v1598
      %v1600 = vpop.f32.mrb[0].mxu0
      %v1601 = vadd.f32 %v512, %v1600
      %1602 = vmatprep.mubr.bf16.mxu0 %v741
      %1603 = vmatmul.mubr.bf16.gmra.mrb[0].mxu0 %v740
      %v1604 = vpop.f32.mrb[0].mxu0
      %v1605 = vadd.f32 %v517, %v1604
      %v1606 = vpop.f32.mrb[0].mxu0
      %v1607 = vadd.f32 %v517, %v1606
      %v1608 = vpop.f32.mrb[0].mxu0
      %v1609 = vadd.f32 %v522, %v1608
      %v1610 = vpop.f32.mrb[0].mxu0
      %v1611 = vadd.f32 %v522, %v1610
      %1612 = vmatprep.mubr.bf16.mxu0 %v750
      %1613 = vmatmul.mubr.bf16.gmra.mrb[0].mxu0 %v749
      %v1614 = vpop.f32.mrb[0].mxu0
      %v1615 = vadd.f32 %v527, %v1614
      %v1616 = vpop.f32.mrb[0].mxu0
      %v1617 = vadd.f32 %v527, %v1616
      %v1618 = vpop.f32.mrb[0].mxu0
      %v1619 = vadd.f32 %v532, %v1618
      %v1620 = vpop.f32.mrb[0].mxu0
      %v1621 = vadd.f32 %v532, %v1620
      %1622 = vmatprep.mubr.bf16.mxu0 %v759
      %1623 = vmatmul.mubr.bf16.gmra.mrb[0].mxu0 %v758
      %v1624 = vpop.f32.mrb[0].mxu0
      %v1625 = vadd.f32 %v537, %v1624
      %v1626 = vpop.f32.mrb[0].mxu0
      %v1627 = vadd.f32 %v537, %v1626
      %v1628 = vpop.f32.mrb[0].mxu0
      %v1629 = vadd.f32 %v542, %v1628
      %v1630 = vpop.f32.mrb[0].mxu0
      %v1631 = vadd.f32 %v542, %v1630
      %1632 = vmatprep.mubr.bf16.mxu0 %v768
      %1633 = vmatmul.mubr.bf16.gmra.mrb[0].mxu0 %v767
      %v1634 = vpop.f32.mrb[0].mxu0
      %v1635 = vadd.f32 %v547, %v1634
      %v1636 = vpop.f32.mrb[0].mxu0
      %v1637 = vadd.f32 %v547, %v1636
      %v1638 = vpop.f32.mrb[0].mxu0
      %v1639 = vadd.f32 %v552, %v1638
      %v1640 = vpop.f32.mrb[0].mxu0
      %v1641 = vadd.f32 %v552, %v1640
      %1642 = vdwg.mxu0
      %1643 = vmatprep.subr.bf16.mxu0 %v1295
      %1644 = vmatpush1.bf16.msra.mxu0 %v1294
      %1645 = vmatprep.subr.bf16.mxu0 %v1297
      %1646 = vmatpush1.bf16.msra.mxu0 %v1296
      %1647 = vmatprep.subr.bf16.mxu0 %v1299
      %1648 = vmatpush1.bf16.msra.mxu0 %v1298
      %1649 = vmatprep.subr.bf16.mxu0 %v1301
      %1650 = vmatpush1.bf16.msra.mxu0 %v1300
      %1651 = vmatprep.subr.bf16.mxu0 %v1303
      %1652 = vmatpush1.bf16.msra.mxu0 %v1302
      %1653 = vmatprep.subr.bf16.mxu0 %v1305
      %1654 = vmatpush1.bf16.msra.mxu0 %v1304
      %1655 = vmatprep.subr.bf16.mxu0 %v1307
      %1656 = vmatpush1.bf16.msra.mxu0 %v1306
      %1657 = vmatprep.subr.bf16.mxu0 %v1309
      %1658 = vmatpush1.bf16.msra.mxu0 %v1308
      %1659 = vmatprep.subr.bf16.mxu0 %v1311
      %1660 = vmatpush1.bf16.msra.mxu0 %v1310
      %1661 = vmatprep.subr.bf16.mxu0 %v1313
      %1662 = vmatpush1.bf16.msra.mxu0 %v1312
      %1663 = vmatprep.subr.bf16.mxu0 %v1315
      %1664 = vmatpush1.bf16.msra.mxu0 %v1314
      %1665 = vmatprep.subr.bf16.mxu0 %v1317
      %1666 = vmatpush1.bf16.msra.mxu0 %v1316
      %1667 = vmatprep.subr.bf16.mxu0 %v1319
      %1668 = vmatpush1.bf16.msra.mxu0 %v1318
      %1669 = vmatprep.subr.bf16.mxu0 %v1321
      %1670 = vmatpush1.bf16.msra.mxu0 %v1320
      %1671 = vmatprep.subr.bf16.mxu0 %v1323
      %1672 = vmatpush1.bf16.msra.mxu0 %v1322
      %1673 = vmatprep.subr.bf16.mxu0 %v1325
      %1674 = vmatpush1.bf16.msra.mxu0 %v1324
      %1675 = vmatprep.mubr.bf16.mxu0 %v725
      %1676 = vmatmul.mubr.bf16.gmra.mrb[0].mxu0 %v724
      %v1677 = vpop.f32.mrb[0].mxu0
      %v1678 = vadd.f32 %v1585, %v1677
      %v1679 = vpop.f32.mrb[0].mxu0
      %v1680 = vadd.f32 %v1587, %v1679
      %v1681 = vpop.f32.mrb[0].mxu0
      %v1682 = vadd.f32 %v1589, %v1681
      %v1683 = vpop.f32.mrb[0].mxu0
      %v1684 = vadd.f32 %v1591, %v1683
      %1685 = vmatprep.mubr.bf16.mxu0 %v734
      %1686 = vmatmul.mubr.bf16.gmra.mrb[0].mxu0 %v733
      %v1687 = vpop.f32.mrb[0].mxu0
      %v1688 = vadd.f32 %v1595, %v1687
      %v1689 = vpop.f32.mrb[0].mxu0
      %v1690 = vadd.f32 %v1597, %v1689
      %v1691 = vpop.f32.mrb[0].mxu0
      %v1692 = vadd.f32 %v1599, %v1691
      %v1693 = vpop.f32.mrb[0].mxu0
      %v1694 = vadd.f32 %v1601, %v1693
      %1695 = vmatprep.mubr.bf16.mxu0 %v743
      %1696 = vmatmul.mubr.bf16.gmra.mrb[0].mxu0 %v742
      %v1697 = vpop.f32.mrb[0].mxu0
      %v1698 = vadd.f32 %v1605, %v1697
      %v1699 = vpop.f32.mrb[0].mxu0
      %v1700 = vadd.f32 %v1607, %v1699
      %v1701 = vpop.f32.mrb[0].mxu0
      %v1702 = vadd.f32 %v1609, %v1701
      %v1703 = vpop.f32.mrb[0].mxu0
      %v1704 = vadd.f32 %v1611, %v1703
      %1705 = vmatprep.mubr.bf16.mxu0 %v752
      %1706 = vmatmul.mubr.bf16.gmra.mrb[0].mxu0 %v751
      %v1707 = vpop.f32.mrb[0].mxu0
      %v1708 = vadd.f32 %v1615, %v1707
      %v1709 = vpop.f32.mrb[0].mxu0
      %v1710 = vadd.f32 %v1617, %v1709
      %v1711 = vpop.f32.mrb[0].mxu0
      %v1712 = vadd.f32 %v1619, %v1711
      %v1713 = vpop.f32.mrb[0].mxu0
      %v1714 = vadd.f32 %v1621, %v1713
      %1715 = vmatprep.mubr.bf16.mxu0 %v761
      %1716 = vmatmul.mubr.bf16.gmra.mrb[0].mxu0 %v760
      %v1717 = vpop.f32.mrb[0].mxu0
      %v1718 = vadd.f32 %v1625, %v1717
      %v1719 = vpop.f32.mrb[0].mxu0
      %v1720 = vadd.f32 %v1627, %v1719
      %v1721 = vpop.f32.mrb[0].mxu0
      %v1722 = vadd.f32 %v1629, %v1721
      %v1723 = vpop.f32.mrb[0].mxu0
      %v1724 = vadd.f32 %v1631, %v1723
      %1725 = vmatprep.mubr.bf16.mxu0 %v770
      %1726 = vmatmul.mubr.bf16.gmra.mrb[0].mxu0 %v769
      %v1727 = vpop.f32.mrb[0].mxu0
      %v1728 = vadd.f32 %v1635, %v1727
      %v1729 = vpop.f32.mrb[0].mxu0
      %v1730 = vadd.f32 %v1637, %v1729
      %v1731 = vpop.f32.mrb[0].mxu0
      %v1732 = vadd.f32 %v1639, %v1731
      %v1733 = vpop.f32.mrb[0].mxu0
      %v1734 = vadd.f32 %v1641, %v1733
      %1735 = vdwg.mxu0
      %1736 = vmatprep.subr.bf16.mxu0 %v1327
      %1737 = vmatpush1.bf16.msra.mxu0 %v1326
      %1738 = vmatprep.subr.bf16.mxu0 %v1329
      %1739 = vmatpush1.bf16.msra.mxu0 %v1328
      %1740 = vmatprep.subr.bf16.mxu0 %v1331
      %1741 = vmatpush1.bf16.msra.mxu0 %v1330
      %1742 = vmatprep.subr.bf16.mxu0 %v1333
      %1743 = vmatpush1.bf16.msra.mxu0 %v1332
      %1744 = vmatprep.subr.bf16.mxu0 %v1335
      %1745 = vmatpush1.bf16.msra.mxu0 %v1334
      %1746 = vmatprep.subr.bf16.mxu0 %v1337
      %1747 = vmatpush1.bf16.msra.mxu0 %v1336
      %1748 = vmatprep.subr.bf16.mxu0 %v1339
      %1749 = vmatpush1.bf16.msra.mxu0 %v1338
      %1750 = vmatprep.subr.bf16.mxu0 %v1341
      %1751 = vmatpush1.bf16.msra.mxu0 %v1340
      %1752 = vmatprep.subr.bf16.mxu0 %v1343
      %1753 = vmatpush1.bf16.msra.mxu0 %v1342
      %1754 = vmatprep.subr.bf16.mxu0 %v1345
      %1755 = vmatpush1.bf16.msra.mxu0 %v1344
      %1756 = vmatprep.subr.bf16.mxu0 %v1347
      %1757 = vmatpush1.bf16.msra.mxu0 %v1346
      %1758 = vmatprep.subr.bf16.mxu0 %v1349
      %1759 = vmatpush1.bf16.msra.mxu0 %v1348
      %1760 = vmatprep.subr.bf16.mxu0 %v1351
      %1761 = vmatpush1.bf16.msra.mxu0 %v1350
      %1762 = vmatprep.subr.bf16.mxu0 %v1353
      %1763 = vmatpush1.bf16.msra.mxu0 %v1352
      %1764 = vmatprep.subr.bf16.mxu0 %v1355
      %1765 = vmatpush1.bf16.msra.mxu0 %v1354
      %1766 = vmatprep.subr.bf16.mxu0 %v1357
      %1767 = vmatpush1.bf16.msra.mxu0 %v1356
      %1768 = vmatprep.mubr.bf16.mxu0 %v727
      %1769 = vmatmul.mubr.bf16.gmra.mrb[0].mxu0 %v726
      %v1770 = vpop.f32.mrb[0].mxu0
      %v1771 = vadd.f32 %v1678, %v1770
      %v1772 = vpop.f32.mrb[0].mxu0
      %v1773 = vadd.f32 %v1680, %v1772
      %v1774 = vpop.f32.mrb[0].mxu0
      %v1775 = vadd.f32 %v1682, %v1774
      %v1776 = vpop.f32.mrb[0].mxu0
      %v1777 = vadd.f32 %v1684, %v1776
      %1778 = vmatprep.mubr.bf16.mxu0 %v736
      %1779 = vmatmul.mubr.bf16.gmra.mrb[0].mxu0 %v735
      %v1780 = vpop.f32.mrb[0].mxu0
      %v1781 = vadd.f32 %v1688, %v1780
      %v1782 = vpop.f32.mrb[0].mxu0
      %v1783 = vadd.f32 %v1690, %v1782
      %v1784 = vpop.f32.mrb[0].mxu0
      %v1785 = vadd.f32 %v1692, %v1784
      %v1786 = vpop.f32.mrb[0].mxu0
      %v1787 = vadd.f32 %v1694, %v1786
      %1788 = vmatprep.mubr.bf16.mxu0 %v745
      %1789 = vmatmul.mubr.bf16.gmra.mrb[0].mxu0 %v744
      %v1790 = vpop.f32.mrb[0].mxu0
      %v1791 = vadd.f32 %v1698, %v1790
      %v1792 = vpop.f32.mrb[0].mxu0
      %v1793 = vadd.f32 %v1700, %v1792
      %v1794 = vpop.f32.mrb[0].mxu0
      %v1795 = vadd.f32 %v1702, %v1794
      %v1796 = vpop.f32.mrb[0].mxu0
      %v1797 = vadd.f32 %v1704, %v1796
      %1798 = vmatprep.mubr.bf16.mxu0 %v754
      %1799 = vmatmul.mubr.bf16.gmra.mrb[0].mxu0 %v753
      %v1800 = vpop.f32.mrb[0].mxu0
      %v1801 = vadd.f32 %v1708, %v1800
      %v1802 = vpop.f32.mrb[0].mxu0
      %v1803 = vadd.f32 %v1710, %v1802
      %v1804 = vpop.f32.mrb[0].mxu0
      %v1805 = vadd.f32 %v1712, %v1804
      %v1806 = vpop.f32.mrb[0].mxu0
      %v1807 = vadd.f32 %v1714, %v1806
      %1808 = vmatprep.mubr.bf16.mxu0 %v763
      %1809 = vmatmul.mubr.bf16.gmra.mrb[0].mxu0 %v762
      %v1810 = vpop.f32.mrb[0].mxu0
      %v1811 = vadd.f32 %v1718, %v1810
      %v1812 = vpop.f32.mrb[0].mxu0
      %v1813 = vadd.f32 %v1720, %v1812
      %v1814 = vpop.f32.mrb[0].mxu0
      %v1815 = vadd.f32 %v1722, %v1814
      %v1816 = vpop.f32.mrb[0].mxu0
      %v1817 = vadd.f32 %v1724, %v1816
      %1818 = vmatprep.mubr.bf16.mxu0 %v772
      %1819 = vmatmul.mubr.bf16.gmra.mrb[0].mxu0 %v771
      %v1820 = vpop.f32.mrb[0].mxu0
      %v1821 = vadd.f32 %v1728, %v1820
      %v1822 = vpop.f32.mrb[0].mxu0
      %v1823 = vadd.f32 %v1730, %v1822
      %v1824 = vpop.f32.mrb[0].mxu0
      %v1825 = vadd.f32 %v1732, %v1824
      %v1826 = vpop.f32.mrb[0].mxu0
      %v1827 = vadd.f32 %v1734, %v1826
      %1828 = vdwg.mxu0
      %1829 = vmatprep.subr.bf16.mxu0 %v1359
      %1830 = vmatpush1.bf16.msra.mxu0 %v1358
      %1831 = vmatprep.subr.bf16.mxu0 %v1361
      %1832 = vmatpush1.bf16.msra.mxu0 %v1360
      %1833 = vmatprep.subr.bf16.mxu0 %v1363
      %1834 = vmatpush1.bf16.msra.mxu0 %v1362
      %1835 = vmatprep.subr.bf16.mxu0 %v1365
      %1836 = vmatpush1.bf16.msra.mxu0 %v1364
      %1837 = vmatprep.subr.bf16.mxu0 %v1367
      %1838 = vmatpush1.bf16.msra.mxu0 %v1366
      %1839 = vmatprep.subr.bf16.mxu0 %v1369
      %1840 = vmatpush1.bf16.msra.mxu0 %v1368
      %1841 = vmatprep.subr.bf16.mxu0 %v1371
      %1842 = vmatpush1.bf16.msra.mxu0 %v1370
      %1843 = vmatprep.subr.bf16.mxu0 %v1373
      %1844 = vmatpush1.bf16.msra.mxu0 %v1372
      %1845 = vmatprep.subr.bf16.mxu0 %v1375
      %1846 = vmatpush1.bf16.msra.mxu0 %v1374
      %1847 = vmatprep.subr.bf16.mxu0 %v1377
      %1848 = vmatpush1.bf16.msra.mxu0 %v1376
      %1849 = vmatprep.subr.bf16.mxu0 %v1379
      %1850 = vmatpush1.bf16.msra.mxu0 %v1378
      %1851 = vmatprep.subr.bf16.mxu0 %v1381
      %1852 = vmatpush1.bf16.msra.mxu0 %v1380
      %1853 = vmatprep.subr.bf16.mxu0 %v1383
      %1854 = vmatpush1.bf16.msra.mxu0 %v1382
      %1855 = vmatprep.subr.bf16.mxu0 %v1385
      %1856 = vmatpush1.bf16.msra.mxu0 %v1384
      %1857 = vmatprep.subr.bf16.mxu0 %v1387
      %1858 = vmatpush1.bf16.msra.mxu0 %v1386
      %1859 = vmatprep.subr.bf16.mxu0 %v1389
      %1860 = vmatpush1.bf16.msra.mxu0 %v1388
      %1861 = vmatprep.mubr.bf16.mxu0 %v729
      %1862 = vmatmul.mubr.bf16.gmra.mrb[0].mxu0 %v728
      %v1863 = vpop.f32.mrb[0].mxu0
      %v1864 = vadd.f32 %v1771, %v1863
      %v1865 = vpop.f32.mrb[0].mxu0
      %v1866 = vadd.f32 %v1773, %v1865
      %v1867 = vpop.f32.mrb[0].mxu0
      %v1868 = vadd.f32 %v1775, %v1867
      %v1869 = vpop.f32.mrb[0].mxu0
      %v1870 = vadd.f32 %v1777, %v1869
      %1871 = vmatprep.mubr.bf16.mxu0 %v738
      %1872 = vmatmul.mubr.bf16.gmra.mrb[0].mxu0 %v737
      %v1873 = vpop.f32.mrb[0].mxu0
      %v1874 = vadd.f32 %v1781, %v1873
      %v1875 = vpop.f32.mrb[0].mxu0
      %v1876 = vadd.f32 %v1783, %v1875
      %v1877 = vpop.f32.mrb[0].mxu0
      %v1878 = vadd.f32 %v1785, %v1877
      %v1879 = vpop.f32.mrb[0].mxu0
      %v1880 = vadd.f32 %v1787, %v1879
      %1881 = vmatprep.mubr.bf16.mxu0 %v747
      %1882 = vmatmul.mubr.bf16.gmra.mrb[0].mxu0 %v746
      %v1883 = vpop.f32.mrb[0].mxu0
      %v1884 = vadd.f32 %v1791, %v1883
      %v1885 = vpop.f32.mrb[0].mxu0
      %v1886 = vadd.f32 %v1793, %v1885
      %v1887 = vpop.f32.mrb[0].mxu0
      %v1888 = vadd.f32 %v1795, %v1887
      %v1889 = vpop.f32.mrb[0].mxu0
      %v1890 = vadd.f32 %v1797, %v1889
      %1891 = vmatprep.mubr.bf16.mxu0 %v756
      %1892 = vmatmul.mubr.bf16.gmra.mrb[0].mxu0 %v755
      %v1893 = vpop.f32.mrb[0].mxu0
      %v1894 = vadd.f32 %v1801, %v1893
      %v1895 = vpop.f32.mrb[0].mxu0
      %v1896 = vadd.f32 %v1803, %v1895
      %v1897 = vpop.f32.mrb[0].mxu0
      %v1898 = vadd.f32 %v1805, %v1897
      %v1899 = vpop.f32.mrb[0].mxu0
      %v1900 = vadd.f32 %v1807, %v1899
      %1901 = vmatprep.mubr.bf16.mxu0 %v765
      %1902 = vmatmul.mubr.bf16.gmra.mrb[0].mxu0 %v764
      %v1903 = vpop.f32.mrb[0].mxu0
      %v1904 = vadd.f32 %v1811, %v1903
      %v1905 = vpop.f32.mrb[0].mxu0
      %v1906 = vadd.f32 %v1813, %v1905
      %v1907 = vpop.f32.mrb[0].mxu0
      %v1908 = vadd.f32 %v1815, %v1907
      %v1909 = vpop.f32.mrb[0].mxu0
      %v1910 = vadd.f32 %v1817, %v1909
      %1911 = vmatprep.mubr.bf16.mxu0 %v774
      %1912 = vmatmul.mubr.bf16.gmra.mrb[0].mxu0 %v773
      %v1913 = vpop.f32.mrb[0].mxu0
      %v1914 = vadd.f32 %v1821, %v1913
      %v1915 = vpop.f32.mrb[0].mxu0
      %v1916 = vadd.f32 %v1823, %v1915
      %v1917 = vpop.f32.mrb[0].mxu0
      %v1918 = vadd.f32 %v1825, %v1917
      %v1919 = vpop.f32.mrb[0].mxu0
      %v1920 = vadd.f32 %v1827, %v1919
      %1921 = vdwg.mxu0
      %1922 = vmatprep.subr.bf16.mxu0 %v1391
      %1923 = vmatpush1.bf16.msra.mxu0 %v1390
      %1924 = vmatprep.subr.bf16.mxu0 %v1393
      %1925 = vmatpush1.bf16.msra.mxu0 %v1392
      %1926 = vmatprep.subr.bf16.mxu0 %v1395
      %1927 = vmatpush1.bf16.msra.mxu0 %v1394
      %1928 = vmatprep.subr.bf16.mxu0 %v1397
      %1929 = vmatpush1.bf16.msra.mxu0 %v1396
      %1930 = vmatprep.subr.bf16.mxu0 %v1399
      %1931 = vmatpush1.bf16.msra.mxu0 %v1398
      %1932 = vmatprep.subr.bf16.mxu0 %v1401
      %1933 = vmatpush1.bf16.msra.mxu0 %v1400
      %1934 = vmatprep.subr.bf16.mxu0 %v1403
      %1935 = vmatpush1.bf16.msra.mxu0 %v1402
      %1936 = vmatprep.subr.bf16.mxu0 %v1405
      %1937 = vmatpush1.bf16.msra.mxu0 %v1404
      %1938 = vmatprep.subr.bf16.mxu0 0
      %1939 = vmatpush1.bf16.msra.mxu0 0
      %1940 = vmatprep.subr.bf16.mxu0 0
      %1941 = vmatpush1.bf16.msra.mxu0 0
      %1942 = vmatprep.subr.bf16.mxu0 0
      %1943 = vmatpush1.bf16.msra.mxu0 0
      %1944 = vmatprep.subr.bf16.mxu0 0
      %1945 = vmatpush1.bf16.msra.mxu0 0
      %1946 = vmatprep.subr.bf16.mxu0 0
      %1947 = vmatpush1.bf16.msra.mxu0 0
      %1948 = vmatprep.subr.bf16.mxu0 0
      %1949 = vmatpush1.bf16.msra.mxu0 0
      %1950 = vmatprep.subr.bf16.mxu0 0
      %1951 = vmatpush1.bf16.msra.mxu0 0
      %1952 = vmatprep.subr.bf16.mxu0 0
      %1953 = vmatpush1.bf16.msra.mxu0 0
      %1954 = vmatprep.mubr.bf16.mxu0 0
      %1955 = vmatmul.mubr.bf16.gmra.mrb[0].mxu0 %v730
      %v1956 = vpop.f32.mrb[0].mxu0
      %v1957 = vadd.f32 %v1864, %v1956
      %v1958 = vpop.f32.mrb[0].mxu0
      %v1959 = vadd.f32 %v1866, %v1958
      %v1960 = vpop.f32.mrb[0].mxu0
      %v1961 = vadd.f32 %v1868, %v1960
      %v1962 = vpop.f32.mrb[0].mxu0
      %v1963 = vadd.f32 %v1870, %v1962
      %1964 = vmatprep.mubr.bf16.mxu0 0
      %1965 = vmatmul.mubr.bf16.gmra.mrb[0].mxu0 %v739
      %v1966 = vpop.f32.mrb[0].mxu0
      %v1967 = vadd.f32 %v1874, %v1966
      %v1968 = vpop.f32.mrb[0].mxu0
      %v1969 = vadd.f32 %v1876, %v1968
      %v1970 = vpop.f32.mrb[0].mxu0
      %v1971 = vadd.f32 %v1878, %v1970
      %v1972 = vpop.f32.mrb[0].mxu0
      %v1973 = vadd.f32 %v1880, %v1972
      %1974 = vmatprep.mubr.bf16.mxu0 0
      %1975 = vmatmul.mubr.bf16.gmra.mrb[0].mxu0 %v748
      %v1976 = vpop.f32.mrb[0].mxu0
      %v1977 = vadd.f32 %v1884, %v1976
      %v1978 = vpop.f32.mrb[0].mxu0
      %v1979 = vadd.f32 %v1886, %v1978
      %v1980 = vpop.f32.mrb[0].mxu0
      %v1981 = vadd.f32 %v1888, %v1980
      %v1982 = vpop.f32.mrb[0].mxu0
      %v1983 = vadd.f32 %v1890, %v1982
      %1984 = vmatprep.mubr.bf16.mxu0 0
      %1985 = vmatmul.mubr.bf16.gmra.mrb[0].mxu0 %v757
      %v1986 = vpop.f32.mrb[0].mxu0
      %v1987 = vadd.f32 %v1894, %v1986
      %v1988 = vpop.f32.mrb[0].mxu0
      %v1989 = vadd.f32 %v1896, %v1988
      %v1990 = vpop.f32.mrb[0].mxu0
      %v1991 = vadd.f32 %v1898, %v1990
      %v1992 = vpop.f32.mrb[0].mxu0
      %v1993 = vadd.f32 %v1900, %v1992
      %1994 = vmatprep.mubr.bf16.mxu0 0
      %1995 = vmatmul.mubr.bf16.gmra.mrb[0].mxu0 %v766
      %v1996 = vpop.f32.mrb[0].mxu0
      %v1997 = vadd.f32 %v1904, %v1996
      %v1998 = vpop.f32.mrb[0].mxu0
      %v1999 = vadd.f32 %v1906, %v1998
      %v2000 = vpop.f32.mrb[0].mxu0
      %v2001 = vadd.f32 %v1908, %v2000
      %v2002 = vpop.f32.mrb[0].mxu0
      %v2003 = vadd.f32 %v1910, %v2002
      %2004 = vmatprep.mubr.bf16.mxu0 0
      %2005 = vmatmul.mubr.bf16.gmra.mrb[0].mxu0 %v775
      %v2006 = vpop.f32.mrb[0].mxu0
      %v2007 = vadd.f32 %v1914, %v2006
      %v2008 = vpop.f32.mrb[0].mxu0
      %v2009 = vadd.f32 %v1916, %v2008
      %v2010 = vpop.f32.mrb[0].mxu0
      %v2011 = vadd.f32 %v1918, %v2010
      %v2012 = vpop.f32.mrb[0].mxu0
      %v2013 = vadd.f32 %v1920, %v2012
      %2014 = vdwg.mxu0
      %v2015 = vmul.f32 %v1957, 0.1
      %v2016 = vmul.f32 %v1959, 0.1
      %v2017 = vmul.f32 %v1961, 0.1
      %v2018 = vmul.f32 %v1963, 0.1
      %v2019 = vmul.f32 %v1967, 0.1
      %v2020 = vmul.f32 %v1969, 0.1
      %v2021 = vmul.f32 %v1971, 0.1
      %v2022 = vmul.f32 %v1973, 0.1
      %v2023 = vmul.f32 %v1977, 0.1
      %v2024 = vmul.f32 %v1979, 0.1
      %v2025 = vmul.f32 %v1981, 0.1
      %v2026 = vmul.f32 %v1983, 0.1
      %v2027 = vmul.f32 %v1987, 0.1
      %v2028 = vmul.f32 %v1989, 0.1
      %v2029 = vmul.f32 %v1991, 0.1
      %v2030 = vmul.f32 %v1993, 0.1
      %v2031 = vmul.f32 %v1997, 0.1
      %v2032 = vmul.f32 %v1999, 0.1
      %v2033 = vmul.f32 %v2001, 0.1
      %v2034 = vmul.f32 %v2003, 0.1
      %v2035 = vmul.f32 %v2007, 0.1
      %v2036 = vmul.f32 %v2009, 0.1
      %v2037 = vmul.f32 %v2011, 0.1
      %v2038 = vmul.f32 %v2013, 0.1
      %v2039 = vmax.f32 %v1957, %v2015
      %v2040 = vmax.f32 %v1959, %v2016
      %v2041 = vmax.f32 %v1961, %v2017
      %v2042 = vmax.f32 %v1963, %v2018
      %v2043 = vmax.f32 %v1967, %v2019
      %v2044 = vmax.f32 %v1969, %v2020
      %v2045 = vmax.f32 %v1971, %v2021
      %v2046 = vmax.f32 %v1973, %v2022
      %v2047 = vmax.f32 %v1977, %v2023
      %v2048 = vmax.f32 %v1979, %v2024
      %v2049 = vmax.f32 %v1981, %v2025
      %v2050 = vmax.f32 %v1983, %v2026
      %v2051 = vmax.f32 %v1987, %v2027
      %v2052 = vmax.f32 %v1989, %v2028
      %v2053 = vmax.f32 %v1991, %v2029
      %v2054 = vmax.f32 %v1993, %v2030
      %v2055 = vmax.f32 %v1997, %v2031
      %v2056 = vmax.f32 %v1999, %v2032
      %v2057 = vmax.f32 %v2001, %v2033
      %v2058 = vmax.f32 %v2003, %v2034
      %v2059 = vmax.f32 %v2007, %v2035
      %v2060 = vmax.f32 %v2009, %v2036
      %v2061 = vmax.f32 %v2011, %v2037
      %v2062 = vmax.f32 %v2013, %v2038
      %2063 = vst [vmem:[%s274] sm:$0xff] %v2039
      %2064 = vst [vmem:[%s274 + $0x8] sm:$0xff] %v2040
      %2065 = vst [vmem:[%s274 + $0x10] sm:$0xff] %v2041
      %2066 = vst [vmem:[%s274 + $0x18] sm:$0xff] %v2042
      %2067 = vst [vmem:[%s274 + $0x20] sm:$0xff] %v2043
      %2068 = vst [vmem:[%s274 + $0x28] sm:$0xff] %v2044
      %2069 = vst [vmem:[%s274 + $0x30] sm:$0xff] %v2045
      %2070 = vst [vmem:[%s274 + $0x38] sm:$0xff] %v2046
      %2071 = vst [vmem:[%s274 + $0x40] sm:$0xff] %v2047
      %2072 = vst [vmem:[%s274 + $0x48] sm:$0xff] %v2048
      %2073 = vst [vmem:[%s274 + $0x50] sm:$0xff] %v2049
      %2074 = vst [vmem:[%s274 + $0x58] sm:$0xff] %v2050
      %2075 = vst [vmem:[%s274 + $0x60] sm:$0xff] %v2051
      %2076 = vst [vmem:[%s274 + $0x68] sm:$0xff] %v2052
      %2077 = vst [vmem:[%s274 + $0x70] sm:$0xff] %v2053
      %2078 = vst [vmem:[%s274 + $0x78] sm:$0xff] %v2054
      %2079 = vst [vmem:[%s274 + $0x80] sm:$0xff] %v2055
      %2080 = vst [vmem:[%s274 + $0x88] sm:$0xff] %v2056
      %2081 = vst [vmem:[%s274 + $0x90] sm:$0xff] %v2057
      %2082 = vst [vmem:[%s274 + $0x98] sm:$0xff] %v2058
      %2083 = vst [vmem:[%s274 + $0xa0] sm:$0xff] %v2059
      %2084 = vst [vmem:[%s274 + $0xa8] sm:$0xff] %v2060
      %2085 = vst [vmem:[%s274 + $0xb0] sm:$0xff] %v2061
      %2086 = vst [vmem:[%s274 + $0xb8] sm:$0xff] %v2062
      %s2087 = smul.u32 12, %s20
      %s2088 = smul.u32 2, %s21
      %p2089 = scmp.lt.s32.totalorder %s19, 1
      %s2090 = scalar_select %p2089, %s19, 1
      %p2091 = scmp.lt.s32.totalorder %s2087, 11
      %s2092 = scalar_select %p2091, %s2087, 11
      %p2093 = scmp.lt.s32.totalorder %s2088, 1
      %s2094 = scalar_select %p2093, %s2088, 1
      %s2095 = smul.addr %s2092, 2
      %s2096 = sadd.s32 %s2094, %s2095
      %s2097 = smul.addr %s2090, 24
      %s2098 = sadd.s32 %s2096, %s2097
      %s2099 = smul.addr %s2098, 8
      %s2100 = scalar_lea.vmem %s3, %s2099
      // Predicated region
      $region33: #{mono_sceneflow_decoder_lstm.9} parent=31 // pred_check
        %p2101 = pneg %p135
      $region34: #{mono_sceneflow_decoder_lstm.9} parent=31 // pred_check_branch
        %2103 = sbr.rel (%p2101) target = $region36
      $region35: #{mono_sceneflow_decoder_lstm.9} parent=31 // pred_region
        %s2104 = smul.u32 12, %s20
        %s2105 = smul.u32 2, %s21
      $region36: #{mono_sceneflow_decoder_lstm.9} parent=31 // pred_fallthru
        _
    $region32: #{mono_sceneflow_decoder_lstm.9} parent=5 // pred_fallthru
      _
    %p2106 = scmp.le.s32.totalorder 2, %s9
    // Predicated region
    $region37: #{mono_sceneflow_decoder_lstm.9} parent=5 // pred_check
      %p2107 = pneg %p2106
    $region38: #{mono_sceneflow_decoder_lstm.9} parent=5 // pred_check_branch
      %2109 = sbr.rel (%p2107) target = $region40
    $region39: #{mono_sceneflow_decoder_lstm.9} parent=5 // pred_region
      %s2110 = ssub.s32 %s9, 2
      // Predicated region
      $region41: #{mono_sceneflow_decoder_lstm.9} parent=39 // pred_check
        %p2111 = pneg %p141
      $region42: #{mono_sceneflow_decoder_lstm.9} parent=39 // pred_check_branch
        %2113 = sbr.rel (%p2111) target = $region44
      $region43: #{mono_sceneflow_decoder_lstm.9} parent=39 // pred_region
        %s2114 = smul.u32 12, %s23
        %s2115 = smul.u32 2, %s24
        %p2116 = scmp.lt.s32.totalorder %s22, 1
        %s2117 = scalar_select %p2116, %s22, 1
        %p2118 = scmp.lt.s32.totalorder %s2114, 11
        %s2119 = scalar_select %p2118, %s2114, 11
        %p2120 = scmp.lt.s32.totalorder %s2115, 1
        %s2121 = scalar_select %p2120, %s2115, 1
        %s2122 = smul.addr %s2119, 2
        %s2123 = sadd.s32 %s2121, %s2122
        %s2124 = smul.addr %s2117, 24
        %s2125 = sadd.s32 %s2123, %s2124
        %s2126 = smul.addr %s2125, 8
        %s2127 = scalar_lea.vmem %s3, %s2126
      $region44: #{mono_sceneflow_decoder_lstm.9} parent=39 // pred_fallthru
        _
    $region40: #{mono_sceneflow_decoder_lstm.9} parent=5 // pred_fallthru
      _
  $region6: #{mono_sceneflow_decoder_lstm.9} parent=0 // loop_footer
    %s13 = sadd.s32 1, %s9
  $region7: #{mono_sceneflow_decoder_lstm.9} parent=0 // loop_footer_branch
    %8 = sbr.rel target = $region3
  $region8: #{mono_sceneflow_decoder_lstm.9} parent=0 // loop_exit
    _

// kernel: mono_sceneflow_decoder_lstm.11
$region0: #{mono_sceneflow_decoder_lstm.11}
  #allocation0 [shape = 'u32[]', space=smem, size = 0x4, offset = 0x4, fixed_abs, tag = 'smem constant byte address 0x4 - core index']
  #allocation1 [shape = 'u32[144,128]{1,0:T(1,128)}', space=vmem, size = 0x12000, scoped, tag = 'internal scratch']
  %s0 = inlined_call_operand.vmem [shape: bf16[2,864,256], index: 0, kind: input, shape index: {}]
  %s1 = inlined_call_operand.vmem [shape: bf16[128,864], index: 1, kind: input, shape index: {}]
  %s2 = inlined_call_operand.vmem [shape: f32[128,1], index: 2, kind: input, shape index: {}]
  %s3 = inlined_call_operand.vmem [shape: f32[2,128,256], index: 3, kind: output, shape index: {}]
  %s4 = sld [smem:[#allocation0]]
  $region45: #{mono_sceneflow_decoder_lstm.11} parent=0
    _
  %s6 = ssub.s32 1, %s4
  %s7 = scalar_select 0, %s6, %s4
  loop: start=0, step=1, limit=4
  $region2: #{mono_sceneflow_decoder_lstm.11} parent=0 // loop_pre_header
    _
  $region3: #{mono_sceneflow_decoder_lstm.11} parent=0 // loop_header
    %s9 = sphi 0, %s13
    %p10 = scmp.ge.s32.totalorder %s9, 4
    %s16 = sphi 0, %s35
    %s17 = sphi 0, %s31
    %s18 = sphi 0, %s27
    %s19 = sphi 0, %s16
    %s20 = sphi 0, %s17
    %s21 = sphi 0, %s18
    %s22 = sphi 0, %s19
    %s23 = sphi 0, %s20
    %s24 = sphi 0, %s21
    %s40 = sphi 0, %s42
    %s43 = sphi 0, %s40
    %s44 = sphi 0, %s43
    %s60 = sphi 0, %s44
    %s66 = sphi 0, %s68
    %s69 = sphi 0, %s66
    %s70 = sphi 0, %s69
    %s86 = sphi 0, %s70
    %s92 = sphi 0, %s94
    %s95 = sphi 0, %s92
    %s96 = sphi 0, %s95
    %s112 = sphi 0, %s96
    %s122 = sphi 0, %s124
    %s125 = sphi 0, %s122
    %s126 = sphi 0, %s125
    %s142 = sphi 0, %s126
  $region4: #{mono_sceneflow_decoder_lstm.11} parent=0 // loop_header_branch
    %12 = sbr.rel (%p10) target = $region8
  $region5: #{mono_sceneflow_decoder_lstm.11} parent=0 // loop_body
    %s14 = ssub.s32 %s9, 1
    %s15 = ssub.s32 %s9, 2
    %s25 = sadd.s32 1, %s18
    %p26 = scmp.ge.s32.totalorder %s25, 1
    %s27 = scalar_select %p26, 0, %s25
    %s28 = sadd.s32 1, %s17
    %s29 = scalar_select %p26, %s28, %s17
    %p30 = scmp.ge.s32.totalorder %s29, 1
    %s31 = scalar_select %p30, 0, %s29
    %s32 = sadd.s32 1, %s16
    %s33 = scalar_select %p30, %s32, %s16
    %p34 = scmp.ge.s32.totalorder %s33, 2
    %s35 = scalar_select %p34, 0, %s33
    %s36 = ssub.s32 %s16, %s35
    %s37 = ssub.s32 %s18, %s27
    %s38 = sor.u32 %s36, %s37
    %p39 = scmp.eq.s32.totalorder %s38, 0
    %s41 = sadd.s32 %s40, 1
    %s42 = scalar_select %p39, %s40, %s41
    %p45 = pneg %p39
    %p46 = scmp.eq.s32.totalorder %s9, 1
    %p47 = por %p45, %p46
    %p48 = scmp.ne.s32.totalorder %s40, %s43
    %p49 = scmp.eq.s32.totalorder %s9, 0
    %p50 = por %p48, %p49
    %p51 = scmp.ne.s32.totalorder %s40, %s43
    %p52 = scmp.eq.s32.totalorder %s14, 1
    %p53 = por %p51, %p52
    %p54 = scmp.ne.s32.totalorder %s43, %s44
    %p55 = scmp.eq.s32.totalorder %s14, 0
    %p56 = por %p54, %p55
    %p57 = scmp.ne.s32.totalorder %s43, %s44
    %p58 = scmp.eq.s32.totalorder %s15, 1
    %p59 = por %p57, %p58
    %p61 = scmp.ne.s32.totalorder %s44, %s60
    %p62 = scmp.eq.s32.totalorder %s15, 0
    %p63 = por %p61, %p62
    %s64 = ssub.s32 %s17, %s31
    %p65 = scmp.eq.s32.totalorder %s64, 0
    %s67 = sadd.s32 %s66, 1
    %s68 = scalar_select %p65, %s66, %s67
    %p71 = pneg %p65
    %p72 = scmp.eq.s32.totalorder %s9, 1
    %p73 = por %p71, %p72
    %p74 = scmp.ne.s32.totalorder %s66, %s69
    %p75 = scmp.eq.s32.totalorder %s9, 0
    %p76 = por %p74, %p75
    %p77 = scmp.ne.s32.totalorder %s66, %s69
    %p78 = scmp.eq.s32.totalorder %s14, 1
    %p79 = por %p77, %p78
    %p80 = scmp.ne.s32.totalorder %s69, %s70
    %p81 = scmp.eq.s32.totalorder %s14, 0
    %p82 = por %p80, %p81
    %p83 = scmp.ne.s32.totalorder %s69, %s70
    %p84 = scmp.eq.s32.totalorder %s15, 1
    %p85 = por %p83, %p84
    %p87 = scmp.ne.s32.totalorder %s70, %s86
    %p88 = scmp.eq.s32.totalorder %s15, 0
    %p89 = por %p87, %p88
    %s90 = ssub.s32 %s17, %s31
    %p91 = scmp.eq.s32.totalorder %s90, 0
    %s93 = sadd.s32 %s92, 1
    %s94 = scalar_select %p91, %s92, %s93
    %p97 = pneg %p91
    %p98 = scmp.eq.s32.totalorder %s9, 1
    %p99 = por %p97, %p98
    %p100 = scmp.ne.s32.totalorder %s92, %s95
    %p101 = scmp.eq.s32.totalorder %s9, 0
    %p102 = por %p100, %p101
    %p103 = scmp.ne.s32.totalorder %s92, %s95
    %p104 = scmp.eq.s32.totalorder %s14, 1
    %p105 = por %p103, %p104
    %p106 = scmp.ne.s32.totalorder %s95, %s96
    %p107 = scmp.eq.s32.totalorder %s14, 0
    %p108 = por %p106, %p107
    %p109 = scmp.ne.s32.totalorder %s95, %s96
    %p110 = scmp.eq.s32.totalorder %s15, 1
    %p111 = por %p109, %p110
    %p113 = scmp.ne.s32.totalorder %s96, %s112
    %p114 = scmp.eq.s32.totalorder %s15, 0
    %p115 = por %p113, %p114
    %s116 = ssub.s32 %s16, %s35
    %s117 = ssub.s32 %s17, %s31
    %s118 = sor.u32 %s116, %s117
    %s119 = ssub.s32 %s18, %s27
    %s120 = sor.u32 %s118, %s119
    %p121 = scmp.eq.s32.totalorder %s120, 0
    %s123 = sadd.s32 %s122, 1
    %s124 = scalar_select %p121, %s122, %s123
    %p127 = pneg %p121
    %p128 = scmp.eq.s32.totalorder %s9, 1
    %p129 = por %p127, %p128
    %p130 = scmp.ne.s32.totalorder %s122, %s125
    %p131 = scmp.eq.s32.totalorder %s9, 0
    %p132 = por %p130, %p131
    %p133 = scmp.ne.s32.totalorder %s122, %s125
    %p134 = scmp.eq.s32.totalorder %s14, 1
    %p135 = por %p133, %p134
    %p136 = scmp.ne.s32.totalorder %s125, %s126
    %p137 = scmp.eq.s32.totalorder %s14, 0
    %p138 = por %p136, %p137
    %p139 = scmp.ne.s32.totalorder %s125, %s126
    %p140 = scmp.eq.s32.totalorder %s15, 1
    %p141 = por %p139, %p140
    %p143 = scmp.ne.s32.totalorder %s126, %s142
    %p144 = scmp.eq.s32.totalorder %s15, 0
    %p145 = por %p143, %p144
    %p146 = scmp.le.s32.totalorder 1, %s9
    %p147 = scmp.lt.s32.totalorder %s9, 3
    %p148 = pnand %p146, %p147
    %p149 = pneg %p148
    // Predicated region
    $region9: #{mono_sceneflow_decoder_lstm.11} parent=5 // pred_check
      _
    $region10: #{mono_sceneflow_decoder_lstm.11} parent=5 // pred_check_branch
      %151 = sbr.rel (%p148) target = $region12
    $region11: #{mono_sceneflow_decoder_lstm.11} parent=5 // pred_region
      %s152 = ssub.s32 %s9, 1
      // Predicated region
      $region13: #{mono_sceneflow_decoder_lstm.11} parent=11 // pred_check
        %p153 = pneg %p82
      $region14: #{mono_sceneflow_decoder_lstm.11} parent=11 // pred_check_branch
        %155 = sbr.rel (%p153) target = $region16
      $region15: #{mono_sceneflow_decoder_lstm.11} parent=11 // pred_region
        %s156 = smul.u32 16, %s20
        %p157 = scmp.lt.s32.totalorder %s156, 15
        %s158 = scalar_select %p157, %s156, 15
        %s159 = smul.addr %s158, 7
        %s160 = smul.addr %s159, 4
        %s161 = scalar_lea.vmem %s1, %s160
        %s162 = smul.u32 16, %s20
      $region16: #{mono_sceneflow_decoder_lstm.11} parent=11 // pred_fallthru
        _
      // Predicated region
      $region17: #{mono_sceneflow_decoder_lstm.11} parent=11 // pred_check
        %p163 = pneg %p108
      $region18: #{mono_sceneflow_decoder_lstm.11} parent=11 // pred_check_branch
        %165 = sbr.rel (%p163) target = $region20
      $region19: #{mono_sceneflow_decoder_lstm.11} parent=11 // pred_region
        %s166 = smul.u32 16, %s20
        %p167 = scmp.lt.s32.totalorder %s166, 15
        %s168 = scalar_select %p167, %s166, 15
        %s169 = smul.addr %s168, 8
        %s170 = scalar_lea.vmem %s2, %s169
        %s171 = smul.u32 16, %s20
      $region20: #{mono_sceneflow_decoder_lstm.11} parent=11 // pred_fallthru
        _
    $region12: #{mono_sceneflow_decoder_lstm.11} parent=5 // pred_fallthru
      _
    %p172 = scmp.lt.s32.totalorder %s9, 2
    // Predicated region
    $region21: #{mono_sceneflow_decoder_lstm.11} parent=5 // pred_check
      %p173 = pneg %p172
    $region22: #{mono_sceneflow_decoder_lstm.11} parent=5 // pred_check_branch
      %175 = sbr.rel (%p173) target = $region24
    $region23: #{mono_sceneflow_decoder_lstm.11} parent=5 // pred_region
      // Predicated region
      $region25: #{mono_sceneflow_decoder_lstm.11} parent=23 // pred_check
        %p176 = pneg %p50
      $region26: #{mono_sceneflow_decoder_lstm.11} parent=23 // pred_check_branch
        %178 = sbr.rel (%p176) target = $region28
      $region27: #{mono_sceneflow_decoder_lstm.11} parent=23 // pred_region
        %s179 = smul.u32 2, %s18
        %p180 = scmp.lt.s32.totalorder %s16, 1
        %s181 = scalar_select %p180, %s16, 1
        %p182 = scmp.lt.s32.totalorder %s179, 1
        %s183 = scalar_select %p182, %s179, 1
        %s184 = smul.addr %s181, 216
        %s185 = sadd.s32 %s183, %s184
        %s186 = smul.addr %s185, 4
        %s187 = scalar_lea.vmem %s0, %s186
        %s188 = smul.u32 2, %s18
      $region28: #{mono_sceneflow_decoder_lstm.11} parent=23 // pred_fallthru
        _
    $region24: #{mono_sceneflow_decoder_lstm.11} parent=5 // pred_fallthru
      _
    %p189 = scmp.le.s32.totalorder 1, %s9
    %p190 = scmp.lt.s32.totalorder %s9, 3
    %p191 = pnand %p189, %p190
    %p192 = pneg %p191
    // Predicated region
    $region29: #{mono_sceneflow_decoder_lstm.11} parent=5 // pred_check
      _
    $region30: #{mono_sceneflow_decoder_lstm.11} parent=5 // pred_check_branch
      %194 = sbr.rel (%p191) target = $region32
    $region31: #{mono_sceneflow_decoder_lstm.11} parent=5 // pred_region
      %s195 = ssub.s32 %s9, 1
      %s196 = smul.u32 2, %s21
      %p197 = scmp.lt.s32.totalorder %s19, 1
      %s198 = scalar_select %p197, %s19, 1
      %p199 = scmp.lt.s32.totalorder %s196, 1
      %s200 = scalar_select %p199, %s196, 1
      %s201 = smul.addr %s198, 216
      %s202 = sadd.s32 %s200, %s201
      %s203 = smul.addr %s202, 4
      %s204 = scalar_lea.vmem %s0, %s203
      %p205 = pneg %p56
      %p206 = pneg %p53
      %s207 = smul.u32 16, %s20
      %p208 = scmp.lt.s32.totalorder %s207, 15
      %s209 = scalar_select %p208, %s207, 15
      %s210 = smul.addr %s209, 7
      %s211 = smul.addr %s210, 4
      %s212 = scalar_lea.vmem %s1, %s211
      %p213 = pneg %p82
      %p214 = pneg %p79
      %s215 = smul.u32 16, %s20
      %p216 = scmp.lt.s32.totalorder %s215, 15
      %s217 = scalar_select %p216, %s215, 15
      %s218 = smul.addr %s217, 8
      %s219 = scalar_lea.vmem %s2, %s218
      %p220 = pneg %p108
      %p221 = pneg %p105
      %p222 = pneg %p138
      %p223 = pneg %p135
      %s224 = smul.u32 16, %s20
      %s225 = smul.u32 2, %s21
      %p226 = scmp.lt.s32.totalorder %s19, 1
      %s227 = scalar_select %p226, %s19, 1
      %p228 = scmp.lt.s32.totalorder %s224, 15
      %s229 = scalar_select %p228, %s224, 15
      %p230 = scmp.lt.s32.totalorder %s225, 1
      %s231 = scalar_select %p230, %s225, 1
      %s232 = smul.addr %s229, 2
      %s233 = sadd.s32 %s231, %s232
      %s234 = smul.addr %s227, 32
      %s235 = sadd.s32 %s233, %s234
      %s236 = smul.addr %s235, 8
      %s237 = scalar_lea.vmem %s3, %s236
      %s238 = smul.u32 2, %s21
      %p239 = scmp.lt.s32.totalorder %s19, 1
      %s240 = scalar_select %p239, %s19, 1
      %p241 = scmp.lt.s32.totalorder %s238, 1
      %s242 = scalar_select %p241, %s238, 1
      %s243 = smul.addr %s240, 216
      %s244 = sadd.s32 %s242, %s243
      %s245 = smul.addr %s244, 4
      %s246 = scalar_lea.vmem %s0, %s245
      %s247 = smul.u32 2, %s21
      %s248 = smul.u32 16, %s20
      %p249 = scmp.lt.s32.totalorder %s248, 15
      %s250 = scalar_select %p249, %s248, 15
      %s251 = smul.addr %s250, 7
      %s252 = smul.addr %s251, 4
      %s253 = scalar_lea.vmem %s1, %s252
      %s254 = smul.u32 16, %s20
      %s255 = smul.u32 16, %s20
      %p256 = scmp.lt.s32.totalorder %s255, 15
      %s257 = scalar_select %p256, %s255, 15
      %s258 = smul.addr %s257, 8
      %s259 = scalar_lea.vmem %s2, %s258
      %s260 = smul.u32 16, %s20
      %s261 = smul.u32 16, %s20
      %s262 = smul.u32 2, %s21
      %p263 = scmp.lt.s32.totalorder %s19, 1
      %s264 = scalar_select %p263, %s19, 1
      %p265 = scmp.lt.s32.totalorder %s261, 15
      %s266 = scalar_select %p265, %s261, 15
      %p267 = scmp.lt.s32.totalorder %s262, 1
      %s268 = scalar_select %p267, %s262, 1
      %s269 = smul.addr %s266, 2
      %s270 = sadd.s32 %s268, %s269
      %s271 = smul.addr %s264, 32
      %s272 = sadd.s32 %s270, %s271
      %s273 = smul.addr %s272, 8
      %s274 = scalar_lea.vmem %s3, %s273
      %s275 = smul.u32 16, %s20
      %s276 = smul.u32 2, %s21
      %v278 = vld [vmem:[%s253] sm:$0xff]
      %v279 = vld [vmem:[%s253 + $0x8] sm:$0xff]
      %v280 = vld [vmem:[%s253 + $0x10] sm:$0xff]
      %v281 = vld [vmem:[%s253 + $0x18] sm:$0xf]
      %v282 = vld [vmem:[%s253 + $0x1c] sm:$0xff]
      %v283 = vld [vmem:[%s253 + $0x24] sm:$0xff]
      %v284 = vld [vmem:[%s253 + $0x2c] sm:$0xff]
      %v285 = vld [vmem:[%s253 + $0x34] sm:$0xf]
      %v286 = vld [vmem:[%s253 + $0x38] sm:$0xff]
      %v287 = vld [vmem:[%s253 + $0x40] sm:$0xff]
      %v288 = vld [vmem:[%s253 + $0x48] sm:$0xff]
      %v289 = vld [vmem:[%s253 + $0x50] sm:$0xf]
      %v290 = vld [vmem:[%s253 + $0x54] sm:$0xff]
      %v291 = vld [vmem:[%s253 + $0x5c] sm:$0xff]
      %v292 = vld [vmem:[%s253 + $0x64] sm:$0xff]
      %v293 = vld [vmem:[%s253 + $0x6c] sm:$0xf]
      %v294 = vld [vmem:[%s253 + $0x70] sm:$0xff]
      %v295 = vld [vmem:[%s253 + $0x78] sm:$0xff]
      %v296 = vld [vmem:[%s253 + $0x80] sm:$0xff]
      %v297 = vld [vmem:[%s253 + $0x88] sm:$0xf]
      %v298 = vld [vmem:[%s253 + $0x8c] sm:$0xff]
      %v299 = vld [vmem:[%s253 + $0x94] sm:$0xff]
      %v300 = vld [vmem:[%s253 + $0x9c] sm:$0xff]
      %v301 = vld [vmem:[%s253 + $0xa4] sm:$0xf]
      %v302 = vld [vmem:[%s253 + $0xa8] sm:$0xff]
      %v303 = vld [vmem:[%s253 + $0xb0] sm:$0xff]
      %v304 = vld [vmem:[%s253 + $0xb8] sm:$0xff]
      %v305 = vld [vmem:[%s253 + $0xc0] sm:$0xf]
      %v306 = vld [vmem:[%s253 + $0xc4] sm:$0xff]
      %v307 = vld [vmem:[%s253 + $0xcc] sm:$0xff]
      %v308 = vld [vmem:[%s253 + $0xd4] sm:$0xff]
      %v309 = vld [vmem:[%s253 + $0xdc] sm:$0xf]
      %v310 = vld [vmem:[%s253 + $0xe0] sm:$0xff]
      %v311 = vld [vmem:[%s253 + $0xe8] sm:$0xff]
      %v312 = vld [vmem:[%s253 + $0xf0] sm:$0xff]
      %v313 = vld [vmem:[%s253 + $0xf8] sm:$0xf]
      %v314 = vld [vmem:[%s253 + $0xfc] sm:$0xff]
      %v315 = vld [vmem:[%s253 + $0x104] sm:$0xff]
      %v316 = vld [vmem:[%s253 + $0x10c] sm:$0xff]
      %v317 = vld [vmem:[%s253 + $0x114] sm:$0xf]
      %v318 = vld [vmem:[%s253 + $0x118] sm:$0xff]
      %v319 = vld [vmem:[%s253 + $0x120] sm:$0xff]
      %v320 = vld [vmem:[%s253 + $0x128] sm:$0xff]
      %v321 = vld [vmem:[%s253 + $0x130] sm:$0xf]
      %v322 = vld [vmem:[%s253 + $0x134] sm:$0xff]
      %v323 = vld [vmem:[%s253 + $0x13c] sm:$0xff]
      %v324 = vld [vmem:[%s253 + $0x144] sm:$0xff]
      %v325 = vld [vmem:[%s253 + $0x14c] sm:$0xf]
      %v326 = vld [vmem:[%s253 + $0x150] sm:$0xff]
      %v327 = vld [vmem:[%s253 + $0x158] sm:$0xff]
      %v328 = vld [vmem:[%s253 + $0x160] sm:$0xff]
      %v329 = vld [vmem:[%s253 + $0x168] sm:$0xf]
      %v330 = vld [vmem:[%s253 + $0x16c] sm:$0xff]
      %v331 = vld [vmem:[%s253 + $0x174] sm:$0xff]
      %v332 = vld [vmem:[%s253 + $0x17c] sm:$0xff]
      %v333 = vld [vmem:[%s253 + $0x184] sm:$0xf]
      %v334 = vld [vmem:[%s253 + $0x188] sm:$0xff]
      %v335 = vld [vmem:[%s253 + $0x190] sm:$0xff]
      %v336 = vld [vmem:[%s253 + $0x198] sm:$0xff]
      %v337 = vld [vmem:[%s253 + $0x1a0] sm:$0xf]
      %v338 = vld [vmem:[%s253 + $0x1a4] sm:$0xff]
      %v339 = vld [vmem:[%s253 + $0x1ac] sm:$0xff]
      %v340 = vld [vmem:[%s253 + $0x1b4] sm:$0xff]
      %v341 = vld [vmem:[%s253 + $0x1bc] sm:$0xf]
      %v342 = vld [vmem:[%s246] sm:$0xff]
      %v343 = vld [vmem:[%s246 + $0x8] sm:$0xff]
      %v344 = vld [vmem:[%s246 + $0x10] sm:$0xff]
      %v345 = vld [vmem:[%s246 + $0x18] sm:$0xff]
      %v346 = vld [vmem:[%s246 + $0x20] sm:$0xff]
      %v347 = vld [vmem:[%s246 + $0x28] sm:$0xff]
      %v348 = vld [vmem:[%s246 + $0x30] sm:$0xff]
      %v349 = vld [vmem:[%s246 + $0x38] sm:$0xff]
      %v350 = vld [vmem:[%s246 + $0x40] sm:$0xff]
      %v351 = vld [vmem:[%s246 + $0x48] sm:$0xff]
      %v352 = vld [vmem:[%s246 + $0x50] sm:$0xff]
      %v353 = vld [vmem:[%s246 + $0x58] sm:$0xff]
      %v354 = vld [vmem:[%s246 + $0x60] sm:$0xff]
      %v355 = vld [vmem:[%s246 + $0x68] sm:$0xff]
      %v356 = vld [vmem:[%s246 + $0x70] sm:$0xff]
      %v357 = vld [vmem:[%s246 + $0x78] sm:$0xff]
      %v358 = vld [vmem:[%s246 + $0x80] sm:$0xff]
      %v359 = vld [vmem:[%s246 + $0x88] sm:$0xff]
      %v360 = vld [vmem:[%s246 + $0x90] sm:$0xff]
      %v361 = vld [vmem:[%s246 + $0x98] sm:$0xff]
      %v362 = vld [vmem:[%s246 + $0xa0] sm:$0xff]
      %v363 = vld [vmem:[%s246 + $0xa8] sm:$0xff]
      %v364 = vld [vmem:[%s246 + $0xb0] sm:$0xff]
      %v365 = vld [vmem:[%s246 + $0xb8] sm:$0xff]
      %v366 = vld [vmem:[%s246 + $0xc0] sm:$0xff]
      %v367 = vld [vmem:[%s246 + $0xc8] sm:$0xff]
      %v368 = vld [vmem:[%s246 + $0xd0] sm:$0xff]
      %v369 = vld [vmem:[%s246 + $0xd8] sm:$0xff]
      %v370 = vld [vmem:[%s246 + $0xe0] sm:$0xff]
      %v371 = vld [vmem:[%s246 + $0xe8] sm:$0xff]
      %v372 = vld [vmem:[%s246 + $0xf0] sm:$0xff]
      %v373 = vld [vmem:[%s246 + $0xf8] sm:$0xff]
      %v374 = vld [vmem:[%s246 + $0x100] sm:$0xff]
      %v375 = vld [vmem:[%s246 + $0x108] sm:$0xff]
      %v376 = vld [vmem:[%s246 + $0x110] sm:$0xff]
      %v377 = vld [vmem:[%s246 + $0x118] sm:$0xff]
      %v378 = vld [vmem:[%s246 + $0x120] sm:$0xff]
      %v379 = vld [vmem:[%s246 + $0x128] sm:$0xff]
      %v380 = vld [vmem:[%s246 + $0x130] sm:$0xff]
      %v381 = vld [vmem:[%s246 + $0x138] sm:$0xff]
      %v382 = vld [vmem:[%s246 + $0x140] sm:$0xff]
      %v383 = vld [vmem:[%s246 + $0x148] sm:$0xff]
      %v384 = vld [vmem:[%s246 + $0x150] sm:$0xff]
      %v385 = vld [vmem:[%s246 + $0x158] sm:$0xff]
      %v386 = vld [vmem:[%s246 + $0x160] sm:$0xff]
      %v387 = vld [vmem:[%s246 + $0x168] sm:$0xff]
      %v388 = vld [vmem:[%s246 + $0x170] sm:$0xff]
      %v389 = vld [vmem:[%s246 + $0x178] sm:$0xff]
      %v390 = vld [vmem:[%s246 + $0x180] sm:$0xff]
      %v391 = vld [vmem:[%s246 + $0x188] sm:$0xff]
      %v392 = vld [vmem:[%s246 + $0x190] sm:$0xff]
      %v393 = vld [vmem:[%s246 + $0x198] sm:$0xff]
      %v394 = vld [vmem:[%s246 + $0x1a0] sm:$0xff]
      %v395 = vld [vmem:[%s246 + $0x1a8] sm:$0xff]
      %v396 = vld [vmem:[%s246 + $0x1b0] sm:$0xff]
      %v397 = vld [vmem:[%s246 + $0x1b8] sm:$0xff]
      %v398 = vld [vmem:[%s246 + $0x1c0] sm:$0xff]
      %v399 = vld [vmem:[%s246 + $0x1c8] sm:$0xff]
      %v400 = vld [vmem:[%s246 + $0x1d0] sm:$0xff]
      %v401 = vld [vmem:[%s246 + $0x1d8] sm:$0xff]
      %v402 = vld [vmem:[%s246 + $0x1e0] sm:$0xff]
      %v403 = vld [vmem:[%s246 + $0x1e8] sm:$0xff]
      %v404 = vld [vmem:[%s246 + $0x1f0] sm:$0xff]
      %v405 = vld [vmem:[%s246 + $0x1f8] sm:$0xff]
      %v406 = vld [vmem:[%s246 + $0x200] sm:$0xff]
      %v407 = vld [vmem:[%s246 + $0x208] sm:$0xff]
      %v408 = vld [vmem:[%s246 + $0x210] sm:$0xff]
      %v409 = vld [vmem:[%s246 + $0x218] sm:$0xff]
      %v410 = vld [vmem:[%s246 + $0x220] sm:$0xff]
      %v411 = vld [vmem:[%s246 + $0x228] sm:$0xff]
      %v412 = vld [vmem:[%s246 + $0x230] sm:$0xff]
      %v413 = vld [vmem:[%s246 + $0x238] sm:$0xff]
      %v414 = vld [vmem:[%s246 + $0x240] sm:$0xff]
      %v415 = vld [vmem:[%s246 + $0x248] sm:$0xff]
      %v416 = vld [vmem:[%s246 + $0x250] sm:$0xff]
      %v417 = vld [vmem:[%s246 + $0x258] sm:$0xff]
      %v418 = vld [vmem:[%s246 + $0x260] sm:$0xff]
      %v419 = vld [vmem:[%s246 + $0x268] sm:$0xff]
      %v420 = vld [vmem:[%s246 + $0x270] sm:$0xff]
      %v421 = vld [vmem:[%s246 + $0x278] sm:$0xff]
      %v422 = vld [vmem:[%s246 + $0x280] sm:$0xff]
      %v423 = vld [vmem:[%s246 + $0x288] sm:$0xff]
      %v424 = vld [vmem:[%s246 + $0x290] sm:$0xff]
      %v425 = vld [vmem:[%s246 + $0x298] sm:$0xff]
      %v426 = vld [vmem:[%s246 + $0x2a0] sm:$0xff]
      %v427 = vld [vmem:[%s246 + $0x2a8] sm:$0xff]
      %v428 = vld [vmem:[%s246 + $0x2b0] sm:$0xff]
      %v429 = vld [vmem:[%s246 + $0x2b8] sm:$0xff]
      %v430 = vld [vmem:[%s246 + $0x2c0] sm:$0xff]
      %v431 = vld [vmem:[%s246 + $0x2c8] sm:$0xff]
      %v432 = vld [vmem:[%s246 + $0x2d0] sm:$0xff]
      %v433 = vld [vmem:[%s246 + $0x2d8] sm:$0xff]
      %v434 = vld [vmem:[%s246 + $0x2e0] sm:$0xff]
      %v435 = vld [vmem:[%s246 + $0x2e8] sm:$0xff]
      %v436 = vld [vmem:[%s246 + $0x2f0] sm:$0xff]
      %v437 = vld [vmem:[%s246 + $0x2f8] sm:$0xff]
      %v438 = vld [vmem:[%s246 + $0x300] sm:$0xff]
      %v439 = vld [vmem:[%s246 + $0x308] sm:$0xff]
      %v440 = vld [vmem:[%s246 + $0x310] sm:$0xff]
      %v441 = vld [vmem:[%s246 + $0x318] sm:$0xff]
      %v442 = vld [vmem:[%s246 + $0x320] sm:$0xff]
      %v443 = vld [vmem:[%s246 + $0x328] sm:$0xff]
      %v444 = vld [vmem:[%s246 + $0x330] sm:$0xff]
      %v445 = vld [vmem:[%s246 + $0x338] sm:$0xff]
      %v446 = vld [vmem:[%s246 + $0x340] sm:$0xff]
      %v447 = vld [vmem:[%s246 + $0x348] sm:$0xff]
      %v448 = vld [vmem:[%s246 + $0x350] sm:$0xff]
      %v449 = vld [vmem:[%s246 + $0x358] sm:$0xff]
      %v450 = vld [vmem:[%s259] sm:$0xff]
      %v451 = vld [vmem:[%s259 + $0x8] sm:$0xff]
      %v452 = vld [vmem:[%s259 + $0x10] sm:$0xff]
      %v453 = vld [vmem:[%s259 + $0x18] sm:$0xff]
      %v454 = vld [vmem:[%s259 + $0x20] sm:$0xff]
      %v455 = vld [vmem:[%s259 + $0x28] sm:$0xff]
      %v456 = vld [vmem:[%s259 + $0x30] sm:$0xff]
      %v457 = vld [vmem:[%s259 + $0x38] sm:$0xff]
      %v458 = vld [vmem:[%s259 + $0x40] sm:$0xff]
      %v459 = vld [vmem:[%s259 + $0x48] sm:$0xff]
      %v460 = vld [vmem:[%s259 + $0x50] sm:$0xff]
      %v461 = vld [vmem:[%s259 + $0x58] sm:$0xff]
      %v462 = vld [vmem:[%s259 + $0x60] sm:$0xff]
      %v463 = vld [vmem:[%s259 + $0x68] sm:$0xff]
      %v464 = vld [vmem:[%s259 + $0x70] sm:$0xff]
      %v465 = vld [vmem:[%s259 + $0x78] sm:$0xff]
      %467 = vset.pattern.permute.xlu0 0
      %468 = vperm.xlu0 %467, %v450
      %v469 = vpop.permute.xlu0 %468
      %472 = vset.pattern.permute.xlu0 0
      %473 = vperm.xlu0 %472, %v451
      %v474 = vpop.permute.xlu0 %473
      %477 = vset.pattern.permute.xlu0 0
      %478 = vperm.xlu0 %477, %v452
      %v479 = vpop.permute.xlu0 %478
      %482 = vset.pattern.permute.xlu0 0
      %483 = vperm.xlu0 %482, %v453
      %v484 = vpop.permute.xlu0 %483
      %487 = vset.pattern.permute.xlu0 0
      %488 = vperm.xlu0 %487, %v454
      %v489 = vpop.permute.xlu0 %488
      %492 = vset.pattern.permute.xlu0 0
      %493 = vperm.xlu0 %492, %v455
      %v494 = vpop.permute.xlu0 %493
      %497 = vset.pattern.permute.xlu0 0
      %498 = vperm.xlu0 %497, %v456
      %v499 = vpop.permute.xlu0 %498
      %502 = vset.pattern.permute.xlu0 0
      %503 = vperm.xlu0 %502, %v457
      %v504 = vpop.permute.xlu0 %503
      %507 = vset.pattern.permute.xlu0 0
      %508 = vperm.xlu0 %507, %v458
      %v509 = vpop.permute.xlu0 %508
      %512 = vset.pattern.permute.xlu0 0
      %513 = vperm.xlu0 %512, %v459
      %v514 = vpop.permute.xlu0 %513
      %517 = vset.pattern.permute.xlu0 0
      %518 = vperm.xlu0 %517, %v460
      %v519 = vpop.permute.xlu0 %518
      %522 = vset.pattern.permute.xlu0 0
      %523 = vperm.xlu0 %522, %v461
      %v524 = vpop.permute.xlu0 %523
      %527 = vset.pattern.permute.xlu0 0
      %528 = vperm.xlu0 %527, %v462
      %v529 = vpop.permute.xlu0 %528
      %532 = vset.pattern.permute.xlu0 0
      %533 = vperm.xlu0 %532, %v463
      %v534 = vpop.permute.xlu0 %533
      %537 = vset.pattern.permute.xlu0 0
      %538 = vperm.xlu0 %537, %v464
      %v539 = vpop.permute.xlu0 %538
      %542 = vset.pattern.permute.xlu0 0
      %543 = vperm.xlu0 %542, %v465
      %v544 = vpop.permute.xlu0 %543
      %v610 = vunpack.c.l.b16 %v278
      %v611 = vunpack.c.h.b16 %v278
      %v612 = vunpack.c.l.b16 %v279
      %v613 = vunpack.c.h.b16 %v279
      %v614 = vunpack.c.l.b16 %v280
      %v615 = vunpack.c.h.b16 %v280
      %v616 = vunpack.c.l.b16 %v281
      %v617 = vunpack.c.l.b16 %v282
      %v618 = vunpack.c.h.b16 %v282
      %v619 = vunpack.c.l.b16 %v283
      %v620 = vunpack.c.h.b16 %v283
      %v621 = vunpack.c.l.b16 %v284
      %v622 = vunpack.c.h.b16 %v284
      %v623 = vunpack.c.l.b16 %v285
      %v624 = vunpack.c.l.b16 %v286
      %v625 = vunpack.c.h.b16 %v286
      %v626 = vunpack.c.l.b16 %v287
      %v627 = vunpack.c.h.b16 %v287
      %v628 = vunpack.c.l.b16 %v288
      %v629 = vunpack.c.h.b16 %v288
      %v630 = vunpack.c.l.b16 %v289
      %v631 = vunpack.c.l.b16 %v290
      %v632 = vunpack.c.h.b16 %v290
      %v633 = vunpack.c.l.b16 %v291
      %v634 = vunpack.c.h.b16 %v291
      %v635 = vunpack.c.l.b16 %v292
      %v636 = vunpack.c.h.b16 %v292
      %v637 = vunpack.c.l.b16 %v293
      %v638 = vunpack.c.l.b16 %v294
      %v639 = vunpack.c.h.b16 %v294
      %v640 = vunpack.c.l.b16 %v295
      %v641 = vunpack.c.h.b16 %v295
      %v642 = vunpack.c.l.b16 %v296
      %v643 = vunpack.c.h.b16 %v296
      %v644 = vunpack.c.l.b16 %v297
      %v645 = vunpack.c.l.b16 %v298
      %v646 = vunpack.c.h.b16 %v298
      %v647 = vunpack.c.l.b16 %v299
      %v648 = vunpack.c.h.b16 %v299
      %v649 = vunpack.c.l.b16 %v300
      %v650 = vunpack.c.h.b16 %v300
      %v651 = vunpack.c.l.b16 %v301
      %v652 = vunpack.c.l.b16 %v302
      %v653 = vunpack.c.h.b16 %v302
      %v654 = vunpack.c.l.b16 %v303
      %v655 = vunpack.c.h.b16 %v303
      %v656 = vunpack.c.l.b16 %v304
      %v657 = vunpack.c.h.b16 %v304
      %v658 = vunpack.c.l.b16 %v305
      %v659 = vunpack.c.l.b16 %v306
      %v660 = vunpack.c.h.b16 %v306
      %v661 = vunpack.c.l.b16 %v307
      %v662 = vunpack.c.h.b16 %v307
      %v663 = vunpack.c.l.b16 %v308
      %v664 = vunpack.c.h.b16 %v308
      %v665 = vunpack.c.l.b16 %v309
      %v666 = vunpack.c.l.b16 %v310
      %v667 = vunpack.c.h.b16 %v310
      %v668 = vunpack.c.l.b16 %v311
      %v669 = vunpack.c.h.b16 %v311
      %v670 = vunpack.c.l.b16 %v312
      %v671 = vunpack.c.h.b16 %v312
      %v672 = vunpack.c.l.b16 %v313
      %v673 = vunpack.c.l.b16 %v314
      %v674 = vunpack.c.h.b16 %v314
      %v675 = vunpack.c.l.b16 %v315
      %v676 = vunpack.c.h.b16 %v315
      %v677 = vunpack.c.l.b16 %v316
      %v678 = vunpack.c.h.b16 %v316
      %v679 = vunpack.c.l.b16 %v317
      %v680 = vunpack.c.l.b16 %v318
      %v681 = vunpack.c.h.b16 %v318
      %v682 = vunpack.c.l.b16 %v319
      %v683 = vunpack.c.h.b16 %v319
      %v684 = vunpack.c.l.b16 %v320
      %v685 = vunpack.c.h.b16 %v320
      %v686 = vunpack.c.l.b16 %v321
      %v687 = vunpack.c.l.b16 %v322
      %v688 = vunpack.c.h.b16 %v322
      %v689 = vunpack.c.l.b16 %v323
      %v690 = vunpack.c.h.b16 %v323
      %v691 = vunpack.c.l.b16 %v324
      %v692 = vunpack.c.h.b16 %v324
      %v693 = vunpack.c.l.b16 %v325
      %v694 = vunpack.c.l.b16 %v326
      %v695 = vunpack.c.h.b16 %v326
      %v696 = vunpack.c.l.b16 %v327
      %v697 = vunpack.c.h.b16 %v327
      %v698 = vunpack.c.l.b16 %v328
      %v699 = vunpack.c.h.b16 %v328
      %v700 = vunpack.c.l.b16 %v329
      %v701 = vunpack.c.l.b16 %v330
      %v702 = vunpack.c.h.b16 %v330
      %v703 = vunpack.c.l.b16 %v331
      %v704 = vunpack.c.h.b16 %v331
      %v705 = vunpack.c.l.b16 %v332
      %v706 = vunpack.c.h.b16 %v332
      %v707 = vunpack.c.l.b16 %v333
      %v708 = vunpack.c.l.b16 %v334
      %v709 = vunpack.c.h.b16 %v334
      %v710 = vunpack.c.l.b16 %v335
      %v711 = vunpack.c.h.b16 %v335
      %v712 = vunpack.c.l.b16 %v336
      %v713 = vunpack.c.h.b16 %v336
      %v714 = vunpack.c.l.b16 %v337
      %v715 = vunpack.c.l.b16 %v338
      %v716 = vunpack.c.h.b16 %v338
      %v717 = vunpack.c.l.b16 %v339
      %v718 = vunpack.c.h.b16 %v339
      %v719 = vunpack.c.l.b16 %v340
      %v720 = vunpack.c.h.b16 %v340
      %v721 = vunpack.c.l.b16 %v341
      %v722 = vpack.c.b16 %v617, %v610
      %v723 = vpack.c.b16 %v618, %v611
      %v724 = vpack.c.b16 %v619, %v612
      %v725 = vpack.c.b16 %v620, %v613
      %v726 = vpack.c.b16 %v621, %v614
      %v727 = vpack.c.b16 %v622, %v615
      %v728 = vpack.c.b16 %v623, %v616
      %v729 = vpack.c.b16 %v631, %v624
      %v730 = vpack.c.b16 %v632, %v625
      %v731 = vpack.c.b16 %v633, %v626
      %v732 = vpack.c.b16 %v634, %v627
      %v733 = vpack.c.b16 %v635, %v628
      %v734 = vpack.c.b16 %v636, %v629
      %v735 = vpack.c.b16 %v637, %v630
      %v736 = vpack.c.b16 %v645, %v638
      %v737 = vpack.c.b16 %v646, %v639
      %v738 = vpack.c.b16 %v647, %v640
      %v739 = vpack.c.b16 %v648, %v641
      %v740 = vpack.c.b16 %v649, %v642
      %v741 = vpack.c.b16 %v650, %v643
      %v742 = vpack.c.b16 %v651, %v644
      %v743 = vpack.c.b16 %v659, %v652
      %v744 = vpack.c.b16 %v660, %v653
      %v745 = vpack.c.b16 %v661, %v654
      %v746 = vpack.c.b16 %v662, %v655
      %v747 = vpack.c.b16 %v663, %v656
      %v748 = vpack.c.b16 %v664, %v657
      %v749 = vpack.c.b16 %v665, %v658
      %v750 = vpack.c.b16 %v673, %v666
      %v751 = vpack.c.b16 %v674, %v667
      %v752 = vpack.c.b16 %v675, %v668
      %v753 = vpack.c.b16 %v676, %v669
      %v754 = vpack.c.b16 %v677, %v670
      %v755 = vpack.c.b16 %v678, %v671
      %v756 = vpack.c.b16 %v679, %v672
      %v757 = vpack.c.b16 %v687, %v680
      %v758 = vpack.c.b16 %v688, %v681
      %v759 = vpack.c.b16 %v689, %v682
      %v760 = vpack.c.b16 %v690, %v683
      %v761 = vpack.c.b16 %v691, %v684
      %v762 = vpack.c.b16 %v692, %v685
      %v763 = vpack.c.b16 %v693, %v686
      %v764 = vpack.c.b16 %v701, %v694
      %v765 = vpack.c.b16 %v702, %v695
      %v766 = vpack.c.b16 %v703, %v696
      %v767 = vpack.c.b16 %v704, %v697
      %v768 = vpack.c.b16 %v705, %v698
      %v769 = vpack.c.b16 %v706, %v699
      %v770 = vpack.c.b16 %v707, %v700
      %v771 = vpack.c.b16 %v715, %v708
      %v772 = vpack.c.b16 %v716, %v709
      %v773 = vpack.c.b16 %v717, %v710
      %v774 = vpack.c.b16 %v718, %v711
      %v775 = vpack.c.b16 %v719, %v712
      %v776 = vpack.c.b16 %v720, %v713
      %v777 = vpack.c.b16 %v721, %v714
      %v934 = vunpack.c.l.b16 %v342
      %v935 = vunpack.c.h.b16 %v342
      %v936 = vunpack.c.l.b16 %v343
      %v937 = vunpack.c.h.b16 %v343
      %v938 = vunpack.c.l.b16 %v344
      %v939 = vunpack.c.h.b16 %v344
      %v940 = vunpack.c.l.b16 %v345
      %v941 = vunpack.c.h.b16 %v345
      %v942 = vunpack.c.l.b16 %v346
      %v943 = vunpack.c.h.b16 %v346
      %v944 = vunpack.c.l.b16 %v347
      %v945 = vunpack.c.h.b16 %v347
      %v946 = vunpack.c.l.b16 %v348
      %v947 = vunpack.c.h.b16 %v348
      %v948 = vunpack.c.l.b16 %v349
      %v949 = vunpack.c.h.b16 %v349
      %v950 = vunpack.c.l.b16 %v350
      %v951 = vunpack.c.h.b16 %v350
      %v952 = vunpack.c.l.b16 %v351
      %v953 = vunpack.c.h.b16 %v351
      %v954 = vunpack.c.l.b16 %v352
      %v955 = vunpack.c.h.b16 %v352
      %v956 = vunpack.c.l.b16 %v353
      %v957 = vunpack.c.h.b16 %v353
      %v958 = vunpack.c.l.b16 %v354
      %v959 = vunpack.c.h.b16 %v354
      %v960 = vunpack.c.l.b16 %v355
      %v961 = vunpack.c.h.b16 %v355
      %v962 = vunpack.c.l.b16 %v356
      %v963 = vunpack.c.h.b16 %v356
      %v964 = vunpack.c.l.b16 %v357
      %v965 = vunpack.c.h.b16 %v357
      %v966 = vunpack.c.l.b16 %v358
      %v967 = vunpack.c.h.b16 %v358
      %v968 = vunpack.c.l.b16 %v359
      %v969 = vunpack.c.h.b16 %v359
      %v970 = vunpack.c.l.b16 %v360
      %v971 = vunpack.c.h.b16 %v360
      %v972 = vunpack.c.l.b16 %v361
      %v973 = vunpack.c.h.b16 %v361
      %v974 = vunpack.c.l.b16 %v362
      %v975 = vunpack.c.h.b16 %v362
      %v976 = vunpack.c.l.b16 %v363
      %v977 = vunpack.c.h.b16 %v363
      %v978 = vunpack.c.l.b16 %v364
      %v979 = vunpack.c.h.b16 %v364
      %v980 = vunpack.c.l.b16 %v365
      %v981 = vunpack.c.h.b16 %v365
      %v982 = vunpack.c.l.b16 %v366
      %v983 = vunpack.c.h.b16 %v366
      %v984 = vunpack.c.l.b16 %v367
      %v985 = vunpack.c.h.b16 %v367
      %v986 = vunpack.c.l.b16 %v368
      %v987 = vunpack.c.h.b16 %v368
      %v988 = vunpack.c.l.b16 %v369
      %v989 = vunpack.c.h.b16 %v369
      %v990 = vunpack.c.l.b16 %v370
      %v991 = vunpack.c.h.b16 %v370
      %v992 = vunpack.c.l.b16 %v371
      %v993 = vunpack.c.h.b16 %v371
      %v994 = vunpack.c.l.b16 %v372
      %v995 = vunpack.c.h.b16 %v372
      %v996 = vunpack.c.l.b16 %v373
      %v997 = vunpack.c.h.b16 %v373
      %v998 = vunpack.c.l.b16 %v374
      %v999 = vunpack.c.h.b16 %v374
      %v1000 = vunpack.c.l.b16 %v375
      %v1001 = vunpack.c.h.b16 %v375
      %v1002 = vunpack.c.l.b16 %v376
      %v1003 = vunpack.c.h.b16 %v376
      %v1004 = vunpack.c.l.b16 %v377
      %v1005 = vunpack.c.h.b16 %v377
      %v1006 = vunpack.c.l.b16 %v378
      %v1007 = vunpack.c.h.b16 %v378
      %v1008 = vunpack.c.l.b16 %v379
      %v1009 = vunpack.c.h.b16 %v379
      %v1010 = vunpack.c.l.b16 %v380
      %v1011 = vunpack.c.h.b16 %v380
      %v1012 = vunpack.c.l.b16 %v381
      %v1013 = vunpack.c.h.b16 %v381
      %v1014 = vunpack.c.l.b16 %v382
      %v1015 = vunpack.c.h.b16 %v382
      %v1016 = vunpack.c.l.b16 %v383
      %v1017 = vunpack.c.h.b16 %v383
      %v1018 = vunpack.c.l.b16 %v384
      %v1019 = vunpack.c.h.b16 %v384
      %v1020 = vunpack.c.l.b16 %v385
      %v1021 = vunpack.c.h.b16 %v385
      %v1022 = vunpack.c.l.b16 %v386
      %v1023 = vunpack.c.h.b16 %v386
      %v1024 = vunpack.c.l.b16 %v387
      %v1025 = vunpack.c.h.b16 %v387
      %v1026 = vunpack.c.l.b16 %v388
      %v1027 = vunpack.c.h.b16 %v388
      %v1028 = vunpack.c.l.b16 %v389
      %v1029 = vunpack.c.h.b16 %v389
      %v1030 = vunpack.c.l.b16 %v390
      %v1031 = vunpack.c.h.b16 %v390
      %v1032 = vunpack.c.l.b16 %v391
      %v1033 = vunpack.c.h.b16 %v391
      %v1034 = vunpack.c.l.b16 %v392
      %v1035 = vunpack.c.h.b16 %v392
      %v1036 = vunpack.c.l.b16 %v393
      %v1037 = vunpack.c.h.b16 %v393
      %v1038 = vunpack.c.l.b16 %v394
      %v1039 = vunpack.c.h.b16 %v394
      %v1040 = vunpack.c.l.b16 %v395
      %v1041 = vunpack.c.h.b16 %v395
      %v1042 = vunpack.c.l.b16 %v396
      %v1043 = vunpack.c.h.b16 %v396
      %v1044 = vunpack.c.l.b16 %v397
      %v1045 = vunpack.c.h.b16 %v397
      %v1046 = vunpack.c.l.b16 %v398
      %v1047 = vunpack.c.h.b16 %v398
      %v1048 = vunpack.c.l.b16 %v399
      %v1049 = vunpack.c.h.b16 %v399
      %v1050 = vunpack.c.l.b16 %v400
      %v1051 = vunpack.c.h.b16 %v400
      %v1052 = vunpack.c.l.b16 %v401
      %v1053 = vunpack.c.h.b16 %v401
      %v1054 = vunpack.c.l.b16 %v402
      %v1055 = vunpack.c.h.b16 %v402
      %v1056 = vunpack.c.l.b16 %v403
      %v1057 = vunpack.c.h.b16 %v403
      %v1058 = vunpack.c.l.b16 %v404
      %v1059 = vunpack.c.h.b16 %v404
      %v1060 = vunpack.c.l.b16 %v405
      %v1061 = vunpack.c.h.b16 %v405
      %v1062 = vunpack.c.l.b16 %v406
      %v1063 = vunpack.c.h.b16 %v406
      %v1064 = vunpack.c.l.b16 %v407
      %v1065 = vunpack.c.h.b16 %v407
      %v1066 = vunpack.c.l.b16 %v408
      %v1067 = vunpack.c.h.b16 %v408
      %v1068 = vunpack.c.l.b16 %v409
      %v1069 = vunpack.c.h.b16 %v409
      %v1070 = vunpack.c.l.b16 %v410
      %v1071 = vunpack.c.h.b16 %v410
      %v1072 = vunpack.c.l.b16 %v411
      %v1073 = vunpack.c.h.b16 %v411
      %v1074 = vunpack.c.l.b16 %v412
      %v1075 = vunpack.c.h.b16 %v412
      %v1076 = vunpack.c.l.b16 %v413
      %v1077 = vunpack.c.h.b16 %v413
      %v1078 = vunpack.c.l.b16 %v414
      %v1079 = vunpack.c.h.b16 %v414
      %v1080 = vunpack.c.l.b16 %v415
      %v1081 = vunpack.c.h.b16 %v415
      %v1082 = vunpack.c.l.b16 %v416
      %v1083 = vunpack.c.h.b16 %v416
      %v1084 = vunpack.c.l.b16 %v417
      %v1085 = vunpack.c.h.b16 %v417
      %v1086 = vunpack.c.l.b16 %v418
      %v1087 = vunpack.c.h.b16 %v418
      %v1088 = vunpack.c.l.b16 %v419
      %v1089 = vunpack.c.h.b16 %v419
      %v1090 = vunpack.c.l.b16 %v420
      %v1091 = vunpack.c.h.b16 %v420
      %v1092 = vunpack.c.l.b16 %v421
      %v1093 = vunpack.c.h.b16 %v421
      %v1094 = vunpack.c.l.b16 %v422
      %v1095 = vunpack.c.h.b16 %v422
      %v1096 = vunpack.c.l.b16 %v423
      %v1097 = vunpack.c.h.b16 %v423
      %v1098 = vunpack.c.l.b16 %v424
      %v1099 = vunpack.c.h.b16 %v424
      %v1100 = vunpack.c.l.b16 %v425
      %v1101 = vunpack.c.h.b16 %v425
      %v1102 = vunpack.c.l.b16 %v426
      %v1103 = vunpack.c.h.b16 %v426
      %v1104 = vunpack.c.l.b16 %v427
      %v1105 = vunpack.c.h.b16 %v427
      %v1106 = vunpack.c.l.b16 %v428
      %v1107 = vunpack.c.h.b16 %v428
      %v1108 = vunpack.c.l.b16 %v429
      %v1109 = vunpack.c.h.b16 %v429
      %v1110 = vunpack.c.l.b16 %v430
      %v1111 = vunpack.c.h.b16 %v430
      %v1112 = vunpack.c.l.b16 %v431
      %v1113 = vunpack.c.h.b16 %v431
      %v1114 = vunpack.c.l.b16 %v432
      %v1115 = vunpack.c.h.b16 %v432
      %v1116 = vunpack.c.l.b16 %v433
      %v1117 = vunpack.c.h.b16 %v433
      %v1118 = vunpack.c.l.b16 %v434
      %v1119 = vunpack.c.h.b16 %v434
      %v1120 = vunpack.c.l.b16 %v435
      %v1121 = vunpack.c.h.b16 %v435
      %v1122 = vunpack.c.l.b16 %v436
      %v1123 = vunpack.c.h.b16 %v436
      %v1124 = vunpack.c.l.b16 %v437
      %v1125 = vunpack.c.h.b16 %v437
      %v1126 = vunpack.c.l.b16 %v438
      %v1127 = vunpack.c.h.b16 %v438
      %v1128 = vunpack.c.l.b16 %v439
      %v1129 = vunpack.c.h.b16 %v439
      %v1130 = vunpack.c.l.b16 %v440
      %v1131 = vunpack.c.h.b16 %v440
      %v1132 = vunpack.c.l.b16 %v441
      %v1133 = vunpack.c.h.b16 %v441
      %v1134 = vunpack.c.l.b16 %v442
      %v1135 = vunpack.c.h.b16 %v442
      %v1136 = vunpack.c.l.b16 %v443
      %v1137 = vunpack.c.h.b16 %v443
      %v1138 = vunpack.c.l.b16 %v444
      %v1139 = vunpack.c.h.b16 %v444
      %v1140 = vunpack.c.l.b16 %v445
      %v1141 = vunpack.c.h.b16 %v445
      %v1142 = vunpack.c.l.b16 %v446
      %v1143 = vunpack.c.h.b16 %v446
      %v1144 = vunpack.c.l.b16 %v447
      %v1145 = vunpack.c.h.b16 %v447
      %v1146 = vunpack.c.l.b16 %v448
      %v1147 = vunpack.c.h.b16 %v448
      %v1148 = vunpack.c.l.b16 %v449
      %v1149 = vunpack.c.h.b16 %v449
      %v1150 = vpack.c.b16 %v936, %v934
      %v1151 = vpack.c.b16 %v937, %v935
      %v1152 = vpack.c.b16 %v940, %v938
      %v1153 = vpack.c.b16 %v941, %v939
      %v1154 = vpack.c.b16 %v944, %v942
      %v1155 = vpack.c.b16 %v945, %v943
      %v1156 = vpack.c.b16 %v948, %v946
      %v1157 = vpack.c.b16 %v949, %v947
      %v1158 = vpack.c.b16 %v952, %v950
      %v1159 = vpack.c.b16 %v953, %v951
      %v1160 = vpack.c.b16 %v956, %v954
      %v1161 = vpack.c.b16 %v957, %v955
      %v1162 = vpack.c.b16 %v960, %v958
      %v1163 = vpack.c.b16 %v961, %v959
      %v1164 = vpack.c.b16 %v964, %v962
      %v1165 = vpack.c.b16 %v965, %v963
      %v1166 = vpack.c.b16 %v968, %v966
      %v1167 = vpack.c.b16 %v969, %v967
      %v1168 = vpack.c.b16 %v972, %v970
      %v1169 = vpack.c.b16 %v973, %v971
      %v1170 = vpack.c.b16 %v976, %v974
      %v1171 = vpack.c.b16 %v977, %v975
      %v1172 = vpack.c.b16 %v980, %v978
      %v1173 = vpack.c.b16 %v981, %v979
      %v1174 = vpack.c.b16 %v984, %v982
      %v1175 = vpack.c.b16 %v985, %v983
      %v1176 = vpack.c.b16 %v988, %v986
      %v1177 = vpack.c.b16 %v989, %v987
      %v1178 = vpack.c.b16 %v992, %v990
      %v1179 = vpack.c.b16 %v993, %v991
      %v1180 = vpack.c.b16 %v996, %v994
      %v1181 = vpack.c.b16 %v997, %v995
      %v1182 = vpack.c.b16 %v1000, %v998
      %v1183 = vpack.c.b16 %v1001, %v999
      %v1184 = vpack.c.b16 %v1004, %v1002
      %v1185 = vpack.c.b16 %v1005, %v1003
      %v1186 = vpack.c.b16 %v1008, %v1006
      %v1187 = vpack.c.b16 %v1009, %v1007
      %v1188 = vpack.c.b16 %v1012, %v1010
      %v1189 = vpack.c.b16 %v1013, %v1011
      %v1190 = vpack.c.b16 %v1016, %v1014
      %v1191 = vpack.c.b16 %v1017, %v1015
      %v1192 = vpack.c.b16 %v1020, %v1018
      %v1193 = vpack.c.b16 %v1021, %v1019
      %v1194 = vpack.c.b16 %v1024, %v1022
      %v1195 = vpack.c.b16 %v1025, %v1023
      %v1196 = vpack.c.b16 %v1028, %v1026
      %v1197 = vpack.c.b16 %v1029, %v1027
      %v1198 = vpack.c.b16 %v1032, %v1030
      %v1199 = vpack.c.b16 %v1033, %v1031
      %v1200 = vpack.c.b16 %v1036, %v1034
      %v1201 = vpack.c.b16 %v1037, %v1035
      %v1202 = vpack.c.b16 %v1040, %v1038
      %v1203 = vpack.c.b16 %v1041, %v1039
      %v1204 = vpack.c.b16 %v1044, %v1042
      %v1205 = vpack.c.b16 %v1045, %v1043
      %v1206 = vpack.c.b16 %v1048, %v1046
      %v1207 = vpack.c.b16 %v1049, %v1047
      %v1208 = vpack.c.b16 %v1052, %v1050
      %v1209 = vpack.c.b16 %v1053, %v1051
      %v1210 = vpack.c.b16 %v1056, %v1054
      %v1211 = vpack.c.b16 %v1057, %v1055
      %v1212 = vpack.c.b16 %v1060, %v1058
      %v1213 = vpack.c.b16 %v1061, %v1059
      %v1214 = vpack.c.b16 %v1064, %v1062
      %v1215 = vpack.c.b16 %v1065, %v1063
      %v1216 = vpack.c.b16 %v1068, %v1066
      %v1217 = vpack.c.b16 %v1069, %v1067
      %v1218 = vpack.c.b16 %v1072, %v1070
      %v1219 = vpack.c.b16 %v1073, %v1071
      %v1220 = vpack.c.b16 %v1076, %v1074
      %v1221 = vpack.c.b16 %v1077, %v1075
      %v1222 = vpack.c.b16 %v1080, %v1078
      %v1223 = vpack.c.b16 %v1081, %v1079
      %v1224 = vpack.c.b16 %v1084, %v1082
      %v1225 = vpack.c.b16 %v1085, %v1083
      %v1226 = vpack.c.b16 %v1088, %v1086
      %v1227 = vpack.c.b16 %v1089, %v1087
      %v1228 = vpack.c.b16 %v1092, %v1090
      %v1229 = vpack.c.b16 %v1093, %v1091
      %v1230 = vpack.c.b16 %v1096, %v1094
      %v1231 = vpack.c.b16 %v1097, %v1095
      %v1232 = vpack.c.b16 %v1100, %v1098
      %v1233 = vpack.c.b16 %v1101, %v1099
      %v1234 = vpack.c.b16 %v1104, %v1102
      %v1235 = vpack.c.b16 %v1105, %v1103
      %v1236 = vpack.c.b16 %v1108, %v1106
      %v1237 = vpack.c.b16 %v1109, %v1107
      %v1238 = vpack.c.b16 %v1112, %v1110
      %v1239 = vpack.c.b16 %v1113, %v1111
      %v1240 = vpack.c.b16 %v1116, %v1114
      %v1241 = vpack.c.b16 %v1117, %v1115
      %v1242 = vpack.c.b16 %v1120, %v1118
      %v1243 = vpack.c.b16 %v1121, %v1119
      %v1244 = vpack.c.b16 %v1124, %v1122
      %v1245 = vpack.c.b16 %v1125, %v1123
      %v1246 = vpack.c.b16 %v1128, %v1126
      %v1247 = vpack.c.b16 %v1129, %v1127
      %v1248 = vpack.c.b16 %v1132, %v1130
      %v1249 = vpack.c.b16 %v1133, %v1131
      %v1250 = vpack.c.b16 %v1136, %v1134
      %v1251 = vpack.c.b16 %v1137, %v1135
      %v1252 = vpack.c.b16 %v1140, %v1138
      %v1253 = vpack.c.b16 %v1141, %v1139
      %v1254 = vpack.c.b16 %v1144, %v1142
      %v1255 = vpack.c.b16 %v1145, %v1143
      %v1256 = vpack.c.b16 %v1148, %v1146
      %v1257 = vpack.c.b16 %v1149, %v1147
      %vm1366 = vcmask 785408
      %v1368 = vsel %vm1366, %v728, 0
      %v1371 = vsel %vm1366, %v735, 0
      %v1374 = vsel %vm1366, %v742, 0
      %v1377 = vsel %vm1366, %v749, 0
      %v1380 = vsel %vm1366, %v756, 0
      %v1383 = vsel %vm1366, %v763, 0
      %v1386 = vsel %vm1366, %v770, 0
      %v1389 = vsel %vm1366, %v777, 0
      %1391 = vmatprep.subr.bf16.mxu0 %v1151
      %1392 = vmatpush1.bf16.msra.mxu0 %v1150
      %1393 = vmatprep.subr.bf16.mxu0 %v1153
      %1394 = vmatpush1.bf16.msra.mxu0 %v1152
      %1395 = vmatprep.subr.bf16.mxu0 %v1155
      %1396 = vmatpush1.bf16.msra.mxu0 %v1154
      %1397 = vmatprep.subr.bf16.mxu0 %v1157
      %1398 = vmatpush1.bf16.msra.mxu0 %v1156
      %1399 = vmatprep.subr.bf16.mxu0 %v1159
      %1400 = vmatpush1.bf16.msra.mxu0 %v1158
      %1401 = vmatprep.subr.bf16.mxu0 %v1161
      %1402 = vmatpush1.bf16.msra.mxu0 %v1160
      %1403 = vmatprep.subr.bf16.mxu0 %v1163
      %1404 = vmatpush1.bf16.msra.mxu0 %v1162
      %1405 = vmatprep.subr.bf16.mxu0 %v1165
      %1406 = vmatpush1.bf16.msra.mxu0 %v1164
      %1407 = vmatprep.subr.bf16.mxu0 %v1167
      %1408 = vmatpush1.bf16.msra.mxu0 %v1166
      %1409 = vmatprep.subr.bf16.mxu0 %v1169
      %1410 = vmatpush1.bf16.msra.mxu0 %v1168
      %1411 = vmatprep.subr.bf16.mxu0 %v1171
      %1412 = vmatpush1.bf16.msra.mxu0 %v1170
      %1413 = vmatprep.subr.bf16.mxu0 %v1173
      %1414 = vmatpush1.bf16.msra.mxu0 %v1172
      %1415 = vmatprep.subr.bf16.mxu0 %v1175
      %1416 = vmatpush1.bf16.msra.mxu0 %v1174
      %1417 = vmatprep.subr.bf16.mxu0 %v1177
      %1418 = vmatpush1.bf16.msra.mxu0 %v1176
      %1419 = vmatprep.subr.bf16.mxu0 %v1179
      %1420 = vmatpush1.bf16.msra.mxu0 %v1178
      %1421 = vmatprep.subr.bf16.mxu0 %v1181
      %1422 = vmatpush1.bf16.msra.mxu0 %v1180
      %1423 = vmatprep.mubr.bf16.mxu0 %v723
      %1424 = vmatmul.mubr.bf16.gmra.mrb[0].mxu0 %v722
      %v1425 = vpop.f32.mrb[0].mxu0
      %v1426 = vadd.f32 %v469, %v1425
      %v1427 = vpop.f32.mrb[0].mxu0
      %v1428 = vadd.f32 %v469, %v1427
      %v1429 = vpop.f32.mrb[0].mxu0
      %v1430 = vadd.f32 %v474, %v1429
      %v1431 = vpop.f32.mrb[0].mxu0
      %v1432 = vadd.f32 %v474, %v1431
      %1433 = vmatprep.mubr.bf16.mxu0 %v730
      %1434 = vmatmul.mubr.bf16.gmra.mrb[0].mxu0 %v729
      %v1435 = vpop.f32.mrb[0].mxu0
      %v1436 = vadd.f32 %v479, %v1435
      %v1437 = vpop.f32.mrb[0].mxu0
      %v1438 = vadd.f32 %v479, %v1437
      %v1439 = vpop.f32.mrb[0].mxu0
      %v1440 = vadd.f32 %v484, %v1439
      %v1441 = vpop.f32.mrb[0].mxu0
      %v1442 = vadd.f32 %v484, %v1441
      %1443 = vmatprep.mubr.bf16.mxu0 %v737
      %1444 = vmatmul.mubr.bf16.gmra.mrb[0].mxu0 %v736
      %v1445 = vpop.f32.mrb[0].mxu0
      %v1446 = vadd.f32 %v489, %v1445
      %v1447 = vpop.f32.mrb[0].mxu0
      %v1448 = vadd.f32 %v489, %v1447
      %v1449 = vpop.f32.mrb[0].mxu0
      %v1450 = vadd.f32 %v494, %v1449
      %v1451 = vpop.f32.mrb[0].mxu0
      %v1452 = vadd.f32 %v494, %v1451
      %1453 = vmatprep.mubr.bf16.mxu0 %v744
      %1454 = vmatmul.mubr.bf16.gmra.mrb[0].mxu0 %v743
      %v1455 = vpop.f32.mrb[0].mxu0
      %v1456 = vadd.f32 %v499, %v1455
      %v1457 = vpop.f32.mrb[0].mxu0
      %v1458 = vadd.f32 %v499, %v1457
      %v1459 = vpop.f32.mrb[0].mxu0
      %v1460 = vadd.f32 %v504, %v1459
      %v1461 = vpop.f32.mrb[0].mxu0
      %v1462 = vadd.f32 %v504, %v1461
      %1463 = vmatprep.mubr.bf16.mxu0 %v751
      %1464 = vmatmul.mubr.bf16.gmra.mrb[0].mxu0 %v750
      %v1465 = vpop.f32.mrb[0].mxu0
      %v1466 = vadd.f32 %v509, %v1465
      %v1467 = vpop.f32.mrb[0].mxu0
      %v1468 = vadd.f32 %v509, %v1467
      %v1469 = vpop.f32.mrb[0].mxu0
      %v1470 = vadd.f32 %v514, %v1469
      %v1471 = vpop.f32.mrb[0].mxu0
      %v1472 = vadd.f32 %v514, %v1471
      %1473 = vmatprep.mubr.bf16.mxu0 %v758
      %1474 = vmatmul.mubr.bf16.gmra.mrb[0].mxu0 %v757
      %v1475 = vpop.f32.mrb[0].mxu0
      %v1476 = vadd.f32 %v519, %v1475
      %v1477 = vpop.f32.mrb[0].mxu0
      %v1478 = vadd.f32 %v519, %v1477
      %v1479 = vpop.f32.mrb[0].mxu0
      %v1480 = vadd.f32 %v524, %v1479
      %v1481 = vpop.f32.mrb[0].mxu0
      %v1482 = vadd.f32 %v524, %v1481
      %1483 = vmatprep.mubr.bf16.mxu0 %v765
      %1484 = vmatmul.mubr.bf16.gmra.mrb[0].mxu0 %v764
      %v1485 = vpop.f32.mrb[0].mxu0
      %v1486 = vadd.f32 %v529, %v1485
      %v1487 = vpop.f32.mrb[0].mxu0
      %v1488 = vadd.f32 %v529, %v1487
      %v1489 = vpop.f32.mrb[0].mxu0
      %v1490 = vadd.f32 %v534, %v1489
      %v1491 = vpop.f32.mrb[0].mxu0
      %v1492 = vadd.f32 %v534, %v1491
      %1493 = vmatprep.mubr.bf16.mxu0 %v772
      %1494 = vmatmul.mubr.bf16.gmra.mrb[0].mxu0 %v771
      %v1495 = vpop.f32.mrb[0].mxu0
      %v1496 = vadd.f32 %v539, %v1495
      %v1497 = vpop.f32.mrb[0].mxu0
      %v1498 = vadd.f32 %v539, %v1497
      %v1499 = vpop.f32.mrb[0].mxu0
      %v1500 = vadd.f32 %v544, %v1499
      %v1501 = vpop.f32.mrb[0].mxu0
      %v1502 = vadd.f32 %v544, %v1501
      %1503 = vdwg.mxu0
      %1504 = vmatprep.subr.bf16.mxu0 %v1183
      %1505 = vmatpush1.bf16.msra.mxu0 %v1182
      %1506 = vmatprep.subr.bf16.mxu0 %v1185
      %1507 = vmatpush1.bf16.msra.mxu0 %v1184
      %1508 = vmatprep.subr.bf16.mxu0 %v1187
      %1509 = vmatpush1.bf16.msra.mxu0 %v1186
      %1510 = vmatprep.subr.bf16.mxu0 %v1189
      %1511 = vmatpush1.bf16.msra.mxu0 %v1188
      %1512 = vmatprep.subr.bf16.mxu0 %v1191
      %1513 = vmatpush1.bf16.msra.mxu0 %v1190
      %1514 = vmatprep.subr.bf16.mxu0 %v1193
      %1515 = vmatpush1.bf16.msra.mxu0 %v1192
      %1516 = vmatprep.subr.bf16.mxu0 %v1195
      %1517 = vmatpush1.bf16.msra.mxu0 %v1194
      %1518 = vmatprep.subr.bf16.mxu0 %v1197
      %1519 = vmatpush1.bf16.msra.mxu0 %v1196
      %1520 = vmatprep.subr.bf16.mxu0 %v1199
      %1521 = vmatpush1.bf16.msra.mxu0 %v1198
      %1522 = vmatprep.subr.bf16.mxu0 %v1201
      %1523 = vmatpush1.bf16.msra.mxu0 %v1200
      %1524 = vmatprep.subr.bf16.mxu0 %v1203
      %1525 = vmatpush1.bf16.msra.mxu0 %v1202
      %1526 = vmatprep.subr.bf16.mxu0 %v1205
      %1527 = vmatpush1.bf16.msra.mxu0 %v1204
      %1528 = vmatprep.subr.bf16.mxu0 %v1207
      %1529 = vmatpush1.bf16.msra.mxu0 %v1206
      %1530 = vmatprep.subr.bf16.mxu0 %v1209
      %1531 = vmatpush1.bf16.msra.mxu0 %v1208
      %1532 = vmatprep.subr.bf16.mxu0 %v1211
      %1533 = vmatpush1.bf16.msra.mxu0 %v1210
      %1534 = vmatprep.subr.bf16.mxu0 %v1213
      %1535 = vmatpush1.bf16.msra.mxu0 %v1212
      %1536 = vmatprep.mubr.bf16.mxu0 %v725
      %1537 = vmatmul.mubr.bf16.gmra.mrb[0].mxu0 %v724
      %v1538 = vpop.f32.mrb[0].mxu0
      %v1539 = vadd.f32 %v1426, %v1538
      %v1540 = vpop.f32.mrb[0].mxu0
      %v1541 = vadd.f32 %v1428, %v1540
      %v1542 = vpop.f32.mrb[0].mxu0
      %v1543 = vadd.f32 %v1430, %v1542
      %v1544 = vpop.f32.mrb[0].mxu0
      %v1545 = vadd.f32 %v1432, %v1544
      %1546 = vmatprep.mubr.bf16.mxu0 %v732
      %1547 = vmatmul.mubr.bf16.gmra.mrb[0].mxu0 %v731
      %v1548 = vpop.f32.mrb[0].mxu0
      %v1549 = vadd.f32 %v1436, %v1548
      %v1550 = vpop.f32.mrb[0].mxu0
      %v1551 = vadd.f32 %v1438, %v1550
      %v1552 = vpop.f32.mrb[0].mxu0
      %v1553 = vadd.f32 %v1440, %v1552
      %v1554 = vpop.f32.mrb[0].mxu0
      %v1555 = vadd.f32 %v1442, %v1554
      %1556 = vmatprep.mubr.bf16.mxu0 %v739
      %1557 = vmatmul.mubr.bf16.gmra.mrb[0].mxu0 %v738
      %v1558 = vpop.f32.mrb[0].mxu0
      %v1559 = vadd.f32 %v1446, %v1558
      %v1560 = vpop.f32.mrb[0].mxu0
      %v1561 = vadd.f32 %v1448, %v1560
      %v1562 = vpop.f32.mrb[0].mxu0
      %v1563 = vadd.f32 %v1450, %v1562
      %v1564 = vpop.f32.mrb[0].mxu0
      %v1565 = vadd.f32 %v1452, %v1564
      %1566 = vmatprep.mubr.bf16.mxu0 %v746
      %1567 = vmatmul.mubr.bf16.gmra.mrb[0].mxu0 %v745
      %v1568 = vpop.f32.mrb[0].mxu0
      %v1569 = vadd.f32 %v1456, %v1568
      %v1570 = vpop.f32.mrb[0].mxu0
      %v1571 = vadd.f32 %v1458, %v1570
      %v1572 = vpop.f32.mrb[0].mxu0
      %v1573 = vadd.f32 %v1460, %v1572
      %v1574 = vpop.f32.mrb[0].mxu0
      %v1575 = vadd.f32 %v1462, %v1574
      %1576 = vmatprep.mubr.bf16.mxu0 %v753
      %1577 = vmatmul.mubr.bf16.gmra.mrb[0].mxu0 %v752
      %v1578 = vpop.f32.mrb[0].mxu0
      %v1579 = vadd.f32 %v1466, %v1578
      %v1580 = vpop.f32.mrb[0].mxu0
      %v1581 = vadd.f32 %v1468, %v1580
      %v1582 = vpop.f32.mrb[0].mxu0
      %v1583 = vadd.f32 %v1470, %v1582
      %v1584 = vpop.f32.mrb[0].mxu0
      %v1585 = vadd.f32 %v1472, %v1584
      %1586 = vmatprep.mubr.bf16.mxu0 %v760
      %1587 = vmatmul.mubr.bf16.gmra.mrb[0].mxu0 %v759
      %v1588 = vpop.f32.mrb[0].mxu0
      %v1589 = vadd.f32 %v1476, %v1588
      %v1590 = vpop.f32.mrb[0].mxu0
      %v1591 = vadd.f32 %v1478, %v1590
      %v1592 = vpop.f32.mrb[0].mxu0
      %v1593 = vadd.f32 %v1480, %v1592
      %v1594 = vpop.f32.mrb[0].mxu0
      %v1595 = vadd.f32 %v1482, %v1594
      %1596 = vmatprep.mubr.bf16.mxu0 %v767
      %1597 = vmatmul.mubr.bf16.gmra.mrb[0].mxu0 %v766
      %v1598 = vpop.f32.mrb[0].mxu0
      %v1599 = vadd.f32 %v1486, %v1598
      %v1600 = vpop.f32.mrb[0].mxu0
      %v1601 = vadd.f32 %v1488, %v1600
      %v1602 = vpop.f32.mrb[0].mxu0
      %v1603 = vadd.f32 %v1490, %v1602
      %v1604 = vpop.f32.mrb[0].mxu0
      %v1605 = vadd.f32 %v1492, %v1604
      %1606 = vmatprep.mubr.bf16.mxu0 %v774
      %1607 = vmatmul.mubr.bf16.gmra.mrb[0].mxu0 %v773
      %v1608 = vpop.f32.mrb[0].mxu0
      %v1609 = vadd.f32 %v1496, %v1608
      %v1610 = vpop.f32.mrb[0].mxu0
      %v1611 = vadd.f32 %v1498, %v1610
      %v1612 = vpop.f32.mrb[0].mxu0
      %v1613 = vadd.f32 %v1500, %v1612
      %v1614 = vpop.f32.mrb[0].mxu0
      %v1615 = vadd.f32 %v1502, %v1614
      %1616 = vdwg.mxu0
      %1617 = vmatprep.subr.bf16.mxu0 %v1215
      %1618 = vmatpush1.bf16.msra.mxu0 %v1214
      %1619 = vmatprep.subr.bf16.mxu0 %v1217
      %1620 = vmatpush1.bf16.msra.mxu0 %v1216
      %1621 = vmatprep.subr.bf16.mxu0 %v1219
      %1622 = vmatpush1.bf16.msra.mxu0 %v1218
      %1623 = vmatprep.subr.bf16.mxu0 %v1221
      %1624 = vmatpush1.bf16.msra.mxu0 %v1220
      %1625 = vmatprep.subr.bf16.mxu0 %v1223
      %1626 = vmatpush1.bf16.msra.mxu0 %v1222
      %1627 = vmatprep.subr.bf16.mxu0 %v1225
      %1628 = vmatpush1.bf16.msra.mxu0 %v1224
      %1629 = vmatprep.subr.bf16.mxu0 %v1227
      %1630 = vmatpush1.bf16.msra.mxu0 %v1226
      %1631 = vmatprep.subr.bf16.mxu0 %v1229
      %1632 = vmatpush1.bf16.msra.mxu0 %v1228
      %1633 = vmatprep.subr.bf16.mxu0 %v1231
      %1634 = vmatpush1.bf16.msra.mxu0 %v1230
      %1635 = vmatprep.subr.bf16.mxu0 %v1233
      %1636 = vmatpush1.bf16.msra.mxu0 %v1232
      %1637 = vmatprep.subr.bf16.mxu0 %v1235
      %1638 = vmatpush1.bf16.msra.mxu0 %v1234
      %1639 = vmatprep.subr.bf16.mxu0 %v1237
      %1640 = vmatpush1.bf16.msra.mxu0 %v1236
      %1641 = vmatprep.subr.bf16.mxu0 %v1239
      %1642 = vmatpush1.bf16.msra.mxu0 %v1238
      %1643 = vmatprep.subr.bf16.mxu0 %v1241
      %1644 = vmatpush1.bf16.msra.mxu0 %v1240
      %1645 = vmatprep.subr.bf16.mxu0 %v1243
      %1646 = vmatpush1.bf16.msra.mxu0 %v1242
      %1647 = vmatprep.subr.bf16.mxu0 %v1245
      %1648 = vmatpush1.bf16.msra.mxu0 %v1244
      %1649 = vmatprep.mubr.bf16.mxu0 %v727
      %1650 = vmatmul.mubr.bf16.gmra.mrb[0].mxu0 %v726
      %v1651 = vpop.f32.mrb[0].mxu0
      %v1652 = vadd.f32 %v1539, %v1651
      %v1653 = vpop.f32.mrb[0].mxu0
      %v1654 = vadd.f32 %v1541, %v1653
      %v1655 = vpop.f32.mrb[0].mxu0
      %v1656 = vadd.f32 %v1543, %v1655
      %v1657 = vpop.f32.mrb[0].mxu0
      %v1658 = vadd.f32 %v1545, %v1657
      %1659 = vmatprep.mubr.bf16.mxu0 %v734
      %1660 = vmatmul.mubr.bf16.gmra.mrb[0].mxu0 %v733
      %v1661 = vpop.f32.mrb[0].mxu0
      %v1662 = vadd.f32 %v1549, %v1661
      %v1663 = vpop.f32.mrb[0].mxu0
      %v1664 = vadd.f32 %v1551, %v1663
      %v1665 = vpop.f32.mrb[0].mxu0
      %v1666 = vadd.f32 %v1553, %v1665
      %v1667 = vpop.f32.mrb[0].mxu0
      %v1668 = vadd.f32 %v1555, %v1667
      %1669 = vmatprep.mubr.bf16.mxu0 %v741
      %1670 = vmatmul.mubr.bf16.gmra.mrb[0].mxu0 %v740
      %v1671 = vpop.f32.mrb[0].mxu0
      %v1672 = vadd.f32 %v1559, %v1671
      %v1673 = vpop.f32.mrb[0].mxu0
      %v1674 = vadd.f32 %v1561, %v1673
      %v1675 = vpop.f32.mrb[0].mxu0
      %v1676 = vadd.f32 %v1563, %v1675
      %v1677 = vpop.f32.mrb[0].mxu0
      %v1678 = vadd.f32 %v1565, %v1677
      %1679 = vmatprep.mubr.bf16.mxu0 %v748
      %1680 = vmatmul.mubr.bf16.gmra.mrb[0].mxu0 %v747
      %v1681 = vpop.f32.mrb[0].mxu0
      %v1682 = vadd.f32 %v1569, %v1681
      %v1683 = vpop.f32.mrb[0].mxu0
      %v1684 = vadd.f32 %v1571, %v1683
      %v1685 = vpop.f32.mrb[0].mxu0
      %v1686 = vadd.f32 %v1573, %v1685
      %v1687 = vpop.f32.mrb[0].mxu0
      %v1688 = vadd.f32 %v1575, %v1687
      %1689 = vmatprep.mubr.bf16.mxu0 %v755
      %1690 = vmatmul.mubr.bf16.gmra.mrb[0].mxu0 %v754
      %v1691 = vpop.f32.mrb[0].mxu0
      %v1692 = vadd.f32 %v1579, %v1691
      %v1693 = vpop.f32.mrb[0].mxu0
      %v1694 = vadd.f32 %v1581, %v1693
      %v1695 = vpop.f32.mrb[0].mxu0
      %v1696 = vadd.f32 %v1583, %v1695
      %v1697 = vpop.f32.mrb[0].mxu0
      %v1698 = vadd.f32 %v1585, %v1697
      %1699 = vmatprep.mubr.bf16.mxu0 %v762
      %1700 = vmatmul.mubr.bf16.gmra.mrb[0].mxu0 %v761
      %v1701 = vpop.f32.mrb[0].mxu0
      %v1702 = vadd.f32 %v1589, %v1701
      %v1703 = vpop.f32.mrb[0].mxu0
      %v1704 = vadd.f32 %v1591, %v1703
      %v1705 = vpop.f32.mrb[0].mxu0
      %v1706 = vadd.f32 %v1593, %v1705
      %v1707 = vpop.f32.mrb[0].mxu0
      %v1708 = vadd.f32 %v1595, %v1707
      %1709 = vmatprep.mubr.bf16.mxu0 %v769
      %1710 = vmatmul.mubr.bf16.gmra.mrb[0].mxu0 %v768
      %v1711 = vpop.f32.mrb[0].mxu0
      %v1712 = vadd.f32 %v1599, %v1711
      %v1713 = vpop.f32.mrb[0].mxu0
      %v1714 = vadd.f32 %v1601, %v1713
      %v1715 = vpop.f32.mrb[0].mxu0
      %v1716 = vadd.f32 %v1603, %v1715
      %v1717 = vpop.f32.mrb[0].mxu0
      %v1718 = vadd.f32 %v1605, %v1717
      %1719 = vmatprep.mubr.bf16.mxu0 %v776
      %1720 = vmatmul.mubr.bf16.gmra.mrb[0].mxu0 %v775
      %v1721 = vpop.f32.mrb[0].mxu0
      %v1722 = vadd.f32 %v1609, %v1721
      %v1723 = vpop.f32.mrb[0].mxu0
      %v1724 = vadd.f32 %v1611, %v1723
      %v1725 = vpop.f32.mrb[0].mxu0
      %v1726 = vadd.f32 %v1613, %v1725
      %v1727 = vpop.f32.mrb[0].mxu0
      %v1728 = vadd.f32 %v1615, %v1727
      %1729 = vdwg.mxu0
      %1730 = vmatprep.subr.bf16.mxu0 %v1247
      %1731 = vmatpush1.bf16.msra.mxu0 %v1246
      %1732 = vmatprep.subr.bf16.mxu0 %v1249
      %1733 = vmatpush1.bf16.msra.mxu0 %v1248
      %1734 = vmatprep.subr.bf16.mxu0 %v1251
      %1735 = vmatpush1.bf16.msra.mxu0 %v1250
      %1736 = vmatprep.subr.bf16.mxu0 %v1253
      %1737 = vmatpush1.bf16.msra.mxu0 %v1252
      %1738 = vmatprep.subr.bf16.mxu0 %v1255
      %1739 = vmatpush1.bf16.msra.mxu0 %v1254
      %1740 = vmatprep.subr.bf16.mxu0 %v1257
      %1741 = vmatpush1.bf16.msra.mxu0 %v1256
      %1742 = vmatprep.subr.bf16.mxu0 0
      %1743 = vmatpush1.bf16.msra.mxu0 0
      %1744 = vmatprep.subr.bf16.mxu0 0
      %1745 = vmatpush1.bf16.msra.mxu0 0
      %1746 = vmatprep.subr.bf16.mxu0 0
      %1747 = vmatpush1.bf16.msra.mxu0 0
      %1748 = vmatprep.subr.bf16.mxu0 0
      %1749 = vmatpush1.bf16.msra.mxu0 0
      %1750 = vmatprep.subr.bf16.mxu0 0
      %1751 = vmatpush1.bf16.msra.mxu0 0
      %1752 = vmatprep.subr.bf16.mxu0 0
      %1753 = vmatpush1.bf16.msra.mxu0 0
      %1754 = vmatprep.subr.bf16.mxu0 0
      %1755 = vmatpush1.bf16.msra.mxu0 0
      %1756 = vmatprep.subr.bf16.mxu0 0
      %1757 = vmatpush1.bf16.msra.mxu0 0
      %1758 = vmatprep.subr.bf16.mxu0 0
      %1759 = vmatpush1.bf16.msra.mxu0 0
      %1760 = vmatprep.subr.bf16.mxu0 0
      %1761 = vmatpush1.bf16.msra.mxu0 0
      %1762 = vmatprep.mubr.bf16.mxu0 0
      %1763 = vmatmul.mubr.bf16.gmra.mrb[0].mxu0 %v1368
      %v1764 = vpop.f32.mrb[0].mxu0
      %v1765 = vadd.f32 %v1652, %v1764
      %v1766 = vpop.f32.mrb[0].mxu0
      %v1767 = vadd.f32 %v1654, %v1766
      %v1768 = vpop.f32.mrb[0].mxu0
      %v1769 = vadd.f32 %v1656, %v1768
      %v1770 = vpop.f32.mrb[0].mxu0
      %v1771 = vadd.f32 %v1658, %v1770
      %1772 = vmatprep.mubr.bf16.mxu0 0
      %1773 = vmatmul.mubr.bf16.gmra.mrb[0].mxu0 %v1371
      %v1774 = vpop.f32.mrb[0].mxu0
      %v1775 = vadd.f32 %v1662, %v1774
      %v1776 = vpop.f32.mrb[0].mxu0
      %v1777 = vadd.f32 %v1664, %v1776
      %v1778 = vpop.f32.mrb[0].mxu0
      %v1779 = vadd.f32 %v1666, %v1778
      %v1780 = vpop.f32.mrb[0].mxu0
      %v1781 = vadd.f32 %v1668, %v1780
      %1782 = vmatprep.mubr.bf16.mxu0 0
      %1783 = vmatmul.mubr.bf16.gmra.mrb[0].mxu0 %v1374
      %v1784 = vpop.f32.mrb[0].mxu0
      %v1785 = vadd.f32 %v1672, %v1784
      %v1786 = vpop.f32.mrb[0].mxu0
      %v1787 = vadd.f32 %v1674, %v1786
      %v1788 = vpop.f32.mrb[0].mxu0
      %v1789 = vadd.f32 %v1676, %v1788
      %v1790 = vpop.f32.mrb[0].mxu0
      %v1791 = vadd.f32 %v1678, %v1790
      %1792 = vmatprep.mubr.bf16.mxu0 0
      %1793 = vmatmul.mubr.bf16.gmra.mrb[0].mxu0 %v1377
      %v1794 = vpop.f32.mrb[0].mxu0
      %v1795 = vadd.f32 %v1682, %v1794
      %v1796 = vpop.f32.mrb[0].mxu0
      %v1797 = vadd.f32 %v1684, %v1796
      %v1798 = vpop.f32.mrb[0].mxu0
      %v1799 = vadd.f32 %v1686, %v1798
      %v1800 = vpop.f32.mrb[0].mxu0
      %v1801 = vadd.f32 %v1688, %v1800
      %1802 = vmatprep.mubr.bf16.mxu0 0
      %1803 = vmatmul.mubr.bf16.gmra.mrb[0].mxu0 %v1380
      %v1804 = vpop.f32.mrb[0].mxu0
      %v1805 = vadd.f32 %v1692, %v1804
      %v1806 = vpop.f32.mrb[0].mxu0
      %v1807 = vadd.f32 %v1694, %v1806
      %v1808 = vpop.f32.mrb[0].mxu0
      %v1809 = vadd.f32 %v1696, %v1808
      %v1810 = vpop.f32.mrb[0].mxu0
      %v1811 = vadd.f32 %v1698, %v1810
      %1812 = vmatprep.mubr.bf16.mxu0 0
      %1813 = vmatmul.mubr.bf16.gmra.mrb[0].mxu0 %v1383
      %v1814 = vpop.f32.mrb[0].mxu0
      %v1815 = vadd.f32 %v1702, %v1814
      %v1816 = vpop.f32.mrb[0].mxu0
      %v1817 = vadd.f32 %v1704, %v1816
      %v1818 = vpop.f32.mrb[0].mxu0
      %v1819 = vadd.f32 %v1706, %v1818
      %v1820 = vpop.f32.mrb[0].mxu0
      %v1821 = vadd.f32 %v1708, %v1820
      %1822 = vmatprep.mubr.bf16.mxu0 0
      %1823 = vmatmul.mubr.bf16.gmra.mrb[0].mxu0 %v1386
      %v1824 = vpop.f32.mrb[0].mxu0
      %v1825 = vadd.f32 %v1712, %v1824
      %v1826 = vpop.f32.mrb[0].mxu0
      %v1827 = vadd.f32 %v1714, %v1826
      %v1828 = vpop.f32.mrb[0].mxu0
      %v1829 = vadd.f32 %v1716, %v1828
      %v1830 = vpop.f32.mrb[0].mxu0
      %v1831 = vadd.f32 %v1718, %v1830
      %1832 = vmatprep.mubr.bf16.mxu0 0
      %1833 = vmatmul.mubr.bf16.gmra.mrb[0].mxu0 %v1389
      %v1834 = vpop.f32.mrb[0].mxu0
      %v1835 = vadd.f32 %v1722, %v1834
      %v1836 = vpop.f32.mrb[0].mxu0
      %v1837 = vadd.f32 %v1724, %v1836
      %v1838 = vpop.f32.mrb[0].mxu0
      %v1839 = vadd.f32 %v1726, %v1838
      %v1840 = vpop.f32.mrb[0].mxu0
      %v1841 = vadd.f32 %v1728, %v1840
      %1842 = vdwg.mxu0
      %v1843 = vmul.f32 %v1765, 0.1
      %v1844 = vmul.f32 %v1767, 0.1
      %v1845 = vmul.f32 %v1769, 0.1
      %v1846 = vmul.f32 %v1771, 0.1
      %v1847 = vmul.f32 %v1775, 0.1
      %v1848 = vmul.f32 %v1777, 0.1
      %v1849 = vmul.f32 %v1779, 0.1
      %v1850 = vmul.f32 %v1781, 0.1
      %v1851 = vmul.f32 %v1785, 0.1
      %v1852 = vmul.f32 %v1787, 0.1
      %v1853 = vmul.f32 %v1789, 0.1
      %v1854 = vmul.f32 %v1791, 0.1
      %v1855 = vmul.f32 %v1795, 0.1
      %v1856 = vmul.f32 %v1797, 0.1
      %v1857 = vmul.f32 %v1799, 0.1
      %v1858 = vmul.f32 %v1801, 0.1
      %v1859 = vmul.f32 %v1805, 0.1
      %v1860 = vmul.f32 %v1807, 0.1
      %v1861 = vmul.f32 %v1809, 0.1
      %v1862 = vmul.f32 %v1811, 0.1
      %v1863 = vmul.f32 %v1815, 0.1
      %v1864 = vmul.f32 %v1817, 0.1
      %v1865 = vmul.f32 %v1819, 0.1
      %v1866 = vmul.f32 %v1821, 0.1
      %v1867 = vmul.f32 %v1825, 0.1
      %v1868 = vmul.f32 %v1827, 0.1
      %v1869 = vmul.f32 %v1829, 0.1
      %v1870 = vmul.f32 %v1831, 0.1
      %v1871 = vmul.f32 %v1835, 0.1
      %v1872 = vmul.f32 %v1837, 0.1
      %v1873 = vmul.f32 %v1839, 0.1
      %v1874 = vmul.f32 %v1841, 0.1
      %v1875 = vmax.f32 %v1765, %v1843
      %v1876 = vmax.f32 %v1767, %v1844
      %v1877 = vmax.f32 %v1769, %v1845
      %v1878 = vmax.f32 %v1771, %v1846
      %v1879 = vmax.f32 %v1775, %v1847
      %v1880 = vmax.f32 %v1777, %v1848
      %v1881 = vmax.f32 %v1779, %v1849
      %v1882 = vmax.f32 %v1781, %v1850
      %v1883 = vmax.f32 %v1785, %v1851
      %v1884 = vmax.f32 %v1787, %v1852
      %v1885 = vmax.f32 %v1789, %v1853
      %v1886 = vmax.f32 %v1791, %v1854
      %v1887 = vmax.f32 %v1795, %v1855
      %v1888 = vmax.f32 %v1797, %v1856
      %v1889 = vmax.f32 %v1799, %v1857
      %v1890 = vmax.f32 %v1801, %v1858
      %v1891 = vmax.f32 %v1805, %v1859
      %v1892 = vmax.f32 %v1807, %v1860
      %v1893 = vmax.f32 %v1809, %v1861
      %v1894 = vmax.f32 %v1811, %v1862
      %v1895 = vmax.f32 %v1815, %v1863
      %v1896 = vmax.f32 %v1817, %v1864
      %v1897 = vmax.f32 %v1819, %v1865
      %v1898 = vmax.f32 %v1821, %v1866
      %v1899 = vmax.f32 %v1825, %v1867
      %v1900 = vmax.f32 %v1827, %v1868
      %v1901 = vmax.f32 %v1829, %v1869
      %v1902 = vmax.f32 %v1831, %v1870
      %v1903 = vmax.f32 %v1835, %v1871
      %v1904 = vmax.f32 %v1837, %v1872
      %v1905 = vmax.f32 %v1839, %v1873
      %v1906 = vmax.f32 %v1841, %v1874
      %1907 = vst [vmem:[%s274] sm:$0xff] %v1875
      %1908 = vst [vmem:[%s274 + $0x8] sm:$0xff] %v1876
      %1909 = vst [vmem:[%s274 + $0x10] sm:$0xff] %v1877
      %1910 = vst [vmem:[%s274 + $0x18] sm:$0xff] %v1878
      %1911 = vst [vmem:[%s274 + $0x20] sm:$0xff] %v1879
      %1912 = vst [vmem:[%s274 + $0x28] sm:$0xff] %v1880
      %1913 = vst [vmem:[%s274 + $0x30] sm:$0xff] %v1881
      %1914 = vst [vmem:[%s274 + $0x38] sm:$0xff] %v1882
      %1915 = vst [vmem:[%s274 + $0x40] sm:$0xff] %v1883
      %1916 = vst [vmem:[%s274 + $0x48] sm:$0xff] %v1884
      %1917 = vst [vmem:[%s274 + $0x50] sm:$0xff] %v1885
      %1918 = vst [vmem:[%s274 + $0x58] sm:$0xff] %v1886
      %1919 = vst [vmem:[%s274 + $0x60] sm:$0xff] %v1887
      %1920 = vst [vmem:[%s274 + $0x68] sm:$0xff] %v1888
      %1921 = vst [vmem:[%s274 + $0x70] sm:$0xff] %v1889
      %1922 = vst [vmem:[%s274 + $0x78] sm:$0xff] %v1890
      %1923 = vst [vmem:[%s274 + $0x80] sm:$0xff] %v1891
      %1924 = vst [vmem:[%s274 + $0x88] sm:$0xff] %v1892
      %1925 = vst [vmem:[%s274 + $0x90] sm:$0xff] %v1893
      %1926 = vst [vmem:[%s274 + $0x98] sm:$0xff] %v1894
      %1927 = vst [vmem:[%s274 + $0xa0] sm:$0xff] %v1895
      %1928 = vst [vmem:[%s274 + $0xa8] sm:$0xff] %v1896
      %1929 = vst [vmem:[%s274 + $0xb0] sm:$0xff] %v1897
      %1930 = vst [vmem:[%s274 + $0xb8] sm:$0xff] %v1898
      %1931 = vst [vmem:[%s274 + $0xc0] sm:$0xff] %v1899
      %1932 = vst [vmem:[%s274 + $0xc8] sm:$0xff] %v1900
      %1933 = vst [vmem:[%s274 + $0xd0] sm:$0xff] %v1901
      %1934 = vst [vmem:[%s274 + $0xd8] sm:$0xff] %v1902
      %1935 = vst [vmem:[%s274 + $0xe0] sm:$0xff] %v1903
      %1936 = vst [vmem:[%s274 + $0xe8] sm:$0xff] %v1904
      %1937 = vst [vmem:[%s274 + $0xf0] sm:$0xff] %v1905
      %1938 = vst [vmem:[%s274 + $0xf8] sm:$0xff] %v1906
      %s1939 = smul.u32 16, %s20
      %s1940 = smul.u32 2, %s21
      %p1941 = scmp.lt.s32.totalorder %s19, 1
      %s1942 = scalar_select %p1941, %s19, 1
      %p1943 = scmp.lt.s32.totalorder %s1939, 15
      %s1944 = scalar_select %p1943, %s1939, 15
      %p1945 = scmp.lt.s32.totalorder %s1940, 1
      %s1946 = scalar_select %p1945, %s1940, 1
      %s1947 = smul.addr %s1944, 2
      %s1948 = sadd.s32 %s1946, %s1947
      %s1949 = smul.addr %s1942, 32
      %s1950 = sadd.s32 %s1948, %s1949
      %s1951 = smul.addr %s1950, 8
      %s1952 = scalar_lea.vmem %s3, %s1951
      // Predicated region
      $region33: #{mono_sceneflow_decoder_lstm.11} parent=31 // pred_check
        %p1953 = pneg %p135
      $region34: #{mono_sceneflow_decoder_lstm.11} parent=31 // pred_check_branch
        %1955 = sbr.rel (%p1953) target = $region36
      $region35: #{mono_sceneflow_decoder_lstm.11} parent=31 // pred_region
        %s1956 = smul.u32 16, %s20
        %s1957 = smul.u32 2, %s21
      $region36: #{mono_sceneflow_decoder_lstm.11} parent=31 // pred_fallthru
        _
    $region32: #{mono_sceneflow_decoder_lstm.11} parent=5 // pred_fallthru
      _
    %p1958 = scmp.le.s32.totalorder 2, %s9
    // Predicated region
    $region37: #{mono_sceneflow_decoder_lstm.11} parent=5 // pred_check
      %p1959 = pneg %p1958
    $region38: #{mono_sceneflow_decoder_lstm.11} parent=5 // pred_check_branch
      %1961 = sbr.rel (%p1959) target = $region40
    $region39: #{mono_sceneflow_decoder_lstm.11} parent=5 // pred_region
      %s1962 = ssub.s32 %s9, 2
      // Predicated region
      $region41: #{mono_sceneflow_decoder_lstm.11} parent=39 // pred_check
        %p1963 = pneg %p141
      $region42: #{mono_sceneflow_decoder_lstm.11} parent=39 // pred_check_branch
        %1965 = sbr.rel (%p1963) target = $region44
      $region43: #{mono_sceneflow_decoder_lstm.11} parent=39 // pred_region
        %s1966 = smul.u32 16, %s23
        %s1967 = smul.u32 2, %s24
        %p1968 = scmp.lt.s32.totalorder %s22, 1
        %s1969 = scalar_select %p1968, %s22, 1
        %p1970 = scmp.lt.s32.totalorder %s1966, 15
        %s1971 = scalar_select %p1970, %s1966, 15
        %p1972 = scmp.lt.s32.totalorder %s1967, 1
        %s1973 = scalar_select %p1972, %s1967, 1
        %s1974 = smul.addr %s1971, 2
        %s1975 = sadd.s32 %s1973, %s1974
        %s1976 = smul.addr %s1969, 32
        %s1977 = sadd.s32 %s1975, %s1976
        %s1978 = smul.addr %s1977, 8
        %s1979 = scalar_lea.vmem %s3, %s1978
      $region44: #{mono_sceneflow_decoder_lstm.11} parent=39 // pred_fallthru
        _
    $region40: #{mono_sceneflow_decoder_lstm.11} parent=5 // pred_fallthru
      _
  $region6: #{mono_sceneflow_decoder_lstm.11} parent=0 // loop_footer
    %s13 = sadd.s32 1, %s9
  $region7: #{mono_sceneflow_decoder_lstm.11} parent=0 // loop_footer_branch
    %8 = sbr.rel target = $region3
  $region8: #{mono_sceneflow_decoder_lstm.11} parent=0 // loop_exit
    _

// kernel: mono_sceneflow_decoder_lstm.12
$region0: #{mono_sceneflow_decoder_lstm.12}
  #allocation0 [shape = 'u32[]', space=smem, size = 0x4, offset = 0x4, fixed_abs, tag = 'smem constant byte address 0x4 - core index']
  #allocation1 [shape = 'u32[144,128]{1,0:T(1,128)}', space=vmem, size = 0x12000, scoped, tag = 'internal scratch']
  %s0 = inlined_call_operand.vmem [shape: bf16[2,1152,256], index: 0, kind: input, shape index: {}]
  %s1 = inlined_call_operand.vmem [shape: bf16[64,1152], index: 1, kind: input, shape index: {}]
  %s2 = inlined_call_operand.vmem [shape: f32[64,1], index: 2, kind: input, shape index: {}]
  %s3 = inlined_call_operand.vmem [shape: f32[2,64,256], index: 3, kind: output, shape index: {}]
  %s4 = sld [smem:[#allocation0]]
  $region45: #{mono_sceneflow_decoder_lstm.12} parent=0
    _
  %s6 = ssub.s32 1, %s4
  %s7 = scalar_select 0, %s6, %s4
  loop: start=0, step=1, limit=4
  $region2: #{mono_sceneflow_decoder_lstm.12} parent=0 // loop_pre_header
    _
  $region3: #{mono_sceneflow_decoder_lstm.12} parent=0 // loop_header
    %s9 = sphi 0, %s13
    %p10 = scmp.ge.s32.totalorder %s9, 4
    %s16 = sphi 0, %s35
    %s17 = sphi 0, %s31
    %s18 = sphi 0, %s27
    %s19 = sphi 0, %s16
    %s20 = sphi 0, %s17
    %s21 = sphi 0, %s18
    %s22 = sphi 0, %s19
    %s23 = sphi 0, %s20
    %s24 = sphi 0, %s21
    %s40 = sphi 0, %s42
    %s43 = sphi 0, %s40
    %s44 = sphi 0, %s43
    %s60 = sphi 0, %s44
    %s66 = sphi 0, %s68
    %s69 = sphi 0, %s66
    %s70 = sphi 0, %s69
    %s86 = sphi 0, %s70
    %s92 = sphi 0, %s94
    %s95 = sphi 0, %s92
    %s96 = sphi 0, %s95
    %s112 = sphi 0, %s96
    %s122 = sphi 0, %s124
    %s125 = sphi 0, %s122
    %s126 = sphi 0, %s125
    %s142 = sphi 0, %s126
  $region4: #{mono_sceneflow_decoder_lstm.12} parent=0 // loop_header_branch
    %12 = sbr.rel (%p10) target = $region8
  $region5: #{mono_sceneflow_decoder_lstm.12} parent=0 // loop_body
    %s14 = ssub.s32 %s9, 1
    %s15 = ssub.s32 %s9, 2
    %s25 = sadd.s32 1, %s18
    %p26 = scmp.ge.s32.totalorder %s25, 1
    %s27 = scalar_select %p26, 0, %s25
    %s28 = sadd.s32 1, %s17
    %s29 = scalar_select %p26, %s28, %s17
    %p30 = scmp.ge.s32.totalorder %s29, 1
    %s31 = scalar_select %p30, 0, %s29
    %s32 = sadd.s32 1, %s16
    %s33 = scalar_select %p30, %s32, %s16
    %p34 = scmp.ge.s32.totalorder %s33, 2
    %s35 = scalar_select %p34, 0, %s33
    %s36 = ssub.s32 %s16, %s35
    %s37 = ssub.s32 %s18, %s27
    %s38 = sor.u32 %s36, %s37
    %p39 = scmp.eq.s32.totalorder %s38, 0
    %s41 = sadd.s32 %s40, 1
    %s42 = scalar_select %p39, %s40, %s41
    %p45 = pneg %p39
    %p46 = scmp.eq.s32.totalorder %s9, 1
    %p47 = por %p45, %p46
    %p48 = scmp.ne.s32.totalorder %s40, %s43
    %p49 = scmp.eq.s32.totalorder %s9, 0
    %p50 = por %p48, %p49
    %p51 = scmp.ne.s32.totalorder %s40, %s43
    %p52 = scmp.eq.s32.totalorder %s14, 1
    %p53 = por %p51, %p52
    %p54 = scmp.ne.s32.totalorder %s43, %s44
    %p55 = scmp.eq.s32.totalorder %s14, 0
    %p56 = por %p54, %p55
    %p57 = scmp.ne.s32.totalorder %s43, %s44
    %p58 = scmp.eq.s32.totalorder %s15, 1
    %p59 = por %p57, %p58
    %p61 = scmp.ne.s32.totalorder %s44, %s60
    %p62 = scmp.eq.s32.totalorder %s15, 0
    %p63 = por %p61, %p62
    %s64 = ssub.s32 %s17, %s31
    %p65 = scmp.eq.s32.totalorder %s64, 0
    %s67 = sadd.s32 %s66, 1
    %s68 = scalar_select %p65, %s66, %s67
    %p71 = pneg %p65
    %p72 = scmp.eq.s32.totalorder %s9, 1
    %p73 = por %p71, %p72
    %p74 = scmp.ne.s32.totalorder %s66, %s69
    %p75 = scmp.eq.s32.totalorder %s9, 0
    %p76 = por %p74, %p75
    %p77 = scmp.ne.s32.totalorder %s66, %s69
    %p78 = scmp.eq.s32.totalorder %s14, 1
    %p79 = por %p77, %p78
    %p80 = scmp.ne.s32.totalorder %s69, %s70
    %p81 = scmp.eq.s32.totalorder %s14, 0
    %p82 = por %p80, %p81
    %p83 = scmp.ne.s32.totalorder %s69, %s70
    %p84 = scmp.eq.s32.totalorder %s15, 1
    %p85 = por %p83, %p84
    %p87 = scmp.ne.s32.totalorder %s70, %s86
    %p88 = scmp.eq.s32.totalorder %s15, 0
    %p89 = por %p87, %p88
    %s90 = ssub.s32 %s17, %s31
    %p91 = scmp.eq.s32.totalorder %s90, 0
    %s93 = sadd.s32 %s92, 1
    %s94 = scalar_select %p91, %s92, %s93
    %p97 = pneg %p91
    %p98 = scmp.eq.s32.totalorder %s9, 1
    %p99 = por %p97, %p98
    %p100 = scmp.ne.s32.totalorder %s92, %s95
    %p101 = scmp.eq.s32.totalorder %s9, 0
    %p102 = por %p100, %p101
    %p103 = scmp.ne.s32.totalorder %s92, %s95
    %p104 = scmp.eq.s32.totalorder %s14, 1
    %p105 = por %p103, %p104
    %p106 = scmp.ne.s32.totalorder %s95, %s96
    %p107 = scmp.eq.s32.totalorder %s14, 0
    %p108 = por %p106, %p107
    %p109 = scmp.ne.s32.totalorder %s95, %s96
    %p110 = scmp.eq.s32.totalorder %s15, 1
    %p111 = por %p109, %p110
    %p113 = scmp.ne.s32.totalorder %s96, %s112
    %p114 = scmp.eq.s32.totalorder %s15, 0
    %p115 = por %p113, %p114
    %s116 = ssub.s32 %s16, %s35
    %s117 = ssub.s32 %s17, %s31
    %s118 = sor.u32 %s116, %s117
    %s119 = ssub.s32 %s18, %s27
    %s120 = sor.u32 %s118, %s119
    %p121 = scmp.eq.s32.totalorder %s120, 0
    %s123 = sadd.s32 %s122, 1
    %s124 = scalar_select %p121, %s122, %s123
    %p127 = pneg %p121
    %p128 = scmp.eq.s32.totalorder %s9, 1
    %p129 = por %p127, %p128
    %p130 = scmp.ne.s32.totalorder %s122, %s125
    %p131 = scmp.eq.s32.totalorder %s9, 0
    %p132 = por %p130, %p131
    %p133 = scmp.ne.s32.totalorder %s122, %s125
    %p134 = scmp.eq.s32.totalorder %s14, 1
    %p135 = por %p133, %p134
    %p136 = scmp.ne.s32.totalorder %s125, %s126
    %p137 = scmp.eq.s32.totalorder %s14, 0
    %p138 = por %p136, %p137
    %p139 = scmp.ne.s32.totalorder %s125, %s126
    %p140 = scmp.eq.s32.totalorder %s15, 1
    %p141 = por %p139, %p140
    %p143 = scmp.ne.s32.totalorder %s126, %s142
    %p144 = scmp.eq.s32.totalorder %s15, 0
    %p145 = por %p143, %p144
    %p146 = scmp.le.s32.totalorder 1, %s9
    %p147 = scmp.lt.s32.totalorder %s9, 3
    %p148 = pnand %p146, %p147
    %p149 = pneg %p148
    // Predicated region
    $region9: #{mono_sceneflow_decoder_lstm.12} parent=5 // pred_check
      _
    $region10: #{mono_sceneflow_decoder_lstm.12} parent=5 // pred_check_branch
      %151 = sbr.rel (%p148) target = $region12
    $region11: #{mono_sceneflow_decoder_lstm.12} parent=5 // pred_region
      %s152 = ssub.s32 %s9, 1
      // Predicated region
      $region13: #{mono_sceneflow_decoder_lstm.12} parent=11 // pred_check
        %p153 = pneg %p82
      $region14: #{mono_sceneflow_decoder_lstm.12} parent=11 // pred_check_branch
        %155 = sbr.rel (%p153) target = $region16
      $region15: #{mono_sceneflow_decoder_lstm.12} parent=11 // pred_region
        %s156 = smul.u32 8, %s20
        %p157 = scmp.lt.s32.totalorder %s156, 7
        %s158 = scalar_select %p157, %s156, 7
        %s159 = smul.addr %s158, 9
        %s160 = smul.addr %s159, 4
        %s161 = scalar_lea.vmem %s1, %s160
        %s162 = smul.u32 8, %s20
      $region16: #{mono_sceneflow_decoder_lstm.12} parent=11 // pred_fallthru
        _
      // Predicated region
      $region17: #{mono_sceneflow_decoder_lstm.12} parent=11 // pred_check
        %p163 = pneg %p108
      $region18: #{mono_sceneflow_decoder_lstm.12} parent=11 // pred_check_branch
        %165 = sbr.rel (%p163) target = $region20
      $region19: #{mono_sceneflow_decoder_lstm.12} parent=11 // pred_region
        %s166 = smul.u32 8, %s20
        %p167 = scmp.lt.s32.totalorder %s166, 7
        %s168 = scalar_select %p167, %s166, 7
        %s169 = smul.addr %s168, 8
        %s170 = scalar_lea.vmem %s2, %s169
        %s171 = smul.u32 8, %s20
      $region20: #{mono_sceneflow_decoder_lstm.12} parent=11 // pred_fallthru
        _
    $region12: #{mono_sceneflow_decoder_lstm.12} parent=5 // pred_fallthru
      _
    %p172 = scmp.lt.s32.totalorder %s9, 2
    // Predicated region
    $region21: #{mono_sceneflow_decoder_lstm.12} parent=5 // pred_check
      %p173 = pneg %p172
    $region22: #{mono_sceneflow_decoder_lstm.12} parent=5 // pred_check_branch
      %175 = sbr.rel (%p173) target = $region24
    $region23: #{mono_sceneflow_decoder_lstm.12} parent=5 // pred_region
      // Predicated region
      $region25: #{mono_sceneflow_decoder_lstm.12} parent=23 // pred_check
        %p176 = pneg %p50
      $region26: #{mono_sceneflow_decoder_lstm.12} parent=23 // pred_check_branch
        %178 = sbr.rel (%p176) target = $region28
      $region27: #{mono_sceneflow_decoder_lstm.12} parent=23 // pred_region
        %s179 = smul.u32 2, %s18
        %p180 = scmp.lt.s32.totalorder %s16, 1
        %s181 = scalar_select %p180, %s16, 1
        %p182 = scmp.lt.s32.totalorder %s179, 1
        %s183 = scalar_select %p182, %s179, 1
        %s184 = smul.addr %s181, 288
        %s185 = sadd.s32 %s183, %s184
        %s186 = smul.addr %s185, 4
        %s187 = scalar_lea.vmem %s0, %s186
        %s188 = smul.u32 2, %s18
      $region28: #{mono_sceneflow_decoder_lstm.12} parent=23 // pred_fallthru
        _
    $region24: #{mono_sceneflow_decoder_lstm.12} parent=5 // pred_fallthru
      _
    %p189 = scmp.le.s32.totalorder 1, %s9
    %p190 = scmp.lt.s32.totalorder %s9, 3
    %p191 = pnand %p189, %p190
    %p192 = pneg %p191
    // Predicated region
    $region29: #{mono_sceneflow_decoder_lstm.12} parent=5 // pred_check
      _
    $region30: #{mono_sceneflow_decoder_lstm.12} parent=5 // pred_check_branch
      %194 = sbr.rel (%p191) target = $region32
    $region31: #{mono_sceneflow_decoder_lstm.12} parent=5 // pred_region
      %s195 = ssub.s32 %s9, 1
      %s196 = smul.u32 2, %s21
      %p197 = scmp.lt.s32.totalorder %s19, 1
      %s198 = scalar_select %p197, %s19, 1
      %p199 = scmp.lt.s32.totalorder %s196, 1
      %s200 = scalar_select %p199, %s196, 1
      %s201 = smul.addr %s198, 288
      %s202 = sadd.s32 %s200, %s201
      %s203 = smul.addr %s202, 4
      %s204 = scalar_lea.vmem %s0, %s203
      %p205 = pneg %p56
      %p206 = pneg %p53
      %s207 = smul.u32 8, %s20
      %p208 = scmp.lt.s32.totalorder %s207, 7
      %s209 = scalar_select %p208, %s207, 7
      %s210 = smul.addr %s209, 9
      %s211 = smul.addr %s210, 4
      %s212 = scalar_lea.vmem %s1, %s211
      %p213 = pneg %p82
      %p214 = pneg %p79
      %s215 = smul.u32 8, %s20
      %p216 = scmp.lt.s32.totalorder %s215, 7
      %s217 = scalar_select %p216, %s215, 7
      %s218 = smul.addr %s217, 8
      %s219 = scalar_lea.vmem %s2, %s218
      %p220 = pneg %p108
      %p221 = pneg %p105
      %p222 = pneg %p138
      %p223 = pneg %p135
      %s224 = smul.u32 8, %s20
      %s225 = smul.u32 2, %s21
      %p226 = scmp.lt.s32.totalorder %s19, 1
      %s227 = scalar_select %p226, %s19, 1
      %p228 = scmp.lt.s32.totalorder %s224, 7
      %s229 = scalar_select %p228, %s224, 7
      %p230 = scmp.lt.s32.totalorder %s225, 1
      %s231 = scalar_select %p230, %s225, 1
      %s232 = smul.addr %s229, 2
      %s233 = sadd.s32 %s231, %s232
      %s234 = smul.addr %s227, 16
      %s235 = sadd.s32 %s233, %s234
      %s236 = smul.addr %s235, 8
      %s237 = scalar_lea.vmem %s3, %s236
      %s238 = smul.u32 2, %s21
      %p239 = scmp.lt.s32.totalorder %s19, 1
      %s240 = scalar_select %p239, %s19, 1
      %p241 = scmp.lt.s32.totalorder %s238, 1
      %s242 = scalar_select %p241, %s238, 1
      %s243 = smul.addr %s240, 288
      %s244 = sadd.s32 %s242, %s243
      %s245 = smul.addr %s244, 4
      %s246 = scalar_lea.vmem %s0, %s245
      %s247 = smul.u32 2, %s21
      %s248 = smul.u32 8, %s20
      %p249 = scmp.lt.s32.totalorder %s248, 7
      %s250 = scalar_select %p249, %s248, 7
      %s251 = smul.addr %s250, 9
      %s252 = smul.addr %s251, 4
      %s253 = scalar_lea.vmem %s1, %s252
      %s254 = smul.u32 8, %s20
      %s255 = smul.u32 8, %s20
      %p256 = scmp.lt.s32.totalorder %s255, 7
      %s257 = scalar_select %p256, %s255, 7
      %s258 = smul.addr %s257, 8
      %s259 = scalar_lea.vmem %s2, %s258
      %s260 = smul.u32 8, %s20
      %s261 = smul.u32 8, %s20
      %s262 = smul.u32 2, %s21
      %p263 = scmp.lt.s32.totalorder %s19, 1
      %s264 = scalar_select %p263, %s19, 1
      %p265 = scmp.lt.s32.totalorder %s261, 7
      %s266 = scalar_select %p265, %s261, 7
      %p267 = scmp.lt.s32.totalorder %s262, 1
      %s268 = scalar_select %p267, %s262, 1
      %s269 = smul.addr %s266, 2
      %s270 = sadd.s32 %s268, %s269
      %s271 = smul.addr %s264, 16
      %s272 = sadd.s32 %s270, %s271
      %s273 = smul.addr %s272, 8
      %s274 = scalar_lea.vmem %s3, %s273
      %s275 = smul.u32 8, %s20
      %s276 = smul.u32 2, %s21
      %v278 = vld [vmem:[%s253] sm:$0xff]
      %v279 = vld [vmem:[%s253 + $0x8] sm:$0xff]
      %v280 = vld [vmem:[%s253 + $0x10] sm:$0xff]
      %v281 = vld [vmem:[%s253 + $0x18] sm:$0xff]
      %v282 = vld [vmem:[%s253 + $0x20] sm:$0xf]
      %v283 = vld [vmem:[%s253 + $0x24] sm:$0xff]
      %v284 = vld [vmem:[%s253 + $0x2c] sm:$0xff]
      %v285 = vld [vmem:[%s253 + $0x34] sm:$0xff]
      %v286 = vld [vmem:[%s253 + $0x3c] sm:$0xff]
      %v287 = vld [vmem:[%s253 + $0x44] sm:$0xf]
      %v288 = vld [vmem:[%s253 + $0x48] sm:$0xff]
      %v289 = vld [vmem:[%s253 + $0x50] sm:$0xff]
      %v290 = vld [vmem:[%s253 + $0x58] sm:$0xff]
      %v291 = vld [vmem:[%s253 + $0x60] sm:$0xff]
      %v292 = vld [vmem:[%s253 + $0x68] sm:$0xf]
      %v293 = vld [vmem:[%s253 + $0x6c] sm:$0xff]
      %v294 = vld [vmem:[%s253 + $0x74] sm:$0xff]
      %v295 = vld [vmem:[%s253 + $0x7c] sm:$0xff]
      %v296 = vld [vmem:[%s253 + $0x84] sm:$0xff]
      %v297 = vld [vmem:[%s253 + $0x8c] sm:$0xf]
      %v298 = vld [vmem:[%s253 + $0x90] sm:$0xff]
      %v299 = vld [vmem:[%s253 + $0x98] sm:$0xff]
      %v300 = vld [vmem:[%s253 + $0xa0] sm:$0xff]
      %v301 = vld [vmem:[%s253 + $0xa8] sm:$0xff]
      %v302 = vld [vmem:[%s253 + $0xb0] sm:$0xf]
      %v303 = vld [vmem:[%s253 + $0xb4] sm:$0xff]
      %v304 = vld [vmem:[%s253 + $0xbc] sm:$0xff]
      %v305 = vld [vmem:[%s253 + $0xc4] sm:$0xff]
      %v306 = vld [vmem:[%s253 + $0xcc] sm:$0xff]
      %v307 = vld [vmem:[%s253 + $0xd4] sm:$0xf]
      %v308 = vld [vmem:[%s253 + $0xd8] sm:$0xff]
      %v309 = vld [vmem:[%s253 + $0xe0] sm:$0xff]
      %v310 = vld [vmem:[%s253 + $0xe8] sm:$0xff]
      %v311 = vld [vmem:[%s253 + $0xf0] sm:$0xff]
      %v312 = vld [vmem:[%s253 + $0xf8] sm:$0xf]
      %v313 = vld [vmem:[%s253 + $0xfc] sm:$0xff]
      %v314 = vld [vmem:[%s253 + $0x104] sm:$0xff]
      %v315 = vld [vmem:[%s253 + $0x10c] sm:$0xff]
      %v316 = vld [vmem:[%s253 + $0x114] sm:$0xff]
      %v317 = vld [vmem:[%s253 + $0x11c] sm:$0xf]
      %v318 = vld [vmem:[%s246] sm:$0xff]
      %v319 = vld [vmem:[%s246 + $0x8] sm:$0xff]
      %v320 = vld [vmem:[%s246 + $0x10] sm:$0xff]
      %v321 = vld [vmem:[%s246 + $0x18] sm:$0xff]
      %v322 = vld [vmem:[%s246 + $0x20] sm:$0xff]
      %v323 = vld [vmem:[%s246 + $0x28] sm:$0xff]
      %v324 = vld [vmem:[%s246 + $0x30] sm:$0xff]
      %v325 = vld [vmem:[%s246 + $0x38] sm:$0xff]
      %v326 = vld [vmem:[%s246 + $0x40] sm:$0xff]
      %v327 = vld [vmem:[%s246 + $0x48] sm:$0xff]
      %v328 = vld [vmem:[%s246 + $0x50] sm:$0xff]
      %v329 = vld [vmem:[%s246 + $0x58] sm:$0xff]
      %v330 = vld [vmem:[%s246 + $0x60] sm:$0xff]
      %v331 = vld [vmem:[%s246 + $0x68] sm:$0xff]
      %v332 = vld [vmem:[%s246 + $0x70] sm:$0xff]
      %v333 = vld [vmem:[%s246 + $0x78] sm:$0xff]
      %v334 = vld [vmem:[%s246 + $0x80] sm:$0xff]
      %v335 = vld [vmem:[%s246 + $0x88] sm:$0xff]
      %v336 = vld [vmem:[%s246 + $0x90] sm:$0xff]
      %v337 = vld [vmem:[%s246 + $0x98] sm:$0xff]
      %v338 = vld [vmem:[%s246 + $0xa0] sm:$0xff]
      %v339 = vld [vmem:[%s246 + $0xa8] sm:$0xff]
      %v340 = vld [vmem:[%s246 + $0xb0] sm:$0xff]
      %v341 = vld [vmem:[%s246 + $0xb8] sm:$0xff]
      %v342 = vld [vmem:[%s246 + $0xc0] sm:$0xff]
      %v343 = vld [vmem:[%s246 + $0xc8] sm:$0xff]
      %v344 = vld [vmem:[%s246 + $0xd0] sm:$0xff]
      %v345 = vld [vmem:[%s246 + $0xd8] sm:$0xff]
      %v346 = vld [vmem:[%s246 + $0xe0] sm:$0xff]
      %v347 = vld [vmem:[%s246 + $0xe8] sm:$0xff]
      %v348 = vld [vmem:[%s246 + $0xf0] sm:$0xff]
      %v349 = vld [vmem:[%s246 + $0xf8] sm:$0xff]
      %v350 = vld [vmem:[%s246 + $0x100] sm:$0xff]
      %v351 = vld [vmem:[%s246 + $0x108] sm:$0xff]
      %v352 = vld [vmem:[%s246 + $0x110] sm:$0xff]
      %v353 = vld [vmem:[%s246 + $0x118] sm:$0xff]
      %v354 = vld [vmem:[%s246 + $0x120] sm:$0xff]
      %v355 = vld [vmem:[%s246 + $0x128] sm:$0xff]
      %v356 = vld [vmem:[%s246 + $0x130] sm:$0xff]
      %v357 = vld [vmem:[%s246 + $0x138] sm:$0xff]
      %v358 = vld [vmem:[%s246 + $0x140] sm:$0xff]
      %v359 = vld [vmem:[%s246 + $0x148] sm:$0xff]
      %v360 = vld [vmem:[%s246 + $0x150] sm:$0xff]
      %v361 = vld [vmem:[%s246 + $0x158] sm:$0xff]
      %v362 = vld [vmem:[%s246 + $0x160] sm:$0xff]
      %v363 = vld [vmem:[%s246 + $0x168] sm:$0xff]
      %v364 = vld [vmem:[%s246 + $0x170] sm:$0xff]
      %v365 = vld [vmem:[%s246 + $0x178] sm:$0xff]
      %v366 = vld [vmem:[%s246 + $0x180] sm:$0xff]
      %v367 = vld [vmem:[%s246 + $0x188] sm:$0xff]
      %v368 = vld [vmem:[%s246 + $0x190] sm:$0xff]
      %v369 = vld [vmem:[%s246 + $0x198] sm:$0xff]
      %v370 = vld [vmem:[%s246 + $0x1a0] sm:$0xff]
      %v371 = vld [vmem:[%s246 + $0x1a8] sm:$0xff]
      %v372 = vld [vmem:[%s246 + $0x1b0] sm:$0xff]
      %v373 = vld [vmem:[%s246 + $0x1b8] sm:$0xff]
      %v374 = vld [vmem:[%s246 + $0x1c0] sm:$0xff]
      %v375 = vld [vmem:[%s246 + $0x1c8] sm:$0xff]
      %v376 = vld [vmem:[%s246 + $0x1d0] sm:$0xff]
      %v377 = vld [vmem:[%s246 + $0x1d8] sm:$0xff]
      %v378 = vld [vmem:[%s246 + $0x1e0] sm:$0xff]
      %v379 = vld [vmem:[%s246 + $0x1e8] sm:$0xff]
      %v380 = vld [vmem:[%s246 + $0x1f0] sm:$0xff]
      %v381 = vld [vmem:[%s246 + $0x1f8] sm:$0xff]
      %v382 = vld [vmem:[%s246 + $0x200] sm:$0xff]
      %v383 = vld [vmem:[%s246 + $0x208] sm:$0xff]
      %v384 = vld [vmem:[%s246 + $0x210] sm:$0xff]
      %v385 = vld [vmem:[%s246 + $0x218] sm:$0xff]
      %v386 = vld [vmem:[%s246 + $0x220] sm:$0xff]
      %v387 = vld [vmem:[%s246 + $0x228] sm:$0xff]
      %v388 = vld [vmem:[%s246 + $0x230] sm:$0xff]
      %v389 = vld [vmem:[%s246 + $0x238] sm:$0xff]
      %v390 = vld [vmem:[%s246 + $0x240] sm:$0xff]
      %v391 = vld [vmem:[%s246 + $0x248] sm:$0xff]
      %v392 = vld [vmem:[%s246 + $0x250] sm:$0xff]
      %v393 = vld [vmem:[%s246 + $0x258] sm:$0xff]
      %v394 = vld [vmem:[%s246 + $0x260] sm:$0xff]
      %v395 = vld [vmem:[%s246 + $0x268] sm:$0xff]
      %v396 = vld [vmem:[%s246 + $0x270] sm:$0xff]
      %v397 = vld [vmem:[%s246 + $0x278] sm:$0xff]
      %v398 = vld [vmem:[%s246 + $0x280] sm:$0xff]
      %v399 = vld [vmem:[%s246 + $0x288] sm:$0xff]
      %v400 = vld [vmem:[%s246 + $0x290] sm:$0xff]
      %v401 = vld [vmem:[%s246 + $0x298] sm:$0xff]
      %v402 = vld [vmem:[%s246 + $0x2a0] sm:$0xff]
      %v403 = vld [vmem:[%s246 + $0x2a8] sm:$0xff]
      %v404 = vld [vmem:[%s246 + $0x2b0] sm:$0xff]
      %v405 = vld [vmem:[%s246 + $0x2b8] sm:$0xff]
      %v406 = vld [vmem:[%s246 + $0x2c0] sm:$0xff]
      %v407 = vld [vmem:[%s246 + $0x2c8] sm:$0xff]
      %v408 = vld [vmem:[%s246 + $0x2d0] sm:$0xff]
      %v409 = vld [vmem:[%s246 + $0x2d8] sm:$0xff]
      %v410 = vld [vmem:[%s246 + $0x2e0] sm:$0xff]
      %v411 = vld [vmem:[%s246 + $0x2e8] sm:$0xff]
      %v412 = vld [vmem:[%s246 + $0x2f0] sm:$0xff]
      %v413 = vld [vmem:[%s246 + $0x2f8] sm:$0xff]
      %v414 = vld [vmem:[%s246 + $0x300] sm:$0xff]
      %v415 = vld [vmem:[%s246 + $0x308] sm:$0xff]
      %v416 = vld [vmem:[%s246 + $0x310] sm:$0xff]
      %v417 = vld [vmem:[%s246 + $0x318] sm:$0xff]
      %v418 = vld [vmem:[%s246 + $0x320] sm:$0xff]
      %v419 = vld [vmem:[%s246 + $0x328] sm:$0xff]
      %v420 = vld [vmem:[%s246 + $0x330] sm:$0xff]
      %v421 = vld [vmem:[%s246 + $0x338] sm:$0xff]
      %v422 = vld [vmem:[%s246 + $0x340] sm:$0xff]
      %v423 = vld [vmem:[%s246 + $0x348] sm:$0xff]
      %v424 = vld [vmem:[%s246 + $0x350] sm:$0xff]
      %v425 = vld [vmem:[%s246 + $0x358] sm:$0xff]
      %v426 = vld [vmem:[%s246 + $0x360] sm:$0xff]
      %v427 = vld [vmem:[%s246 + $0x368] sm:$0xff]
      %v428 = vld [vmem:[%s246 + $0x370] sm:$0xff]
      %v429 = vld [vmem:[%s246 + $0x378] sm:$0xff]
      %v430 = vld [vmem:[%s246 + $0x380] sm:$0xff]
      %v431 = vld [vmem:[%s246 + $0x388] sm:$0xff]
      %v432 = vld [vmem:[%s246 + $0x390] sm:$0xff]
      %v433 = vld [vmem:[%s246 + $0x398] sm:$0xff]
      %v434 = vld [vmem:[%s246 + $0x3a0] sm:$0xff]
      %v435 = vld [vmem:[%s246 + $0x3a8] sm:$0xff]
      %v436 = vld [vmem:[%s246 + $0x3b0] sm:$0xff]
      %v437 = vld [vmem:[%s246 + $0x3b8] sm:$0xff]
      %v438 = vld [vmem:[%s246 + $0x3c0] sm:$0xff]
      %v439 = vld [vmem:[%s246 + $0x3c8] sm:$0xff]
      %v440 = vld [vmem:[%s246 + $0x3d0] sm:$0xff]
      %v441 = vld [vmem:[%s246 + $0x3d8] sm:$0xff]
      %v442 = vld [vmem:[%s246 + $0x3e0] sm:$0xff]
      %v443 = vld [vmem:[%s246 + $0x3e8] sm:$0xff]
      %v444 = vld [vmem:[%s246 + $0x3f0] sm:$0xff]
      %v445 = vld [vmem:[%s246 + $0x3f8] sm:$0xff]
      %v446 = vld [vmem:[%s246 + $0x400] sm:$0xff]
      %v447 = vld [vmem:[%s246 + $0x408] sm:$0xff]
      %v448 = vld [vmem:[%s246 + $0x410] sm:$0xff]
      %v449 = vld [vmem:[%s246 + $0x418] sm:$0xff]
      %v450 = vld [vmem:[%s246 + $0x420] sm:$0xff]
      %v451 = vld [vmem:[%s246 + $0x428] sm:$0xff]
      %v452 = vld [vmem:[%s246 + $0x430] sm:$0xff]
      %v453 = vld [vmem:[%s246 + $0x438] sm:$0xff]
      %v454 = vld [vmem:[%s246 + $0x440] sm:$0xff]
      %v455 = vld [vmem:[%s246 + $0x448] sm:$0xff]
      %v456 = vld [vmem:[%s246 + $0x450] sm:$0xff]
      %v457 = vld [vmem:[%s246 + $0x458] sm:$0xff]
      %v458 = vld [vmem:[%s246 + $0x460] sm:$0xff]
      %v459 = vld [vmem:[%s246 + $0x468] sm:$0xff]
      %v460 = vld [vmem:[%s246 + $0x470] sm:$0xff]
      %v461 = vld [vmem:[%s246 + $0x478] sm:$0xff]
      %v462 = vld [vmem:[%s259] sm:$0xff]
      %v463 = vld [vmem:[%s259 + $0x8] sm:$0xff]
      %v464 = vld [vmem:[%s259 + $0x10] sm:$0xff]
      %v465 = vld [vmem:[%s259 + $0x18] sm:$0xff]
      %v466 = vld [vmem:[%s259 + $0x20] sm:$0xff]
      %v467 = vld [vmem:[%s259 + $0x28] sm:$0xff]
      %v468 = vld [vmem:[%s259 + $0x30] sm:$0xff]
      %v469 = vld [vmem:[%s259 + $0x38] sm:$0xff]
      %471 = vset.pattern.permute.xlu0 0
      %472 = vperm.xlu0 %471, %v462
      %v473 = vpop.permute.xlu0 %472
      %476 = vset.pattern.permute.xlu0 0
      %477 = vperm.xlu0 %476, %v463
      %v478 = vpop.permute.xlu0 %477
      %481 = vset.pattern.permute.xlu0 0
      %482 = vperm.xlu0 %481, %v464
      %v483 = vpop.permute.xlu0 %482
      %486 = vset.pattern.permute.xlu0 0
      %487 = vperm.xlu0 %486, %v465
      %v488 = vpop.permute.xlu0 %487
      %491 = vset.pattern.permute.xlu0 0
      %492 = vperm.xlu0 %491, %v466
      %v493 = vpop.permute.xlu0 %492
      %496 = vset.pattern.permute.xlu0 0
      %497 = vperm.xlu0 %496, %v467
      %v498 = vpop.permute.xlu0 %497
      %501 = vset.pattern.permute.xlu0 0
      %502 = vperm.xlu0 %501, %v468
      %v503 = vpop.permute.xlu0 %502
      %506 = vset.pattern.permute.xlu0 0
      %507 = vperm.xlu0 %506, %v469
      %v508 = vpop.permute.xlu0 %507
      %v550 = vunpack.c.l.b16 %v278
      %v551 = vunpack.c.h.b16 %v278
      %v552 = vunpack.c.l.b16 %v279
      %v553 = vunpack.c.h.b16 %v279
      %v554 = vunpack.c.l.b16 %v280
      %v555 = vunpack.c.h.b16 %v280
      %v556 = vunpack.c.l.b16 %v281
      %v557 = vunpack.c.h.b16 %v281
      %v558 = vunpack.c.l.b16 %v282
      %v559 = vunpack.c.l.b16 %v283
      %v560 = vunpack.c.h.b16 %v283
      %v561 = vunpack.c.l.b16 %v284
      %v562 = vunpack.c.h.b16 %v284
      %v563 = vunpack.c.l.b16 %v285
      %v564 = vunpack.c.h.b16 %v285
      %v565 = vunpack.c.l.b16 %v286
      %v566 = vunpack.c.h.b16 %v286
      %v567 = vunpack.c.l.b16 %v287
      %v568 = vunpack.c.l.b16 %v288
      %v569 = vunpack.c.h.b16 %v288
      %v570 = vunpack.c.l.b16 %v289
      %v571 = vunpack.c.h.b16 %v289
      %v572 = vunpack.c.l.b16 %v290
      %v573 = vunpack.c.h.b16 %v290
      %v574 = vunpack.c.l.b16 %v291
      %v575 = vunpack.c.h.b16 %v291
      %v576 = vunpack.c.l.b16 %v292
      %v577 = vunpack.c.l.b16 %v293
      %v578 = vunpack.c.h.b16 %v293
      %v579 = vunpack.c.l.b16 %v294
      %v580 = vunpack.c.h.b16 %v294
      %v581 = vunpack.c.l.b16 %v295
      %v582 = vunpack.c.h.b16 %v295
      %v583 = vunpack.c.l.b16 %v296
      %v584 = vunpack.c.h.b16 %v296
      %v585 = vunpack.c.l.b16 %v297
      %v586 = vunpack.c.l.b16 %v298
      %v587 = vunpack.c.h.b16 %v298
      %v588 = vunpack.c.l.b16 %v299
      %v589 = vunpack.c.h.b16 %v299
      %v590 = vunpack.c.l.b16 %v300
      %v591 = vunpack.c.h.b16 %v300
      %v592 = vunpack.c.l.b16 %v301
      %v593 = vunpack.c.h.b16 %v301
      %v594 = vunpack.c.l.b16 %v302
      %v595 = vunpack.c.l.b16 %v303
      %v596 = vunpack.c.h.b16 %v303
      %v597 = vunpack.c.l.b16 %v304
      %v598 = vunpack.c.h.b16 %v304
      %v599 = vunpack.c.l.b16 %v305
      %v600 = vunpack.c.h.b16 %v305
      %v601 = vunpack.c.l.b16 %v306
      %v602 = vunpack.c.h.b16 %v306
      %v603 = vunpack.c.l.b16 %v307
      %v604 = vunpack.c.l.b16 %v308
      %v605 = vunpack.c.h.b16 %v308
      %v606 = vunpack.c.l.b16 %v309
      %v607 = vunpack.c.h.b16 %v309
      %v608 = vunpack.c.l.b16 %v310
      %v609 = vunpack.c.h.b16 %v310
      %v610 = vunpack.c.l.b16 %v311
      %v611 = vunpack.c.h.b16 %v311
      %v612 = vunpack.c.l.b16 %v312
      %v613 = vunpack.c.l.b16 %v313
      %v614 = vunpack.c.h.b16 %v313
      %v615 = vunpack.c.l.b16 %v314
      %v616 = vunpack.c.h.b16 %v314
      %v617 = vunpack.c.l.b16 %v315
      %v618 = vunpack.c.h.b16 %v315
      %v619 = vunpack.c.l.b16 %v316
      %v620 = vunpack.c.h.b16 %v316
      %v621 = vunpack.c.l.b16 %v317
      %v622 = vpack.c.b16 %v559, %v550
      %v623 = vpack.c.b16 %v560, %v551
      %v624 = vpack.c.b16 %v561, %v552
      %v625 = vpack.c.b16 %v562, %v553
      %v626 = vpack.c.b16 %v563, %v554
      %v627 = vpack.c.b16 %v564, %v555
      %v628 = vpack.c.b16 %v565, %v556
      %v629 = vpack.c.b16 %v566, %v557
      %v630 = vpack.c.b16 %v567, %v558
      %v631 = vpack.c.b16 %v577, %v568
      %v632 = vpack.c.b16 %v578, %v569
      %v633 = vpack.c.b16 %v579, %v570
      %v634 = vpack.c.b16 %v580, %v571
      %v635 = vpack.c.b16 %v581, %v572
      %v636 = vpack.c.b16 %v582, %v573
      %v637 = vpack.c.b16 %v583, %v574
      %v638 = vpack.c.b16 %v584, %v575
      %v639 = vpack.c.b16 %v585, %v576
      %v640 = vpack.c.b16 %v595, %v586
      %v641 = vpack.c.b16 %v596, %v587
      %v642 = vpack.c.b16 %v597, %v588
      %v643 = vpack.c.b16 %v598, %v589
      %v644 = vpack.c.b16 %v599, %v590
      %v645 = vpack.c.b16 %v600, %v591
      %v646 = vpack.c.b16 %v601, %v592
      %v647 = vpack.c.b16 %v602, %v593
      %v648 = vpack.c.b16 %v603, %v594
      %v649 = vpack.c.b16 %v613, %v604
      %v650 = vpack.c.b16 %v614, %v605
      %v651 = vpack.c.b16 %v615, %v606
      %v652 = vpack.c.b16 %v616, %v607
      %v653 = vpack.c.b16 %v617, %v608
      %v654 = vpack.c.b16 %v618, %v609
      %v655 = vpack.c.b16 %v619, %v610
      %v656 = vpack.c.b16 %v620, %v611
      %v657 = vpack.c.b16 %v621, %v612
      %v838 = vunpack.c.l.b16 %v318
      %v839 = vunpack.c.h.b16 %v318
      %v840 = vunpack.c.l.b16 %v319
      %v841 = vunpack.c.h.b16 %v319
      %v842 = vunpack.c.l.b16 %v320
      %v843 = vunpack.c.h.b16 %v320
      %v844 = vunpack.c.l.b16 %v321
      %v845 = vunpack.c.h.b16 %v321
      %v846 = vunpack.c.l.b16 %v322
      %v847 = vunpack.c.h.b16 %v322
      %v848 = vunpack.c.l.b16 %v323
      %v849 = vunpack.c.h.b16 %v323
      %v850 = vunpack.c.l.b16 %v324
      %v851 = vunpack.c.h.b16 %v324
      %v852 = vunpack.c.l.b16 %v325
      %v853 = vunpack.c.h.b16 %v325
      %v854 = vunpack.c.l.b16 %v326
      %v855 = vunpack.c.h.b16 %v326
      %v856 = vunpack.c.l.b16 %v327
      %v857 = vunpack.c.h.b16 %v327
      %v858 = vunpack.c.l.b16 %v328
      %v859 = vunpack.c.h.b16 %v328
      %v860 = vunpack.c.l.b16 %v329
      %v861 = vunpack.c.h.b16 %v329
      %v862 = vunpack.c.l.b16 %v330
      %v863 = vunpack.c.h.b16 %v330
      %v864 = vunpack.c.l.b16 %v331
      %v865 = vunpack.c.h.b16 %v331
      %v866 = vunpack.c.l.b16 %v332
      %v867 = vunpack.c.h.b16 %v332
      %v868 = vunpack.c.l.b16 %v333
      %v869 = vunpack.c.h.b16 %v333
      %v870 = vunpack.c.l.b16 %v334
      %v871 = vunpack.c.h.b16 %v334
      %v872 = vunpack.c.l.b16 %v335
      %v873 = vunpack.c.h.b16 %v335
      %v874 = vunpack.c.l.b16 %v336
      %v875 = vunpack.c.h.b16 %v336
      %v876 = vunpack.c.l.b16 %v337
      %v877 = vunpack.c.h.b16 %v337
      %v878 = vunpack.c.l.b16 %v338
      %v879 = vunpack.c.h.b16 %v338
      %v880 = vunpack.c.l.b16 %v339
      %v881 = vunpack.c.h.b16 %v339
      %v882 = vunpack.c.l.b16 %v340
      %v883 = vunpack.c.h.b16 %v340
      %v884 = vunpack.c.l.b16 %v341
      %v885 = vunpack.c.h.b16 %v341
      %v886 = vunpack.c.l.b16 %v342
      %v887 = vunpack.c.h.b16 %v342
      %v888 = vunpack.c.l.b16 %v343
      %v889 = vunpack.c.h.b16 %v343
      %v890 = vunpack.c.l.b16 %v344
      %v891 = vunpack.c.h.b16 %v344
      %v892 = vunpack.c.l.b16 %v345
      %v893 = vunpack.c.h.b16 %v345
      %v894 = vunpack.c.l.b16 %v346
      %v895 = vunpack.c.h.b16 %v346
      %v896 = vunpack.c.l.b16 %v347
      %v897 = vunpack.c.h.b16 %v347
      %v898 = vunpack.c.l.b16 %v348
      %v899 = vunpack.c.h.b16 %v348
      %v900 = vunpack.c.l.b16 %v349
      %v901 = vunpack.c.h.b16 %v349
      %v902 = vunpack.c.l.b16 %v350
      %v903 = vunpack.c.h.b16 %v350
      %v904 = vunpack.c.l.b16 %v351
      %v905 = vunpack.c.h.b16 %v351
      %v906 = vunpack.c.l.b16 %v352
      %v907 = vunpack.c.h.b16 %v352
      %v908 = vunpack.c.l.b16 %v353
      %v909 = vunpack.c.h.b16 %v353
      %v910 = vunpack.c.l.b16 %v354
      %v911 = vunpack.c.h.b16 %v354
      %v912 = vunpack.c.l.b16 %v355
      %v913 = vunpack.c.h.b16 %v355
      %v914 = vunpack.c.l.b16 %v356
      %v915 = vunpack.c.h.b16 %v356
      %v916 = vunpack.c.l.b16 %v357
      %v917 = vunpack.c.h.b16 %v357
      %v918 = vunpack.c.l.b16 %v358
      %v919 = vunpack.c.h.b16 %v358
      %v920 = vunpack.c.l.b16 %v359
      %v921 = vunpack.c.h.b16 %v359
      %v922 = vunpack.c.l.b16 %v360
      %v923 = vunpack.c.h.b16 %v360
      %v924 = vunpack.c.l.b16 %v361
      %v925 = vunpack.c.h.b16 %v361
      %v926 = vunpack.c.l.b16 %v362
      %v927 = vunpack.c.h.b16 %v362
      %v928 = vunpack.c.l.b16 %v363
      %v929 = vunpack.c.h.b16 %v363
      %v930 = vunpack.c.l.b16 %v364
      %v931 = vunpack.c.h.b16 %v364
      %v932 = vunpack.c.l.b16 %v365
      %v933 = vunpack.c.h.b16 %v365
      %v934 = vunpack.c.l.b16 %v366
      %v935 = vunpack.c.h.b16 %v366
      %v936 = vunpack.c.l.b16 %v367
      %v937 = vunpack.c.h.b16 %v367
      %v938 = vunpack.c.l.b16 %v368
      %v939 = vunpack.c.h.b16 %v368
      %v940 = vunpack.c.l.b16 %v369
      %v941 = vunpack.c.h.b16 %v369
      %v942 = vunpack.c.l.b16 %v370
      %v943 = vunpack.c.h.b16 %v370
      %v944 = vunpack.c.l.b16 %v371
      %v945 = vunpack.c.h.b16 %v371
      %v946 = vunpack.c.l.b16 %v372
      %v947 = vunpack.c.h.b16 %v372
      %v948 = vunpack.c.l.b16 %v373
      %v949 = vunpack.c.h.b16 %v373
      %v950 = vunpack.c.l.b16 %v374
      %v951 = vunpack.c.h.b16 %v374
      %v952 = vunpack.c.l.b16 %v375
      %v953 = vunpack.c.h.b16 %v375
      %v954 = vunpack.c.l.b16 %v376
      %v955 = vunpack.c.h.b16 %v376
      %v956 = vunpack.c.l.b16 %v377
      %v957 = vunpack.c.h.b16 %v377
      %v958 = vunpack.c.l.b16 %v378
      %v959 = vunpack.c.h.b16 %v378
      %v960 = vunpack.c.l.b16 %v379
      %v961 = vunpack.c.h.b16 %v379
      %v962 = vunpack.c.l.b16 %v380
      %v963 = vunpack.c.h.b16 %v380
      %v964 = vunpack.c.l.b16 %v381
      %v965 = vunpack.c.h.b16 %v381
      %v966 = vunpack.c.l.b16 %v382
      %v967 = vunpack.c.h.b16 %v382
      %v968 = vunpack.c.l.b16 %v383
      %v969 = vunpack.c.h.b16 %v383
      %v970 = vunpack.c.l.b16 %v384
      %v971 = vunpack.c.h.b16 %v384
      %v972 = vunpack.c.l.b16 %v385
      %v973 = vunpack.c.h.b16 %v385
      %v974 = vunpack.c.l.b16 %v386
      %v975 = vunpack.c.h.b16 %v386
      %v976 = vunpack.c.l.b16 %v387
      %v977 = vunpack.c.h.b16 %v387
      %v978 = vunpack.c.l.b16 %v388
      %v979 = vunpack.c.h.b16 %v388
      %v980 = vunpack.c.l.b16 %v389
      %v981 = vunpack.c.h.b16 %v389
      %v982 = vunpack.c.l.b16 %v390
      %v983 = vunpack.c.h.b16 %v390
      %v984 = vunpack.c.l.b16 %v391
      %v985 = vunpack.c.h.b16 %v391
      %v986 = vunpack.c.l.b16 %v392
      %v987 = vunpack.c.h.b16 %v392
      %v988 = vunpack.c.l.b16 %v393
      %v989 = vunpack.c.h.b16 %v393
      %v990 = vunpack.c.l.b16 %v394
      %v991 = vunpack.c.h.b16 %v394
      %v992 = vunpack.c.l.b16 %v395
      %v993 = vunpack.c.h.b16 %v395
      %v994 = vunpack.c.l.b16 %v396
      %v995 = vunpack.c.h.b16 %v396
      %v996 = vunpack.c.l.b16 %v397
      %v997 = vunpack.c.h.b16 %v397
      %v998 = vunpack.c.l.b16 %v398
      %v999 = vunpack.c.h.b16 %v398
      %v1000 = vunpack.c.l.b16 %v399
      %v1001 = vunpack.c.h.b16 %v399
      %v1002 = vunpack.c.l.b16 %v400
      %v1003 = vunpack.c.h.b16 %v400
      %v1004 = vunpack.c.l.b16 %v401
      %v1005 = vunpack.c.h.b16 %v401
      %v1006 = vunpack.c.l.b16 %v402
      %v1007 = vunpack.c.h.b16 %v402
      %v1008 = vunpack.c.l.b16 %v403
      %v1009 = vunpack.c.h.b16 %v403
      %v1010 = vunpack.c.l.b16 %v404
      %v1011 = vunpack.c.h.b16 %v404
      %v1012 = vunpack.c.l.b16 %v405
      %v1013 = vunpack.c.h.b16 %v405
      %v1014 = vunpack.c.l.b16 %v406
      %v1015 = vunpack.c.h.b16 %v406
      %v1016 = vunpack.c.l.b16 %v407
      %v1017 = vunpack.c.h.b16 %v407
      %v1018 = vunpack.c.l.b16 %v408
      %v1019 = vunpack.c.h.b16 %v408
      %v1020 = vunpack.c.l.b16 %v409
      %v1021 = vunpack.c.h.b16 %v409
      %v1022 = vunpack.c.l.b16 %v410
      %v1023 = vunpack.c.h.b16 %v410
      %v1024 = vunpack.c.l.b16 %v411
      %v1025 = vunpack.c.h.b16 %v411
      %v1026 = vunpack.c.l.b16 %v412
      %v1027 = vunpack.c.h.b16 %v412
      %v1028 = vunpack.c.l.b16 %v413
      %v1029 = vunpack.c.h.b16 %v413
      %v1030 = vunpack.c.l.b16 %v414
      %v1031 = vunpack.c.h.b16 %v414
      %v1032 = vunpack.c.l.b16 %v415
      %v1033 = vunpack.c.h.b16 %v415
      %v1034 = vunpack.c.l.b16 %v416
      %v1035 = vunpack.c.h.b16 %v416
      %v1036 = vunpack.c.l.b16 %v417
      %v1037 = vunpack.c.h.b16 %v417
      %v1038 = vunpack.c.l.b16 %v418
      %v1039 = vunpack.c.h.b16 %v418
      %v1040 = vunpack.c.l.b16 %v419
      %v1041 = vunpack.c.h.b16 %v419
      %v1042 = vunpack.c.l.b16 %v420
      %v1043 = vunpack.c.h.b16 %v420
      %v1044 = vunpack.c.l.b16 %v421
      %v1045 = vunpack.c.h.b16 %v421
      %v1046 = vunpack.c.l.b16 %v422
      %v1047 = vunpack.c.h.b16 %v422
      %v1048 = vunpack.c.l.b16 %v423
      %v1049 = vunpack.c.h.b16 %v423
      %v1050 = vunpack.c.l.b16 %v424
      %v1051 = vunpack.c.h.b16 %v424
      %v1052 = vunpack.c.l.b16 %v425
      %v1053 = vunpack.c.h.b16 %v425
      %v1054 = vunpack.c.l.b16 %v426
      %v1055 = vunpack.c.h.b16 %v426
      %v1056 = vunpack.c.l.b16 %v427
      %v1057 = vunpack.c.h.b16 %v427
      %v1058 = vunpack.c.l.b16 %v428
      %v1059 = vunpack.c.h.b16 %v428
      %v1060 = vunpack.c.l.b16 %v429
      %v1061 = vunpack.c.h.b16 %v429
      %v1062 = vunpack.c.l.b16 %v430
      %v1063 = vunpack.c.h.b16 %v430
      %v1064 = vunpack.c.l.b16 %v431
      %v1065 = vunpack.c.h.b16 %v431
      %v1066 = vunpack.c.l.b16 %v432
      %v1067 = vunpack.c.h.b16 %v432
      %v1068 = vunpack.c.l.b16 %v433
      %v1069 = vunpack.c.h.b16 %v433
      %v1070 = vunpack.c.l.b16 %v434
      %v1071 = vunpack.c.h.b16 %v434
      %v1072 = vunpack.c.l.b16 %v435
      %v1073 = vunpack.c.h.b16 %v435
      %v1074 = vunpack.c.l.b16 %v436
      %v1075 = vunpack.c.h.b16 %v436
      %v1076 = vunpack.c.l.b16 %v437
      %v1077 = vunpack.c.h.b16 %v437
      %v1078 = vunpack.c.l.b16 %v438
      %v1079 = vunpack.c.h.b16 %v438
      %v1080 = vunpack.c.l.b16 %v439
      %v1081 = vunpack.c.h.b16 %v439
      %v1082 = vunpack.c.l.b16 %v440
      %v1083 = vunpack.c.h.b16 %v440
      %v1084 = vunpack.c.l.b16 %v441
      %v1085 = vunpack.c.h.b16 %v441
      %v1086 = vunpack.c.l.b16 %v442
      %v1087 = vunpack.c.h.b16 %v442
      %v1088 = vunpack.c.l.b16 %v443
      %v1089 = vunpack.c.h.b16 %v443
      %v1090 = vunpack.c.l.b16 %v444
      %v1091 = vunpack.c.h.b16 %v444
      %v1092 = vunpack.c.l.b16 %v445
      %v1093 = vunpack.c.h.b16 %v445
      %v1094 = vunpack.c.l.b16 %v446
      %v1095 = vunpack.c.h.b16 %v446
      %v1096 = vunpack.c.l.b16 %v447
      %v1097 = vunpack.c.h.b16 %v447
      %v1098 = vunpack.c.l.b16 %v448
      %v1099 = vunpack.c.h.b16 %v448
      %v1100 = vunpack.c.l.b16 %v449
      %v1101 = vunpack.c.h.b16 %v449
      %v1102 = vunpack.c.l.b16 %v450
      %v1103 = vunpack.c.h.b16 %v450
      %v1104 = vunpack.c.l.b16 %v451
      %v1105 = vunpack.c.h.b16 %v451
      %v1106 = vunpack.c.l.b16 %v452
      %v1107 = vunpack.c.h.b16 %v452
      %v1108 = vunpack.c.l.b16 %v453
      %v1109 = vunpack.c.h.b16 %v453
      %v1110 = vunpack.c.l.b16 %v454
      %v1111 = vunpack.c.h.b16 %v454
      %v1112 = vunpack.c.l.b16 %v455
      %v1113 = vunpack.c.h.b16 %v455
      %v1114 = vunpack.c.l.b16 %v456
      %v1115 = vunpack.c.h.b16 %v456
      %v1116 = vunpack.c.l.b16 %v457
      %v1117 = vunpack.c.h.b16 %v457
      %v1118 = vunpack.c.l.b16 %v458
      %v1119 = vunpack.c.h.b16 %v458
      %v1120 = vunpack.c.l.b16 %v459
      %v1121 = vunpack.c.h.b16 %v459
      %v1122 = vunpack.c.l.b16 %v460
      %v1123 = vunpack.c.h.b16 %v460
      %v1124 = vunpack.c.l.b16 %v461
      %v1125 = vunpack.c.h.b16 %v461
      %v1126 = vpack.c.b16 %v840, %v838
      %v1127 = vpack.c.b16 %v841, %v839
      %v1128 = vpack.c.b16 %v844, %v842
      %v1129 = vpack.c.b16 %v845, %v843
      %v1130 = vpack.c.b16 %v848, %v846
      %v1131 = vpack.c.b16 %v849, %v847
      %v1132 = vpack.c.b16 %v852, %v850
      %v1133 = vpack.c.b16 %v853, %v851
      %v1134 = vpack.c.b16 %v856, %v854
      %v1135 = vpack.c.b16 %v857, %v855
      %v1136 = vpack.c.b16 %v860, %v858
      %v1137 = vpack.c.b16 %v861, %v859
      %v1138 = vpack.c.b16 %v864, %v862
      %v1139 = vpack.c.b16 %v865, %v863
      %v1140 = vpack.c.b16 %v868, %v866
      %v1141 = vpack.c.b16 %v869, %v867
      %v1142 = vpack.c.b16 %v872, %v870
      %v1143 = vpack.c.b16 %v873, %v871
      %v1144 = vpack.c.b16 %v876, %v874
      %v1145 = vpack.c.b16 %v877, %v875
      %v1146 = vpack.c.b16 %v880, %v878
      %v1147 = vpack.c.b16 %v881, %v879
      %v1148 = vpack.c.b16 %v884, %v882
      %v1149 = vpack.c.b16 %v885, %v883
      %v1150 = vpack.c.b16 %v888, %v886
      %v1151 = vpack.c.b16 %v889, %v887
      %v1152 = vpack.c.b16 %v892, %v890
      %v1153 = vpack.c.b16 %v893, %v891
      %v1154 = vpack.c.b16 %v896, %v894
      %v1155 = vpack.c.b16 %v897, %v895
      %v1156 = vpack.c.b16 %v900, %v898
      %v1157 = vpack.c.b16 %v901, %v899
      %v1158 = vpack.c.b16 %v904, %v902
      %v1159 = vpack.c.b16 %v905, %v903
      %v1160 = vpack.c.b16 %v908, %v906
      %v1161 = vpack.c.b16 %v909, %v907
      %v1162 = vpack.c.b16 %v912, %v910
      %v1163 = vpack.c.b16 %v913, %v911
      %v1164 = vpack.c.b16 %v916, %v914
      %v1165 = vpack.c.b16 %v917, %v915
      %v1166 = vpack.c.b16 %v920, %v918
      %v1167 = vpack.c.b16 %v921, %v919
      %v1168 = vpack.c.b16 %v924, %v922
      %v1169 = vpack.c.b16 %v925, %v923
      %v1170 = vpack.c.b16 %v928, %v926
      %v1171 = vpack.c.b16 %v929, %v927
      %v1172 = vpack.c.b16 %v932, %v930
      %v1173 = vpack.c.b16 %v933, %v931
      %v1174 = vpack.c.b16 %v936, %v934
      %v1175 = vpack.c.b16 %v937, %v935
      %v1176 = vpack.c.b16 %v940, %v938
      %v1177 = vpack.c.b16 %v941, %v939
      %v1178 = vpack.c.b16 %v944, %v942
      %v1179 = vpack.c.b16 %v945, %v943
      %v1180 = vpack.c.b16 %v948, %v946
      %v1181 = vpack.c.b16 %v949, %v947
      %v1182 = vpack.c.b16 %v952, %v950
      %v1183 = vpack.c.b16 %v953, %v951
      %v1184 = vpack.c.b16 %v956, %v954
      %v1185 = vpack.c.b16 %v957, %v955
      %v1186 = vpack.c.b16 %v960, %v958
      %v1187 = vpack.c.b16 %v961, %v959
      %v1188 = vpack.c.b16 %v964, %v962
      %v1189 = vpack.c.b16 %v965, %v963
      %v1190 = vpack.c.b16 %v968, %v966
      %v1191 = vpack.c.b16 %v969, %v967
      %v1192 = vpack.c.b16 %v972, %v970
      %v1193 = vpack.c.b16 %v973, %v971
      %v1194 = vpack.c.b16 %v976, %v974
      %v1195 = vpack.c.b16 %v977, %v975
      %v1196 = vpack.c.b16 %v980, %v978
      %v1197 = vpack.c.b16 %v981, %v979
      %v1198 = vpack.c.b16 %v984, %v982
      %v1199 = vpack.c.b16 %v985, %v983
      %v1200 = vpack.c.b16 %v988, %v986
      %v1201 = vpack.c.b16 %v989, %v987
      %v1202 = vpack.c.b16 %v992, %v990
      %v1203 = vpack.c.b16 %v993, %v991
      %v1204 = vpack.c.b16 %v996, %v994
      %v1205 = vpack.c.b16 %v997, %v995
      %v1206 = vpack.c.b16 %v1000, %v998
      %v1207 = vpack.c.b16 %v1001, %v999
      %v1208 = vpack.c.b16 %v1004, %v1002
      %v1209 = vpack.c.b16 %v1005, %v1003
      %v1210 = vpack.c.b16 %v1008, %v1006
      %v1211 = vpack.c.b16 %v1009, %v1007
      %v1212 = vpack.c.b16 %v1012, %v1010
      %v1213 = vpack.c.b16 %v1013, %v1011
      %v1214 = vpack.c.b16 %v1016, %v1014
      %v1215 = vpack.c.b16 %v1017, %v1015
      %v1216 = vpack.c.b16 %v1020, %v1018
      %v1217 = vpack.c.b16 %v1021, %v1019
      %v1218 = vpack.c.b16 %v1024, %v1022
      %v1219 = vpack.c.b16 %v1025, %v1023
      %v1220 = vpack.c.b16 %v1028, %v1026
      %v1221 = vpack.c.b16 %v1029, %v1027
      %v1222 = vpack.c.b16 %v1032, %v1030
      %v1223 = vpack.c.b16 %v1033, %v1031
      %v1224 = vpack.c.b16 %v1036, %v1034
      %v1225 = vpack.c.b16 %v1037, %v1035
      %v1226 = vpack.c.b16 %v1040, %v1038
      %v1227 = vpack.c.b16 %v1041, %v1039
      %v1228 = vpack.c.b16 %v1044, %v1042
      %v1229 = vpack.c.b16 %v1045, %v1043
      %v1230 = vpack.c.b16 %v1048, %v1046
      %v1231 = vpack.c.b16 %v1049, %v1047
      %v1232 = vpack.c.b16 %v1052, %v1050
      %v1233 = vpack.c.b16 %v1053, %v1051
      %v1234 = vpack.c.b16 %v1056, %v1054
      %v1235 = vpack.c.b16 %v1057, %v1055
      %v1236 = vpack.c.b16 %v1060, %v1058
      %v1237 = vpack.c.b16 %v1061, %v1059
      %v1238 = vpack.c.b16 %v1064, %v1062
      %v1239 = vpack.c.b16 %v1065, %v1063
      %v1240 = vpack.c.b16 %v1068, %v1066
      %v1241 = vpack.c.b16 %v1069, %v1067
      %v1242 = vpack.c.b16 %v1072, %v1070
      %v1243 = vpack.c.b16 %v1073, %v1071
      %v1244 = vpack.c.b16 %v1076, %v1074
      %v1245 = vpack.c.b16 %v1077, %v1075
      %v1246 = vpack.c.b16 %v1080, %v1078
      %v1247 = vpack.c.b16 %v1081, %v1079
      %v1248 = vpack.c.b16 %v1084, %v1082
      %v1249 = vpack.c.b16 %v1085, %v1083
      %v1250 = vpack.c.b16 %v1088, %v1086
      %v1251 = vpack.c.b16 %v1089, %v1087
      %v1252 = vpack.c.b16 %v1092, %v1090
      %v1253 = vpack.c.b16 %v1093, %v1091
      %v1254 = vpack.c.b16 %v1096, %v1094
      %v1255 = vpack.c.b16 %v1097, %v1095
      %v1256 = vpack.c.b16 %v1100, %v1098
      %v1257 = vpack.c.b16 %v1101, %v1099
      %v1258 = vpack.c.b16 %v1104, %v1102
      %v1259 = vpack.c.b16 %v1105, %v1103
      %v1260 = vpack.c.b16 %v1108, %v1106
      %v1261 = vpack.c.b16 %v1109, %v1107
      %v1262 = vpack.c.b16 %v1112, %v1110
      %v1263 = vpack.c.b16 %v1113, %v1111
      %v1264 = vpack.c.b16 %v1116, %v1114
      %v1265 = vpack.c.b16 %v1117, %v1115
      %v1266 = vpack.c.b16 %v1120, %v1118
      %v1267 = vpack.c.b16 %v1121, %v1119
      %v1268 = vpack.c.b16 %v1124, %v1122
      %v1269 = vpack.c.b16 %v1125, %v1123
      %1414 = vmatprep.subr.bf16.mxu0 %v1127
      %1415 = vmatpush1.bf16.msra.mxu0 %v1126
      %1416 = vmatprep.subr.bf16.mxu0 %v1129
      %1417 = vmatpush1.bf16.msra.mxu0 %v1128
      %1418 = vmatprep.subr.bf16.mxu0 %v1131
      %1419 = vmatpush1.bf16.msra.mxu0 %v1130
      %1420 = vmatprep.subr.bf16.mxu0 %v1133
      %1421 = vmatpush1.bf16.msra.mxu0 %v1132
      %1422 = vmatprep.subr.bf16.mxu0 %v1135
      %1423 = vmatpush1.bf16.msra.mxu0 %v1134
      %1424 = vmatprep.subr.bf16.mxu0 %v1137
      %1425 = vmatpush1.bf16.msra.mxu0 %v1136
      %1426 = vmatprep.subr.bf16.mxu0 %v1139
      %1427 = vmatpush1.bf16.msra.mxu0 %v1138
      %1428 = vmatprep.subr.bf16.mxu0 %v1141
      %1429 = vmatpush1.bf16.msra.mxu0 %v1140
      %1430 = vmatprep.subr.bf16.mxu0 %v1143
      %1431 = vmatpush1.bf16.msra.mxu0 %v1142
      %1432 = vmatprep.subr.bf16.mxu0 %v1145
      %1433 = vmatpush1.bf16.msra.mxu0 %v1144
      %1434 = vmatprep.subr.bf16.mxu0 %v1147
      %1435 = vmatpush1.bf16.msra.mxu0 %v1146
      %1436 = vmatprep.subr.bf16.mxu0 %v1149
      %1437 = vmatpush1.bf16.msra.mxu0 %v1148
      %1438 = vmatprep.subr.bf16.mxu0 %v1151
      %1439 = vmatpush1.bf16.msra.mxu0 %v1150
      %1440 = vmatprep.subr.bf16.mxu0 %v1153
      %1441 = vmatpush1.bf16.msra.mxu0 %v1152
      %1442 = vmatprep.subr.bf16.mxu0 %v1155
      %1443 = vmatpush1.bf16.msra.mxu0 %v1154
      %1444 = vmatprep.subr.bf16.mxu0 %v1157
      %1445 = vmatpush1.bf16.msra.mxu0 %v1156
      %1446 = vmatprep.mubr.bf16.mxu0 %v623
      %1447 = vmatmul.mubr.bf16.gmra.mrb[0].mxu0 %v622
      %v1448 = vpop.f32.mrb[0].mxu0
      %v1449 = vadd.f32 %v473, %v1448
      %v1450 = vpop.f32.mrb[0].mxu0
      %v1451 = vadd.f32 %v473, %v1450
      %v1452 = vpop.f32.mrb[0].mxu0
      %v1453 = vadd.f32 %v478, %v1452
      %v1454 = vpop.f32.mrb[0].mxu0
      %v1455 = vadd.f32 %v478, %v1454
      %1456 = vmatprep.mubr.bf16.mxu0 %v632
      %1457 = vmatmul.mubr.bf16.gmra.mrb[0].mxu0 %v631
      %v1458 = vpop.f32.mrb[0].mxu0
      %v1459 = vadd.f32 %v483, %v1458
      %v1460 = vpop.f32.mrb[0].mxu0
      %v1461 = vadd.f32 %v483, %v1460
      %v1462 = vpop.f32.mrb[0].mxu0
      %v1463 = vadd.f32 %v488, %v1462
      %v1464 = vpop.f32.mrb[0].mxu0
      %v1465 = vadd.f32 %v488, %v1464
      %1466 = vmatprep.mubr.bf16.mxu0 %v641
      %1467 = vmatmul.mubr.bf16.gmra.mrb[0].mxu0 %v640
      %v1468 = vpop.f32.mrb[0].mxu0
      %v1469 = vadd.f32 %v493, %v1468
      %v1470 = vpop.f32.mrb[0].mxu0
      %v1471 = vadd.f32 %v493, %v1470
      %v1472 = vpop.f32.mrb[0].mxu0
      %v1473 = vadd.f32 %v498, %v1472
      %v1474 = vpop.f32.mrb[0].mxu0
      %v1475 = vadd.f32 %v498, %v1474
      %1476 = vmatprep.mubr.bf16.mxu0 %v650
      %1477 = vmatmul.mubr.bf16.gmra.mrb[0].mxu0 %v649
      %v1478 = vpop.f32.mrb[0].mxu0
      %v1479 = vadd.f32 %v503, %v1478
      %v1480 = vpop.f32.mrb[0].mxu0
      %v1481 = vadd.f32 %v503, %v1480
      %v1482 = vpop.f32.mrb[0].mxu0
      %v1483 = vadd.f32 %v508, %v1482
      %v1484 = vpop.f32.mrb[0].mxu0
      %v1485 = vadd.f32 %v508, %v1484
      %1486 = vdwg.mxu0
      %1487 = vmatprep.subr.bf16.mxu0 %v1159
      %1488 = vmatpush1.bf16.msra.mxu0 %v1158
      %1489 = vmatprep.subr.bf16.mxu0 %v1161
      %1490 = vmatpush1.bf16.msra.mxu0 %v1160
      %1491 = vmatprep.subr.bf16.mxu0 %v1163
      %1492 = vmatpush1.bf16.msra.mxu0 %v1162
      %1493 = vmatprep.subr.bf16.mxu0 %v1165
      %1494 = vmatpush1.bf16.msra.mxu0 %v1164
      %1495 = vmatprep.subr.bf16.mxu0 %v1167
      %1496 = vmatpush1.bf16.msra.mxu0 %v1166
      %1497 = vmatprep.subr.bf16.mxu0 %v1169
      %1498 = vmatpush1.bf16.msra.mxu0 %v1168
      %1499 = vmatprep.subr.bf16.mxu0 %v1171
      %1500 = vmatpush1.bf16.msra.mxu0 %v1170
      %1501 = vmatprep.subr.bf16.mxu0 %v1173
      %1502 = vmatpush1.bf16.msra.mxu0 %v1172
      %1503 = vmatprep.subr.bf16.mxu0 %v1175
      %1504 = vmatpush1.bf16.msra.mxu0 %v1174
      %1505 = vmatprep.subr.bf16.mxu0 %v1177
      %1506 = vmatpush1.bf16.msra.mxu0 %v1176
      %1507 = vmatprep.subr.bf16.mxu0 %v1179
      %1508 = vmatpush1.bf16.msra.mxu0 %v1178
      %1509 = vmatprep.subr.bf16.mxu0 %v1181
      %1510 = vmatpush1.bf16.msra.mxu0 %v1180
      %1511 = vmatprep.subr.bf16.mxu0 %v1183
      %1512 = vmatpush1.bf16.msra.mxu0 %v1182
      %1513 = vmatprep.subr.bf16.mxu0 %v1185
      %1514 = vmatpush1.bf16.msra.mxu0 %v1184
      %1515 = vmatprep.subr.bf16.mxu0 %v1187
      %1516 = vmatpush1.bf16.msra.mxu0 %v1186
      %1517 = vmatprep.subr.bf16.mxu0 %v1189
      %1518 = vmatpush1.bf16.msra.mxu0 %v1188
      %1519 = vmatprep.mubr.bf16.mxu0 %v625
      %1520 = vmatmul.mubr.bf16.gmra.mrb[0].mxu0 %v624
      %v1521 = vpop.f32.mrb[0].mxu0
      %v1522 = vadd.f32 %v1449, %v1521
      %v1523 = vpop.f32.mrb[0].mxu0
      %v1524 = vadd.f32 %v1451, %v1523
      %v1525 = vpop.f32.mrb[0].mxu0
      %v1526 = vadd.f32 %v1453, %v1525
      %v1527 = vpop.f32.mrb[0].mxu0
      %v1528 = vadd.f32 %v1455, %v1527
      %1529 = vmatprep.mubr.bf16.mxu0 %v634
      %1530 = vmatmul.mubr.bf16.gmra.mrb[0].mxu0 %v633
      %v1531 = vpop.f32.mrb[0].mxu0
      %v1532 = vadd.f32 %v1459, %v1531
      %v1533 = vpop.f32.mrb[0].mxu0
      %v1534 = vadd.f32 %v1461, %v1533
      %v1535 = vpop.f32.mrb[0].mxu0
      %v1536 = vadd.f32 %v1463, %v1535
      %v1537 = vpop.f32.mrb[0].mxu0
      %v1538 = vadd.f32 %v1465, %v1537
      %1539 = vmatprep.mubr.bf16.mxu0 %v643
      %1540 = vmatmul.mubr.bf16.gmra.mrb[0].mxu0 %v642
      %v1541 = vpop.f32.mrb[0].mxu0
      %v1542 = vadd.f32 %v1469, %v1541
      %v1543 = vpop.f32.mrb[0].mxu0
      %v1544 = vadd.f32 %v1471, %v1543
      %v1545 = vpop.f32.mrb[0].mxu0
      %v1546 = vadd.f32 %v1473, %v1545
      %v1547 = vpop.f32.mrb[0].mxu0
      %v1548 = vadd.f32 %v1475, %v1547
      %1549 = vmatprep.mubr.bf16.mxu0 %v652
      %1550 = vmatmul.mubr.bf16.gmra.mrb[0].mxu0 %v651
      %v1551 = vpop.f32.mrb[0].mxu0
      %v1552 = vadd.f32 %v1479, %v1551
      %v1553 = vpop.f32.mrb[0].mxu0
      %v1554 = vadd.f32 %v1481, %v1553
      %v1555 = vpop.f32.mrb[0].mxu0
      %v1556 = vadd.f32 %v1483, %v1555
      %v1557 = vpop.f32.mrb[0].mxu0
      %v1558 = vadd.f32 %v1485, %v1557
      %1559 = vdwg.mxu0
      %1560 = vmatprep.subr.bf16.mxu0 %v1191
      %1561 = vmatpush1.bf16.msra.mxu0 %v1190
      %1562 = vmatprep.subr.bf16.mxu0 %v1193
      %1563 = vmatpush1.bf16.msra.mxu0 %v1192
      %1564 = vmatprep.subr.bf16.mxu0 %v1195
      %1565 = vmatpush1.bf16.msra.mxu0 %v1194
      %1566 = vmatprep.subr.bf16.mxu0 %v1197
      %1567 = vmatpush1.bf16.msra.mxu0 %v1196
      %1568 = vmatprep.subr.bf16.mxu0 %v1199
      %1569 = vmatpush1.bf16.msra.mxu0 %v1198
      %1570 = vmatprep.subr.bf16.mxu0 %v1201
      %1571 = vmatpush1.bf16.msra.mxu0 %v1200
      %1572 = vmatprep.subr.bf16.mxu0 %v1203
      %1573 = vmatpush1.bf16.msra.mxu0 %v1202
      %1574 = vmatprep.subr.bf16.mxu0 %v1205
      %1575 = vmatpush1.bf16.msra.mxu0 %v1204
      %1576 = vmatprep.subr.bf16.mxu0 %v1207
      %1577 = vmatpush1.bf16.msra.mxu0 %v1206
      %1578 = vmatprep.subr.bf16.mxu0 %v1209
      %1579 = vmatpush1.bf16.msra.mxu0 %v1208
      %1580 = vmatprep.subr.bf16.mxu0 %v1211
      %1581 = vmatpush1.bf16.msra.mxu0 %v1210
      %1582 = vmatprep.subr.bf16.mxu0 %v1213
      %1583 = vmatpush1.bf16.msra.mxu0 %v1212
      %1584 = vmatprep.subr.bf16.mxu0 %v1215
      %1585 = vmatpush1.bf16.msra.mxu0 %v1214
      %1586 = vmatprep.subr.bf16.mxu0 %v1217
      %1587 = vmatpush1.bf16.msra.mxu0 %v1216
      %1588 = vmatprep.subr.bf16.mxu0 %v1219
      %1589 = vmatpush1.bf16.msra.mxu0 %v1218
      %1590 = vmatprep.subr.bf16.mxu0 %v1221
      %1591 = vmatpush1.bf16.msra.mxu0 %v1220
      %1592 = vmatprep.mubr.bf16.mxu0 %v627
      %1593 = vmatmul.mubr.bf16.gmra.mrb[0].mxu0 %v626
      %v1594 = vpop.f32.mrb[0].mxu0
      %v1595 = vadd.f32 %v1522, %v1594
      %v1596 = vpop.f32.mrb[0].mxu0
      %v1597 = vadd.f32 %v1524, %v1596
      %v1598 = vpop.f32.mrb[0].mxu0
      %v1599 = vadd.f32 %v1526, %v1598
      %v1600 = vpop.f32.mrb[0].mxu0
      %v1601 = vadd.f32 %v1528, %v1600
      %1602 = vmatprep.mubr.bf16.mxu0 %v636
      %1603 = vmatmul.mubr.bf16.gmra.mrb[0].mxu0 %v635
      %v1604 = vpop.f32.mrb[0].mxu0
      %v1605 = vadd.f32 %v1532, %v1604
      %v1606 = vpop.f32.mrb[0].mxu0
      %v1607 = vadd.f32 %v1534, %v1606
      %v1608 = vpop.f32.mrb[0].mxu0
      %v1609 = vadd.f32 %v1536, %v1608
      %v1610 = vpop.f32.mrb[0].mxu0
      %v1611 = vadd.f32 %v1538, %v1610
      %1612 = vmatprep.mubr.bf16.mxu0 %v645
      %1613 = vmatmul.mubr.bf16.gmra.mrb[0].mxu0 %v644
      %v1614 = vpop.f32.mrb[0].mxu0
      %v1615 = vadd.f32 %v1542, %v1614
      %v1616 = vpop.f32.mrb[0].mxu0
      %v1617 = vadd.f32 %v1544, %v1616
      %v1618 = vpop.f32.mrb[0].mxu0
      %v1619 = vadd.f32 %v1546, %v1618
      %v1620 = vpop.f32.mrb[0].mxu0
      %v1621 = vadd.f32 %v1548, %v1620
      %1622 = vmatprep.mubr.bf16.mxu0 %v654
      %1623 = vmatmul.mubr.bf16.gmra.mrb[0].mxu0 %v653
      %v1624 = vpop.f32.mrb[0].mxu0
      %v1625 = vadd.f32 %v1552, %v1624
      %v1626 = vpop.f32.mrb[0].mxu0
      %v1627 = vadd.f32 %v1554, %v1626
      %v1628 = vpop.f32.mrb[0].mxu0
      %v1629 = vadd.f32 %v1556, %v1628
      %v1630 = vpop.f32.mrb[0].mxu0
      %v1631 = vadd.f32 %v1558, %v1630
      %1632 = vdwg.mxu0
      %1633 = vmatprep.subr.bf16.mxu0 %v1223
      %1634 = vmatpush1.bf16.msra.mxu0 %v1222
      %1635 = vmatprep.subr.bf16.mxu0 %v1225
      %1636 = vmatpush1.bf16.msra.mxu0 %v1224
      %1637 = vmatprep.subr.bf16.mxu0 %v1227
      %1638 = vmatpush1.bf16.msra.mxu0 %v1226
      %1639 = vmatprep.subr.bf16.mxu0 %v1229
      %1640 = vmatpush1.bf16.msra.mxu0 %v1228
      %1641 = vmatprep.subr.bf16.mxu0 %v1231
      %1642 = vmatpush1.bf16.msra.mxu0 %v1230
      %1643 = vmatprep.subr.bf16.mxu0 %v1233
      %1644 = vmatpush1.bf16.msra.mxu0 %v1232
      %1645 = vmatprep.subr.bf16.mxu0 %v1235
      %1646 = vmatpush1.bf16.msra.mxu0 %v1234
      %1647 = vmatprep.subr.bf16.mxu0 %v1237
      %1648 = vmatpush1.bf16.msra.mxu0 %v1236
      %1649 = vmatprep.subr.bf16.mxu0 %v1239
      %1650 = vmatpush1.bf16.msra.mxu0 %v1238
      %1651 = vmatprep.subr.bf16.mxu0 %v1241
      %1652 = vmatpush1.bf16.msra.mxu0 %v1240
      %1653 = vmatprep.subr.bf16.mxu0 %v1243
      %1654 = vmatpush1.bf16.msra.mxu0 %v1242
      %1655 = vmatprep.subr.bf16.mxu0 %v1245
      %1656 = vmatpush1.bf16.msra.mxu0 %v1244
      %1657 = vmatprep.subr.bf16.mxu0 %v1247
      %1658 = vmatpush1.bf16.msra.mxu0 %v1246
      %1659 = vmatprep.subr.bf16.mxu0 %v1249
      %1660 = vmatpush1.bf16.msra.mxu0 %v1248
      %1661 = vmatprep.subr.bf16.mxu0 %v1251
      %1662 = vmatpush1.bf16.msra.mxu0 %v1250
      %1663 = vmatprep.subr.bf16.mxu0 %v1253
      %1664 = vmatpush1.bf16.msra.mxu0 %v1252
      %1665 = vmatprep.mubr.bf16.mxu0 %v629
      %1666 = vmatmul.mubr.bf16.gmra.mrb[0].mxu0 %v628
      %v1667 = vpop.f32.mrb[0].mxu0
      %v1668 = vadd.f32 %v1595, %v1667
      %v1669 = vpop.f32.mrb[0].mxu0
      %v1670 = vadd.f32 %v1597, %v1669
      %v1671 = vpop.f32.mrb[0].mxu0
      %v1672 = vadd.f32 %v1599, %v1671
      %v1673 = vpop.f32.mrb[0].mxu0
      %v1674 = vadd.f32 %v1601, %v1673
      %1675 = vmatprep.mubr.bf16.mxu0 %v638
      %1676 = vmatmul.mubr.bf16.gmra.mrb[0].mxu0 %v637
      %v1677 = vpop.f32.mrb[0].mxu0
      %v1678 = vadd.f32 %v1605, %v1677
      %v1679 = vpop.f32.mrb[0].mxu0
      %v1680 = vadd.f32 %v1607, %v1679
      %v1681 = vpop.f32.mrb[0].mxu0
      %v1682 = vadd.f32 %v1609, %v1681
      %v1683 = vpop.f32.mrb[0].mxu0
      %v1684 = vadd.f32 %v1611, %v1683
      %1685 = vmatprep.mubr.bf16.mxu0 %v647
      %1686 = vmatmul.mubr.bf16.gmra.mrb[0].mxu0 %v646
      %v1687 = vpop.f32.mrb[0].mxu0
      %v1688 = vadd.f32 %v1615, %v1687
      %v1689 = vpop.f32.mrb[0].mxu0
      %v1690 = vadd.f32 %v1617, %v1689
      %v1691 = vpop.f32.mrb[0].mxu0
      %v1692 = vadd.f32 %v1619, %v1691
      %v1693 = vpop.f32.mrb[0].mxu0
      %v1694 = vadd.f32 %v1621, %v1693
      %1695 = vmatprep.mubr.bf16.mxu0 %v656
      %1696 = vmatmul.mubr.bf16.gmra.mrb[0].mxu0 %v655
      %v1697 = vpop.f32.mrb[0].mxu0
      %v1698 = vadd.f32 %v1625, %v1697
      %v1699 = vpop.f32.mrb[0].mxu0
      %v1700 = vadd.f32 %v1627, %v1699
      %v1701 = vpop.f32.mrb[0].mxu0
      %v1702 = vadd.f32 %v1629, %v1701
      %v1703 = vpop.f32.mrb[0].mxu0
      %v1704 = vadd.f32 %v1631, %v1703
      %1705 = vdwg.mxu0
      %1706 = vmatprep.subr.bf16.mxu0 %v1255
      %1707 = vmatpush1.bf16.msra.mxu0 %v1254
      %1708 = vmatprep.subr.bf16.mxu0 %v1257
      %1709 = vmatpush1.bf16.msra.mxu0 %v1256
      %1710 = vmatprep.subr.bf16.mxu0 %v1259
      %1711 = vmatpush1.bf16.msra.mxu0 %v1258
      %1712 = vmatprep.subr.bf16.mxu0 %v1261
      %1713 = vmatpush1.bf16.msra.mxu0 %v1260
      %1714 = vmatprep.subr.bf16.mxu0 %v1263
      %1715 = vmatpush1.bf16.msra.mxu0 %v1262
      %1716 = vmatprep.subr.bf16.mxu0 %v1265
      %1717 = vmatpush1.bf16.msra.mxu0 %v1264
      %1718 = vmatprep.subr.bf16.mxu0 %v1267
      %1719 = vmatpush1.bf16.msra.mxu0 %v1266
      %1720 = vmatprep.subr.bf16.mxu0 %v1269
      %1721 = vmatpush1.bf16.msra.mxu0 %v1268
      %1722 = vmatprep.subr.bf16.mxu0 0
      %1723 = vmatpush1.bf16.msra.mxu0 0
      %1724 = vmatprep.subr.bf16.mxu0 0
      %1725 = vmatpush1.bf16.msra.mxu0 0
      %1726 = vmatprep.subr.bf16.mxu0 0
      %1727 = vmatpush1.bf16.msra.mxu0 0
      %1728 = vmatprep.subr.bf16.mxu0 0
      %1729 = vmatpush1.bf16.msra.mxu0 0
      %1730 = vmatprep.subr.bf16.mxu0 0
      %1731 = vmatpush1.bf16.msra.mxu0 0
      %1732 = vmatprep.subr.bf16.mxu0 0
      %1733 = vmatpush1.bf16.msra.mxu0 0
      %1734 = vmatprep.subr.bf16.mxu0 0
      %1735 = vmatpush1.bf16.msra.mxu0 0
      %1736 = vmatprep.subr.bf16.mxu0 0
      %1737 = vmatpush1.bf16.msra.mxu0 0
      %1738 = vmatprep.mubr.bf16.mxu0 0
      %1739 = vmatmul.mubr.bf16.gmra.mrb[0].mxu0 %v630
      %v1740 = vpop.f32.mrb[0].mxu0
      %v1741 = vadd.f32 %v1668, %v1740
      %v1742 = vpop.f32.mrb[0].mxu0
      %v1743 = vadd.f32 %v1670, %v1742
      %v1744 = vpop.f32.mrb[0].mxu0
      %v1745 = vadd.f32 %v1672, %v1744
      %v1746 = vpop.f32.mrb[0].mxu0
      %v1747 = vadd.f32 %v1674, %v1746
      %1748 = vmatprep.mubr.bf16.mxu0 0
      %1749 = vmatmul.mubr.bf16.gmra.mrb[0].mxu0 %v639
      %v1750 = vpop.f32.mrb[0].mxu0
      %v1751 = vadd.f32 %v1678, %v1750
      %v1752 = vpop.f32.mrb[0].mxu0
      %v1753 = vadd.f32 %v1680, %v1752
      %v1754 = vpop.f32.mrb[0].mxu0
      %v1755 = vadd.f32 %v1682, %v1754
      %v1756 = vpop.f32.mrb[0].mxu0
      %v1757 = vadd.f32 %v1684, %v1756
      %1758 = vmatprep.mubr.bf16.mxu0 0
      %1759 = vmatmul.mubr.bf16.gmra.mrb[0].mxu0 %v648
      %v1760 = vpop.f32.mrb[0].mxu0
      %v1761 = vadd.f32 %v1688, %v1760
      %v1762 = vpop.f32.mrb[0].mxu0
      %v1763 = vadd.f32 %v1690, %v1762
      %v1764 = vpop.f32.mrb[0].mxu0
      %v1765 = vadd.f32 %v1692, %v1764
      %v1766 = vpop.f32.mrb[0].mxu0
      %v1767 = vadd.f32 %v1694, %v1766
      %1768 = vmatprep.mubr.bf16.mxu0 0
      %1769 = vmatmul.mubr.bf16.gmra.mrb[0].mxu0 %v657
      %v1770 = vpop.f32.mrb[0].mxu0
      %v1771 = vadd.f32 %v1698, %v1770
      %v1772 = vpop.f32.mrb[0].mxu0
      %v1773 = vadd.f32 %v1700, %v1772
      %v1774 = vpop.f32.mrb[0].mxu0
      %v1775 = vadd.f32 %v1702, %v1774
      %v1776 = vpop.f32.mrb[0].mxu0
      %v1777 = vadd.f32 %v1704, %v1776
      %1778 = vdwg.mxu0
      %v1779 = vmul.f32 %v1741, 0.1
      %v1780 = vmul.f32 %v1743, 0.1
      %v1781 = vmul.f32 %v1745, 0.1
      %v1782 = vmul.f32 %v1747, 0.1
      %v1783 = vmul.f32 %v1751, 0.1
      %v1784 = vmul.f32 %v1753, 0.1
      %v1785 = vmul.f32 %v1755, 0.1
      %v1786 = vmul.f32 %v1757, 0.1
      %v1787 = vmul.f32 %v1761, 0.1
      %v1788 = vmul.f32 %v1763, 0.1
      %v1789 = vmul.f32 %v1765, 0.1
      %v1790 = vmul.f32 %v1767, 0.1
      %v1791 = vmul.f32 %v1771, 0.1
      %v1792 = vmul.f32 %v1773, 0.1
      %v1793 = vmul.f32 %v1775, 0.1
      %v1794 = vmul.f32 %v1777, 0.1
      %v1795 = vmax.f32 %v1741, %v1779
      %v1796 = vmax.f32 %v1743, %v1780
      %v1797 = vmax.f32 %v1745, %v1781
      %v1798 = vmax.f32 %v1747, %v1782
      %v1799 = vmax.f32 %v1751, %v1783
      %v1800 = vmax.f32 %v1753, %v1784
      %v1801 = vmax.f32 %v1755, %v1785
      %v1802 = vmax.f32 %v1757, %v1786
      %v1803 = vmax.f32 %v1761, %v1787
      %v1804 = vmax.f32 %v1763, %v1788
      %v1805 = vmax.f32 %v1765, %v1789
      %v1806 = vmax.f32 %v1767, %v1790
      %v1807 = vmax.f32 %v1771, %v1791
      %v1808 = vmax.f32 %v1773, %v1792
      %v1809 = vmax.f32 %v1775, %v1793
      %v1810 = vmax.f32 %v1777, %v1794
      %1811 = vst [vmem:[%s274] sm:$0xff] %v1795
      %1812 = vst [vmem:[%s274 + $0x8] sm:$0xff] %v1796
      %1813 = vst [vmem:[%s274 + $0x10] sm:$0xff] %v1797
      %1814 = vst [vmem:[%s274 + $0x18] sm:$0xff] %v1798
      %1815 = vst [vmem:[%s274 + $0x20] sm:$0xff] %v1799
      %1816 = vst [vmem:[%s274 + $0x28] sm:$0xff] %v1800
      %1817 = vst [vmem:[%s274 + $0x30] sm:$0xff] %v1801
      %1818 = vst [vmem:[%s274 + $0x38] sm:$0xff] %v1802
      %1819 = vst [vmem:[%s274 + $0x40] sm:$0xff] %v1803
      %1820 = vst [vmem:[%s274 + $0x48] sm:$0xff] %v1804
      %1821 = vst [vmem:[%s274 + $0x50] sm:$0xff] %v1805
      %1822 = vst [vmem:[%s274 + $0x58] sm:$0xff] %v1806
      %1823 = vst [vmem:[%s274 + $0x60] sm:$0xff] %v1807
      %1824 = vst [vmem:[%s274 + $0x68] sm:$0xff] %v1808
      %1825 = vst [vmem:[%s274 + $0x70] sm:$0xff] %v1809
      %1826 = vst [vmem:[%s274 + $0x78] sm:$0xff] %v1810
      %s1827 = smul.u32 8, %s20
      %s1828 = smul.u32 2, %s21
      %p1829 = scmp.lt.s32.totalorder %s19, 1
      %s1830 = scalar_select %p1829, %s19, 1
      %p1831 = scmp.lt.s32.totalorder %s1827, 7
      %s1832 = scalar_select %p1831, %s1827, 7
      %p1833 = scmp.lt.s32.totalorder %s1828, 1
      %s1834 = scalar_select %p1833, %s1828, 1
      %s1835 = smul.addr %s1832, 2
      %s1836 = sadd.s32 %s1834, %s1835
      %s1837 = smul.addr %s1830, 16
      %s1838 = sadd.s32 %s1836, %s1837
      %s1839 = smul.addr %s1838, 8
      %s1840 = scalar_lea.vmem %s3, %s1839
      // Predicated region
      $region33: #{mono_sceneflow_decoder_lstm.12} parent=31 // pred_check
        %p1841 = pneg %p135
      $region34: #{mono_sceneflow_decoder_lstm.12} parent=31 // pred_check_branch
        %1843 = sbr.rel (%p1841) target = $region36
      $region35: #{mono_sceneflow_decoder_lstm.12} parent=31 // pred_region
        %s1844 = smul.u32 8, %s20
        %s1845 = smul.u32 2, %s21
      $region36: #{mono_sceneflow_decoder_lstm.12} parent=31 // pred_fallthru
        _
    $region32: #{mono_sceneflow_decoder_lstm.12} parent=5 // pred_fallthru
      _
    %p1846 = scmp.le.s32.totalorder 2, %s9
    // Predicated region
    $region37: #{mono_sceneflow_decoder_lstm.12} parent=5 // pred_check
      %p1847 = pneg %p1846
    $region38: #{mono_sceneflow_decoder_lstm.12} parent=5 // pred_check_branch
      %1849 = sbr.rel (%p1847) target = $region40
    $region39: #{mono_sceneflow_decoder_lstm.12} parent=5 // pred_region
      %s1850 = ssub.s32 %s9, 2
      // Predicated region
      $region41: #{mono_sceneflow_decoder_lstm.12} parent=39 // pred_check
        %p1851 = pneg %p141
      $region42: #{mono_sceneflow_decoder_lstm.12} parent=39 // pred_check_branch
        %1853 = sbr.rel (%p1851) target = $region44
      $region43: #{mono_sceneflow_decoder_lstm.12} parent=39 // pred_region
        %s1854 = smul.u32 8, %s23
        %s1855 = smul.u32 2, %s24
        %p1856 = scmp.lt.s32.totalorder %s22, 1
        %s1857 = scalar_select %p1856, %s22, 1
        %p1858 = scmp.lt.s32.totalorder %s1854, 7
        %s1859 = scalar_select %p1858, %s1854, 7
        %p1860 = scmp.lt.s32.totalorder %s1855, 1
        %s1861 = scalar_select %p1860, %s1855, 1
        %s1862 = smul.addr %s1859, 2
        %s1863 = sadd.s32 %s1861, %s1862
        %s1864 = smul.addr %s1857, 16
        %s1865 = sadd.s32 %s1863, %s1864
        %s1866 = smul.addr %s1865, 8
        %s1867 = scalar_lea.vmem %s3, %s1866
      $region44: #{mono_sceneflow_decoder_lstm.12} parent=39 // pred_fallthru
        _
    $region40: #{mono_sceneflow_decoder_lstm.12} parent=5 // pred_fallthru
      _
  $region6: #{mono_sceneflow_decoder_lstm.12} parent=0 // loop_footer
    %s13 = sadd.s32 1, %s9
  $region7: #{mono_sceneflow_decoder_lstm.12} parent=0 // loop_footer_branch
    %8 = sbr.rel target = $region3
  $region8: #{mono_sceneflow_decoder_lstm.12} parent=0 // loop_exit
    _

// kernel: mono_sceneflow_decoder_lstm.13
$region0: #{mono_sceneflow_decoder_lstm.13}
  #allocation0 [shape = 'u32[]', space=smem, size = 0x4, offset = 0x4, fixed_abs, tag = 'smem constant byte address 0x4 - core index']
  #allocation1 [shape = 'u32[144,128]{1,0:T(1,128)}', space=vmem, size = 0x12000, scoped, tag = 'internal scratch']
  %s0 = inlined_call_operand.vmem [shape: bf16[2,576,256], index: 0, kind: input, shape index: {}]
  %s1 = inlined_call_operand.vmem [shape: bf16[8,576], index: 1, kind: input, shape index: {}]
  %s2 = inlined_call_operand.vmem [shape: f32[8,1], index: 2, kind: input, shape index: {}]
  %s3 = inlined_call_operand.vmem [shape: f32[2,8,256], index: 3, kind: output, shape index: {}]
  %s4 = sld [smem:[#allocation0]]
  $region45: #{mono_sceneflow_decoder_lstm.13} parent=0
    _
  %s6 = ssub.s32 1, %s4
  %s7 = scalar_select 0, %s6, %s4
  loop: start=0, step=1, limit=4
  $region2: #{mono_sceneflow_decoder_lstm.13} parent=0 // loop_pre_header
    _
  $region3: #{mono_sceneflow_decoder_lstm.13} parent=0 // loop_header
    %s9 = sphi 0, %s13
    %p10 = scmp.ge.s32.totalorder %s9, 4
    %s16 = sphi 0, %s35
    %s17 = sphi 0, %s31
    %s18 = sphi 0, %s27
    %s19 = sphi 0, %s16
    %s20 = sphi 0, %s17
    %s21 = sphi 0, %s18
    %s22 = sphi 0, %s19
    %s23 = sphi 0, %s20
    %s24 = sphi 0, %s21
    %s40 = sphi 0, %s42
    %s43 = sphi 0, %s40
    %s44 = sphi 0, %s43
    %s60 = sphi 0, %s44
    %s66 = sphi 0, %s68
    %s69 = sphi 0, %s66
    %s70 = sphi 0, %s69
    %s86 = sphi 0, %s70
    %s92 = sphi 0, %s94
    %s95 = sphi 0, %s92
    %s96 = sphi 0, %s95
    %s112 = sphi 0, %s96
    %s122 = sphi 0, %s124
    %s125 = sphi 0, %s122
    %s126 = sphi 0, %s125
    %s142 = sphi 0, %s126
  $region4: #{mono_sceneflow_decoder_lstm.13} parent=0 // loop_header_branch
    %12 = sbr.rel (%p10) target = $region8
  $region5: #{mono_sceneflow_decoder_lstm.13} parent=0 // loop_body
    %s14 = ssub.s32 %s9, 1
    %s15 = ssub.s32 %s9, 2
    %s25 = sadd.s32 1, %s18
    %p26 = scmp.ge.s32.totalorder %s25, 1
    %s27 = scalar_select %p26, 0, %s25
    %s28 = sadd.s32 1, %s17
    %s29 = scalar_select %p26, %s28, %s17
    %p30 = scmp.ge.s32.totalorder %s29, 1
    %s31 = scalar_select %p30, 0, %s29
    %s32 = sadd.s32 1, %s16
    %s33 = scalar_select %p30, %s32, %s16
    %p34 = scmp.ge.s32.totalorder %s33, 2
    %s35 = scalar_select %p34, 0, %s33
    %s36 = ssub.s32 %s16, %s35
    %s37 = ssub.s32 %s18, %s27
    %s38 = sor.u32 %s36, %s37
    %p39 = scmp.eq.s32.totalorder %s38, 0
    %s41 = sadd.s32 %s40, 1
    %s42 = scalar_select %p39, %s40, %s41
    %p45 = pneg %p39
    %p46 = scmp.eq.s32.totalorder %s9, 1
    %p47 = por %p45, %p46
    %p48 = scmp.ne.s32.totalorder %s40, %s43
    %p49 = scmp.eq.s32.totalorder %s9, 0
    %p50 = por %p48, %p49
    %p51 = scmp.ne.s32.totalorder %s40, %s43
    %p52 = scmp.eq.s32.totalorder %s14, 1
    %p53 = por %p51, %p52
    %p54 = scmp.ne.s32.totalorder %s43, %s44
    %p55 = scmp.eq.s32.totalorder %s14, 0
    %p56 = por %p54, %p55
    %p57 = scmp.ne.s32.totalorder %s43, %s44
    %p58 = scmp.eq.s32.totalorder %s15, 1
    %p59 = por %p57, %p58
    %p61 = scmp.ne.s32.totalorder %s44, %s60
    %p62 = scmp.eq.s32.totalorder %s15, 0
    %p63 = por %p61, %p62
    %s64 = ssub.s32 %s17, %s31
    %p65 = scmp.eq.s32.totalorder %s64, 0
    %s67 = sadd.s32 %s66, 1
    %s68 = scalar_select %p65, %s66, %s67
    %p71 = pneg %p65
    %p72 = scmp.eq.s32.totalorder %s9, 1
    %p73 = por %p71, %p72
    %p74 = scmp.ne.s32.totalorder %s66, %s69
    %p75 = scmp.eq.s32.totalorder %s9, 0
    %p76 = por %p74, %p75
    %p77 = scmp.ne.s32.totalorder %s66, %s69
    %p78 = scmp.eq.s32.totalorder %s14, 1
    %p79 = por %p77, %p78
    %p80 = scmp.ne.s32.totalorder %s69, %s70
    %p81 = scmp.eq.s32.totalorder %s14, 0
    %p82 = por %p80, %p81
    %p83 = scmp.ne.s32.totalorder %s69, %s70
    %p84 = scmp.eq.s32.totalorder %s15, 1
    %p85 = por %p83, %p84
    %p87 = scmp.ne.s32.totalorder %s70, %s86
    %p88 = scmp.eq.s32.totalorder %s15, 0
    %p89 = por %p87, %p88
    %s90 = ssub.s32 %s17, %s31
    %p91 = scmp.eq.s32.totalorder %s90, 0
    %s93 = sadd.s32 %s92, 1
    %s94 = scalar_select %p91, %s92, %s93
    %p97 = pneg %p91
    %p98 = scmp.eq.s32.totalorder %s9, 1
    %p99 = por %p97, %p98
    %p100 = scmp.ne.s32.totalorder %s92, %s95
    %p101 = scmp.eq.s32.totalorder %s9, 0
    %p102 = por %p100, %p101
    %p103 = scmp.ne.s32.totalorder %s92, %s95
    %p104 = scmp.eq.s32.totalorder %s14, 1
    %p105 = por %p103, %p104
    %p106 = scmp.ne.s32.totalorder %s95, %s96
    %p107 = scmp.eq.s32.totalorder %s14, 0
    %p108 = por %p106, %p107
    %p109 = scmp.ne.s32.totalorder %s95, %s96
    %p110 = scmp.eq.s32.totalorder %s15, 1
    %p111 = por %p109, %p110
    %p113 = scmp.ne.s32.totalorder %s96, %s112
    %p114 = scmp.eq.s32.totalorder %s15, 0
    %p115 = por %p113, %p114
    %s116 = ssub.s32 %s16, %s35
    %s117 = ssub.s32 %s17, %s31
    %s118 = sor.u32 %s116, %s117
    %s119 = ssub.s32 %s18, %s27
    %s120 = sor.u32 %s118, %s119
    %p121 = scmp.eq.s32.totalorder %s120, 0
    %s123 = sadd.s32 %s122, 1
    %s124 = scalar_select %p121, %s122, %s123
    %p127 = pneg %p121
    %p128 = scmp.eq.s32.totalorder %s9, 1
    %p129 = por %p127, %p128
    %p130 = scmp.ne.s32.totalorder %s122, %s125
    %p131 = scmp.eq.s32.totalorder %s9, 0
    %p132 = por %p130, %p131
    %p133 = scmp.ne.s32.totalorder %s122, %s125
    %p134 = scmp.eq.s32.totalorder %s14, 1
    %p135 = por %p133, %p134
    %p136 = scmp.ne.s32.totalorder %s125, %s126
    %p137 = scmp.eq.s32.totalorder %s14, 0
    %p138 = por %p136, %p137
    %p139 = scmp.ne.s32.totalorder %s125, %s126
    %p140 = scmp.eq.s32.totalorder %s15, 1
    %p141 = por %p139, %p140
    %p143 = scmp.ne.s32.totalorder %s126, %s142
    %p144 = scmp.eq.s32.totalorder %s15, 0
    %p145 = por %p143, %p144
    %p146 = scmp.le.s32.totalorder 1, %s9
    %p147 = scmp.lt.s32.totalorder %s9, 3
    %p148 = pnand %p146, %p147
    %p149 = pneg %p148
    // Predicated region
    $region9: #{mono_sceneflow_decoder_lstm.13} parent=5 // pred_check
      _
    $region10: #{mono_sceneflow_decoder_lstm.13} parent=5 // pred_check_branch
      %151 = sbr.rel (%p148) target = $region12
    $region11: #{mono_sceneflow_decoder_lstm.13} parent=5 // pred_region
      %s152 = ssub.s32 %s9, 1
      // Predicated region
      $region13: #{mono_sceneflow_decoder_lstm.13} parent=11 // pred_check
        %p153 = pneg %p82
      $region14: #{mono_sceneflow_decoder_lstm.13} parent=11 // pred_check_branch
        %155 = sbr.rel (%p153) target = $region16
      $region15: #{mono_sceneflow_decoder_lstm.13} parent=11 // pred_region
        %p156 = scmp.lt.s32.totalorder %s20, 0
        %s157 = scalar_select %p156, %s20, 0
        %s158 = smul.addr %s157, 5
        %s159 = smul.addr %s158, 4
        %s160 = scalar_lea.vmem %s1, %s159
      $region16: #{mono_sceneflow_decoder_lstm.13} parent=11 // pred_fallthru
        _
      // Predicated region
      $region17: #{mono_sceneflow_decoder_lstm.13} parent=11 // pred_check
        %p161 = pneg %p108
      $region18: #{mono_sceneflow_decoder_lstm.13} parent=11 // pred_check_branch
        %163 = sbr.rel (%p161) target = $region20
      $region19: #{mono_sceneflow_decoder_lstm.13} parent=11 // pred_region
        %p164 = scmp.lt.s32.totalorder %s20, 0
        %s165 = scalar_select %p164, %s20, 0
        %s166 = smul.addr %s165, 8
        %s167 = scalar_lea.vmem %s2, %s166
      $region20: #{mono_sceneflow_decoder_lstm.13} parent=11 // pred_fallthru
        _
    $region12: #{mono_sceneflow_decoder_lstm.13} parent=5 // pred_fallthru
      _
    %p168 = scmp.lt.s32.totalorder %s9, 2
    // Predicated region
    $region21: #{mono_sceneflow_decoder_lstm.13} parent=5 // pred_check
      %p169 = pneg %p168
    $region22: #{mono_sceneflow_decoder_lstm.13} parent=5 // pred_check_branch
      %171 = sbr.rel (%p169) target = $region24
    $region23: #{mono_sceneflow_decoder_lstm.13} parent=5 // pred_region
      // Predicated region
      $region25: #{mono_sceneflow_decoder_lstm.13} parent=23 // pred_check
        %p172 = pneg %p50
      $region26: #{mono_sceneflow_decoder_lstm.13} parent=23 // pred_check_branch
        %174 = sbr.rel (%p172) target = $region28
      $region27: #{mono_sceneflow_decoder_lstm.13} parent=23 // pred_region
        %s175 = smul.u32 2, %s18
        %p176 = scmp.lt.s32.totalorder %s16, 1
        %s177 = scalar_select %p176, %s16, 1
        %p178 = scmp.lt.s32.totalorder %s175, 1
        %s179 = scalar_select %p178, %s175, 1
        %s180 = smul.addr %s177, 144
        %s181 = sadd.s32 %s179, %s180
        %s182 = smul.addr %s181, 4
        %s183 = scalar_lea.vmem %s0, %s182
        %s184 = smul.u32 2, %s18
      $region28: #{mono_sceneflow_decoder_lstm.13} parent=23 // pred_fallthru
        _
    $region24: #{mono_sceneflow_decoder_lstm.13} parent=5 // pred_fallthru
      _
    %p185 = scmp.le.s32.totalorder 1, %s9
    %p186 = scmp.lt.s32.totalorder %s9, 3
    %p187 = pnand %p185, %p186
    %p188 = pneg %p187
    // Predicated region
    $region29: #{mono_sceneflow_decoder_lstm.13} parent=5 // pred_check
      _
    $region30: #{mono_sceneflow_decoder_lstm.13} parent=5 // pred_check_branch
      %190 = sbr.rel (%p187) target = $region32
    $region31: #{mono_sceneflow_decoder_lstm.13} parent=5 // pred_region
      %s191 = ssub.s32 %s9, 1
      %s192 = smul.u32 2, %s21
      %p193 = scmp.lt.s32.totalorder %s19, 1
      %s194 = scalar_select %p193, %s19, 1
      %p195 = scmp.lt.s32.totalorder %s192, 1
      %s196 = scalar_select %p195, %s192, 1
      %s197 = smul.addr %s194, 144
      %s198 = sadd.s32 %s196, %s197
      %s199 = smul.addr %s198, 4
      %s200 = scalar_lea.vmem %s0, %s199
      %p201 = pneg %p56
      %p202 = pneg %p53
      %p203 = scmp.lt.s32.totalorder %s20, 0
      %s204 = scalar_select %p203, %s20, 0
      %s205 = smul.addr %s204, 5
      %s206 = smul.addr %s205, 4
      %s207 = scalar_lea.vmem %s1, %s206
      %p208 = pneg %p82
      %p209 = pneg %p79
      %p210 = scmp.lt.s32.totalorder %s20, 0
      %s211 = scalar_select %p210, %s20, 0
      %s212 = smul.addr %s211, 8
      %s213 = scalar_lea.vmem %s2, %s212
      %p214 = pneg %p108
      %p215 = pneg %p105
      %p216 = pneg %p138
      %p217 = pneg %p135
      %s218 = smul.u32 2, %s21
      %p219 = scmp.lt.s32.totalorder %s19, 1
      %s220 = scalar_select %p219, %s19, 1
      %p221 = scmp.lt.s32.totalorder %s20, 0
      %s222 = scalar_select %p221, %s20, 0
      %p223 = scmp.lt.s32.totalorder %s218, 1
      %s224 = scalar_select %p223, %s218, 1
      %s225 = smul.addr %s222, 2
      %s226 = sadd.s32 %s224, %s225
      %s227 = smul.addr %s220, 2
      %s228 = sadd.s32 %s226, %s227
      %s229 = smul.addr %s228, 8
      %s230 = scalar_lea.vmem %s3, %s229
      %s231 = smul.u32 2, %s21
      %p232 = scmp.lt.s32.totalorder %s19, 1
      %s233 = scalar_select %p232, %s19, 1
      %p234 = scmp.lt.s32.totalorder %s231, 1
      %s235 = scalar_select %p234, %s231, 1
      %s236 = smul.addr %s233, 144
      %s237 = sadd.s32 %s235, %s236
      %s238 = smul.addr %s237, 4
      %s239 = scalar_lea.vmem %s0, %s238
      %s240 = smul.u32 2, %s21
      %p241 = scmp.lt.s32.totalorder %s20, 0
      %s242 = scalar_select %p241, %s20, 0
      %s243 = smul.addr %s242, 5
      %s244 = smul.addr %s243, 4
      %s245 = scalar_lea.vmem %s1, %s244
      %p246 = scmp.lt.s32.totalorder %s20, 0
      %s247 = scalar_select %p246, %s20, 0
      %s248 = smul.addr %s247, 8
      %s249 = scalar_lea.vmem %s2, %s248
      %s250 = smul.u32 2, %s21
      %p251 = scmp.lt.s32.totalorder %s19, 1
      %s252 = scalar_select %p251, %s19, 1
      %p253 = scmp.lt.s32.totalorder %s20, 0
      %s254 = scalar_select %p253, %s20, 0
      %p255 = scmp.lt.s32.totalorder %s250, 1
      %s256 = scalar_select %p255, %s250, 1
      %s257 = smul.addr %s254, 2
      %s258 = sadd.s32 %s256, %s257
      %s259 = smul.addr %s252, 2
      %s260 = sadd.s32 %s258, %s259
      %s261 = smul.addr %s260, 8
      %s262 = scalar_lea.vmem %s3, %s261
      %s263 = smul.u32 2, %s21
      %v265 = vld [vmem:[%s245] sm:$0xff]
      %v266 = vld [vmem:[%s245 + $0x8] sm:$0xff]
      %v267 = vld [vmem:[%s245 + $0x10] sm:$0xf]
      %v268 = vld [vmem:[%s239] sm:$0xff]
      %v269 = vld [vmem:[%s239 + $0x8] sm:$0xff]
      %v270 = vld [vmem:[%s239 + $0x10] sm:$0xff]
      %v271 = vld [vmem:[%s239 + $0x18] sm:$0xff]
      %v272 = vld [vmem:[%s239 + $0x20] sm:$0xff]
      %v273 = vld [vmem:[%s239 + $0x28] sm:$0xff]
      %v274 = vld [vmem:[%s239 + $0x30] sm:$0xff]
      %v275 = vld [vmem:[%s239 + $0x38] sm:$0xff]
      %v276 = vld [vmem:[%s239 + $0x40] sm:$0xff]
      %v277 = vld [vmem:[%s239 + $0x48] sm:$0xff]
      %v278 = vld [vmem:[%s239 + $0x50] sm:$0xff]
      %v279 = vld [vmem:[%s239 + $0x58] sm:$0xff]
      %v280 = vld [vmem:[%s239 + $0x60] sm:$0xff]
      %v281 = vld [vmem:[%s239 + $0x68] sm:$0xff]
      %v282 = vld [vmem:[%s239 + $0x70] sm:$0xff]
      %v283 = vld [vmem:[%s239 + $0x78] sm:$0xff]
      %v284 = vld [vmem:[%s239 + $0x80] sm:$0xff]
      %v285 = vld [vmem:[%s239 + $0x88] sm:$0xff]
      %v286 = vld [vmem:[%s239 + $0x90] sm:$0xff]
      %v287 = vld [vmem:[%s239 + $0x98] sm:$0xff]
      %v288 = vld [vmem:[%s239 + $0xa0] sm:$0xff]
      %v289 = vld [vmem:[%s239 + $0xa8] sm:$0xff]
      %v290 = vld [vmem:[%s239 + $0xb0] sm:$0xff]
      %v291 = vld [vmem:[%s239 + $0xb8] sm:$0xff]
      %v292 = vld [vmem:[%s239 + $0xc0] sm:$0xff]
      %v293 = vld [vmem:[%s239 + $0xc8] sm:$0xff]
      %v294 = vld [vmem:[%s239 + $0xd0] sm:$0xff]
      %v295 = vld [vmem:[%s239 + $0xd8] sm:$0xff]
      %v296 = vld [vmem:[%s239 + $0xe0] sm:$0xff]
      %v297 = vld [vmem:[%s239 + $0xe8] sm:$0xff]
      %v298 = vld [vmem:[%s239 + $0xf0] sm:$0xff]
      %v299 = vld [vmem:[%s239 + $0xf8] sm:$0xff]
      %v300 = vld [vmem:[%s239 + $0x100] sm:$0xff]
      %v301 = vld [vmem:[%s239 + $0x108] sm:$0xff]
      %v302 = vld [vmem:[%s239 + $0x110] sm:$0xff]
      %v303 = vld [vmem:[%s239 + $0x118] sm:$0xff]
      %v304 = vld [vmem:[%s239 + $0x120] sm:$0xff]
      %v305 = vld [vmem:[%s239 + $0x128] sm:$0xff]
      %v306 = vld [vmem:[%s239 + $0x130] sm:$0xff]
      %v307 = vld [vmem:[%s239 + $0x138] sm:$0xff]
      %v308 = vld [vmem:[%s239 + $0x140] sm:$0xff]
      %v309 = vld [vmem:[%s239 + $0x148] sm:$0xff]
      %v310 = vld [vmem:[%s239 + $0x150] sm:$0xff]
      %v311 = vld [vmem:[%s239 + $0x158] sm:$0xff]
      %v312 = vld [vmem:[%s239 + $0x160] sm:$0xff]
      %v313 = vld [vmem:[%s239 + $0x168] sm:$0xff]
      %v314 = vld [vmem:[%s239 + $0x170] sm:$0xff]
      %v315 = vld [vmem:[%s239 + $0x178] sm:$0xff]
      %v316 = vld [vmem:[%s239 + $0x180] sm:$0xff]
      %v317 = vld [vmem:[%s239 + $0x188] sm:$0xff]
      %v318 = vld [vmem:[%s239 + $0x190] sm:$0xff]
      %v319 = vld [vmem:[%s239 + $0x198] sm:$0xff]
      %v320 = vld [vmem:[%s239 + $0x1a0] sm:$0xff]
      %v321 = vld [vmem:[%s239 + $0x1a8] sm:$0xff]
      %v322 = vld [vmem:[%s239 + $0x1b0] sm:$0xff]
      %v323 = vld [vmem:[%s239 + $0x1b8] sm:$0xff]
      %v324 = vld [vmem:[%s239 + $0x1c0] sm:$0xff]
      %v325 = vld [vmem:[%s239 + $0x1c8] sm:$0xff]
      %v326 = vld [vmem:[%s239 + $0x1d0] sm:$0xff]
      %v327 = vld [vmem:[%s239 + $0x1d8] sm:$0xff]
      %v328 = vld [vmem:[%s239 + $0x1e0] sm:$0xff]
      %v329 = vld [vmem:[%s239 + $0x1e8] sm:$0xff]
      %v330 = vld [vmem:[%s239 + $0x1f0] sm:$0xff]
      %v331 = vld [vmem:[%s239 + $0x1f8] sm:$0xff]
      %v332 = vld [vmem:[%s239 + $0x200] sm:$0xff]
      %v333 = vld [vmem:[%s239 + $0x208] sm:$0xff]
      %v334 = vld [vmem:[%s239 + $0x210] sm:$0xff]
      %v335 = vld [vmem:[%s239 + $0x218] sm:$0xff]
      %v336 = vld [vmem:[%s239 + $0x220] sm:$0xff]
      %v337 = vld [vmem:[%s239 + $0x228] sm:$0xff]
      %v338 = vld [vmem:[%s239 + $0x230] sm:$0xff]
      %v339 = vld [vmem:[%s239 + $0x238] sm:$0xff]
      %v340 = vld [vmem:[%s249] sm:$0xff]
      %342 = vset.pattern.permute.xlu0 0
      %343 = vperm.xlu0 %342, %v340
      %v344 = vpop.permute.xlu0 %343
      %v349 = vunpack.c.l.b16 %v265
      %v350 = vunpack.c.h.b16 %v265
      %v351 = vunpack.c.l.b16 %v266
      %v352 = vunpack.c.h.b16 %v266
      %v353 = vunpack.c.l.b16 %v267
      %v354 = vpack.c.b16 %v349, %v349
      %v355 = vpack.c.b16 %v350, %v350
      %v356 = vpack.c.b16 %v351, %v351
      %v357 = vpack.c.b16 %v352, %v352
      %v358 = vpack.c.b16 %v353, %v353
      %v435 = vunpack.c.l.b16 %v268
      %v436 = vunpack.c.h.b16 %v268
      %v437 = vunpack.c.l.b16 %v269
      %v438 = vunpack.c.h.b16 %v269
      %v439 = vunpack.c.l.b16 %v270
      %v440 = vunpack.c.h.b16 %v270
      %v441 = vunpack.c.l.b16 %v271
      %v442 = vunpack.c.h.b16 %v271
      %v443 = vunpack.c.l.b16 %v272
      %v444 = vunpack.c.h.b16 %v272
      %v445 = vunpack.c.l.b16 %v273
      %v446 = vunpack.c.h.b16 %v273
      %v447 = vunpack.c.l.b16 %v274
      %v448 = vunpack.c.h.b16 %v274
      %v449 = vunpack.c.l.b16 %v275
      %v450 = vunpack.c.h.b16 %v275
      %v451 = vunpack.c.l.b16 %v276
      %v452 = vunpack.c.h.b16 %v276
      %v453 = vunpack.c.l.b16 %v277
      %v454 = vunpack.c.h.b16 %v277
      %v455 = vunpack.c.l.b16 %v278
      %v456 = vunpack.c.h.b16 %v278
      %v457 = vunpack.c.l.b16 %v279
      %v458 = vunpack.c.h.b16 %v279
      %v459 = vunpack.c.l.b16 %v280
      %v460 = vunpack.c.h.b16 %v280
      %v461 = vunpack.c.l.b16 %v281
      %v462 = vunpack.c.h.b16 %v281
      %v463 = vunpack.c.l.b16 %v282
      %v464 = vunpack.c.h.b16 %v282
      %v465 = vunpack.c.l.b16 %v283
      %v466 = vunpack.c.h.b16 %v283
      %v467 = vunpack.c.l.b16 %v284
      %v468 = vunpack.c.h.b16 %v284
      %v469 = vunpack.c.l.b16 %v285
      %v470 = vunpack.c.h.b16 %v285
      %v471 = vunpack.c.l.b16 %v286
      %v472 = vunpack.c.h.b16 %v286
      %v473 = vunpack.c.l.b16 %v287
      %v474 = vunpack.c.h.b16 %v287
      %v475 = vunpack.c.l.b16 %v288
      %v476 = vunpack.c.h.b16 %v288
      %v477 = vunpack.c.l.b16 %v289
      %v478 = vunpack.c.h.b16 %v289
      %v479 = vunpack.c.l.b16 %v290
      %v480 = vunpack.c.h.b16 %v290
      %v481 = vunpack.c.l.b16 %v291
      %v482 = vunpack.c.h.b16 %v291
      %v483 = vunpack.c.l.b16 %v292
      %v484 = vunpack.c.h.b16 %v292
      %v485 = vunpack.c.l.b16 %v293
      %v486 = vunpack.c.h.b16 %v293
      %v487 = vunpack.c.l.b16 %v294
      %v488 = vunpack.c.h.b16 %v294
      %v489 = vunpack.c.l.b16 %v295
      %v490 = vunpack.c.h.b16 %v295
      %v491 = vunpack.c.l.b16 %v296
      %v492 = vunpack.c.h.b16 %v296
      %v493 = vunpack.c.l.b16 %v297
      %v494 = vunpack.c.h.b16 %v297
      %v495 = vunpack.c.l.b16 %v298
      %v496 = vunpack.c.h.b16 %v298
      %v497 = vunpack.c.l.b16 %v299
      %v498 = vunpack.c.h.b16 %v299
      %v499 = vunpack.c.l.b16 %v300
      %v500 = vunpack.c.h.b16 %v300
      %v501 = vunpack.c.l.b16 %v301
      %v502 = vunpack.c.h.b16 %v301
      %v503 = vunpack.c.l.b16 %v302
      %v504 = vunpack.c.h.b16 %v302
      %v505 = vunpack.c.l.b16 %v303
      %v506 = vunpack.c.h.b16 %v303
      %v507 = vunpack.c.l.b16 %v304
      %v508 = vunpack.c.h.b16 %v304
      %v509 = vunpack.c.l.b16 %v305
      %v510 = vunpack.c.h.b16 %v305
      %v511 = vunpack.c.l.b16 %v306
      %v512 = vunpack.c.h.b16 %v306
      %v513 = vunpack.c.l.b16 %v307
      %v514 = vunpack.c.h.b16 %v307
      %v515 = vunpack.c.l.b16 %v308
      %v516 = vunpack.c.h.b16 %v308
      %v517 = vunpack.c.l.b16 %v309
      %v518 = vunpack.c.h.b16 %v309
      %v519 = vunpack.c.l.b16 %v310
      %v520 = vunpack.c.h.b16 %v310
      %v521 = vunpack.c.l.b16 %v311
      %v522 = vunpack.c.h.b16 %v311
      %v523 = vunpack.c.l.b16 %v312
      %v524 = vunpack.c.h.b16 %v312
      %v525 = vunpack.c.l.b16 %v313
      %v526 = vunpack.c.h.b16 %v313
      %v527 = vunpack.c.l.b16 %v314
      %v528 = vunpack.c.h.b16 %v314
      %v529 = vunpack.c.l.b16 %v315
      %v530 = vunpack.c.h.b16 %v315
      %v531 = vunpack.c.l.b16 %v316
      %v532 = vunpack.c.h.b16 %v316
      %v533 = vunpack.c.l.b16 %v317
      %v534 = vunpack.c.h.b16 %v317
      %v535 = vunpack.c.l.b16 %v318
      %v536 = vunpack.c.h.b16 %v318
      %v537 = vunpack.c.l.b16 %v319
      %v538 = vunpack.c.h.b16 %v319
      %v539 = vunpack.c.l.b16 %v320
      %v540 = vunpack.c.h.b16 %v320
      %v541 = vunpack.c.l.b16 %v321
      %v542 = vunpack.c.h.b16 %v321
      %v543 = vunpack.c.l.b16 %v322
      %v544 = vunpack.c.h.b16 %v322
      %v545 = vunpack.c.l.b16 %v323
      %v546 = vunpack.c.h.b16 %v323
      %v547 = vunpack.c.l.b16 %v324
      %v548 = vunpack.c.h.b16 %v324
      %v549 = vunpack.c.l.b16 %v325
      %v550 = vunpack.c.h.b16 %v325
      %v551 = vunpack.c.l.b16 %v326
      %v552 = vunpack.c.h.b16 %v326
      %v553 = vunpack.c.l.b16 %v327
      %v554 = vunpack.c.h.b16 %v327
      %v555 = vunpack.c.l.b16 %v328
      %v556 = vunpack.c.h.b16 %v328
      %v557 = vunpack.c.l.b16 %v329
      %v558 = vunpack.c.h.b16 %v329
      %v559 = vunpack.c.l.b16 %v330
      %v560 = vunpack.c.h.b16 %v330
      %v561 = vunpack.c.l.b16 %v331
      %v562 = vunpack.c.h.b16 %v331
      %v563 = vunpack.c.l.b16 %v332
      %v564 = vunpack.c.h.b16 %v332
      %v565 = vunpack.c.l.b16 %v333
      %v566 = vunpack.c.h.b16 %v333
      %v567 = vunpack.c.l.b16 %v334
      %v568 = vunpack.c.h.b16 %v334
      %v569 = vunpack.c.l.b16 %v335
      %v570 = vunpack.c.h.b16 %v335
      %v571 = vunpack.c.l.b16 %v336
      %v572 = vunpack.c.h.b16 %v336
      %v573 = vunpack.c.l.b16 %v337
      %v574 = vunpack.c.h.b16 %v337
      %v575 = vunpack.c.l.b16 %v338
      %v576 = vunpack.c.h.b16 %v338
      %v577 = vunpack.c.l.b16 %v339
      %v578 = vunpack.c.h.b16 %v339
      %v579 = vpack.c.b16 %v437, %v435
      %v580 = vpack.c.b16 %v438, %v436
      %v581 = vpack.c.b16 %v441, %v439
      %v582 = vpack.c.b16 %v442, %v440
      %v583 = vpack.c.b16 %v445, %v443
      %v584 = vpack.c.b16 %v446, %v444
      %v585 = vpack.c.b16 %v449, %v447
      %v586 = vpack.c.b16 %v450, %v448
      %v587 = vpack.c.b16 %v453, %v451
      %v588 = vpack.c.b16 %v454, %v452
      %v589 = vpack.c.b16 %v457, %v455
      %v590 = vpack.c.b16 %v458, %v456
      %v591 = vpack.c.b16 %v461, %v459
      %v592 = vpack.c.b16 %v462, %v460
      %v593 = vpack.c.b16 %v465, %v463
      %v594 = vpack.c.b16 %v466, %v464
      %v595 = vpack.c.b16 %v469, %v467
      %v596 = vpack.c.b16 %v470, %v468
      %v597 = vpack.c.b16 %v473, %v471
      %v598 = vpack.c.b16 %v474, %v472
      %v599 = vpack.c.b16 %v477, %v475
      %v600 = vpack.c.b16 %v478, %v476
      %v601 = vpack.c.b16 %v481, %v479
      %v602 = vpack.c.b16 %v482, %v480
      %v603 = vpack.c.b16 %v485, %v483
      %v604 = vpack.c.b16 %v486, %v484
      %v605 = vpack.c.b16 %v489, %v487
      %v606 = vpack.c.b16 %v490, %v488
      %v607 = vpack.c.b16 %v493, %v491
      %v608 = vpack.c.b16 %v494, %v492
      %v609 = vpack.c.b16 %v497, %v495
      %v610 = vpack.c.b16 %v498, %v496
      %v611 = vpack.c.b16 %v501, %v499
      %v612 = vpack.c.b16 %v502, %v500
      %v613 = vpack.c.b16 %v505, %v503
      %v614 = vpack.c.b16 %v506, %v504
      %v615 = vpack.c.b16 %v509, %v507
      %v616 = vpack.c.b16 %v510, %v508
      %v617 = vpack.c.b16 %v513, %v511
      %v618 = vpack.c.b16 %v514, %v512
      %v619 = vpack.c.b16 %v517, %v515
      %v620 = vpack.c.b16 %v518, %v516
      %v621 = vpack.c.b16 %v521, %v519
      %v622 = vpack.c.b16 %v522, %v520
      %v623 = vpack.c.b16 %v525, %v523
      %v624 = vpack.c.b16 %v526, %v524
      %v625 = vpack.c.b16 %v529, %v527
      %v626 = vpack.c.b16 %v530, %v528
      %v627 = vpack.c.b16 %v533, %v531
      %v628 = vpack.c.b16 %v534, %v532
      %v629 = vpack.c.b16 %v537, %v535
      %v630 = vpack.c.b16 %v538, %v536
      %v631 = vpack.c.b16 %v541, %v539
      %v632 = vpack.c.b16 %v542, %v540
      %v633 = vpack.c.b16 %v545, %v543
      %v634 = vpack.c.b16 %v546, %v544
      %v635 = vpack.c.b16 %v549, %v547
      %v636 = vpack.c.b16 %v550, %v548
      %v637 = vpack.c.b16 %v553, %v551
      %v638 = vpack.c.b16 %v554, %v552
      %v639 = vpack.c.b16 %v557, %v555
      %v640 = vpack.c.b16 %v558, %v556
      %v641 = vpack.c.b16 %v561, %v559
      %v642 = vpack.c.b16 %v562, %v560
      %v643 = vpack.c.b16 %v565, %v563
      %v644 = vpack.c.b16 %v566, %v564
      %v645 = vpack.c.b16 %v569, %v567
      %v646 = vpack.c.b16 %v570, %v568
      %v647 = vpack.c.b16 %v573, %v571
      %v648 = vpack.c.b16 %v574, %v572
      %v649 = vpack.c.b16 %v577, %v575
      %v650 = vpack.c.b16 %v578, %v576
      %vm723 = vcmask 523264
      %v725 = vsel %vm723, %v358, 0
      %727 = vmatprep.subr.bf16.mxu0 %v580
      %728 = vmatpush1.bf16.msra.mxu0 %v579
      %729 = vmatprep.subr.bf16.mxu0 %v582
      %730 = vmatpush1.bf16.msra.mxu0 %v581
      %731 = vmatprep.subr.bf16.mxu0 %v584
      %732 = vmatpush1.bf16.msra.mxu0 %v583
      %733 = vmatprep.subr.bf16.mxu0 %v586
      %734 = vmatpush1.bf16.msra.mxu0 %v585
      %735 = vmatprep.subr.bf16.mxu0 %v588
      %736 = vmatpush1.bf16.msra.mxu0 %v587
      %737 = vmatprep.subr.bf16.mxu0 %v590
      %738 = vmatpush1.bf16.msra.mxu0 %v589
      %739 = vmatprep.subr.bf16.mxu0 %v592
      %740 = vmatpush1.bf16.msra.mxu0 %v591
      %741 = vmatprep.subr.bf16.mxu0 %v594
      %742 = vmatpush1.bf16.msra.mxu0 %v593
      %743 = vmatprep.subr.bf16.mxu0 %v596
      %744 = vmatpush1.bf16.msra.mxu0 %v595
      %745 = vmatprep.subr.bf16.mxu0 %v598
      %746 = vmatpush1.bf16.msra.mxu0 %v597
      %747 = vmatprep.subr.bf16.mxu0 %v600
      %748 = vmatpush1.bf16.msra.mxu0 %v599
      %749 = vmatprep.subr.bf16.mxu0 %v602
      %750 = vmatpush1.bf16.msra.mxu0 %v601
      %751 = vmatprep.subr.bf16.mxu0 %v604
      %752 = vmatpush1.bf16.msra.mxu0 %v603
      %753 = vmatprep.subr.bf16.mxu0 %v606
      %754 = vmatpush1.bf16.msra.mxu0 %v605
      %755 = vmatprep.subr.bf16.mxu0 %v608
      %756 = vmatpush1.bf16.msra.mxu0 %v607
      %757 = vmatprep.subr.bf16.mxu0 %v610
      %758 = vmatpush1.bf16.msra.mxu0 %v609
      %759 = vmatprep.mubr.bf16.mxu0 %v355
      %760 = vmatmul.mubr.bf16.gmra.mrb[0].mxu0 %v354
      %v761 = vpop.f32.mrb[0].mxu0
      %v762 = vadd.f32 %v344, %v761
      %v763 = vpop.f32.mrb[0].mxu0
      %v764 = vadd.f32 %v344, %v763
      %v765 = vpop.f32.mrb[0].mxu0
      %v766 = vpop.f32.mrb[0].mxu0
      %767 = vdwg.mxu0
      %768 = vmatprep.subr.bf16.mxu0 %v612
      %769 = vmatpush1.bf16.msra.mxu0 %v611
      %770 = vmatprep.subr.bf16.mxu0 %v614
      %771 = vmatpush1.bf16.msra.mxu0 %v613
      %772 = vmatprep.subr.bf16.mxu0 %v616
      %773 = vmatpush1.bf16.msra.mxu0 %v615
      %774 = vmatprep.subr.bf16.mxu0 %v618
      %775 = vmatpush1.bf16.msra.mxu0 %v617
      %776 = vmatprep.subr.bf16.mxu0 %v620
      %777 = vmatpush1.bf16.msra.mxu0 %v619
      %778 = vmatprep.subr.bf16.mxu0 %v622
      %779 = vmatpush1.bf16.msra.mxu0 %v621
      %780 = vmatprep.subr.bf16.mxu0 %v624
      %781 = vmatpush1.bf16.msra.mxu0 %v623
      %782 = vmatprep.subr.bf16.mxu0 %v626
      %783 = vmatpush1.bf16.msra.mxu0 %v625
      %784 = vmatprep.subr.bf16.mxu0 %v628
      %785 = vmatpush1.bf16.msra.mxu0 %v627
      %786 = vmatprep.subr.bf16.mxu0 %v630
      %787 = vmatpush1.bf16.msra.mxu0 %v629
      %788 = vmatprep.subr.bf16.mxu0 %v632
      %789 = vmatpush1.bf16.msra.mxu0 %v631
      %790 = vmatprep.subr.bf16.mxu0 %v634
      %791 = vmatpush1.bf16.msra.mxu0 %v633
      %792 = vmatprep.subr.bf16.mxu0 %v636
      %793 = vmatpush1.bf16.msra.mxu0 %v635
      %794 = vmatprep.subr.bf16.mxu0 %v638
      %795 = vmatpush1.bf16.msra.mxu0 %v637
      %796 = vmatprep.subr.bf16.mxu0 %v640
      %797 = vmatpush1.bf16.msra.mxu0 %v639
      %798 = vmatprep.subr.bf16.mxu0 %v642
      %799 = vmatpush1.bf16.msra.mxu0 %v641
      %800 = vmatprep.mubr.bf16.mxu0 %v357
      %801 = vmatmul.mubr.bf16.gmra.mrb[0].mxu0 %v356
      %v802 = vpop.f32.mrb[0].mxu0
      %v803 = vadd.f32 %v762, %v802
      %v804 = vpop.f32.mrb[0].mxu0
      %v805 = vadd.f32 %v764, %v804
      %v806 = vpop.f32.mrb[0].mxu0
      %v807 = vpop.f32.mrb[0].mxu0
      %808 = vdwg.mxu0
      %809 = vmatprep.subr.bf16.mxu0 %v644
      %810 = vmatpush1.bf16.msra.mxu0 %v643
      %811 = vmatprep.subr.bf16.mxu0 %v646
      %812 = vmatpush1.bf16.msra.mxu0 %v645
      %813 = vmatprep.subr.bf16.mxu0 %v648
      %814 = vmatpush1.bf16.msra.mxu0 %v647
      %815 = vmatprep.subr.bf16.mxu0 %v650
      %816 = vmatpush1.bf16.msra.mxu0 %v649
      %817 = vmatprep.subr.bf16.mxu0 0
      %818 = vmatpush1.bf16.msra.mxu0 0
      %819 = vmatprep.subr.bf16.mxu0 0
      %820 = vmatpush1.bf16.msra.mxu0 0
      %821 = vmatprep.subr.bf16.mxu0 0
      %822 = vmatpush1.bf16.msra.mxu0 0
      %823 = vmatprep.subr.bf16.mxu0 0
      %824 = vmatpush1.bf16.msra.mxu0 0
      %825 = vmatprep.subr.bf16.mxu0 0
      %826 = vmatpush1.bf16.msra.mxu0 0
      %827 = vmatprep.subr.bf16.mxu0 0
      %828 = vmatpush1.bf16.msra.mxu0 0
      %829 = vmatprep.subr.bf16.mxu0 0
      %830 = vmatpush1.bf16.msra.mxu0 0
      %831 = vmatprep.subr.bf16.mxu0 0
      %832 = vmatpush1.bf16.msra.mxu0 0
      %833 = vmatprep.subr.bf16.mxu0 0
      %834 = vmatpush1.bf16.msra.mxu0 0
      %835 = vmatprep.subr.bf16.mxu0 0
      %836 = vmatpush1.bf16.msra.mxu0 0
      %837 = vmatprep.subr.bf16.mxu0 0
      %838 = vmatpush1.bf16.msra.mxu0 0
      %839 = vmatprep.subr.bf16.mxu0 0
      %840 = vmatpush1.bf16.msra.mxu0 0
      %841 = vmatprep.mubr.bf16.mxu0 0
      %842 = vmatmul.mubr.bf16.gmra.mrb[0].mxu0 %v725
      %v843 = vpop.f32.mrb[0].mxu0
      %v844 = vadd.f32 %v803, %v843
      %v845 = vpop.f32.mrb[0].mxu0
      %v846 = vadd.f32 %v805, %v845
      %v847 = vpop.f32.mrb[0].mxu0
      %v848 = vpop.f32.mrb[0].mxu0
      %849 = vdwg.mxu0
      %850 = vst [vmem:[%s262] sm:$0xff] %v844
      %851 = vst [vmem:[%s262 + $0x8] sm:$0xff] %v846
      %s852 = smul.u32 2, %s21
      %p853 = scmp.lt.s32.totalorder %s19, 1
      %s854 = scalar_select %p853, %s19, 1
      %p855 = scmp.lt.s32.totalorder %s20, 0
      %s856 = scalar_select %p855, %s20, 0
      %p857 = scmp.lt.s32.totalorder %s852, 1
      %s858 = scalar_select %p857, %s852, 1
      %s859 = smul.addr %s856, 2
      %s860 = sadd.s32 %s858, %s859
      %s861 = smul.addr %s854, 2
      %s862 = sadd.s32 %s860, %s861
      %s863 = smul.addr %s862, 8
      %s864 = scalar_lea.vmem %s3, %s863
      // Predicated region
      $region33: #{mono_sceneflow_decoder_lstm.13} parent=31 // pred_check
        %p865 = pneg %p135
      $region34: #{mono_sceneflow_decoder_lstm.13} parent=31 // pred_check_branch
        %867 = sbr.rel (%p865) target = $region36
      $region35: #{mono_sceneflow_decoder_lstm.13} parent=31 // pred_region
        %s868 = smul.u32 2, %s21
      $region36: #{mono_sceneflow_decoder_lstm.13} parent=31 // pred_fallthru
        _
    $region32: #{mono_sceneflow_decoder_lstm.13} parent=5 // pred_fallthru
      _
    %p869 = scmp.le.s32.totalorder 2, %s9
    // Predicated region
    $region37: #{mono_sceneflow_decoder_lstm.13} parent=5 // pred_check
      %p870 = pneg %p869
    $region38: #{mono_sceneflow_decoder_lstm.13} parent=5 // pred_check_branch
      %872 = sbr.rel (%p870) target = $region40
    $region39: #{mono_sceneflow_decoder_lstm.13} parent=5 // pred_region
      %s873 = ssub.s32 %s9, 2
      // Predicated region
      $region41: #{mono_sceneflow_decoder_lstm.13} parent=39 // pred_check
        %p874 = pneg %p141
      $region42: #{mono_sceneflow_decoder_lstm.13} parent=39 // pred_check_branch
        %876 = sbr.rel (%p874) target = $region44
      $region43: #{mono_sceneflow_decoder_lstm.13} parent=39 // pred_region
        %s877 = smul.u32 2, %s24
        %p878 = scmp.lt.s32.totalorder %s22, 1
        %s879 = scalar_select %p878, %s22, 1
        %p880 = scmp.lt.s32.totalorder %s23, 0
        %s881 = scalar_select %p880, %s23, 0
        %p882 = scmp.lt.s32.totalorder %s877, 1
        %s883 = scalar_select %p882, %s877, 1
        %s884 = smul.addr %s881, 2
        %s885 = sadd.s32 %s883, %s884
        %s886 = smul.addr %s879, 2
        %s887 = sadd.s32 %s885, %s886
        %s888 = smul.addr %s887, 8
        %s889 = scalar_lea.vmem %s3, %s888
      $region44: #{mono_sceneflow_decoder_lstm.13} parent=39 // pred_fallthru
        _
    $region40: #{mono_sceneflow_decoder_lstm.13} parent=5 // pred_fallthru
      _
  $region6: #{mono_sceneflow_decoder_lstm.13} parent=0 // loop_footer
    %s13 = sadd.s32 1, %s9
  $region7: #{mono_sceneflow_decoder_lstm.13} parent=0 // loop_footer_branch
    %8 = sbr.rel target = $region3
  $region8: #{mono_sceneflow_decoder_lstm.13} parent=0 // loop_exit
    _

// kernel: mono_sceneflow_decoder_lstm.10
$region0: #{mono_sceneflow_decoder_lstm.10}
  #allocation0 [shape = 'u32[]', space=smem, size = 0x4, offset = 0x4, fixed_abs, tag = 'smem constant byte address 0x4 - core index']
  #allocation1 [shape = 'u32[144,128]{1,0:T(1,128)}', space=vmem, size = 0x12000, scoped, tag = 'internal scratch']
  %s0 = inlined_call_operand.vmem [shape: bf16[2,864,256], index: 0, kind: input, shape index: {}]
  %s1 = inlined_call_operand.vmem [shape: bf16[96,864], index: 1, kind: input, shape index: {}]
  %s2 = inlined_call_operand.vmem [shape: f32[96,1], index: 2, kind: input, shape index: {}]
  %s3 = inlined_call_operand.vmem [shape: f32[2,96,256], index: 3, kind: output, shape index: {}]
  %s4 = sld [smem:[#allocation0]]
  $region45: #{mono_sceneflow_decoder_lstm.10} parent=0
    _
  %s6 = ssub.s32 1, %s4
  %s7 = scalar_select 0, %s6, %s4
  loop: start=0, step=1, limit=4
  $region2: #{mono_sceneflow_decoder_lstm.10} parent=0 // loop_pre_header
    _
  $region3: #{mono_sceneflow_decoder_lstm.10} parent=0 // loop_header
    %s9 = sphi 0, %s13
    %p10 = scmp.ge.s32.totalorder %s9, 4
    %s16 = sphi 0, %s35
    %s17 = sphi 0, %s31
    %s18 = sphi 0, %s27
    %s19 = sphi 0, %s16
    %s20 = sphi 0, %s17
    %s21 = sphi 0, %s18
    %s22 = sphi 0, %s19
    %s23 = sphi 0, %s20
    %s24 = sphi 0, %s21
    %s40 = sphi 0, %s42
    %s43 = sphi 0, %s40
    %s44 = sphi 0, %s43
    %s60 = sphi 0, %s44
    %s66 = sphi 0, %s68
    %s69 = sphi 0, %s66
    %s70 = sphi 0, %s69
    %s86 = sphi 0, %s70
    %s92 = sphi 0, %s94
    %s95 = sphi 0, %s92
    %s96 = sphi 0, %s95
    %s112 = sphi 0, %s96
    %s122 = sphi 0, %s124
    %s125 = sphi 0, %s122
    %s126 = sphi 0, %s125
    %s142 = sphi 0, %s126
  $region4: #{mono_sceneflow_decoder_lstm.10} parent=0 // loop_header_branch
    %12 = sbr.rel (%p10) target = $region8
  $region5: #{mono_sceneflow_decoder_lstm.10} parent=0 // loop_body
    %s14 = ssub.s32 %s9, 1
    %s15 = ssub.s32 %s9, 2
    %s25 = sadd.s32 1, %s18
    %p26 = scmp.ge.s32.totalorder %s25, 1
    %s27 = scalar_select %p26, 0, %s25
    %s28 = sadd.s32 1, %s17
    %s29 = scalar_select %p26, %s28, %s17
    %p30 = scmp.ge.s32.totalorder %s29, 1
    %s31 = scalar_select %p30, 0, %s29
    %s32 = sadd.s32 1, %s16
    %s33 = scalar_select %p30, %s32, %s16
    %p34 = scmp.ge.s32.totalorder %s33, 2
    %s35 = scalar_select %p34, 0, %s33
    %s36 = ssub.s32 %s16, %s35
    %s37 = ssub.s32 %s18, %s27
    %s38 = sor.u32 %s36, %s37
    %p39 = scmp.eq.s32.totalorder %s38, 0
    %s41 = sadd.s32 %s40, 1
    %s42 = scalar_select %p39, %s40, %s41
    %p45 = pneg %p39
    %p46 = scmp.eq.s32.totalorder %s9, 1
    %p47 = por %p45, %p46
    %p48 = scmp.ne.s32.totalorder %s40, %s43
    %p49 = scmp.eq.s32.totalorder %s9, 0
    %p50 = por %p48, %p49
    %p51 = scmp.ne.s32.totalorder %s40, %s43
    %p52 = scmp.eq.s32.totalorder %s14, 1
    %p53 = por %p51, %p52
    %p54 = scmp.ne.s32.totalorder %s43, %s44
    %p55 = scmp.eq.s32.totalorder %s14, 0
    %p56 = por %p54, %p55
    %p57 = scmp.ne.s32.totalorder %s43, %s44
    %p58 = scmp.eq.s32.totalorder %s15, 1
    %p59 = por %p57, %p58
    %p61 = scmp.ne.s32.totalorder %s44, %s60
    %p62 = scmp.eq.s32.totalorder %s15, 0
    %p63 = por %p61, %p62
    %s64 = ssub.s32 %s17, %s31
    %p65 = scmp.eq.s32.totalorder %s64, 0
    %s67 = sadd.s32 %s66, 1
    %s68 = scalar_select %p65, %s66, %s67
    %p71 = pneg %p65
    %p72 = scmp.eq.s32.totalorder %s9, 1
    %p73 = por %p71, %p72
    %p74 = scmp.ne.s32.totalorder %s66, %s69
    %p75 = scmp.eq.s32.totalorder %s9, 0
    %p76 = por %p74, %p75
    %p77 = scmp.ne.s32.totalorder %s66, %s69
    %p78 = scmp.eq.s32.totalorder %s14, 1
    %p79 = por %p77, %p78
    %p80 = scmp.ne.s32.totalorder %s69, %s70
    %p81 = scmp.eq.s32.totalorder %s14, 0
    %p82 = por %p80, %p81
    %p83 = scmp.ne.s32.totalorder %s69, %s70
    %p84 = scmp.eq.s32.totalorder %s15, 1
    %p85 = por %p83, %p84
    %p87 = scmp.ne.s32.totalorder %s70, %s86
    %p88 = scmp.eq.s32.totalorder %s15, 0
    %p89 = por %p87, %p88
    %s90 = ssub.s32 %s17, %s31
    %p91 = scmp.eq.s32.totalorder %s90, 0
    %s93 = sadd.s32 %s92, 1
    %s94 = scalar_select %p91, %s92, %s93
    %p97 = pneg %p91
    %p98 = scmp.eq.s32.totalorder %s9, 1
    %p99 = por %p97, %p98
    %p100 = scmp.ne.s32.totalorder %s92, %s95
    %p101 = scmp.eq.s32.totalorder %s9, 0
    %p102 = por %p100, %p101
    %p103 = scmp.ne.s32.totalorder %s92, %s95
    %p104 = scmp.eq.s32.totalorder %s14, 1
    %p105 = por %p103, %p104
    %p106 = scmp.ne.s32.totalorder %s95, %s96
    %p107 = scmp.eq.s32.totalorder %s14, 0
    %p108 = por %p106, %p107
    %p109 = scmp.ne.s32.totalorder %s95, %s96
    %p110 = scmp.eq.s32.totalorder %s15, 1
    %p111 = por %p109, %p110
    %p113 = scmp.ne.s32.totalorder %s96, %s112
    %p114 = scmp.eq.s32.totalorder %s15, 0
    %p115 = por %p113, %p114
    %s116 = ssub.s32 %s16, %s35
    %s117 = ssub.s32 %s17, %s31
    %s118 = sor.u32 %s116, %s117
    %s119 = ssub.s32 %s18, %s27
    %s120 = sor.u32 %s118, %s119
    %p121 = scmp.eq.s32.totalorder %s120, 0
    %s123 = sadd.s32 %s122, 1
    %s124 = scalar_select %p121, %s122, %s123
    %p127 = pneg %p121
    %p128 = scmp.eq.s32.totalorder %s9, 1
    %p129 = por %p127, %p128
    %p130 = scmp.ne.s32.totalorder %s122, %s125
    %p131 = scmp.eq.s32.totalorder %s9, 0
    %p132 = por %p130, %p131
    %p133 = scmp.ne.s32.totalorder %s122, %s125
    %p134 = scmp.eq.s32.totalorder %s14, 1
    %p135 = por %p133, %p134
    %p136 = scmp.ne.s32.totalorder %s125, %s126
    %p137 = scmp.eq.s32.totalorder %s14, 0
    %p138 = por %p136, %p137
    %p139 = scmp.ne.s32.totalorder %s125, %s126
    %p140 = scmp.eq.s32.totalorder %s15, 1
    %p141 = por %p139, %p140
    %p143 = scmp.ne.s32.totalorder %s126, %s142
    %p144 = scmp.eq.s32.totalorder %s15, 0
    %p145 = por %p143, %p144
    %p146 = scmp.le.s32.totalorder 1, %s9
    %p147 = scmp.lt.s32.totalorder %s9, 3
    %p148 = pnand %p146, %p147
    %p149 = pneg %p148
    // Predicated region
    $region9: #{mono_sceneflow_decoder_lstm.10} parent=5 // pred_check
      _
    $region10: #{mono_sceneflow_decoder_lstm.10} parent=5 // pred_check_branch
      %151 = sbr.rel (%p148) target = $region12
    $region11: #{mono_sceneflow_decoder_lstm.10} parent=5 // pred_region
      %s152 = ssub.s32 %s9, 1
      // Predicated region
      $region13: #{mono_sceneflow_decoder_lstm.10} parent=11 // pred_check
        %p153 = pneg %p82
      $region14: #{mono_sceneflow_decoder_lstm.10} parent=11 // pred_check_branch
        %155 = sbr.rel (%p153) target = $region16
      $region15: #{mono_sceneflow_decoder_lstm.10} parent=11 // pred_region
        %s156 = smul.u32 12, %s20
        %p157 = scmp.lt.s32.totalorder %s156, 11
        %s158 = scalar_select %p157, %s156, 11
        %s159 = smul.addr %s158, 7
        %s160 = smul.addr %s159, 4
        %s161 = scalar_lea.vmem %s1, %s160
        %s162 = smul.u32 12, %s20
      $region16: #{mono_sceneflow_decoder_lstm.10} parent=11 // pred_fallthru
        _
      // Predicated region
      $region17: #{mono_sceneflow_decoder_lstm.10} parent=11 // pred_check
        %p163 = pneg %p108
      $region18: #{mono_sceneflow_decoder_lstm.10} parent=11 // pred_check_branch
        %165 = sbr.rel (%p163) target = $region20
      $region19: #{mono_sceneflow_decoder_lstm.10} parent=11 // pred_region
        %s166 = smul.u32 12, %s20
        %p167 = scmp.lt.s32.totalorder %s166, 11
        %s168 = scalar_select %p167, %s166, 11
        %s169 = smul.addr %s168, 8
        %s170 = scalar_lea.vmem %s2, %s169
        %s171 = smul.u32 12, %s20
      $region20: #{mono_sceneflow_decoder_lstm.10} parent=11 // pred_fallthru
        _
    $region12: #{mono_sceneflow_decoder_lstm.10} parent=5 // pred_fallthru
      _
    %p172 = scmp.lt.s32.totalorder %s9, 2
    // Predicated region
    $region21: #{mono_sceneflow_decoder_lstm.10} parent=5 // pred_check
      %p173 = pneg %p172
    $region22: #{mono_sceneflow_decoder_lstm.10} parent=5 // pred_check_branch
      %175 = sbr.rel (%p173) target = $region24
    $region23: #{mono_sceneflow_decoder_lstm.10} parent=5 // pred_region
      // Predicated region
      $region25: #{mono_sceneflow_decoder_lstm.10} parent=23 // pred_check
        %p176 = pneg %p50
      $region26: #{mono_sceneflow_decoder_lstm.10} parent=23 // pred_check_branch
        %178 = sbr.rel (%p176) target = $region28
      $region27: #{mono_sceneflow_decoder_lstm.10} parent=23 // pred_region
        %s179 = smul.u32 2, %s18
        %p180 = scmp.lt.s32.totalorder %s16, 1
        %s181 = scalar_select %p180, %s16, 1
        %p182 = scmp.lt.s32.totalorder %s179, 1
        %s183 = scalar_select %p182, %s179, 1
        %s184 = smul.addr %s181, 216
        %s185 = sadd.s32 %s183, %s184
        %s186 = smul.addr %s185, 4
        %s187 = scalar_lea.vmem %s0, %s186
        %s188 = smul.u32 2, %s18
      $region28: #{mono_sceneflow_decoder_lstm.10} parent=23 // pred_fallthru
        _
    $region24: #{mono_sceneflow_decoder_lstm.10} parent=5 // pred_fallthru
      _
    %p189 = scmp.le.s32.totalorder 1, %s9
    %p190 = scmp.lt.s32.totalorder %s9, 3
    %p191 = pnand %p189, %p190
    %p192 = pneg %p191
    // Predicated region
    $region29: #{mono_sceneflow_decoder_lstm.10} parent=5 // pred_check
      _
    $region30: #{mono_sceneflow_decoder_lstm.10} parent=5 // pred_check_branch
      %194 = sbr.rel (%p191) target = $region32
    $region31: #{mono_sceneflow_decoder_lstm.10} parent=5 // pred_region
      %s195 = ssub.s32 %s9, 1
      %s196 = smul.u32 2, %s21
      %p197 = scmp.lt.s32.totalorder %s19, 1
      %s198 = scalar_select %p197, %s19, 1
      %p199 = scmp.lt.s32.totalorder %s196, 1
      %s200 = scalar_select %p199, %s196, 1
      %s201 = smul.addr %s198, 216
      %s202 = sadd.s32 %s200, %s201
      %s203 = smul.addr %s202, 4
      %s204 = scalar_lea.vmem %s0, %s203
      %p205 = pneg %p56
      %p206 = pneg %p53
      %s207 = smul.u32 12, %s20
      %p208 = scmp.lt.s32.totalorder %s207, 11
      %s209 = scalar_select %p208, %s207, 11
      %s210 = smul.addr %s209, 7
      %s211 = smul.addr %s210, 4
      %s212 = scalar_lea.vmem %s1, %s211
      %p213 = pneg %p82
      %p214 = pneg %p79
      %s215 = smul.u32 12, %s20
      %p216 = scmp.lt.s32.totalorder %s215, 11
      %s217 = scalar_select %p216, %s215, 11
      %s218 = smul.addr %s217, 8
      %s219 = scalar_lea.vmem %s2, %s218
      %p220 = pneg %p108
      %p221 = pneg %p105
      %p222 = pneg %p138
      %p223 = pneg %p135
      %s224 = smul.u32 12, %s20
      %s225 = smul.u32 2, %s21
      %p226 = scmp.lt.s32.totalorder %s19, 1
      %s227 = scalar_select %p226, %s19, 1
      %p228 = scmp.lt.s32.totalorder %s224, 11
      %s229 = scalar_select %p228, %s224, 11
      %p230 = scmp.lt.s32.totalorder %s225, 1
      %s231 = scalar_select %p230, %s225, 1
      %s232 = smul.addr %s229, 2
      %s233 = sadd.s32 %s231, %s232
      %s234 = smul.addr %s227, 24
      %s235 = sadd.s32 %s233, %s234
      %s236 = smul.addr %s235, 8
      %s237 = scalar_lea.vmem %s3, %s236
      %s238 = smul.u32 2, %s21
      %p239 = scmp.lt.s32.totalorder %s19, 1
      %s240 = scalar_select %p239, %s19, 1
      %p241 = scmp.lt.s32.totalorder %s238, 1
      %s242 = scalar_select %p241, %s238, 1
      %s243 = smul.addr %s240, 216
      %s244 = sadd.s32 %s242, %s243
      %s245 = smul.addr %s244, 4
      %s246 = scalar_lea.vmem %s0, %s245
      %s247 = smul.u32 2, %s21
      %s248 = smul.u32 12, %s20
      %p249 = scmp.lt.s32.totalorder %s248, 11
      %s250 = scalar_select %p249, %s248, 11
      %s251 = smul.addr %s250, 7
      %s252 = smul.addr %s251, 4
      %s253 = scalar_lea.vmem %s1, %s252
      %s254 = smul.u32 12, %s20
      %s255 = smul.u32 12, %s20
      %p256 = scmp.lt.s32.totalorder %s255, 11
      %s257 = scalar_select %p256, %s255, 11
      %s258 = smul.addr %s257, 8
      %s259 = scalar_lea.vmem %s2, %s258
      %s260 = smul.u32 12, %s20
      %s261 = smul.u32 12, %s20
      %s262 = smul.u32 2, %s21
      %p263 = scmp.lt.s32.totalorder %s19, 1
      %s264 = scalar_select %p263, %s19, 1
      %p265 = scmp.lt.s32.totalorder %s261, 11
      %s266 = scalar_select %p265, %s261, 11
      %p267 = scmp.lt.s32.totalorder %s262, 1
      %s268 = scalar_select %p267, %s262, 1
      %s269 = smul.addr %s266, 2
      %s270 = sadd.s32 %s268, %s269
      %s271 = smul.addr %s264, 24
      %s272 = sadd.s32 %s270, %s271
      %s273 = smul.addr %s272, 8
      %s274 = scalar_lea.vmem %s3, %s273
      %s275 = smul.u32 12, %s20
      %s276 = smul.u32 2, %s21
      %v278 = vld [vmem:[%s253] sm:$0xff]
      %v279 = vld [vmem:[%s253 + $0x8] sm:$0xff]
      %v280 = vld [vmem:[%s253 + $0x10] sm:$0xff]
      %v281 = vld [vmem:[%s253 + $0x18] sm:$0xf]
      %v282 = vld [vmem:[%s253 + $0x1c] sm:$0xff]
      %v283 = vld [vmem:[%s253 + $0x24] sm:$0xff]
      %v284 = vld [vmem:[%s253 + $0x2c] sm:$0xff]
      %v285 = vld [vmem:[%s253 + $0x34] sm:$0xf]
      %v286 = vld [vmem:[%s253 + $0x38] sm:$0xff]
      %v287 = vld [vmem:[%s253 + $0x40] sm:$0xff]
      %v288 = vld [vmem:[%s253 + $0x48] sm:$0xff]
      %v289 = vld [vmem:[%s253 + $0x50] sm:$0xf]
      %v290 = vld [vmem:[%s253 + $0x54] sm:$0xff]
      %v291 = vld [vmem:[%s253 + $0x5c] sm:$0xff]
      %v292 = vld [vmem:[%s253 + $0x64] sm:$0xff]
      %v293 = vld [vmem:[%s253 + $0x6c] sm:$0xf]
      %v294 = vld [vmem:[%s253 + $0x70] sm:$0xff]
      %v295 = vld [vmem:[%s253 + $0x78] sm:$0xff]
      %v296 = vld [vmem:[%s253 + $0x80] sm:$0xff]
      %v297 = vld [vmem:[%s253 + $0x88] sm:$0xf]
      %v298 = vld [vmem:[%s253 + $0x8c] sm:$0xff]
      %v299 = vld [vmem:[%s253 + $0x94] sm:$0xff]
      %v300 = vld [vmem:[%s253 + $0x9c] sm:$0xff]
      %v301 = vld [vmem:[%s253 + $0xa4] sm:$0xf]
      %v302 = vld [vmem:[%s253 + $0xa8] sm:$0xff]
      %v303 = vld [vmem:[%s253 + $0xb0] sm:$0xff]
      %v304 = vld [vmem:[%s253 + $0xb8] sm:$0xff]
      %v305 = vld [vmem:[%s253 + $0xc0] sm:$0xf]
      %v306 = vld [vmem:[%s253 + $0xc4] sm:$0xff]
      %v307 = vld [vmem:[%s253 + $0xcc] sm:$0xff]
      %v308 = vld [vmem:[%s253 + $0xd4] sm:$0xff]
      %v309 = vld [vmem:[%s253 + $0xdc] sm:$0xf]
      %v310 = vld [vmem:[%s253 + $0xe0] sm:$0xff]
      %v311 = vld [vmem:[%s253 + $0xe8] sm:$0xff]
      %v312 = vld [vmem:[%s253 + $0xf0] sm:$0xff]
      %v313 = vld [vmem:[%s253 + $0xf8] sm:$0xf]
      %v314 = vld [vmem:[%s253 + $0xfc] sm:$0xff]
      %v315 = vld [vmem:[%s253 + $0x104] sm:$0xff]
      %v316 = vld [vmem:[%s253 + $0x10c] sm:$0xff]
      %v317 = vld [vmem:[%s253 + $0x114] sm:$0xf]
      %v318 = vld [vmem:[%s253 + $0x118] sm:$0xff]
      %v319 = vld [vmem:[%s253 + $0x120] sm:$0xff]
      %v320 = vld [vmem:[%s253 + $0x128] sm:$0xff]
      %v321 = vld [vmem:[%s253 + $0x130] sm:$0xf]
      %v322 = vld [vmem:[%s253 + $0x134] sm:$0xff]
      %v323 = vld [vmem:[%s253 + $0x13c] sm:$0xff]
      %v324 = vld [vmem:[%s253 + $0x144] sm:$0xff]
      %v325 = vld [vmem:[%s253 + $0x14c] sm:$0xf]
      %v326 = vld [vmem:[%s246] sm:$0xff]
      %v327 = vld [vmem:[%s246 + $0x8] sm:$0xff]
      %v328 = vld [vmem:[%s246 + $0x10] sm:$0xff]
      %v329 = vld [vmem:[%s246 + $0x18] sm:$0xff]
      %v330 = vld [vmem:[%s246 + $0x20] sm:$0xff]
      %v331 = vld [vmem:[%s246 + $0x28] sm:$0xff]
      %v332 = vld [vmem:[%s246 + $0x30] sm:$0xff]
      %v333 = vld [vmem:[%s246 + $0x38] sm:$0xff]
      %v334 = vld [vmem:[%s246 + $0x40] sm:$0xff]
      %v335 = vld [vmem:[%s246 + $0x48] sm:$0xff]
      %v336 = vld [vmem:[%s246 + $0x50] sm:$0xff]
      %v337 = vld [vmem:[%s246 + $0x58] sm:$0xff]
      %v338 = vld [vmem:[%s246 + $0x60] sm:$0xff]
      %v339 = vld [vmem:[%s246 + $0x68] sm:$0xff]
      %v340 = vld [vmem:[%s246 + $0x70] sm:$0xff]
      %v341 = vld [vmem:[%s246 + $0x78] sm:$0xff]
      %v342 = vld [vmem:[%s246 + $0x80] sm:$0xff]
      %v343 = vld [vmem:[%s246 + $0x88] sm:$0xff]
      %v344 = vld [vmem:[%s246 + $0x90] sm:$0xff]
      %v345 = vld [vmem:[%s246 + $0x98] sm:$0xff]
      %v346 = vld [vmem:[%s246 + $0xa0] sm:$0xff]
      %v347 = vld [vmem:[%s246 + $0xa8] sm:$0xff]
      %v348 = vld [vmem:[%s246 + $0xb0] sm:$0xff]
      %v349 = vld [vmem:[%s246 + $0xb8] sm:$0xff]
      %v350 = vld [vmem:[%s246 + $0xc0] sm:$0xff]
      %v351 = vld [vmem:[%s246 + $0xc8] sm:$0xff]
      %v352 = vld [vmem:[%s246 + $0xd0] sm:$0xff]
      %v353 = vld [vmem:[%s246 + $0xd8] sm:$0xff]
      %v354 = vld [vmem:[%s246 + $0xe0] sm:$0xff]
      %v355 = vld [vmem:[%s246 + $0xe8] sm:$0xff]
      %v356 = vld [vmem:[%s246 + $0xf0] sm:$0xff]
      %v357 = vld [vmem:[%s246 + $0xf8] sm:$0xff]
      %v358 = vld [vmem:[%s246 + $0x100] sm:$0xff]
      %v359 = vld [vmem:[%s246 + $0x108] sm:$0xff]
      %v360 = vld [vmem:[%s246 + $0x110] sm:$0xff]
      %v361 = vld [vmem:[%s246 + $0x118] sm:$0xff]
      %v362 = vld [vmem:[%s246 + $0x120] sm:$0xff]
      %v363 = vld [vmem:[%s246 + $0x128] sm:$0xff]
      %v364 = vld [vmem:[%s246 + $0x130] sm:$0xff]
      %v365 = vld [vmem:[%s246 + $0x138] sm:$0xff]
      %v366 = vld [vmem:[%s246 + $0x140] sm:$0xff]
      %v367 = vld [vmem:[%s246 + $0x148] sm:$0xff]
      %v368 = vld [vmem:[%s246 + $0x150] sm:$0xff]
      %v369 = vld [vmem:[%s246 + $0x158] sm:$0xff]
      %v370 = vld [vmem:[%s246 + $0x160] sm:$0xff]
      %v371 = vld [vmem:[%s246 + $0x168] sm:$0xff]
      %v372 = vld [vmem:[%s246 + $0x170] sm:$0xff]
      %v373 = vld [vmem:[%s246 + $0x178] sm:$0xff]
      %v374 = vld [vmem:[%s246 + $0x180] sm:$0xff]
      %v375 = vld [vmem:[%s246 + $0x188] sm:$0xff]
      %v376 = vld [vmem:[%s246 + $0x190] sm:$0xff]
      %v377 = vld [vmem:[%s246 + $0x198] sm:$0xff]
      %v378 = vld [vmem:[%s246 + $0x1a0] sm:$0xff]
      %v379 = vld [vmem:[%s246 + $0x1a8] sm:$0xff]
      %v380 = vld [vmem:[%s246 + $0x1b0] sm:$0xff]
      %v381 = vld [vmem:[%s246 + $0x1b8] sm:$0xff]
      %v382 = vld [vmem:[%s246 + $0x1c0] sm:$0xff]
      %v383 = vld [vmem:[%s246 + $0x1c8] sm:$0xff]
      %v384 = vld [vmem:[%s246 + $0x1d0] sm:$0xff]
      %v385 = vld [vmem:[%s246 + $0x1d8] sm:$0xff]
      %v386 = vld [vmem:[%s246 + $0x1e0] sm:$0xff]
      %v387 = vld [vmem:[%s246 + $0x1e8] sm:$0xff]
      %v388 = vld [vmem:[%s246 + $0x1f0] sm:$0xff]
      %v389 = vld [vmem:[%s246 + $0x1f8] sm:$0xff]
      %v390 = vld [vmem:[%s246 + $0x200] sm:$0xff]
      %v391 = vld [vmem:[%s246 + $0x208] sm:$0xff]
      %v392 = vld [vmem:[%s246 + $0x210] sm:$0xff]
      %v393 = vld [vmem:[%s246 + $0x218] sm:$0xff]
      %v394 = vld [vmem:[%s246 + $0x220] sm:$0xff]
      %v395 = vld [vmem:[%s246 + $0x228] sm:$0xff]
      %v396 = vld [vmem:[%s246 + $0x230] sm:$0xff]
      %v397 = vld [vmem:[%s246 + $0x238] sm:$0xff]
      %v398 = vld [vmem:[%s246 + $0x240] sm:$0xff]
      %v399 = vld [vmem:[%s246 + $0x248] sm:$0xff]
      %v400 = vld [vmem:[%s246 + $0x250] sm:$0xff]
      %v401 = vld [vmem:[%s246 + $0x258] sm:$0xff]
      %v402 = vld [vmem:[%s246 + $0x260] sm:$0xff]
      %v403 = vld [vmem:[%s246 + $0x268] sm:$0xff]
      %v404 = vld [vmem:[%s246 + $0x270] sm:$0xff]
      %v405 = vld [vmem:[%s246 + $0x278] sm:$0xff]
      %v406 = vld [vmem:[%s246 + $0x280] sm:$0xff]
      %v407 = vld [vmem:[%s246 + $0x288] sm:$0xff]
      %v408 = vld [vmem:[%s246 + $0x290] sm:$0xff]
      %v409 = vld [vmem:[%s246 + $0x298] sm:$0xff]
      %v410 = vld [vmem:[%s246 + $0x2a0] sm:$0xff]
      %v411 = vld [vmem:[%s246 + $0x2a8] sm:$0xff]
      %v412 = vld [vmem:[%s246 + $0x2b0] sm:$0xff]
      %v413 = vld [vmem:[%s246 + $0x2b8] sm:$0xff]
      %v414 = vld [vmem:[%s246 + $0x2c0] sm:$0xff]
      %v415 = vld [vmem:[%s246 + $0x2c8] sm:$0xff]
      %v416 = vld [vmem:[%s246 + $0x2d0] sm:$0xff]
      %v417 = vld [vmem:[%s246 + $0x2d8] sm:$0xff]
      %v418 = vld [vmem:[%s246 + $0x2e0] sm:$0xff]
      %v419 = vld [vmem:[%s246 + $0x2e8] sm:$0xff]
      %v420 = vld [vmem:[%s246 + $0x2f0] sm:$0xff]
      %v421 = vld [vmem:[%s246 + $0x2f8] sm:$0xff]
      %v422 = vld [vmem:[%s246 + $0x300] sm:$0xff]
      %v423 = vld [vmem:[%s246 + $0x308] sm:$0xff]
      %v424 = vld [vmem:[%s246 + $0x310] sm:$0xff]
      %v425 = vld [vmem:[%s246 + $0x318] sm:$0xff]
      %v426 = vld [vmem:[%s246 + $0x320] sm:$0xff]
      %v427 = vld [vmem:[%s246 + $0x328] sm:$0xff]
      %v428 = vld [vmem:[%s246 + $0x330] sm:$0xff]
      %v429 = vld [vmem:[%s246 + $0x338] sm:$0xff]
      %v430 = vld [vmem:[%s246 + $0x340] sm:$0xff]
      %v431 = vld [vmem:[%s246 + $0x348] sm:$0xff]
      %v432 = vld [vmem:[%s246 + $0x350] sm:$0xff]
      %v433 = vld [vmem:[%s246 + $0x358] sm:$0xff]
      %v434 = vld [vmem:[%s259] sm:$0xff]
      %v435 = vld [vmem:[%s259 + $0x8] sm:$0xff]
      %v436 = vld [vmem:[%s259 + $0x10] sm:$0xff]
      %v437 = vld [vmem:[%s259 + $0x18] sm:$0xff]
      %v438 = vld [vmem:[%s259 + $0x20] sm:$0xff]
      %v439 = vld [vmem:[%s259 + $0x28] sm:$0xff]
      %v440 = vld [vmem:[%s259 + $0x30] sm:$0xff]
      %v441 = vld [vmem:[%s259 + $0x38] sm:$0xff]
      %v442 = vld [vmem:[%s259 + $0x40] sm:$0xff]
      %v443 = vld [vmem:[%s259 + $0x48] sm:$0xff]
      %v444 = vld [vmem:[%s259 + $0x50] sm:$0xff]
      %v445 = vld [vmem:[%s259 + $0x58] sm:$0xff]
      %447 = vset.pattern.permute.xlu0 0
      %448 = vperm.xlu0 %447, %v434
      %v449 = vpop.permute.xlu0 %448
      %452 = vset.pattern.permute.xlu0 0
      %453 = vperm.xlu0 %452, %v435
      %v454 = vpop.permute.xlu0 %453
      %457 = vset.pattern.permute.xlu0 0
      %458 = vperm.xlu0 %457, %v436
      %v459 = vpop.permute.xlu0 %458
      %462 = vset.pattern.permute.xlu0 0
      %463 = vperm.xlu0 %462, %v437
      %v464 = vpop.permute.xlu0 %463
      %467 = vset.pattern.permute.xlu0 0
      %468 = vperm.xlu0 %467, %v438
      %v469 = vpop.permute.xlu0 %468
      %472 = vset.pattern.permute.xlu0 0
      %473 = vperm.xlu0 %472, %v439
      %v474 = vpop.permute.xlu0 %473
      %477 = vset.pattern.permute.xlu0 0
      %478 = vperm.xlu0 %477, %v440
      %v479 = vpop.permute.xlu0 %478
      %482 = vset.pattern.permute.xlu0 0
      %483 = vperm.xlu0 %482, %v441
      %v484 = vpop.permute.xlu0 %483
      %487 = vset.pattern.permute.xlu0 0
      %488 = vperm.xlu0 %487, %v442
      %v489 = vpop.permute.xlu0 %488
      %492 = vset.pattern.permute.xlu0 0
      %493 = vperm.xlu0 %492, %v443
      %v494 = vpop.permute.xlu0 %493
      %497 = vset.pattern.permute.xlu0 0
      %498 = vperm.xlu0 %497, %v444
      %v499 = vpop.permute.xlu0 %498
      %502 = vset.pattern.permute.xlu0 0
      %503 = vperm.xlu0 %502, %v445
      %v504 = vpop.permute.xlu0 %503
      %v554 = vunpack.c.l.b16 %v278
      %v555 = vunpack.c.h.b16 %v278
      %v556 = vunpack.c.l.b16 %v279
      %v557 = vunpack.c.h.b16 %v279
      %v558 = vunpack.c.l.b16 %v280
      %v559 = vunpack.c.h.b16 %v280
      %v560 = vunpack.c.l.b16 %v281
      %v561 = vunpack.c.l.b16 %v282
      %v562 = vunpack.c.h.b16 %v282
      %v563 = vunpack.c.l.b16 %v283
      %v564 = vunpack.c.h.b16 %v283
      %v565 = vunpack.c.l.b16 %v284
      %v566 = vunpack.c.h.b16 %v284
      %v567 = vunpack.c.l.b16 %v285
      %v568 = vunpack.c.l.b16 %v286
      %v569 = vunpack.c.h.b16 %v286
      %v570 = vunpack.c.l.b16 %v287
      %v571 = vunpack.c.h.b16 %v287
      %v572 = vunpack.c.l.b16 %v288
      %v573 = vunpack.c.h.b16 %v288
      %v574 = vunpack.c.l.b16 %v289
      %v575 = vunpack.c.l.b16 %v290
      %v576 = vunpack.c.h.b16 %v290
      %v577 = vunpack.c.l.b16 %v291
      %v578 = vunpack.c.h.b16 %v291
      %v579 = vunpack.c.l.b16 %v292
      %v580 = vunpack.c.h.b16 %v292
      %v581 = vunpack.c.l.b16 %v293
      %v582 = vunpack.c.l.b16 %v294
      %v583 = vunpack.c.h.b16 %v294
      %v584 = vunpack.c.l.b16 %v295
      %v585 = vunpack.c.h.b16 %v295
      %v586 = vunpack.c.l.b16 %v296
      %v587 = vunpack.c.h.b16 %v296
      %v588 = vunpack.c.l.b16 %v297
      %v589 = vunpack.c.l.b16 %v298
      %v590 = vunpack.c.h.b16 %v298
      %v591 = vunpack.c.l.b16 %v299
      %v592 = vunpack.c.h.b16 %v299
      %v593 = vunpack.c.l.b16 %v300
      %v594 = vunpack.c.h.b16 %v300
      %v595 = vunpack.c.l.b16 %v301
      %v596 = vunpack.c.l.b16 %v302
      %v597 = vunpack.c.h.b16 %v302
      %v598 = vunpack.c.l.b16 %v303
      %v599 = vunpack.c.h.b16 %v303
      %v600 = vunpack.c.l.b16 %v304
      %v601 = vunpack.c.h.b16 %v304
      %v602 = vunpack.c.l.b16 %v305
      %v603 = vunpack.c.l.b16 %v306
      %v604 = vunpack.c.h.b16 %v306
      %v605 = vunpack.c.l.b16 %v307
      %v606 = vunpack.c.h.b16 %v307
      %v607 = vunpack.c.l.b16 %v308
      %v608 = vunpack.c.h.b16 %v308
      %v609 = vunpack.c.l.b16 %v309
      %v610 = vunpack.c.l.b16 %v310
      %v611 = vunpack.c.h.b16 %v310
      %v612 = vunpack.c.l.b16 %v311
      %v613 = vunpack.c.h.b16 %v311
      %v614 = vunpack.c.l.b16 %v312
      %v615 = vunpack.c.h.b16 %v312
      %v616 = vunpack.c.l.b16 %v313
      %v617 = vunpack.c.l.b16 %v314
      %v618 = vunpack.c.h.b16 %v314
      %v619 = vunpack.c.l.b16 %v315
      %v620 = vunpack.c.h.b16 %v315
      %v621 = vunpack.c.l.b16 %v316
      %v622 = vunpack.c.h.b16 %v316
      %v623 = vunpack.c.l.b16 %v317
      %v624 = vunpack.c.l.b16 %v318
      %v625 = vunpack.c.h.b16 %v318
      %v626 = vunpack.c.l.b16 %v319
      %v627 = vunpack.c.h.b16 %v319
      %v628 = vunpack.c.l.b16 %v320
      %v629 = vunpack.c.h.b16 %v320
      %v630 = vunpack.c.l.b16 %v321
      %v631 = vunpack.c.l.b16 %v322
      %v632 = vunpack.c.h.b16 %v322
      %v633 = vunpack.c.l.b16 %v323
      %v634 = vunpack.c.h.b16 %v323
      %v635 = vunpack.c.l.b16 %v324
      %v636 = vunpack.c.h.b16 %v324
      %v637 = vunpack.c.l.b16 %v325
      %v638 = vpack.c.b16 %v561, %v554
      %v639 = vpack.c.b16 %v562, %v555
      %v640 = vpack.c.b16 %v563, %v556
      %v641 = vpack.c.b16 %v564, %v557
      %v642 = vpack.c.b16 %v565, %v558
      %v643 = vpack.c.b16 %v566, %v559
      %v644 = vpack.c.b16 %v567, %v560
      %v645 = vpack.c.b16 %v575, %v568
      %v646 = vpack.c.b16 %v576, %v569
      %v647 = vpack.c.b16 %v577, %v570
      %v648 = vpack.c.b16 %v578, %v571
      %v649 = vpack.c.b16 %v579, %v572
      %v650 = vpack.c.b16 %v580, %v573
      %v651 = vpack.c.b16 %v581, %v574
      %v652 = vpack.c.b16 %v589, %v582
      %v653 = vpack.c.b16 %v590, %v583
      %v654 = vpack.c.b16 %v591, %v584
      %v655 = vpack.c.b16 %v592, %v585
      %v656 = vpack.c.b16 %v593, %v586
      %v657 = vpack.c.b16 %v594, %v587
      %v658 = vpack.c.b16 %v595, %v588
      %v659 = vpack.c.b16 %v603, %v596
      %v660 = vpack.c.b16 %v604, %v597
      %v661 = vpack.c.b16 %v605, %v598
      %v662 = vpack.c.b16 %v606, %v599
      %v663 = vpack.c.b16 %v607, %v600
      %v664 = vpack.c.b16 %v608, %v601
      %v665 = vpack.c.b16 %v609, %v602
      %v666 = vpack.c.b16 %v617, %v610
      %v667 = vpack.c.b16 %v618, %v611
      %v668 = vpack.c.b16 %v619, %v612
      %v669 = vpack.c.b16 %v620, %v613
      %v670 = vpack.c.b16 %v621, %v614
      %v671 = vpack.c.b16 %v622, %v615
      %v672 = vpack.c.b16 %v623, %v616
      %v673 = vpack.c.b16 %v631, %v624
      %v674 = vpack.c.b16 %v632, %v625
      %v675 = vpack.c.b16 %v633, %v626
      %v676 = vpack.c.b16 %v634, %v627
      %v677 = vpack.c.b16 %v635, %v628
      %v678 = vpack.c.b16 %v636, %v629
      %v679 = vpack.c.b16 %v637, %v630
      %v824 = vunpack.c.l.b16 %v326
      %v825 = vunpack.c.h.b16 %v326
      %v826 = vunpack.c.l.b16 %v327
      %v827 = vunpack.c.h.b16 %v327
      %v828 = vunpack.c.l.b16 %v328
      %v829 = vunpack.c.h.b16 %v328
      %v830 = vunpack.c.l.b16 %v329
      %v831 = vunpack.c.h.b16 %v329
      %v832 = vunpack.c.l.b16 %v330
      %v833 = vunpack.c.h.b16 %v330
      %v834 = vunpack.c.l.b16 %v331
      %v835 = vunpack.c.h.b16 %v331
      %v836 = vunpack.c.l.b16 %v332
      %v837 = vunpack.c.h.b16 %v332
      %v838 = vunpack.c.l.b16 %v333
      %v839 = vunpack.c.h.b16 %v333
      %v840 = vunpack.c.l.b16 %v334
      %v841 = vunpack.c.h.b16 %v334
      %v842 = vunpack.c.l.b16 %v335
      %v843 = vunpack.c.h.b16 %v335
      %v844 = vunpack.c.l.b16 %v336
      %v845 = vunpack.c.h.b16 %v336
      %v846 = vunpack.c.l.b16 %v337
      %v847 = vunpack.c.h.b16 %v337
      %v848 = vunpack.c.l.b16 %v338
      %v849 = vunpack.c.h.b16 %v338
      %v850 = vunpack.c.l.b16 %v339
      %v851 = vunpack.c.h.b16 %v339
      %v852 = vunpack.c.l.b16 %v340
      %v853 = vunpack.c.h.b16 %v340
      %v854 = vunpack.c.l.b16 %v341
      %v855 = vunpack.c.h.b16 %v341
      %v856 = vunpack.c.l.b16 %v342
      %v857 = vunpack.c.h.b16 %v342
      %v858 = vunpack.c.l.b16 %v343
      %v859 = vunpack.c.h.b16 %v343
      %v860 = vunpack.c.l.b16 %v344
      %v861 = vunpack.c.h.b16 %v344
      %v862 = vunpack.c.l.b16 %v345
      %v863 = vunpack.c.h.b16 %v345
      %v864 = vunpack.c.l.b16 %v346
      %v865 = vunpack.c.h.b16 %v346
      %v866 = vunpack.c.l.b16 %v347
      %v867 = vunpack.c.h.b16 %v347
      %v868 = vunpack.c.l.b16 %v348
      %v869 = vunpack.c.h.b16 %v348
      %v870 = vunpack.c.l.b16 %v349
      %v871 = vunpack.c.h.b16 %v349
      %v872 = vunpack.c.l.b16 %v350
      %v873 = vunpack.c.h.b16 %v350
      %v874 = vunpack.c.l.b16 %v351
      %v875 = vunpack.c.h.b16 %v351
      %v876 = vunpack.c.l.b16 %v352
      %v877 = vunpack.c.h.b16 %v352
      %v878 = vunpack.c.l.b16 %v353
      %v879 = vunpack.c.h.b16 %v353
      %v880 = vunpack.c.l.b16 %v354
      %v881 = vunpack.c.h.b16 %v354
      %v882 = vunpack.c.l.b16 %v355
      %v883 = vunpack.c.h.b16 %v355
      %v884 = vunpack.c.l.b16 %v356
      %v885 = vunpack.c.h.b16 %v356
      %v886 = vunpack.c.l.b16 %v357
      %v887 = vunpack.c.h.b16 %v357
      %v888 = vunpack.c.l.b16 %v358
      %v889 = vunpack.c.h.b16 %v358
      %v890 = vunpack.c.l.b16 %v359
      %v891 = vunpack.c.h.b16 %v359
      %v892 = vunpack.c.l.b16 %v360
      %v893 = vunpack.c.h.b16 %v360
      %v894 = vunpack.c.l.b16 %v361
      %v895 = vunpack.c.h.b16 %v361
      %v896 = vunpack.c.l.b16 %v362
      %v897 = vunpack.c.h.b16 %v362
      %v898 = vunpack.c.l.b16 %v363
      %v899 = vunpack.c.h.b16 %v363
      %v900 = vunpack.c.l.b16 %v364
      %v901 = vunpack.c.h.b16 %v364
      %v902 = vunpack.c.l.b16 %v365
      %v903 = vunpack.c.h.b16 %v365
      %v904 = vunpack.c.l.b16 %v366
      %v905 = vunpack.c.h.b16 %v366
      %v906 = vunpack.c.l.b16 %v367
      %v907 = vunpack.c.h.b16 %v367
      %v908 = vunpack.c.l.b16 %v368
      %v909 = vunpack.c.h.b16 %v368
      %v910 = vunpack.c.l.b16 %v369
      %v911 = vunpack.c.h.b16 %v369
      %v912 = vunpack.c.l.b16 %v370
      %v913 = vunpack.c.h.b16 %v370
      %v914 = vunpack.c.l.b16 %v371
      %v915 = vunpack.c.h.b16 %v371
      %v916 = vunpack.c.l.b16 %v372
      %v917 = vunpack.c.h.b16 %v372
      %v918 = vunpack.c.l.b16 %v373
      %v919 = vunpack.c.h.b16 %v373
      %v920 = vunpack.c.l.b16 %v374
      %v921 = vunpack.c.h.b16 %v374
      %v922 = vunpack.c.l.b16 %v375
      %v923 = vunpack.c.h.b16 %v375
      %v924 = vunpack.c.l.b16 %v376
      %v925 = vunpack.c.h.b16 %v376
      %v926 = vunpack.c.l.b16 %v377
      %v927 = vunpack.c.h.b16 %v377
      %v928 = vunpack.c.l.b16 %v378
      %v929 = vunpack.c.h.b16 %v378
      %v930 = vunpack.c.l.b16 %v379
      %v931 = vunpack.c.h.b16 %v379
      %v932 = vunpack.c.l.b16 %v380
      %v933 = vunpack.c.h.b16 %v380
      %v934 = vunpack.c.l.b16 %v381
      %v935 = vunpack.c.h.b16 %v381
      %v936 = vunpack.c.l.b16 %v382
      %v937 = vunpack.c.h.b16 %v382
      %v938 = vunpack.c.l.b16 %v383
      %v939 = vunpack.c.h.b16 %v383
      %v940 = vunpack.c.l.b16 %v384
      %v941 = vunpack.c.h.b16 %v384
      %v942 = vunpack.c.l.b16 %v385
      %v943 = vunpack.c.h.b16 %v385
      %v944 = vunpack.c.l.b16 %v386
      %v945 = vunpack.c.h.b16 %v386
      %v946 = vunpack.c.l.b16 %v387
      %v947 = vunpack.c.h.b16 %v387
      %v948 = vunpack.c.l.b16 %v388
      %v949 = vunpack.c.h.b16 %v388
      %v950 = vunpack.c.l.b16 %v389
      %v951 = vunpack.c.h.b16 %v389
      %v952 = vunpack.c.l.b16 %v390
      %v953 = vunpack.c.h.b16 %v390
      %v954 = vunpack.c.l.b16 %v391
      %v955 = vunpack.c.h.b16 %v391
      %v956 = vunpack.c.l.b16 %v392
      %v957 = vunpack.c.h.b16 %v392
      %v958 = vunpack.c.l.b16 %v393
      %v959 = vunpack.c.h.b16 %v393
      %v960 = vunpack.c.l.b16 %v394
      %v961 = vunpack.c.h.b16 %v394
      %v962 = vunpack.c.l.b16 %v395
      %v963 = vunpack.c.h.b16 %v395
      %v964 = vunpack.c.l.b16 %v396
      %v965 = vunpack.c.h.b16 %v396
      %v966 = vunpack.c.l.b16 %v397
      %v967 = vunpack.c.h.b16 %v397
      %v968 = vunpack.c.l.b16 %v398
      %v969 = vunpack.c.h.b16 %v398
      %v970 = vunpack.c.l.b16 %v399
      %v971 = vunpack.c.h.b16 %v399
      %v972 = vunpack.c.l.b16 %v400
      %v973 = vunpack.c.h.b16 %v400
      %v974 = vunpack.c.l.b16 %v401
      %v975 = vunpack.c.h.b16 %v401
      %v976 = vunpack.c.l.b16 %v402
      %v977 = vunpack.c.h.b16 %v402
      %v978 = vunpack.c.l.b16 %v403
      %v979 = vunpack.c.h.b16 %v403
      %v980 = vunpack.c.l.b16 %v404
      %v981 = vunpack.c.h.b16 %v404
      %v982 = vunpack.c.l.b16 %v405
      %v983 = vunpack.c.h.b16 %v405
      %v984 = vunpack.c.l.b16 %v406
      %v985 = vunpack.c.h.b16 %v406
      %v986 = vunpack.c.l.b16 %v407
      %v987 = vunpack.c.h.b16 %v407
      %v988 = vunpack.c.l.b16 %v408
      %v989 = vunpack.c.h.b16 %v408
      %v990 = vunpack.c.l.b16 %v409
      %v991 = vunpack.c.h.b16 %v409
      %v992 = vunpack.c.l.b16 %v410
      %v993 = vunpack.c.h.b16 %v410
      %v994 = vunpack.c.l.b16 %v411
      %v995 = vunpack.c.h.b16 %v411
      %v996 = vunpack.c.l.b16 %v412
      %v997 = vunpack.c.h.b16 %v412
      %v998 = vunpack.c.l.b16 %v413
      %v999 = vunpack.c.h.b16 %v413
      %v1000 = vunpack.c.l.b16 %v414
      %v1001 = vunpack.c.h.b16 %v414
      %v1002 = vunpack.c.l.b16 %v415
      %v1003 = vunpack.c.h.b16 %v415
      %v1004 = vunpack.c.l.b16 %v416
      %v1005 = vunpack.c.h.b16 %v416
      %v1006 = vunpack.c.l.b16 %v417
      %v1007 = vunpack.c.h.b16 %v417
      %v1008 = vunpack.c.l.b16 %v418
      %v1009 = vunpack.c.h.b16 %v418
      %v1010 = vunpack.c.l.b16 %v419
      %v1011 = vunpack.c.h.b16 %v419
      %v1012 = vunpack.c.l.b16 %v420
      %v1013 = vunpack.c.h.b16 %v420
      %v1014 = vunpack.c.l.b16 %v421
      %v1015 = vunpack.c.h.b16 %v421
      %v1016 = vunpack.c.l.b16 %v422
      %v1017 = vunpack.c.h.b16 %v422
      %v1018 = vunpack.c.l.b16 %v423
      %v1019 = vunpack.c.h.b16 %v423
      %v1020 = vunpack.c.l.b16 %v424
      %v1021 = vunpack.c.h.b16 %v424
      %v1022 = vunpack.c.l.b16 %v425
      %v1023 = vunpack.c.h.b16 %v425
      %v1024 = vunpack.c.l.b16 %v426
      %v1025 = vunpack.c.h.b16 %v426
      %v1026 = vunpack.c.l.b16 %v427
      %v1027 = vunpack.c.h.b16 %v427
      %v1028 = vunpack.c.l.b16 %v428
      %v1029 = vunpack.c.h.b16 %v428
      %v1030 = vunpack.c.l.b16 %v429
      %v1031 = vunpack.c.h.b16 %v429
      %v1032 = vunpack.c.l.b16 %v430
      %v1033 = vunpack.c.h.b16 %v430
      %v1034 = vunpack.c.l.b16 %v431
      %v1035 = vunpack.c.h.b16 %v431
      %v1036 = vunpack.c.l.b16 %v432
      %v1037 = vunpack.c.h.b16 %v432
      %v1038 = vunpack.c.l.b16 %v433
      %v1039 = vunpack.c.h.b16 %v433
      %v1040 = vpack.c.b16 %v826, %v824
      %v1041 = vpack.c.b16 %v827, %v825
      %v1042 = vpack.c.b16 %v830, %v828
      %v1043 = vpack.c.b16 %v831, %v829
      %v1044 = vpack.c.b16 %v834, %v832
      %v1045 = vpack.c.b16 %v835, %v833
      %v1046 = vpack.c.b16 %v838, %v836
      %v1047 = vpack.c.b16 %v839, %v837
      %v1048 = vpack.c.b16 %v842, %v840
      %v1049 = vpack.c.b16 %v843, %v841
      %v1050 = vpack.c.b16 %v846, %v844
      %v1051 = vpack.c.b16 %v847, %v845
      %v1052 = vpack.c.b16 %v850, %v848
      %v1053 = vpack.c.b16 %v851, %v849
      %v1054 = vpack.c.b16 %v854, %v852
      %v1055 = vpack.c.b16 %v855, %v853
      %v1056 = vpack.c.b16 %v858, %v856
      %v1057 = vpack.c.b16 %v859, %v857
      %v1058 = vpack.c.b16 %v862, %v860
      %v1059 = vpack.c.b16 %v863, %v861
      %v1060 = vpack.c.b16 %v866, %v864
      %v1061 = vpack.c.b16 %v867, %v865
      %v1062 = vpack.c.b16 %v870, %v868
      %v1063 = vpack.c.b16 %v871, %v869
      %v1064 = vpack.c.b16 %v874, %v872
      %v1065 = vpack.c.b16 %v875, %v873
      %v1066 = vpack.c.b16 %v878, %v876
      %v1067 = vpack.c.b16 %v879, %v877
      %v1068 = vpack.c.b16 %v882, %v880
      %v1069 = vpack.c.b16 %v883, %v881
      %v1070 = vpack.c.b16 %v886, %v884
      %v1071 = vpack.c.b16 %v887, %v885
      %v1072 = vpack.c.b16 %v890, %v888
      %v1073 = vpack.c.b16 %v891, %v889
      %v1074 = vpack.c.b16 %v894, %v892
      %v1075 = vpack.c.b16 %v895, %v893
      %v1076 = vpack.c.b16 %v898, %v896
      %v1077 = vpack.c.b16 %v899, %v897
      %v1078 = vpack.c.b16 %v902, %v900
      %v1079 = vpack.c.b16 %v903, %v901
      %v1080 = vpack.c.b16 %v906, %v904
      %v1081 = vpack.c.b16 %v907, %v905
      %v1082 = vpack.c.b16 %v910, %v908
      %v1083 = vpack.c.b16 %v911, %v909
      %v1084 = vpack.c.b16 %v914, %v912
      %v1085 = vpack.c.b16 %v915, %v913
      %v1086 = vpack.c.b16 %v918, %v916
      %v1087 = vpack.c.b16 %v919, %v917
      %v1088 = vpack.c.b16 %v922, %v920
      %v1089 = vpack.c.b16 %v923, %v921
      %v1090 = vpack.c.b16 %v926, %v924
      %v1091 = vpack.c.b16 %v927, %v925
      %v1092 = vpack.c.b16 %v930, %v928
      %v1093 = vpack.c.b16 %v931, %v929
      %v1094 = vpack.c.b16 %v934, %v932
      %v1095 = vpack.c.b16 %v935, %v933
      %v1096 = vpack.c.b16 %v938, %v936
      %v1097 = vpack.c.b16 %v939, %v937
      %v1098 = vpack.c.b16 %v942, %v940
      %v1099 = vpack.c.b16 %v943, %v941
      %v1100 = vpack.c.b16 %v946, %v944
      %v1101 = vpack.c.b16 %v947, %v945
      %v1102 = vpack.c.b16 %v950, %v948
      %v1103 = vpack.c.b16 %v951, %v949
      %v1104 = vpack.c.b16 %v954, %v952
      %v1105 = vpack.c.b16 %v955, %v953
      %v1106 = vpack.c.b16 %v958, %v956
      %v1107 = vpack.c.b16 %v959, %v957
      %v1108 = vpack.c.b16 %v962, %v960
      %v1109 = vpack.c.b16 %v963, %v961
      %v1110 = vpack.c.b16 %v966, %v964
      %v1111 = vpack.c.b16 %v967, %v965
      %v1112 = vpack.c.b16 %v970, %v968
      %v1113 = vpack.c.b16 %v971, %v969
      %v1114 = vpack.c.b16 %v974, %v972
      %v1115 = vpack.c.b16 %v975, %v973
      %v1116 = vpack.c.b16 %v978, %v976
      %v1117 = vpack.c.b16 %v979, %v977
      %v1118 = vpack.c.b16 %v982, %v980
      %v1119 = vpack.c.b16 %v983, %v981
      %v1120 = vpack.c.b16 %v986, %v984
      %v1121 = vpack.c.b16 %v987, %v985
      %v1122 = vpack.c.b16 %v990, %v988
      %v1123 = vpack.c.b16 %v991, %v989
      %v1124 = vpack.c.b16 %v994, %v992
      %v1125 = vpack.c.b16 %v995, %v993
      %v1126 = vpack.c.b16 %v998, %v996
      %v1127 = vpack.c.b16 %v999, %v997
      %v1128 = vpack.c.b16 %v1002, %v1000
      %v1129 = vpack.c.b16 %v1003, %v1001
      %v1130 = vpack.c.b16 %v1006, %v1004
      %v1131 = vpack.c.b16 %v1007, %v1005
      %v1132 = vpack.c.b16 %v1010, %v1008
      %v1133 = vpack.c.b16 %v1011, %v1009
      %v1134 = vpack.c.b16 %v1014, %v1012
      %v1135 = vpack.c.b16 %v1015, %v1013
      %v1136 = vpack.c.b16 %v1018, %v1016
      %v1137 = vpack.c.b16 %v1019, %v1017
      %v1138 = vpack.c.b16 %v1022, %v1020
      %v1139 = vpack.c.b16 %v1023, %v1021
      %v1140 = vpack.c.b16 %v1026, %v1024
      %v1141 = vpack.c.b16 %v1027, %v1025
      %v1142 = vpack.c.b16 %v1030, %v1028
      %v1143 = vpack.c.b16 %v1031, %v1029
      %v1144 = vpack.c.b16 %v1034, %v1032
      %v1145 = vpack.c.b16 %v1035, %v1033
      %v1146 = vpack.c.b16 %v1038, %v1036
      %v1147 = vpack.c.b16 %v1039, %v1037
      %vm1256 = vcmask 785408
      %v1258 = vsel %vm1256, %v644, 0
      %v1261 = vsel %vm1256, %v651, 0
      %v1264 = vsel %vm1256, %v658, 0
      %v1267 = vsel %vm1256, %v665, 0
      %v1270 = vsel %vm1256, %v672, 0
      %v1273 = vsel %vm1256, %v679, 0
      %1275 = vmatprep.subr.bf16.mxu0 %v1041
      %1276 = vmatpush1.bf16.msra.mxu0 %v1040
      %1277 = vmatprep.subr.bf16.mxu0 %v1043
      %1278 = vmatpush1.bf16.msra.mxu0 %v1042
      %1279 = vmatprep.subr.bf16.mxu0 %v1045
      %1280 = vmatpush1.bf16.msra.mxu0 %v1044
      %1281 = vmatprep.subr.bf16.mxu0 %v1047
      %1282 = vmatpush1.bf16.msra.mxu0 %v1046
      %1283 = vmatprep.subr.bf16.mxu0 %v1049
      %1284 = vmatpush1.bf16.msra.mxu0 %v1048
      %1285 = vmatprep.subr.bf16.mxu0 %v1051
      %1286 = vmatpush1.bf16.msra.mxu0 %v1050
      %1287 = vmatprep.subr.bf16.mxu0 %v1053
      %1288 = vmatpush1.bf16.msra.mxu0 %v1052
      %1289 = vmatprep.subr.bf16.mxu0 %v1055
      %1290 = vmatpush1.bf16.msra.mxu0 %v1054
      %1291 = vmatprep.subr.bf16.mxu0 %v1057
      %1292 = vmatpush1.bf16.msra.mxu0 %v1056
      %1293 = vmatprep.subr.bf16.mxu0 %v1059
      %1294 = vmatpush1.bf16.msra.mxu0 %v1058
      %1295 = vmatprep.subr.bf16.mxu0 %v1061
      %1296 = vmatpush1.bf16.msra.mxu0 %v1060
      %1297 = vmatprep.subr.bf16.mxu0 %v1063
      %1298 = vmatpush1.bf16.msra.mxu0 %v1062
      %1299 = vmatprep.subr.bf16.mxu0 %v1065
      %1300 = vmatpush1.bf16.msra.mxu0 %v1064
      %1301 = vmatprep.subr.bf16.mxu0 %v1067
      %1302 = vmatpush1.bf16.msra.mxu0 %v1066
      %1303 = vmatprep.subr.bf16.mxu0 %v1069
      %1304 = vmatpush1.bf16.msra.mxu0 %v1068
      %1305 = vmatprep.subr.bf16.mxu0 %v1071
      %1306 = vmatpush1.bf16.msra.mxu0 %v1070
      %1307 = vmatprep.mubr.bf16.mxu0 %v639
      %1308 = vmatmul.mubr.bf16.gmra.mrb[0].mxu0 %v638
      %v1309 = vpop.f32.mrb[0].mxu0
      %v1310 = vadd.f32 %v449, %v1309
      %v1311 = vpop.f32.mrb[0].mxu0
      %v1312 = vadd.f32 %v449, %v1311
      %v1313 = vpop.f32.mrb[0].mxu0
      %v1314 = vadd.f32 %v454, %v1313
      %v1315 = vpop.f32.mrb[0].mxu0
      %v1316 = vadd.f32 %v454, %v1315
      %1317 = vmatprep.mubr.bf16.mxu0 %v646
      %1318 = vmatmul.mubr.bf16.gmra.mrb[0].mxu0 %v645
      %v1319 = vpop.f32.mrb[0].mxu0
      %v1320 = vadd.f32 %v459, %v1319
      %v1321 = vpop.f32.mrb[0].mxu0
      %v1322 = vadd.f32 %v459, %v1321
      %v1323 = vpop.f32.mrb[0].mxu0
      %v1324 = vadd.f32 %v464, %v1323
      %v1325 = vpop.f32.mrb[0].mxu0
      %v1326 = vadd.f32 %v464, %v1325
      %1327 = vmatprep.mubr.bf16.mxu0 %v653
      %1328 = vmatmul.mubr.bf16.gmra.mrb[0].mxu0 %v652
      %v1329 = vpop.f32.mrb[0].mxu0
      %v1330 = vadd.f32 %v469, %v1329
      %v1331 = vpop.f32.mrb[0].mxu0
      %v1332 = vadd.f32 %v469, %v1331
      %v1333 = vpop.f32.mrb[0].mxu0
      %v1334 = vadd.f32 %v474, %v1333
      %v1335 = vpop.f32.mrb[0].mxu0
      %v1336 = vadd.f32 %v474, %v1335
      %1337 = vmatprep.mubr.bf16.mxu0 %v660
      %1338 = vmatmul.mubr.bf16.gmra.mrb[0].mxu0 %v659
      %v1339 = vpop.f32.mrb[0].mxu0
      %v1340 = vadd.f32 %v479, %v1339
      %v1341 = vpop.f32.mrb[0].mxu0
      %v1342 = vadd.f32 %v479, %v1341
      %v1343 = vpop.f32.mrb[0].mxu0
      %v1344 = vadd.f32 %v484, %v1343
      %v1345 = vpop.f32.mrb[0].mxu0
      %v1346 = vadd.f32 %v484, %v1345
      %1347 = vmatprep.mubr.bf16.mxu0 %v667
      %1348 = vmatmul.mubr.bf16.gmra.mrb[0].mxu0 %v666
      %v1349 = vpop.f32.mrb[0].mxu0
      %v1350 = vadd.f32 %v489, %v1349
      %v1351 = vpop.f32.mrb[0].mxu0
      %v1352 = vadd.f32 %v489, %v1351
      %v1353 = vpop.f32.mrb[0].mxu0
      %v1354 = vadd.f32 %v494, %v1353
      %v1355 = vpop.f32.mrb[0].mxu0
      %v1356 = vadd.f32 %v494, %v1355
      %1357 = vmatprep.mubr.bf16.mxu0 %v674
      %1358 = vmatmul.mubr.bf16.gmra.mrb[0].mxu0 %v673
      %v1359 = vpop.f32.mrb[0].mxu0
      %v1360 = vadd.f32 %v499, %v1359
      %v1361 = vpop.f32.mrb[0].mxu0
      %v1362 = vadd.f32 %v499, %v1361
      %v1363 = vpop.f32.mrb[0].mxu0
      %v1364 = vadd.f32 %v504, %v1363
      %v1365 = vpop.f32.mrb[0].mxu0
      %v1366 = vadd.f32 %v504, %v1365
      %1367 = vdwg.mxu0
      %1368 = vmatprep.subr.bf16.mxu0 %v1073
      %1369 = vmatpush1.bf16.msra.mxu0 %v1072
      %1370 = vmatprep.subr.bf16.mxu0 %v1075
      %1371 = vmatpush1.bf16.msra.mxu0 %v1074
      %1372 = vmatprep.subr.bf16.mxu0 %v1077
      %1373 = vmatpush1.bf16.msra.mxu0 %v1076
      %1374 = vmatprep.subr.bf16.mxu0 %v1079
      %1375 = vmatpush1.bf16.msra.mxu0 %v1078
      %1376 = vmatprep.subr.bf16.mxu0 %v1081
      %1377 = vmatpush1.bf16.msra.mxu0 %v1080
      %1378 = vmatprep.subr.bf16.mxu0 %v1083
      %1379 = vmatpush1.bf16.msra.mxu0 %v1082
      %1380 = vmatprep.subr.bf16.mxu0 %v1085
      %1381 = vmatpush1.bf16.msra.mxu0 %v1084
      %1382 = vmatprep.subr.bf16.mxu0 %v1087
      %1383 = vmatpush1.bf16.msra.mxu0 %v1086
      %1384 = vmatprep.subr.bf16.mxu0 %v1089
      %1385 = vmatpush1.bf16.msra.mxu0 %v1088
      %1386 = vmatprep.subr.bf16.mxu0 %v1091
      %1387 = vmatpush1.bf16.msra.mxu0 %v1090
      %1388 = vmatprep.subr.bf16.mxu0 %v1093
      %1389 = vmatpush1.bf16.msra.mxu0 %v1092
      %1390 = vmatprep.subr.bf16.mxu0 %v1095
      %1391 = vmatpush1.bf16.msra.mxu0 %v1094
      %1392 = vmatprep.subr.bf16.mxu0 %v1097
      %1393 = vmatpush1.bf16.msra.mxu0 %v1096
      %1394 = vmatprep.subr.bf16.mxu0 %v1099
      %1395 = vmatpush1.bf16.msra.mxu0 %v1098
      %1396 = vmatprep.subr.bf16.mxu0 %v1101
      %1397 = vmatpush1.bf16.msra.mxu0 %v1100
      %1398 = vmatprep.subr.bf16.mxu0 %v1103
      %1399 = vmatpush1.bf16.msra.mxu0 %v1102
      %1400 = vmatprep.mubr.bf16.mxu0 %v641
      %1401 = vmatmul.mubr.bf16.gmra.mrb[0].mxu0 %v640
      %v1402 = vpop.f32.mrb[0].mxu0
      %v1403 = vadd.f32 %v1310, %v1402
      %v1404 = vpop.f32.mrb[0].mxu0
      %v1405 = vadd.f32 %v1312, %v1404
      %v1406 = vpop.f32.mrb[0].mxu0
      %v1407 = vadd.f32 %v1314, %v1406
      %v1408 = vpop.f32.mrb[0].mxu0
      %v1409 = vadd.f32 %v1316, %v1408
      %1410 = vmatprep.mubr.bf16.mxu0 %v648
      %1411 = vmatmul.mubr.bf16.gmra.mrb[0].mxu0 %v647
      %v1412 = vpop.f32.mrb[0].mxu0
      %v1413 = vadd.f32 %v1320, %v1412
      %v1414 = vpop.f32.mrb[0].mxu0
      %v1415 = vadd.f32 %v1322, %v1414
      %v1416 = vpop.f32.mrb[0].mxu0
      %v1417 = vadd.f32 %v1324, %v1416
      %v1418 = vpop.f32.mrb[0].mxu0
      %v1419 = vadd.f32 %v1326, %v1418
      %1420 = vmatprep.mubr.bf16.mxu0 %v655
      %1421 = vmatmul.mubr.bf16.gmra.mrb[0].mxu0 %v654
      %v1422 = vpop.f32.mrb[0].mxu0
      %v1423 = vadd.f32 %v1330, %v1422
      %v1424 = vpop.f32.mrb[0].mxu0
      %v1425 = vadd.f32 %v1332, %v1424
      %v1426 = vpop.f32.mrb[0].mxu0
      %v1427 = vadd.f32 %v1334, %v1426
      %v1428 = vpop.f32.mrb[0].mxu0
      %v1429 = vadd.f32 %v1336, %v1428
      %1430 = vmatprep.mubr.bf16.mxu0 %v662
      %1431 = vmatmul.mubr.bf16.gmra.mrb[0].mxu0 %v661
      %v1432 = vpop.f32.mrb[0].mxu0
      %v1433 = vadd.f32 %v1340, %v1432
      %v1434 = vpop.f32.mrb[0].mxu0
      %v1435 = vadd.f32 %v1342, %v1434
      %v1436 = vpop.f32.mrb[0].mxu0
      %v1437 = vadd.f32 %v1344, %v1436
      %v1438 = vpop.f32.mrb[0].mxu0
      %v1439 = vadd.f32 %v1346, %v1438
      %1440 = vmatprep.mubr.bf16.mxu0 %v669
      %1441 = vmatmul.mubr.bf16.gmra.mrb[0].mxu0 %v668
      %v1442 = vpop.f32.mrb[0].mxu0
      %v1443 = vadd.f32 %v1350, %v1442
      %v1444 = vpop.f32.mrb[0].mxu0
      %v1445 = vadd.f32 %v1352, %v1444
      %v1446 = vpop.f32.mrb[0].mxu0
      %v1447 = vadd.f32 %v1354, %v1446
      %v1448 = vpop.f32.mrb[0].mxu0
      %v1449 = vadd.f32 %v1356, %v1448
      %1450 = vmatprep.mubr.bf16.mxu0 %v676
      %1451 = vmatmul.mubr.bf16.gmra.mrb[0].mxu0 %v675
      %v1452 = vpop.f32.mrb[0].mxu0
      %v1453 = vadd.f32 %v1360, %v1452
      %v1454 = vpop.f32.mrb[0].mxu0
      %v1455 = vadd.f32 %v1362, %v1454
      %v1456 = vpop.f32.mrb[0].mxu0
      %v1457 = vadd.f32 %v1364, %v1456
      %v1458 = vpop.f32.mrb[0].mxu0
      %v1459 = vadd.f32 %v1366, %v1458
      %1460 = vdwg.mxu0
      %1461 = vmatprep.subr.bf16.mxu0 %v1105
      %1462 = vmatpush1.bf16.msra.mxu0 %v1104
      %1463 = vmatprep.subr.bf16.mxu0 %v1107
      %1464 = vmatpush1.bf16.msra.mxu0 %v1106
      %1465 = vmatprep.subr.bf16.mxu0 %v1109
      %1466 = vmatpush1.bf16.msra.mxu0 %v1108
      %1467 = vmatprep.subr.bf16.mxu0 %v1111
      %1468 = vmatpush1.bf16.msra.mxu0 %v1110
      %1469 = vmatprep.subr.bf16.mxu0 %v1113
      %1470 = vmatpush1.bf16.msra.mxu0 %v1112
      %1471 = vmatprep.subr.bf16.mxu0 %v1115
      %1472 = vmatpush1.bf16.msra.mxu0 %v1114
      %1473 = vmatprep.subr.bf16.mxu0 %v1117
      %1474 = vmatpush1.bf16.msra.mxu0 %v1116
      %1475 = vmatprep.subr.bf16.mxu0 %v1119
      %1476 = vmatpush1.bf16.msra.mxu0 %v1118
      %1477 = vmatprep.subr.bf16.mxu0 %v1121
      %1478 = vmatpush1.bf16.msra.mxu0 %v1120
      %1479 = vmatprep.subr.bf16.mxu0 %v1123
      %1480 = vmatpush1.bf16.msra.mxu0 %v1122
      %1481 = vmatprep.subr.bf16.mxu0 %v1125
      %1482 = vmatpush1.bf16.msra.mxu0 %v1124
      %1483 = vmatprep.subr.bf16.mxu0 %v1127
      %1484 = vmatpush1.bf16.msra.mxu0 %v1126
      %1485 = vmatprep.subr.bf16.mxu0 %v1129
      %1486 = vmatpush1.bf16.msra.mxu0 %v1128
      %1487 = vmatprep.subr.bf16.mxu0 %v1131
      %1488 = vmatpush1.bf16.msra.mxu0 %v1130
      %1489 = vmatprep.subr.bf16.mxu0 %v1133
      %1490 = vmatpush1.bf16.msra.mxu0 %v1132
      %1491 = vmatprep.subr.bf16.mxu0 %v1135
      %1492 = vmatpush1.bf16.msra.mxu0 %v1134
      %1493 = vmatprep.mubr.bf16.mxu0 %v643
      %1494 = vmatmul.mubr.bf16.gmra.mrb[0].mxu0 %v642
      %v1495 = vpop.f32.mrb[0].mxu0
      %v1496 = vadd.f32 %v1403, %v1495
      %v1497 = vpop.f32.mrb[0].mxu0
      %v1498 = vadd.f32 %v1405, %v1497
      %v1499 = vpop.f32.mrb[0].mxu0
      %v1500 = vadd.f32 %v1407, %v1499
      %v1501 = vpop.f32.mrb[0].mxu0
      %v1502 = vadd.f32 %v1409, %v1501
      %1503 = vmatprep.mubr.bf16.mxu0 %v650
      %1504 = vmatmul.mubr.bf16.gmra.mrb[0].mxu0 %v649
      %v1505 = vpop.f32.mrb[0].mxu0
      %v1506 = vadd.f32 %v1413, %v1505
      %v1507 = vpop.f32.mrb[0].mxu0
      %v1508 = vadd.f32 %v1415, %v1507
      %v1509 = vpop.f32.mrb[0].mxu0
      %v1510 = vadd.f32 %v1417, %v1509
      %v1511 = vpop.f32.mrb[0].mxu0
      %v1512 = vadd.f32 %v1419, %v1511
      %1513 = vmatprep.mubr.bf16.mxu0 %v657
      %1514 = vmatmul.mubr.bf16.gmra.mrb[0].mxu0 %v656
      %v1515 = vpop.f32.mrb[0].mxu0
      %v1516 = vadd.f32 %v1423, %v1515
      %v1517 = vpop.f32.mrb[0].mxu0
      %v1518 = vadd.f32 %v1425, %v1517
      %v1519 = vpop.f32.mrb[0].mxu0
      %v1520 = vadd.f32 %v1427, %v1519
      %v1521 = vpop.f32.mrb[0].mxu0
      %v1522 = vadd.f32 %v1429, %v1521
      %1523 = vmatprep.mubr.bf16.mxu0 %v664
      %1524 = vmatmul.mubr.bf16.gmra.mrb[0].mxu0 %v663
      %v1525 = vpop.f32.mrb[0].mxu0
      %v1526 = vadd.f32 %v1433, %v1525
      %v1527 = vpop.f32.mrb[0].mxu0
      %v1528 = vadd.f32 %v1435, %v1527
      %v1529 = vpop.f32.mrb[0].mxu0
      %v1530 = vadd.f32 %v1437, %v1529
      %v1531 = vpop.f32.mrb[0].mxu0
      %v1532 = vadd.f32 %v1439, %v1531
      %1533 = vmatprep.mubr.bf16.mxu0 %v671
      %1534 = vmatmul.mubr.bf16.gmra.mrb[0].mxu0 %v670
      %v1535 = vpop.f32.mrb[0].mxu0
      %v1536 = vadd.f32 %v1443, %v1535
      %v1537 = vpop.f32.mrb[0].mxu0
      %v1538 = vadd.f32 %v1445, %v1537
      %v1539 = vpop.f32.mrb[0].mxu0
      %v1540 = vadd.f32 %v1447, %v1539
      %v1541 = vpop.f32.mrb[0].mxu0
      %v1542 = vadd.f32 %v1449, %v1541
      %1543 = vmatprep.mubr.bf16.mxu0 %v678
      %1544 = vmatmul.mubr.bf16.gmra.mrb[0].mxu0 %v677
      %v1545 = vpop.f32.mrb[0].mxu0
      %v1546 = vadd.f32 %v1453, %v1545
      %v1547 = vpop.f32.mrb[0].mxu0
      %v1548 = vadd.f32 %v1455, %v1547
      %v1549 = vpop.f32.mrb[0].mxu0
      %v1550 = vadd.f32 %v1457, %v1549
      %v1551 = vpop.f32.mrb[0].mxu0
      %v1552 = vadd.f32 %v1459, %v1551
      %1553 = vdwg.mxu0
      %1554 = vmatprep.subr.bf16.mxu0 %v1137
      %1555 = vmatpush1.bf16.msra.mxu0 %v1136
      %1556 = vmatprep.subr.bf16.mxu0 %v1139
      %1557 = vmatpush1.bf16.msra.mxu0 %v1138
      %1558 = vmatprep.subr.bf16.mxu0 %v1141
      %1559 = vmatpush1.bf16.msra.mxu0 %v1140
      %1560 = vmatprep.subr.bf16.mxu0 %v1143
      %1561 = vmatpush1.bf16.msra.mxu0 %v1142
      %1562 = vmatprep.subr.bf16.mxu0 %v1145
      %1563 = vmatpush1.bf16.msra.mxu0 %v1144
      %1564 = vmatprep.subr.bf16.mxu0 %v1147
      %1565 = vmatpush1.bf16.msra.mxu0 %v1146
      %1566 = vmatprep.subr.bf16.mxu0 0
      %1567 = vmatpush1.bf16.msra.mxu0 0
      %1568 = vmatprep.subr.bf16.mxu0 0
      %1569 = vmatpush1.bf16.msra.mxu0 0
      %1570 = vmatprep.subr.bf16.mxu0 0
      %1571 = vmatpush1.bf16.msra.mxu0 0
      %1572 = vmatprep.subr.bf16.mxu0 0
      %1573 = vmatpush1.bf16.msra.mxu0 0
      %1574 = vmatprep.subr.bf16.mxu0 0
      %1575 = vmatpush1.bf16.msra.mxu0 0
      %1576 = vmatprep.subr.bf16.mxu0 0
      %1577 = vmatpush1.bf16.msra.mxu0 0
      %1578 = vmatprep.subr.bf16.mxu0 0
      %1579 = vmatpush1.bf16.msra.mxu0 0
      %1580 = vmatprep.subr.bf16.mxu0 0
      %1581 = vmatpush1.bf16.msra.mxu0 0
      %1582 = vmatprep.subr.bf16.mxu0 0
      %1583 = vmatpush1.bf16.msra.mxu0 0
      %1584 = vmatprep.subr.bf16.mxu0 0
      %1585 = vmatpush1.bf16.msra.mxu0 0
      %1586 = vmatprep.mubr.bf16.mxu0 0
      %1587 = vmatmul.mubr.bf16.gmra.mrb[0].mxu0 %v1258
      %v1588 = vpop.f32.mrb[0].mxu0
      %v1589 = vadd.f32 %v1496, %v1588
      %v1590 = vpop.f32.mrb[0].mxu0
      %v1591 = vadd.f32 %v1498, %v1590
      %v1592 = vpop.f32.mrb[0].mxu0
      %v1593 = vadd.f32 %v1500, %v1592
      %v1594 = vpop.f32.mrb[0].mxu0
      %v1595 = vadd.f32 %v1502, %v1594
      %1596 = vmatprep.mubr.bf16.mxu0 0
      %1597 = vmatmul.mubr.bf16.gmra.mrb[0].mxu0 %v1261
      %v1598 = vpop.f32.mrb[0].mxu0
      %v1599 = vadd.f32 %v1506, %v1598
      %v1600 = vpop.f32.mrb[0].mxu0
      %v1601 = vadd.f32 %v1508, %v1600
      %v1602 = vpop.f32.mrb[0].mxu0
      %v1603 = vadd.f32 %v1510, %v1602
      %v1604 = vpop.f32.mrb[0].mxu0
      %v1605 = vadd.f32 %v1512, %v1604
      %1606 = vmatprep.mubr.bf16.mxu0 0
      %1607 = vmatmul.mubr.bf16.gmra.mrb[0].mxu0 %v1264
      %v1608 = vpop.f32.mrb[0].mxu0
      %v1609 = vadd.f32 %v1516, %v1608
      %v1610 = vpop.f32.mrb[0].mxu0
      %v1611 = vadd.f32 %v1518, %v1610
      %v1612 = vpop.f32.mrb[0].mxu0
      %v1613 = vadd.f32 %v1520, %v1612
      %v1614 = vpop.f32.mrb[0].mxu0
      %v1615 = vadd.f32 %v1522, %v1614
      %1616 = vmatprep.mubr.bf16.mxu0 0
      %1617 = vmatmul.mubr.bf16.gmra.mrb[0].mxu0 %v1267
      %v1618 = vpop.f32.mrb[0].mxu0
      %v1619 = vadd.f32 %v1526, %v1618
      %v1620 = vpop.f32.mrb[0].mxu0
      %v1621 = vadd.f32 %v1528, %v1620
      %v1622 = vpop.f32.mrb[0].mxu0
      %v1623 = vadd.f32 %v1530, %v1622
      %v1624 = vpop.f32.mrb[0].mxu0
      %v1625 = vadd.f32 %v1532, %v1624
      %1626 = vmatprep.mubr.bf16.mxu0 0
      %1627 = vmatmul.mubr.bf16.gmra.mrb[0].mxu0 %v1270
      %v1628 = vpop.f32.mrb[0].mxu0
      %v1629 = vadd.f32 %v1536, %v1628
      %v1630 = vpop.f32.mrb[0].mxu0
      %v1631 = vadd.f32 %v1538, %v1630
      %v1632 = vpop.f32.mrb[0].mxu0
      %v1633 = vadd.f32 %v1540, %v1632
      %v1634 = vpop.f32.mrb[0].mxu0
      %v1635 = vadd.f32 %v1542, %v1634
      %1636 = vmatprep.mubr.bf16.mxu0 0
      %1637 = vmatmul.mubr.bf16.gmra.mrb[0].mxu0 %v1273
      %v1638 = vpop.f32.mrb[0].mxu0
      %v1639 = vadd.f32 %v1546, %v1638
      %v1640 = vpop.f32.mrb[0].mxu0
      %v1641 = vadd.f32 %v1548, %v1640
      %v1642 = vpop.f32.mrb[0].mxu0
      %v1643 = vadd.f32 %v1550, %v1642
      %v1644 = vpop.f32.mrb[0].mxu0
      %v1645 = vadd.f32 %v1552, %v1644
      %1646 = vdwg.mxu0
      %v1647 = vmul.f32 %v1589, 0.1
      %v1648 = vmul.f32 %v1591, 0.1
      %v1649 = vmul.f32 %v1593, 0.1
      %v1650 = vmul.f32 %v1595, 0.1
      %v1651 = vmul.f32 %v1599, 0.1
      %v1652 = vmul.f32 %v1601, 0.1
      %v1653 = vmul.f32 %v1603, 0.1
      %v1654 = vmul.f32 %v1605, 0.1
      %v1655 = vmul.f32 %v1609, 0.1
      %v1656 = vmul.f32 %v1611, 0.1
      %v1657 = vmul.f32 %v1613, 0.1
      %v1658 = vmul.f32 %v1615, 0.1
      %v1659 = vmul.f32 %v1619, 0.1
      %v1660 = vmul.f32 %v1621, 0.1
      %v1661 = vmul.f32 %v1623, 0.1
      %v1662 = vmul.f32 %v1625, 0.1
      %v1663 = vmul.f32 %v1629, 0.1
      %v1664 = vmul.f32 %v1631, 0.1
      %v1665 = vmul.f32 %v1633, 0.1
      %v1666 = vmul.f32 %v1635, 0.1
      %v1667 = vmul.f32 %v1639, 0.1
      %v1668 = vmul.f32 %v1641, 0.1
      %v1669 = vmul.f32 %v1643, 0.1
      %v1670 = vmul.f32 %v1645, 0.1
      %v1671 = vmax.f32 %v1589, %v1647
      %v1672 = vmax.f32 %v1591, %v1648
      %v1673 = vmax.f32 %v1593, %v1649
      %v1674 = vmax.f32 %v1595, %v1650
      %v1675 = vmax.f32 %v1599, %v1651
      %v1676 = vmax.f32 %v1601, %v1652
      %v1677 = vmax.f32 %v1603, %v1653
      %v1678 = vmax.f32 %v1605, %v1654
      %v1679 = vmax.f32 %v1609, %v1655
      %v1680 = vmax.f32 %v1611, %v1656
      %v1681 = vmax.f32 %v1613, %v1657
      %v1682 = vmax.f32 %v1615, %v1658
      %v1683 = vmax.f32 %v1619, %v1659
      %v1684 = vmax.f32 %v1621, %v1660
      %v1685 = vmax.f32 %v1623, %v1661
      %v1686 = vmax.f32 %v1625, %v1662
      %v1687 = vmax.f32 %v1629, %v1663
      %v1688 = vmax.f32 %v1631, %v1664
      %v1689 = vmax.f32 %v1633, %v1665
      %v1690 = vmax.f32 %v1635, %v1666
      %v1691 = vmax.f32 %v1639, %v1667
      %v1692 = vmax.f32 %v1641, %v1668
      %v1693 = vmax.f32 %v1643, %v1669
      %v1694 = vmax.f32 %v1645, %v1670
      %1695 = vst [vmem:[%s274] sm:$0xff] %v1671
      %1696 = vst [vmem:[%s274 + $0x8] sm:$0xff] %v1672
      %1697 = vst [vmem:[%s274 + $0x10] sm:$0xff] %v1673
      %1698 = vst [vmem:[%s274 + $0x18] sm:$0xff] %v1674
      %1699 = vst [vmem:[%s274 + $0x20] sm:$0xff] %v1675
      %1700 = vst [vmem:[%s274 + $0x28] sm:$0xff] %v1676
      %1701 = vst [vmem:[%s274 + $0x30] sm:$0xff] %v1677
      %1702 = vst [vmem:[%s274 + $0x38] sm:$0xff] %v1678
      %1703 = vst [vmem:[%s274 + $0x40] sm:$0xff] %v1679
      %1704 = vst [vmem:[%s274 + $0x48] sm:$0xff] %v1680
      %1705 = vst [vmem:[%s274 + $0x50] sm:$0xff] %v1681
      %1706 = vst [vmem:[%s274 + $0x58] sm:$0xff] %v1682
      %1707 = vst [vmem:[%s274 + $0x60] sm:$0xff] %v1683
      %1708 = vst [vmem:[%s274 + $0x68] sm:$0xff] %v1684
      %1709 = vst [vmem:[%s274 + $0x70] sm:$0xff] %v1685
      %1710 = vst [vmem:[%s274 + $0x78] sm:$0xff] %v1686
      %1711 = vst [vmem:[%s274 + $0x80] sm:$0xff] %v1687
      %1712 = vst [vmem:[%s274 + $0x88] sm:$0xff] %v1688
      %1713 = vst [vmem:[%s274 + $0x90] sm:$0xff] %v1689
      %1714 = vst [vmem:[%s274 + $0x98] sm:$0xff] %v1690
      %1715 = vst [vmem:[%s274 + $0xa0] sm:$0xff] %v1691
      %1716 = vst [vmem:[%s274 + $0xa8] sm:$0xff] %v1692
      %1717 = vst [vmem:[%s274 + $0xb0] sm:$0xff] %v1693
      %1718 = vst [vmem:[%s274 + $0xb8] sm:$0xff] %v1694
      %s1719 = smul.u32 12, %s20
      %s1720 = smul.u32 2, %s21
      %p1721 = scmp.lt.s32.totalorder %s19, 1
      %s1722 = scalar_select %p1721, %s19, 1
      %p1723 = scmp.lt.s32.totalorder %s1719, 11
      %s1724 = scalar_select %p1723, %s1719, 11
      %p1725 = scmp.lt.s32.totalorder %s1720, 1
      %s1726 = scalar_select %p1725, %s1720, 1
      %s1727 = smul.addr %s1724, 2
      %s1728 = sadd.s32 %s1726, %s1727
      %s1729 = smul.addr %s1722, 24
      %s1730 = sadd.s32 %s1728, %s1729
      %s1731 = smul.addr %s1730, 8
      %s1732 = scalar_lea.vmem %s3, %s1731
      // Predicated region
      $region33: #{mono_sceneflow_decoder_lstm.10} parent=31 // pred_check
        %p1733 = pneg %p135
      $region34: #{mono_sceneflow_decoder_lstm.10} parent=31 // pred_check_branch
        %1735 = sbr.rel (%p1733) target = $region36
      $region35: #{mono_sceneflow_decoder_lstm.10} parent=31 // pred_region
        %s1736 = smul.u32 12, %s20
        %s1737 = smul.u32 2, %s21
      $region36: #{mono_sceneflow_decoder_lstm.10} parent=31 // pred_fallthru
        _
    $region32: #{mono_sceneflow_decoder_lstm.10} parent=5 // pred_fallthru
      _
    %p1738 = scmp.le.s32.totalorder 2, %s9
    // Predicated region
    $region37: #{mono_sceneflow_decoder_lstm.10} parent=5 // pred_check
      %p1739 = pneg %p1738
    $region38: #{mono_sceneflow_decoder_lstm.10} parent=5 // pred_check_branch
      %1741 = sbr.rel (%p1739) target = $region40
    $region39: #{mono_sceneflow_decoder_lstm.10} parent=5 // pred_region
      %s1742 = ssub.s32 %s9, 2
      // Predicated region
      $region41: #{mono_sceneflow_decoder_lstm.10} parent=39 // pred_check
        %p1743 = pneg %p141
      $region42: #{mono_sceneflow_decoder_lstm.10} parent=39 // pred_check_branch
        %1745 = sbr.rel (%p1743) target = $region44
      $region43: #{mono_sceneflow_decoder_lstm.10} parent=39 // pred_region
        %s1746 = smul.u32 12, %s23
        %s1747 = smul.u32 2, %s24
        %p1748 = scmp.lt.s32.totalorder %s22, 1
        %s1749 = scalar_select %p1748, %s22, 1
        %p1750 = scmp.lt.s32.totalorder %s1746, 11
        %s1751 = scalar_select %p1750, %s1746, 11
        %p1752 = scmp.lt.s32.totalorder %s1747, 1
        %s1753 = scalar_select %p1752, %s1747, 1
        %s1754 = smul.addr %s1751, 2
        %s1755 = sadd.s32 %s1753, %s1754
        %s1756 = smul.addr %s1749, 24
        %s1757 = sadd.s32 %s1755, %s1756
        %s1758 = smul.addr %s1757, 8
        %s1759 = scalar_lea.vmem %s3, %s1758
      $region44: #{mono_sceneflow_decoder_lstm.10} parent=39 // pred_fallthru
        _
    $region40: #{mono_sceneflow_decoder_lstm.10} parent=5 // pred_fallthru
      _
  $region6: #{mono_sceneflow_decoder_lstm.10} parent=0 // loop_footer
    %s13 = sadd.s32 1, %s9
  $region7: #{mono_sceneflow_decoder_lstm.10} parent=0 // loop_footer_branch
    %8 = sbr.rel target = $region3
  $region8: #{mono_sceneflow_decoder_lstm.10} parent=0 // loop_exit
    _

</llo_original>
